<compile_context>
chip_gen: v5e
topology: v5e:2x2
jax: 0.10.0
libtpu: 0.0.40
codegen_flags: <defaults>
</compile_context>

<pallas_src>
import functools

import jax
import jax.numpy as jnp
from jax.experimental import pallas as pl
from jax.experimental.pallas import tpu as pltpu

_LN_EPS = 1e-5


# --------------------- VMEM budgeting (generation aware) ---------------------

def _vmem_capacity_bytes():
    try:
        return int(pltpu.get_tpu_info().vmem_capacity_bytes)
    except Exception:
        return 64 << 20                     # conservative fallback (v7x VMEM)


_VMEM_CAP = _vmem_capacity_bytes()
_VMEM_LIMIT = int(min(max(_VMEM_CAP - (8 << 20), 32 << 20), 100 << 20))
_TILE_BUDGET = max(4 << 20, _VMEM_LIMIT // 4)


def _compiler_params(semantics):
    return pltpu.CompilerParams(dimension_semantics=semantics,
                                vmem_limit_bytes=_VMEM_LIMIT)


def _pick_tm(M, row_f32_elems, budget_bytes=_TILE_BUDGET):
    """Row tile for the token-parallel tail kernel: the largest tile that
    (a) divides M, (b) keeps the double-buffered activations inside the VMEM
    budget and (c) leaves >=2 grid steps when M is large (feeds both v7x
    TensorCores; negligible extra cost on single-TC v5e / v6e)."""
    tm = M
    if M >= 512 and M % 16 == 0:
        tm = M // 2
    while tm > 8 and 2 * tm * row_f32_elems * 4 > budget_bytes:
        nt = tm // 2
        if nt % 8 != 0 or M % nt != 0:
            break
        tm = nt
    return tm


def _layernorm(y, g, b, eps=_LN_EPS):
    mu = jnp.mean(y, axis=-1, keepdims=True)
    var = jnp.mean(jnp.square(y - mu), axis=-1, keepdims=True)
    return (y - mu) * jax.lax.rsqrt(var + eps) * g + b


# ------------------------------ Pallas kernels ------------------------------

def _attn_half_kernel(x_ref, w_ref, b_ref, o_ref, *, heads, scale):
    """Fused qkv-projection + batched multi-head softmax attention for one half
    of the channels, one window / stripe per grid step (gathered by BlockSpec).

    x_ref : (wh, ww, C)   window of tokens (full channel dim), f32
    w_ref : (C, 3*Ch)     qkv weight columns of this half, bf16
    b_ref : (1, 3*Ch)     qkv bias of this half, f32
    o_ref : (wh, ww, Ch)  attention output of this half, f32
    """
    wh, ww, C = x_ref.shape
    T = wh * ww
    Ch = w_ref.shape[1] // 3
    d = Ch // heads

    x = x_ref[...].reshape(T, C).astype(jnp.bfloat16)
    qkv = jnp.dot(x, w_ref[...], preferred_element_type=jnp.float32) + b_ref[...]

    # fold the softmax scale into q (cheaper than scaling the (T,T) scores)
    q = (qkv[:, 0 * Ch:1 * Ch] * scale).reshape(T, heads, d)
    k = qkv[:, 1 * Ch:2 * Ch].reshape(T, heads, d)
    v = qkv[:, 2 * Ch:3 * Ch].reshape(T, heads, d)
    q = jnp.transpose(q, (1, 0, 2)).astype(jnp.bfloat16)     # (heads, T, d)
    k = jnp.transpose(k, (1, 0, 2)).astype(jnp.bfloat16)
    v = jnp.transpose(v, (1, 0, 2)).astype(jnp.bfloat16)

    # single batched matmul over heads (no per-head python loop / lane concat)
    s = jnp.einsum("htd,hsd->hts", q, k, preferred_element_type=jnp.float32)
    s = s - jnp.max(s, axis=-1, keepdims=True)
    p = jnp.exp(s)
    l = jnp.sum(p, axis=-1, keepdims=True)                    # (heads, T, 1)
    o = jnp.einsum("hts,hsd->htd", p.astype(jnp.bfloat16), v,
                   preferred_element_type=jnp.float32)
    # deferred softmax denominator: reciprocal on the EUP, applied to (T,d) work
    o = o * pl.reciprocal(l, approx=True)
    o = jnp.transpose(o, (1, 0, 2))                            # (T, heads, d)
    o_ref[...] = o.reshape(wh, ww, heads * d).astype(o_ref.dtype)


def _block_tail_kernel(aw_ref, as_ref, x_ref, wpw_ref, wps_ref, bp_ref,
                       g1_ref, bt1_ref, w1_ref, b1_ref, w2_ref, b2_ref,
                       g2_ref, bt2_ref, o_ref, *, res_scale):
    """Everything after attention in one kernel: out-projection of the two
    channel halves (concat(a_w, a_s) @ W == a_w @ W[:Ch] + a_s @ W[Ch:], so the
    halves are never concatenated in HBM) + post-LN + residual, then the MLP
    (fc1 + GELU + fc2, hidden stays in VMEM) + post-LN + residual."""
    x = x_ref[...].astype(jnp.float32)

    y = jnp.dot(aw_ref[...].astype(jnp.bfloat16), wpw_ref[...],
                preferred_element_type=jnp.float32)
    y = y + jnp.dot(as_ref[...].astype(jnp.bfloat16), wps_ref[...],
                    preferred_element_type=jnp.float32)
    y = y + bp_ref[...]
    y = _layernorm(y, g1_ref[...], bt1_ref[...])
    x = x + res_scale * y

    h = jnp.dot(x.astype(jnp.bfloat16), w1_ref[...],
                preferred_element_type=jnp.float32) + b1_ref[...]
    # TODO(synk): PyTorch nn.GELU default is exact erf; tanh approximation here.
    h = jax.nn.gelu(h, approximate=True)
    y = jnp.dot(h.astype(jnp.bfloat16), w2_ref[...],
                preferred_element_type=jnp.float32) + b2_ref[...]
    y = _layernorm(y, g2_ref[...], bt2_ref[...])
    o_ref[...] = (x + res_scale * y).astype(o_ref.dtype)


def _conv3x3_res_kernel(xp_ref, x0_ref, w_ref, b_ref, o_ref, *, H, W, C):
    """3x3 conv + stage residual for one image.

    The 9 im2col taps are sliced from the padded image already in VMEM and
    accumulated as 9 bf16 matmuls (no 9C-wide lane concat, no HBM im2col).

    xp_ref : (H+2, W+2, C)  zero-padded NHWC image, bf16
    x0_ref : (H*W, C)       stage input (residual), f32
    w_ref  : (9*C, C)       conv weights, tap-major (tap = ky*3 + kx), bf16
    b_ref  : (1, C)         conv bias, f32
    o_ref  : (H*W, C)
    """
    # TODO(synk): for very large images, tile over output rows with a 2-row halo
    #             so the padded image does not have to fit VMEM whole (v7x).
    xp = xp_ref[...]
    acc = jnp.zeros((H * W, C), jnp.float32)
    t = 0
    for dy in range(3):
        for dx in range(3):
            tap = xp[dy:dy + H, dx:dx + W, :].reshape(H * W, C)
            acc = acc + jnp.dot(tap, w_ref[t * C:(t + 1) * C, :],
                                preferred_element_type=jnp.float32)
            t += 1
    y = acc + b_ref[...]
    o_ref[...] = (x0_ref[...].astype(jnp.float32) + y).astype(o_ref.dtype)


# --------------------------- pallas_call wrappers ---------------------------

def pallas_attn_half(x_img, w_half, b_half, heads, wh, ww):
    """x_img: (B, H, W, C) -> (B, H, W, Ch); windows gathered by BlockSpec."""
    B, H, W, C = x_img.shape
    Ch = w_half.shape[1] // 3
    d = Ch // heads
    return pl.pallas_call(
        functools.partial(_attn_half_kernel, heads=heads,
                          scale=1.0 / (float(d) ** 0.5)),
        out_shape=jax.ShapeDtypeStruct((B, H, W, Ch), x_img.dtype),
        grid=(B, H // wh, W // ww),
        in_specs=[
            pl.BlockSpec((None, wh, ww, C), lambda b, i, j: (b, i, j, 0)),
            pl.BlockSpec((C, 3 * Ch), lambda b, i, j: (0, 0)),
            pl.BlockSpec((1, 3 * Ch), lambda b, i, j: (0, 0)),
        ],
        out_specs=pl.BlockSpec((None, wh, ww, Ch), lambda b, i, j: (b, i, j, 0)),
        compiler_params=_compiler_params(("parallel", "parallel", "parallel")),
    )(x_img, w_half, b_half)


def pallas_block_tail(aw2d, as2d, x2d, p, res_scale=1.0):
    """(attn_window_half, attn_stripe_half, x) -> x + LN(proj) -> + LN(MLP)."""
    M, C = x2d.shape
    Ch = aw2d.shape[1]
    hidden = p["w_fc1"].shape[1]
    tm = _pick_tm(M, row_f32_elems=2 * Ch + 3 * C + hidden)

    return pl.pallas_call(
        functools.partial(_block_tail_kernel, res_scale=res_scale),
        out_shape=jax.ShapeDtypeStruct((M, C), x2d.dtype),
        grid=(M // tm,),
        in_specs=[
            pl.BlockSpec((tm, Ch), lambda i: (i, 0)),        # window-attn half
            pl.BlockSpec((tm, Ch), lambda i: (i, 0)),        # stripe-attn half
            pl.BlockSpec((tm, C), lambda i: (i, 0)),         # x (residual)
            pl.BlockSpec((Ch, C), lambda i: (0, 0)),         # w_proj rows [:Ch]
            pl.BlockSpec((Ch, C), lambda i: (0, 0)),         # w_proj rows [Ch:]
            pl.BlockSpec((1, C), lambda i: (0, 0)),          # b_proj
            pl.BlockSpec((1, C), lambda i: (0, 0)),          # gamma1
            pl.BlockSpec((1, C), lambda i: (0, 0)),          # beta1
            pl.BlockSpec((C, hidden), lambda i: (0, 0)),     # w_fc1
            pl.BlockSpec((1, hidden), lambda i: (0, 0)),     # b_fc1
            pl.BlockSpec((hidden, C), lambda i: (0, 0)),     # w_fc2
            pl.BlockSpec((1, C), lambda i: (0, 0)),          # b_fc2
            pl.BlockSpec((1, C), lambda i: (0, 0)),          # gamma2
            pl.BlockSpec((1, C), lambda i: (0, 0)),          # beta2
        ],
        out_specs=pl.BlockSpec((tm, C), lambda i: (i, 0)),
        compiler_params=_compiler_params(("parallel",)),
    )(aw2d, as2d, x2d, p["w_proj_w"], p["w_proj_s"], p["b_proj"],
      p["g1"], p["bt1"], p["w_fc1"], p["b_fc1"], p["w_fc2"], p["b_fc2"],
      p["g2"], p["bt2"])


def pallas_conv3x3_residual(res_blc, x_blc, H, W, w9c, b):
    """out = conv3x3(res) + x   (stage residual fused into the conv kernel)."""
    B, L, C = res_blc.shape
    # pad + bf16 cast fuse into one XLA pass; halves the per-step DMA traffic
    xp = jnp.pad(res_blc.reshape(B, H, W, C),
                 ((0, 0), (1, 1), (1, 1), (0, 0))).astype(jnp.bfloat16)
    return pl.pallas_call(
        functools.partial(_conv3x3_res_kernel, H=H, W=W, C=C),
        out_shape=jax.ShapeDtypeStruct((B, L, C), res_blc.dtype),
        grid=(B,),
        in_specs=[
            pl.BlockSpec((None, H + 2, W + 2, C), lambda bi: (bi, 0, 0, 0)),
            pl.BlockSpec((None, L, C), lambda bi: (bi, 0, 0)),
            pl.BlockSpec((9 * C, C), lambda bi: (0, 0)),
            pl.BlockSpec((1, C), lambda bi: (0, 0)),
        ],
        out_specs=pl.BlockSpec((None, L, C), lambda bi: (bi, 0, 0)),
        compiler_params=_compiler_params(("parallel",)),
    )(xp, x_blc, w9c, b)


# ----------------------------- JAX glue (layout only) -----------------------------

def block_forward(x, p, H, W, window_size, stripe_size, heads_w, heads_s,
                  window_shift, stripe_type, res_scale=1.0):
    B, L, C = x.shape
    Ch = C // 2
    x_img = x.reshape(B, H, W, C)

    # ---- window-attention half (cyclic shift on even blocks) ----
    # TODO(synk): shifted windows use jnp.roll without the attention mask of the
    #             reference implementation.
    shift = window_size // 2 if window_shift else 0
    xw = jnp.roll(x_img, (-shift, -shift), axis=(1, 2)) if shift else x_img
    ow = pallas_attn_half(xw, p["w_qkv_win"], p["b_qkv_win"], heads_w,
                          window_size, window_size)            # (B, H, W, Ch)
    if shift:
        ow = jnp.roll(ow, (shift, shift), axis=(1, 2))

    # ---- stripe-attention half ('H' uses stripe_size, 'W' the reverse) ----
    # TODO(synk): anchor-based (avgpool) stripe attention not reproduced.
    sh, sw = stripe_size if stripe_type == "H" else stripe_size[::-1]
    o_str = pallas_attn_half(x_img, p["w_qkv_str"], p["b_qkv_str"], heads_s,
                             sh, sw)                            # (B, H, W, Ch)

    # ---- fused: proj (split) + LN1 + residual + MLP + LN2 + residual ----
    y = pallas_block_tail(ow.reshape(B * L, Ch), o_str.reshape(B * L, Ch),
                          x.reshape(B * L, C), p, res_scale)
    return y.reshape(B, L, C)


def transformer_stage(x, params, x_size, window_size, stripe_size, heads_w, heads_s):
    # forward: res = blocks(x); res = conv3x3(res); return res + x
    H, W = x_size
    res = x
    for i, bp in enumerate(params["blocks"]):
        res = block_forward(res, bp, H, W, window_size, stripe_size, heads_w, heads_s,
                            window_shift=(i % 2 == 0),
                            stripe_type="H" if i % 2 == 0 else "W",
                            res_scale=1.0)
    return pallas_conv3x3_residual(res, x, H, W, params["conv_w9"], params["conv_b"])


# ----------------------------- parameters -----------------------------

def init_params(key, dim, depth, hidden):
    def nrm(k, shape, std=0.02):
        return std * jax.random.normal(k, shape, jnp.float32)

    params = {"blocks": []}
    for _ in range(depth):
        key, k0, k1, k2, k3 = jax.random.split(key, 5)
        params["blocks"].append({
            "w_qkv": nrm(k0, (dim, 3 * dim)), "b_qkv": jnp.zeros((3 * dim,), jnp.float32),
            "w_proj": nrm(k1, (dim, dim)), "b_proj": jnp.zeros((dim,), jnp.float32),
            "g1": jnp.ones((dim,), jnp.float32), "bt1": jnp.zeros((dim,), jnp.float32),
            "w_fc1": nrm(k2, (dim, hidden)), "b_fc1": jnp.zeros((hidden,), jnp.float32),
            "w_fc2": nrm(k3, (hidden, dim)), "b_fc2": jnp.zeros((dim,), jnp.float32),
            "g2": jnp.ones((dim,), jnp.float32), "bt2": jnp.zeros((dim,), jnp.float32),
        })
    key, kc = jax.random.split(key)
    params["conv_w"] = nrm(kc, (9, dim, dim))          # (kh*kw, Cin, Cout)
    params["conv_b"] = jnp.zeros((dim,), jnp.float32)
    return params


def prepare_block_params(bp):
    """One-time prep: split the fused qkv / proj weights into window & stripe
    channel halves, cast matmul weights to bf16, reshape biases to (1, .)."""
    C = bp["w_qkv"].shape[0]
    Ch = C // 2
    w_qkv, b_qkv = bp["w_qkv"], bp["b_qkv"]

    def cols(lo, hi):
        w = jnp.concatenate([w_qkv[:, lo:hi], w_qkv[:, C + lo:C + hi],
                             w_qkv[:, 2 * C + lo:2 * C + hi]], axis=1)
        b = jnp.concatenate([b_qkv[lo:hi], b_qkv[C + lo:C + hi],
                             b_qkv[2 * C + lo:2 * C + hi]])
        return w.astype(jnp.bfloat16), b.reshape(1, -1)

    w_win, b_win = cols(0, Ch)
    w_str, b_str = cols(Ch, C)
    return {
        "w_qkv_win": w_win, "b_qkv_win": b_win,
        "w_qkv_str": w_str, "b_qkv_str": b_str,
        "w_proj_w": bp["w_proj"][:Ch, :].astype(jnp.bfloat16),
        "w_proj_s": bp["w_proj"][Ch:, :].astype(jnp.bfloat16),
        "b_proj": bp["b_proj"].reshape(1, -1),
        "g1": bp["g1"].reshape(1, -1), "bt1": bp["bt1"].reshape(1, -1),
        "w_fc1": bp["w_fc1"].astype(jnp.bfloat16), "b_fc1": bp["b_fc1"].reshape(1, -1),
        "w_fc2": bp["w_fc2"].astype(jnp.bfloat16), "b_fc2": bp["b_fc2"].reshape(1, -1),
        "g2": bp["g2"].reshape(1, -1), "bt2": bp["bt2"].reshape(1, -1),
    }


def prepare_stage_params(params):
    C = params["conv_w"].shape[1]
    return {
        "blocks": [prepare_block_params(bp) for bp in params["blocks"]],
        "conv_w9": params["conv_w"].reshape(9 * C, C).astype(jnp.bfloat16),
        "conv_b": params["conv_b"].reshape(1, -1),
    }


# ----------------------------- main -----------------------------

if __name__ == "__main__":
    B, dim, H, W = 2, 32, 16, 16
    depth = 2
    heads_w, heads_s = 2, 2
    window_size = 8
    stripe_size = (8, 8)
    mlp_ratio = 2.0

    key = jax.random.PRNGKey(0)
    key, kx = jax.random.split(key)
    x = jax.random.normal(kx, (B, H * W, dim), jnp.float32)
    params = prepare_stage_params(init_params(key, dim, depth, int(dim * mlp_ratio)))

    stage_fn = jax.jit(functools.partial(
        transformer_stage,
        x_size=(H, W),
        window_size=window_size,
        stripe_size=stripe_size,
        heads_w=heads_w,
        heads_s=heads_s,
    ))

    out = jax.block_until_ready(stage_fn(x, params))
    assert out.shape == (B, H * W, dim), out.shape
    assert bool(jnp.all(jnp.isfinite(out)))
    print("KERNEL_OK")
</pallas_src>

<mosaic_0001>
module attributes {stable_mosaic.version = 11 : i64} {
  func.func @_attn_half_kernel(%arg0: i32, %arg1: i32, %arg2: i32, %arg3: memref<1x8x8x32xf32, #tpu.memory_space<vmem>>, %arg4: memref<32x48xbf16, #tpu.memory_space<vmem>>, %arg5: memref<1x48xf32, #tpu.memory_space<vmem>>, %arg6: memref<1x8x8x16xf32, #tpu.memory_space<vmem>>) attributes {dimension_semantics = [#tpu.dimension_semantics<parallel>, #tpu.dimension_semantics<parallel>, #tpu.dimension_semantics<parallel>], iteration_bounds = array<i64: 2, 2, 2>, scalar_prefetch = 0 : i64, scratch_operands = 0 : i64, tpu.core_type = #tpu.core_type<tc>, window_params = [{transform_indices = @transform_0, window_bounds = array<i64: 1, 8, 8, 32>}, {pipeline_mode = #tpu.pipeline_mode<synchronous>, transform_indices = @transform_1, window_bounds = array<i64: 32, 48>}, {pipeline_mode = #tpu.pipeline_mode<synchronous>, transform_indices = @transform_2, window_bounds = array<i64: 1, 48>}, {transform_indices = @transform_3, window_bounds = array<i64: 1, 8, 8, 16>}]} {
    %c0 = arith.constant 0 : index
    %c0_0 = arith.constant 0 : index
    %c0_1 = arith.constant 0 : index
    %c0_2 = arith.constant 0 : index
    %0 = vector.load %arg3[%c0, %c0_0, %c0_1, %c0_2] : memref<1x8x8x32xf32, #tpu.memory_space<vmem>>, vector<1x8x8x32xf32>
    %1 = vector.shape_cast %0 : vector<1x8x8x32xf32> to vector<8x8x32xf32>
    %2 = vector.shape_cast %1 : vector<8x8x32xf32> to vector<64x32xf32>
    %3 = arith.truncf %2 : vector<64x32xf32> to vector<64x32xbf16>
    %c0_3 = arith.constant 0 : index
    %c0_4 = arith.constant 0 : index
    %4 = vector.load %arg4[%c0_3, %c0_4] : memref<32x48xbf16, #tpu.memory_space<vmem>>, vector<32x48xbf16>
    %cst = arith.constant dense<0.000000e+00> : vector<64x48xf32>
    %5 = tpu.matmul %3, %4, %cst {dimension_numbers = #tpu.dot_dimension_numbers<[1], [0], [0], [1], [0, 0, 1, 1], [], []>} : vector<64x32xbf16>, vector<32x48xbf16>, vector<64x48xf32> -> vector<64x48xf32>
    %c0_5 = arith.constant 0 : index
    %c0_6 = arith.constant 0 : index
    %6 = vector.load %arg5[%c0_5, %c0_6] : memref<1x48xf32, #tpu.memory_space<vmem>>, vector<1x48xf32>
    %7 = vector.broadcast %6 : vector<1x48xf32> to vector<64x48xf32>
    %8 = arith.addf %5, %7 : vector<64x48xf32>
    %9 = vector.extract_strided_slice %8 {offsets = [0, 0], sizes = [64, 16], strides = [1, 1]} : vector<64x48xf32> to vector<64x16xf32>
    %cst_7 = arith.constant 0.353553385 : f32
    %10 = vector.broadcast %cst_7 : f32 to vector<64x16xf32>
    %11 = arith.mulf %9, %10 : vector<64x16xf32>
    %12 = vector.shape_cast %11 : vector<64x16xf32> to vector<64x2x8xf32>
    %13 = vector.extract_strided_slice %8 {offsets = [0, 16], sizes = [64, 16], strides = [1, 1]} : vector<64x48xf32> to vector<64x16xf32>
    %14 = vector.shape_cast %13 : vector<64x16xf32> to vector<64x2x8xf32>
    %15 = vector.extract_strided_slice %8 {offsets = [0, 32], sizes = [64, 16], strides = [1, 1]} : vector<64x48xf32> to vector<64x16xf32>
    %16 = vector.shape_cast %15 : vector<64x16xf32> to vector<64x2x8xf32>
    %17 = tpu.transpose %12, [1, 0, 2] : vector<64x2x8xf32> -> vector<2x64x8xf32>
    %18 = arith.truncf %17 : vector<2x64x8xf32> to vector<2x64x8xbf16>
    %19 = tpu.transpose %14, [1, 0, 2] : vector<64x2x8xf32> -> vector<2x64x8xf32>
    %20 = arith.truncf %19 : vector<2x64x8xf32> to vector<2x64x8xbf16>
    %21 = tpu.transpose %16, [1, 0, 2] : vector<64x2x8xf32> -> vector<2x64x8xf32>
    %22 = arith.truncf %21 : vector<2x64x8xf32> to vector<2x64x8xbf16>
    "tpu.trace_start"() <{level = 10 : i32, message = "htd,hsd->hts"}> : () -> ()
    %cst_8 = arith.constant dense<0.000000e+00> : vector<2x64x64xf32>
    %23 = tpu.matmul %18, %20, %cst_8 {dimension_numbers = #tpu.dot_dimension_numbers<[2], [2], [1], [1], [0, 0, 0, 1, 1, 1], [0], [0]>} : vector<2x64x8xbf16>, vector<2x64x8xbf16>, vector<2x64x64xf32> -> vector<2x64x64xf32>
    "tpu.trace_stop"() : () -> ()
    %cst_9 = arith.constant dense<0xFF800000> : vector<2x64xf32>
    %24 = vector.multi_reduction <maximumf>, %23, %cst_9 [2] : vector<2x64x64xf32> to vector<2x64xf32>
    %25 = vector.shape_cast %24 : vector<2x64xf32> to vector<2x64x1xf32>
    %26 = vector.broadcast %25 : vector<2x64x1xf32> to vector<2x64x64xf32>
    %27 = arith.subf %23, %26 : vector<2x64x64xf32>
    %28 = math.exp %27 : vector<2x64x64xf32>
    %cst_10 = arith.constant dense<0.000000e+00> : vector<2x64xf32>
    %29 = vector.multi_reduction <add>, %28, %cst_10 [2] : vector<2x64x64xf32> to vector<2x64xf32>
    %30 = vector.shape_cast %29 : vector<2x64xf32> to vector<2x64x1xf32>
    %31 = arith.truncf %28 : vector<2x64x64xf32> to vector<2x64x64xbf16>
    "tpu.trace_start"() <{level = 10 : i32, message = "hts,hsd->htd"}> : () -> ()
    %cst_11 = arith.constant dense<0.000000e+00> : vector<2x64x8xf32>
    %32 = tpu.matmul %31, %22, %cst_11 {dimension_numbers = #tpu.dot_dimension_numbers<[2], [1], [1], [2], [0, 0, 0, 1, 1, 2], [0], [0]>} : vector<2x64x64xbf16>, vector<2x64x8xbf16>, vector<2x64x8xf32> -> vector<2x64x8xf32>
    "tpu.trace_stop"() : () -> ()
    %33 = tpu.reciprocal %30 {approx = true} : vector<2x64x1xf32> -> vector<2x64x1xf32>
    %34 = vector.broadcast %33 : vector<2x64x1xf32> to vector<2x64x8xf32>
    %35 = arith.mulf %32, %34 : vector<2x64x8xf32>
    %36 = tpu.transpose %35, [1, 0, 2] : vector<2x64x8xf32> -> vector<64x2x8xf32>
    %37 = vector.shape_cast %36 : vector<64x2x8xf32> to vector<8x8x16xf32>
    %c0_12 = arith.constant 0 : index
    %c0_13 = arith.constant 0 : index
    %c0_14 = arith.constant 0 : index
    %c0_15 = arith.constant 0 : index
    %38 = vector.load %arg6[%c0_12, %c0_13, %c0_14, %c0_15] : memref<1x8x8x16xf32, #tpu.memory_space<vmem>>, vector<1x8x8x16xf32>
    %39 = vector.shape_cast %38 : vector<1x8x8x16xf32> to vector<8x8x16xf32>
    %40 = vector.shape_cast %37 : vector<8x8x16xf32> to vector<1x8x8x16xf32>
    tpu.vector_store %arg6[%c0_12, %c0_13, %c0_14, %c0_15], %40 {strides = array<i32>} : memref<1x8x8x16xf32, #tpu.memory_space<vmem>>, vector<1x8x8x16xf32>,
    return
  }
  func.func @transform_0(%arg0: i32, %arg1: i32, %arg2: i32) -> (i32, i32, i32, i32) {
    %c0_i32 = arith.constant 0 : i32
    %c0_i32_0 = arith.constant 0 : i32
    return %arg0, %arg1, %arg2, %c0_i32 : i32, i32, i32, i32
  }
  func.func @transform_1(%arg0: i32, %arg1: i32, %arg2: i32) -> (i32, i32) {
    %c0_i32 = arith.constant 0 : i32
    %c0_i32_0 = arith.constant 0 : i32
    %c0_i32_1 = arith.constant 0 : i32
    return %c0_i32, %c0_i32_0 : i32, i32
  }
  func.func @transform_2(%arg0: i32, %arg1: i32, %arg2: i32) -> (i32, i32) {
    %c0_i32 = arith.constant 0 : i32
    %c0_i32_0 = arith.constant 0 : i32
    %c0_i32_1 = arith.constant 0 : i32
    return %c0_i32, %c0_i32_0 : i32, i32
  }
  func.func @transform_3(%arg0: i32, %arg1: i32, %arg2: i32) -> (i32, i32, i32, i32) {
    %c0_i32 = arith.constant 0 : i32
    %c0_i32_0 = arith.constant 0 : i32
    return %arg0, %arg1, %arg2, %c0_i32 : i32, i32, i32, i32
  }
}

module attributes {stable_mosaic.version = 11 : i64} {
  func.func @_block_tail_kernel(%arg0: i32, %arg1: memref<256x16xf32, #tpu.memory_space<vmem>>, %arg2: memref<256x16xf32, #tpu.memory_space<vmem>>, %arg3: memref<256x32xf32, #tpu.memory_space<vmem>>, %arg4: memref<16x32xbf16, #tpu.memory_space<vmem>>, %arg5: memref<16x32xbf16, #tpu.memory_space<vmem>>, %arg6: memref<1x32xf32, #tpu.memory_space<vmem>>, %arg7: memref<1x32xf32, #tpu.memory_space<vmem>>, %arg8: memref<1x32xf32, #tpu.memory_space<vmem>>, %arg9: memref<32x64xbf16, #tpu.memory_space<vmem>>, %arg10: memref<1x64xf32, #tpu.memory_space<vmem>>, %arg11: memref<64x32xbf16, #tpu.memory_space<vmem>>, %arg12: memref<1x32xf32, #tpu.memory_space<vmem>>, %arg13: memref<1x32xf32, #tpu.memory_space<vmem>>, %arg14: memref<1x32xf32, #tpu.memory_space<vmem>>, %arg15: memref<256x32xf32, #tpu.memory_space<vmem>>) attributes {dimension_semantics = [#tpu.dimension_semantics<parallel>], iteration_bounds = array<i64: 2>, scalar_prefetch = 0 : i64, scratch_operands = 0 : i64, tpu.core_type = #tpu.core_type<tc>, window_params = [{transform_indices = @transform_0, window_bounds = array<i64: 256, 16>}, {transform_indices = @transform_1, window_bounds = array<i64: 256, 16>}, {transform_indices = @transform_2, window_bounds = array<i64: 256, 32>}, {pipeline_mode = #tpu.pipeline_mode<synchronous>, transform_indices = @transform_3, window_bounds = array<i64: 16, 32>}, {pipeline_mode = #tpu.pipeline_mode<synchronous>, transform_indices = @transform_4, window_bounds = array<i64: 16, 32>}, {pipeline_mode = #tpu.pipeline_mode<synchronous>, transform_indices = @transform_5, window_bounds = array<i64: 1, 32>}, {pipeline_mode = #tpu.pipeline_mode<synchronous>, transform_indices = @transform_6, window_bounds = array<i64: 1, 32>}, {pipeline_mode = #tpu.pipeline_mode<synchronous>, transform_indices = @transform_7, window_bounds = array<i64: 1, 32>}, {pipeline_mode = #tpu.pipeline_mode<synchronous>, transform_indices = @transform_8, window_bounds = array<i64: 32, 64>}, {pipeline_mode = #tpu.pipeline_mode<synchronous>, transform_indices = @transform_9, window_bounds = array<i64: 1, 64>}, {pipeline_mode = #tpu.pipeline_mode<synchronous>, transform_indices = @transform_10, window_bounds = array<i64: 64, 32>}, {pipeline_mode = #tpu.pipeline_mode<synchronous>, transform_indices = @transform_11, window_bounds = array<i64: 1, 32>}, {pipeline_mode = #tpu.pipeline_mode<synchronous>, transform_indices = @transform_12, window_bounds = array<i64: 1, 32>}, {pipeline_mode = #tpu.pipeline_mode<synchronous>, transform_indices = @transform_13, window_bounds = array<i64: 1, 32>}, {transform_indices = @transform_14, window_bounds = array<i64: 256, 32>}]} {
    %c0 = arith.constant 0 : index
    %c0_0 = arith.constant 0 : index
    %0 = vector.load %arg3[%c0, %c0_0] : memref<256x32xf32, #tpu.memory_space<vmem>>, vector<256x32xf32>
    %c0_1 = arith.constant 0 : index
    %c0_2 = arith.constant 0 : index
    %1 = vector.load %arg1[%c0_1, %c0_2] : memref<256x16xf32, #tpu.memory_space<vmem>>, vector<256x16xf32>
    %2 = arith.truncf %1 : vector<256x16xf32> to vector<256x16xbf16>
    %c0_3 = arith.constant 0 : index
    %c0_4 = arith.constant 0 : index
    %3 = vector.load %arg4[%c0_3, %c0_4] : memref<16x32xbf16, #tpu.memory_space<vmem>>, vector<16x32xbf16>
    %cst = arith.constant dense<0.000000e+00> : vector<256x32xf32>
    %4 = tpu.matmul %2, %3, %cst {dimension_numbers = #tpu.dot_dimension_numbers<[1], [0], [0], [1], [0, 0, 1, 1], [], []>} : vector<256x16xbf16>, vector<16x32xbf16>, vector<256x32xf32> -> vector<256x32xf32>
    %c0_5 = arith.constant 0 : index
    %c0_6 = arith.constant 0 : index
    %5 = vector.load %arg2[%c0_5, %c0_6] : memref<256x16xf32, #tpu.memory_space<vmem>>, vector<256x16xf32>
    %6 = arith.truncf %5 : vector<256x16xf32> to vector<256x16xbf16>
    %c0_7 = arith.constant 0 : index
    %c0_8 = arith.constant 0 : index
    %7 = vector.load %arg5[%c0_7, %c0_8] : memref<16x32xbf16, #tpu.memory_space<vmem>>, vector<16x32xbf16>
    %cst_9 = arith.constant dense<0.000000e+00> : vector<256x32xf32>
    %8 = tpu.matmul %6, %7, %cst_9 {dimension_numbers = #tpu.dot_dimension_numbers<[1], [0], [0], [1], [0, 0, 1, 1], [], []>} : vector<256x16xbf16>, vector<16x32xbf16>, vector<256x32xf32> -> vector<256x32xf32>
    %9 = arith.addf %4, %8 : vector<256x32xf32>
    %c0_10 = arith.constant 0 : index
    %c0_11 = arith.constant 0 : index
    %10 = vector.load %arg6[%c0_10, %c0_11] : memref<1x32xf32, #tpu.memory_space<vmem>>, vector<1x32xf32>
    %11 = vector.broadcast %10 : vector<1x32xf32> to vector<256x32xf32>
    %12 = arith.addf %9, %11 : vector<256x32xf32>
    %c0_12 = arith.constant 0 : index
    %c0_13 = arith.constant 0 : index
    %13 = vector.load %arg7[%c0_12, %c0_13] : memref<1x32xf32, #tpu.memory_space<vmem>>, vector<1x32xf32>
    %c0_14 = arith.constant 0 : index
    %c0_15 = arith.constant 0 : index
    %14 = vector.load %arg8[%c0_14, %c0_15] : memref<1x32xf32, #tpu.memory_space<vmem>>, vector<1x32xf32>
    %cst_16 = arith.constant dense<0.000000e+00> : vector<256xf32>
    %15 = vector.multi_reduction <add>, %12, %cst_16 [1] : vector<256x32xf32> to vector<256xf32>
    %16 = vector.shape_cast %15 : vector<256xf32> to vector<256x1xf32>
    %cst_17 = arith.constant 3.200000e+01 : f32
    %17 = vector.broadcast %cst_17 : f32 to vector<256x1xf32>
    %18 = arith.divf %16, %17 : vector<256x1xf32>
    %19 = vector.broadcast %18 : vector<256x1xf32> to vector<256x32xf32>
    %20 = arith.subf %12, %19 : vector<256x32xf32>
    %21 = arith.mulf %20, %20 : vector<256x32xf32>
    %cst_18 = arith.constant dense<0.000000e+00> : vector<256xf32>
    %22 = vector.multi_reduction <add>, %21, %cst_18 [1] : vector<256x32xf32> to vector<256xf32>
    %23 = vector.shape_cast %22 : vector<256xf32> to vector<256x1xf32>
    %cst_19 = arith.constant 3.200000e+01 : f32
    %24 = vector.broadcast %cst_19 : f32 to vector<256x1xf32>
    %25 = arith.divf %23, %24 : vector<256x1xf32>
    %26 = vector.broadcast %18 : vector<256x1xf32> to vector<256x32xf32>
    %27 = arith.subf %12, %26 : vector<256x32xf32>
    %cst_20 = arith.constant 9.99999974E-6 : f32
    %28 = vector.broadcast %cst_20 : f32 to vector<256x1xf32>
    %29 = arith.addf %25, %28 : vector<256x1xf32>
    %30 = math.rsqrt %29 : vector<256x1xf32>
    %31 = vector.broadcast %30 : vector<256x1xf32> to vector<256x32xf32>
    %32 = arith.mulf %27, %31 : vector<256x32xf32>
    %33 = vector.broadcast %13 : vector<1x32xf32> to vector<256x32xf32>
    %34 = arith.mulf %32, %33 : vector<256x32xf32>
    %35 = vector.broadcast %14 : vector<1x32xf32> to vector<256x32xf32>
    %36 = arith.addf %34, %35 : vector<256x32xf32>
    %cst_21 = arith.constant 1.000000e+00 : f32
    %37 = vector.broadcast %cst_21 : f32 to vector<256x32xf32>
    %38 = arith.mulf %37, %36 : vector<256x32xf32>
    %39 = arith.addf %0, %38 : vector<256x32xf32>
    %40 = arith.truncf %39 : vector<256x32xf32> to vector<256x32xbf16>
    %c0_22 = arith.constant 0 : index
    %c0_23 = arith.constant 0 : index
    %41 = vector.load %arg9[%c0_22, %c0_23] : memref<32x64xbf16, #tpu.memory_space<vmem>>, vector<32x64xbf16>
    %cst_24 = arith.constant dense<0.000000e+00> : vector<256x64xf32>
    %42 = tpu.matmul %40, %41, %cst_24 {dimension_numbers = #tpu.dot_dimension_numbers<[1], [0], [0], [1], [0, 0, 1, 1], [], []>} : vector<256x32xbf16>, vector<32x64xbf16>, vector<256x64xf32> -> vector<256x64xf32>
    %c0_25 = arith.constant 0 : index
    %c0_26 = arith.constant 0 : index
    %43 = vector.load %arg10[%c0_25, %c0_26] : memref<1x64xf32, #tpu.memory_space<vmem>>, vector<1x64xf32>
    %44 = vector.broadcast %43 : vector<1x64xf32> to vector<256x64xf32>
    %45 = arith.addf %42, %44 : vector<256x64xf32>
    %46 = arith.mulf %45, %45 : vector<256x64xf32>
    %47 = arith.mulf %45, %46 : vector<256x64xf32>
    %cst_27 = arith.constant 4.471500e-02 : f32
    %48 = vector.broadcast %cst_27 : f32 to vector<256x64xf32>
    %49 = arith.mulf %48, %47 : vector<256x64xf32>
    %50 = arith.addf %45, %49 : vector<256x64xf32>
    %cst_28 = arith.constant 0.797884583 : f32
    %51 = vector.broadcast %cst_28 : f32 to vector<256x64xf32>
    %52 = arith.mulf %51, %50 : vector<256x64xf32>
    %53 = math.tanh %52 : vector<256x64xf32>
    %cst_29 = arith.constant 1.000000e+00 : f32
    %54 = vector.broadcast %cst_29 : f32 to vector<256x64xf32>
    %55 = arith.addf %54, %53 : vector<256x64xf32>
    %cst_30 = arith.constant 5.000000e-01 : f32
    %56 = vector.broadcast %cst_30 : f32 to vector<256x64xf32>
    %57 = arith.mulf %56, %55 : vector<256x64xf32>
    %58 = arith.mulf %45, %57 : vector<256x64xf32>
    %59 = arith.truncf %58 : vector<256x64xf32> to vector<256x64xbf16>
    %c0_31 = arith.constant 0 : index
    %c0_32 = arith.constant 0 : index
    %60 = vector.load %arg11[%c0_31, %c0_32] : memref<64x32xbf16, #tpu.memory_space<vmem>>, vector<64x32xbf16>
    %cst_33 = arith.constant dense<0.000000e+00> : vector<256x32xf32>
    %61 = tpu.matmul %59, %60, %cst_33 {dimension_numbers = #tpu.dot_dimension_numbers<[1], [0], [0], [1], [0, 0, 1, 1], [], []>} : vector<256x64xbf16>, vector<64x32xbf16>, vector<256x32xf32> -> vector<256x32xf32>
    %c0_34 = arith.constant 0 : index
    %c0_35 = arith.constant 0 : index
    %62 = vector.load %arg12[%c0_34, %c0_35] : memref<1x32xf32, #tpu.memory_space<vmem>>, vector<1x32xf32>
    %63 = vector.broadcast %62 : vector<1x32xf32> to vector<256x32xf32>
    %64 = arith.addf %61, %63 : vector<256x32xf32>
    %c0_36 = arith.constant 0 : index
    %c0_37 = arith.constant 0 : index
    %65 = vector.load %arg13[%c0_36, %c0_37] : memref<1x32xf32, #tpu.memory_space<vmem>>, vector<1x32xf32>
    %c0_38 = arith.constant 0 : index
    %c0_39 = arith.constant 0 : index
    %66 = vector.load %arg14[%c0_38, %c0_39] : memref<1x32xf32, #tpu.memory_space<vmem>>, vector<1x32xf32>
    %cst_40 = arith.constant dense<0.000000e+00> : vector<256xf32>
    %67 = vector.multi_reduction <add>, %64, %cst_40 [1] : vector<256x32xf32> to vector<256xf32>
    %68 = vector.shape_cast %67 : vector<256xf32> to vector<256x1xf32>
    %cst_41 = arith.constant 3.200000e+01 : f32
    %69 = vector.broadcast %cst_41 : f32 to vector<256x1xf32>
    %70 = arith.divf %68, %69 : vector<256x1xf32>
    %71 = vector.broadcast %70 : vector<256x1xf32> to vector<256x32xf32>
    %72 = arith.subf %64, %71 : vector<256x32xf32>
    %73 = arith.mulf %72, %72 : vector<256x32xf32>
    %cst_42 = arith.constant dense<0.000000e+00> : vector<256xf32>
    %74 = vector.multi_reduction <add>, %73, %cst_42 [1] : vector<256x32xf32> to vector<256xf32>
    %75 = vector.shape_cast %74 : vector<256xf32> to vector<256x1xf32>
    %cst_43 = arith.constant 3.200000e+01 : f32
    %76 = vector.broadcast %cst_43 : f32 to vector<256x1xf32>
    %77 = arith.divf %75, %76 : vector<256x1xf32>
    %78 = vector.broadcast %70 : vector<256x1xf32> to vector<256x32xf32>
    %79 = arith.subf %64, %78 : vector<256x32xf32>
    %cst_44 = arith.constant 9.99999974E-6 : f32
    %80 = vector.broadcast %cst_44 : f32 to vector<256x1xf32>
    %81 = arith.addf %77, %80 : vector<256x1xf32>
    %82 = math.rsqrt %81 : vector<256x1xf32>
    %83 = vector.broadcast %82 : vector<256x1xf32> to vector<256x32xf32>
    %84 = arith.mulf %79, %83 : vector<256x32xf32>
    %85 = vector.broadcast %65 : vector<1x32xf32> to vector<256x32xf32>
    %86 = arith.mulf %84, %85 : vector<256x32xf32>
    %87 = vector.broadcast %66 : vector<1x32xf32> to vector<256x32xf32>
    %88 = arith.addf %86, %87 : vector<256x32xf32>
    %cst_45 = arith.constant 1.000000e+00 : f32
    %89 = vector.broadcast %cst_45 : f32 to vector<256x32xf32>
    %90 = arith.mulf %89, %88 : vector<256x32xf32>
    %91 = arith.addf %39, %90 : vector<256x32xf32>
    %c0_46 = arith.constant 0 : index
    %c0_47 = arith.constant 0 : index
    %92 = vector.load %arg15[%c0_46, %c0_47] : memref<256x32xf32, #tpu.memory_space<vmem>>, vector<256x32xf32>
    tpu.vector_store %arg15[%c0_46, %c0_47], %91 {strides = array<i32>} : memref<256x32xf32, #tpu.memory_space<vmem>>, vector<256x32xf32>,
    return
  }
  func.func @transform_0(%arg0: i32) -> (i32, i32) {
    %c0_i32 = arith.constant 0 : i32
    %c0_i32_0 = arith.constant 0 : i32
    return %arg0, %c0_i32 : i32, i32
  }
  func.func @transform_1(%arg0: i32) -> (i32, i32) {
    %c0_i32 = arith.constant 0 : i32
    %c0_i32_0 = arith.constant 0 : i32
    return %arg0, %c0_i32 : i32, i32
  }
  func.func @transform_2(%arg0: i32) -> (i32, i32) {
    %c0_i32 = arith.constant 0 : i32
    %c0_i32_0 = arith.constant 0 : i32
    return %arg0, %c0_i32 : i32, i32
  }
  func.func @transform_3(%arg0: i32) -> (i32, i32) {
    %c0_i32 = arith.constant 0 : i32
    %c0_i32_0 = arith.constant 0 : i32
    %c0_i32_1 = arith.constant 0 : i32
    return %c0_i32, %c0_i32_0 : i32, i32
  }
  func.func @transform_4(%arg0: i32) -> (i32, i32) {
    %c0_i32 = arith.constant 0 : i32
    %c0_i32_0 = arith.constant 0 : i32
    %c0_i32_1 = arith.constant 0 : i32
    return %c0_i32, %c0_i32_0 : i32, i32
  }
  func.func @transform_5(%arg0: i32) -> (i32, i32) {
    %c0_i32 = arith.constant 0 : i32
    %c0_i32_0 = arith.constant 0 : i32
    %c0_i32_1 = arith.constant 0 : i32
    return %c0_i32, %c0_i32_0 : i32, i32
  }
  func.func @transform_6(%arg0: i32) -> (i32, i32) {
    %c0_i32 = arith.constant 0 : i32
    %c0_i32_0 = arith.constant 0 : i32
    %c0_i32_1 = arith.constant 0 : i32
    return %c0_i32, %c0_i32_0 : i32, i32
  }
  func.func @transform_7(%arg0: i32) -> (i32, i32) {
    %c0_i32 = arith.constant 0 : i32
    %c0_i32_0 = arith.constant 0 : i32
    %c0_i32_1 = arith.constant 0 : i32
    return %c0_i32, %c0_i32_0 : i32, i32
  }
  func.func @transform_8(%arg0: i32) -> (i32, i32) {
    %c0_i32 = arith.constant 0 : i32
    %c0_i32_0 = arith.constant 0 : i32
    %c0_i32_1 = arith.constant 0 : i32
    return %c0_i32, %c0_i32_0 : i32, i32
  }
  func.func @transform_9(%arg0: i32) -> (i32, i32) {
    %c0_i32 = arith.constant 0 : i32
    %c0_i32_0 = arith.constant 0 : i32
    %c0_i32_1 = arith.constant 0 : i32
    return %c0_i32, %c0_i32_0 : i32, i32
  }
  func.func @transform_10(%arg0: i32) -> (i32, i32) {
    %c0_i32 = arith.constant 0 : i32
    %c0_i32_0 = arith.constant 0 : i32
    %c0_i32_1 = arith.constant 0 : i32
    return %c0_i32, %c0_i32_0 : i32, i32
  }
  func.func @transform_11(%arg0: i32) -> (i32, i32) {
    %c0_i32 = arith.constant 0 : i32
    %c0_i32_0 = arith.constant 0 : i32
    %c0_i32_1 = arith.constant 0 : i32
    return %c0_i32, %c0_i32_0 : i32, i32
  }
  func.func @transform_12(%arg0: i32) -> (i32, i32) {
    %c0_i32 = arith.constant 0 : i32
    %c0_i32_0 = arith.constant 0 : i32
    %c0_i32_1 = arith.constant 0 : i32
    return %c0_i32, %c0_i32_0 : i32, i32
  }
  func.func @transform_13(%arg0: i32) -> (i32, i32) {
    %c0_i32 = arith.constant 0 : i32
    %c0_i32_0 = arith.constant 0 : i32
    %c0_i32_1 = arith.constant 0 : i32
    return %c0_i32, %c0_i32_0 : i32, i32
  }
  func.func @transform_14(%arg0: i32) -> (i32, i32) {
    %c0_i32 = arith.constant 0 : i32
    %c0_i32_0 = arith.constant 0 : i32
    return %arg0, %c0_i32 : i32, i32
  }
}

module attributes {stable_mosaic.version = 11 : i64} {
  func.func @_conv3x3_res_kernel(%arg0: i32, %arg1: memref<1x18x18x32xbf16, #tpu.memory_space<vmem>>, %arg2: memref<1x256x32xf32, #tpu.memory_space<vmem>>, %arg3: memref<288x32xbf16, #tpu.memory_space<vmem>>, %arg4: memref<1x32xf32, #tpu.memory_space<vmem>>, %arg5: memref<1x256x32xf32, #tpu.memory_space<vmem>>) attributes {dimension_semantics = [#tpu.dimension_semantics<parallel>], iteration_bounds = array<i64: 2>, scalar_prefetch = 0 : i64, scratch_operands = 0 : i64, tpu.core_type = #tpu.core_type<tc>, window_params = [{transform_indices = @transform_0, window_bounds = array<i64: 1, 18, 18, 32>}, {transform_indices = @transform_1, window_bounds = array<i64: 1, 256, 32>}, {pipeline_mode = #tpu.pipeline_mode<synchronous>, transform_indices = @transform_2, window_bounds = array<i64: 288, 32>}, {pipeline_mode = #tpu.pipeline_mode<synchronous>, transform_indices = @transform_3, window_bounds = array<i64: 1, 32>}, {transform_indices = @transform_4, window_bounds = array<i64: 1, 256, 32>}]} {
    %c0 = arith.constant 0 : index
    %c0_0 = arith.constant 0 : index
    %c0_1 = arith.constant 0 : index
    %c0_2 = arith.constant 0 : index
    %0 = vector.load %arg1[%c0, %c0_0, %c0_1, %c0_2] : memref<1x18x18x32xbf16, #tpu.memory_space<vmem>>, vector<1x18x18x32xbf16>
    %1 = vector.shape_cast %0 : vector<1x18x18x32xbf16> to vector<18x18x32xbf16>
    %cst = arith.constant 0.000000e+00 : f32
    %2 = vector.broadcast %cst : f32 to vector<256x32xf32>
    %3 = vector.extract_strided_slice %1 {offsets = [0, 0, 0], sizes = [16, 16, 32], strides = [1, 1, 1]} : vector<18x18x32xbf16> to vector<16x16x32xbf16>
    %4 = vector.shape_cast %3 : vector<16x16x32xbf16> to vector<256x32xbf16>
    %c0_3 = arith.constant 0 : index
    %c0_4 = arith.constant 0 : index
    %5 = vector.load %arg3[%c0_3, %c0_4] : memref<288x32xbf16, #tpu.memory_space<vmem>>, vector<32x32xbf16>
    %cst_5 = arith.constant dense<0.000000e+00> : vector<256x32xf32>
    %6 = tpu.matmul %4, %5, %cst_5 {dimension_numbers = #tpu.dot_dimension_numbers<[1], [0], [0], [1], [0, 0, 1, 1], [], []>} : vector<256x32xbf16>, vector<32x32xbf16>, vector<256x32xf32> -> vector<256x32xf32>
    %7 = arith.addf %2, %6 : vector<256x32xf32>
    %8 = vector.extract_strided_slice %1 {offsets = [0, 1, 0], sizes = [16, 16, 32], strides = [1, 1, 1]} : vector<18x18x32xbf16> to vector<16x16x32xbf16>
    %9 = vector.shape_cast %8 : vector<16x16x32xbf16> to vector<256x32xbf16>
    %c32 = arith.constant 32 : index
    %c0_6 = arith.constant 0 : index
    %10 = vector.load %arg3[%c32, %c0_6] : memref<288x32xbf16, #tpu.memory_space<vmem>>, vector<32x32xbf16>
    %cst_7 = arith.constant dense<0.000000e+00> : vector<256x32xf32>
    %11 = tpu.matmul %9, %10, %cst_7 {dimension_numbers = #tpu.dot_dimension_numbers<[1], [0], [0], [1], [0, 0, 1, 1], [], []>} : vector<256x32xbf16>, vector<32x32xbf16>, vector<256x32xf32> -> vector<256x32xf32>
    %12 = arith.addf %7, %11 : vector<256x32xf32>
    %13 = vector.extract_strided_slice %1 {offsets = [0, 2, 0], sizes = [16, 16, 32], strides = [1, 1, 1]} : vector<18x18x32xbf16> to vector<16x16x32xbf16>
    %14 = vector.shape_cast %13 : vector<16x16x32xbf16> to vector<256x32xbf16>
    %c64 = arith.constant 64 : index
    %c0_8 = arith.constant 0 : index
    %15 = vector.load %arg3[%c64, %c0_8] : memref<288x32xbf16, #tpu.memory_space<vmem>>, vector<32x32xbf16>
    %cst_9 = arith.constant dense<0.000000e+00> : vector<256x32xf32>
    %16 = tpu.matmul %14, %15, %cst_9 {dimension_numbers = #tpu.dot_dimension_numbers<[1], [0], [0], [1], [0, 0, 1, 1], [], []>} : vector<256x32xbf16>, vector<32x32xbf16>, vector<256x32xf32> -> vector<256x32xf32>
    %17 = arith.addf %12, %16 : vector<256x32xf32>
    %18 = vector.extract_strided_slice %1 {offsets = [1, 0, 0], sizes = [16, 16, 32], strides = [1, 1, 1]} : vector<18x18x32xbf16> to vector<16x16x32xbf16>
    %19 = vector.shape_cast %18 : vector<16x16x32xbf16> to vector<256x32xbf16>
    %c96 = arith.constant 96 : index
    %c0_10 = arith.constant 0 : index
    %20 = vector.load %arg3[%c96, %c0_10] : memref<288x32xbf16, #tpu.memory_space<vmem>>, vector<32x32xbf16>
    %cst_11 = arith.constant dense<0.000000e+00> : vector<256x32xf32>
    %21 = tpu.matmul %19, %20, %cst_11 {dimension_numbers = #tpu.dot_dimension_numbers<[1], [0], [0], [1], [0, 0, 1, 1], [], []>} : vector<256x32xbf16>, vector<32x32xbf16>, vector<256x32xf32> -> vector<256x32xf32>
    %22 = arith.addf %17, %21 : vector<256x32xf32>
    %23 = vector.extract_strided_slice %1 {offsets = [1, 1, 0], sizes = [16, 16, 32], strides = [1, 1, 1]} : vector<18x18x32xbf16> to vector<16x16x32xbf16>
    %24 = vector.shape_cast %23 : vector<16x16x32xbf16> to vector<256x32xbf16>
    %c128 = arith.constant 128 : index
    %c0_12 = arith.constant 0 : index
    %25 = vector.load %arg3[%c128, %c0_12] : memref<288x32xbf16, #tpu.memory_space<vmem>>, vector<32x32xbf16>
    %cst_13 = arith.constant dense<0.000000e+00> : vector<256x32xf32>
    %26 = tpu.matmul %24, %25, %cst_13 {dimension_numbers = #tpu.dot_dimension_numbers<[1], [0], [0], [1], [0, 0, 1, 1], [], []>} : vector<256x32xbf16>, vector<32x32xbf16>, vector<256x32xf32> -> vector<256x32xf32>
    %27 = arith.addf %22, %26 : vector<256x32xf32>
    %28 = vector.extract_strided_slice %1 {offsets = [1, 2, 0], sizes = [16, 16, 32], strides = [1, 1, 1]} : vector<18x18x32xbf16> to vector<16x16x32xbf16>
    %29 = vector.shape_cast %28 : vector<16x16x32xbf16> to vector<256x32xbf16>
    %c160 = arith.constant 160 : index
    %c0_14 = arith.constant 0 : index
    %30 = vector.load %arg3[%c160, %c0_14] : memref<288x32xbf16, #tpu.memory_space<vmem>>, vector<32x32xbf16>
    %cst_15 = arith.constant dense<0.000000e+00> : vector<256x32xf32>
    %31 = tpu.matmul %29, %30, %cst_15 {dimension_numbers = #tpu.dot_dimension_numbers<[1], [0], [0], [1], [0, 0, 1, 1], [], []>} : vector<256x32xbf16>, vector<32x32xbf16>, vector<256x32xf32> -> vector<256x32xf32>
    %32 = arith.addf %27, %31 : vector<256x32xf32>
    %33 = vector.extract_strided_slice %1 {offsets = [2, 0, 0], sizes = [16, 16, 32], strides = [1, 1, 1]} : vector<18x18x32xbf16> to vector<16x16x32xbf16>
    %34 = vector.shape_cast %33 : vector<16x16x32xbf16> to vector<256x32xbf16>
    %c192 = arith.constant 192 : index
    %c0_16 = arith.constant 0 : index
    %35 = vector.load %arg3[%c192, %c0_16] : memref<288x32xbf16, #tpu.memory_space<vmem>>, vector<32x32xbf16>
    %cst_17 = arith.constant dense<0.000000e+00> : vector<256x32xf32>
    %36 = tpu.matmul %34, %35, %cst_17 {dimension_numbers = #tpu.dot_dimension_numbers<[1], [0], [0], [1], [0, 0, 1, 1], [], []>} : vector<256x32xbf16>, vector<32x32xbf16>, vector<256x32xf32> -> vector<256x32xf32>
    %37 = arith.addf %32, %36 : vector<256x32xf32>
    %38 = vector.extract_strided_slice %1 {offsets = [2, 1, 0], sizes = [16, 16, 32], strides = [1, 1, 1]} : vector<18x18x32xbf16> to vector<16x16x32xbf16>
    %39 = vector.shape_cast %38 : vector<16x16x32xbf16> to vector<256x32xbf16>
    %c224 = arith.constant 224 : index
    %c0_18 = arith.constant 0 : index
    %40 = vector.load %arg3[%c224, %c0_18] : memref<288x32xbf16, #tpu.memory_space<vmem>>, vector<32x32xbf16>
    %cst_19 = arith.constant dense<0.000000e+00> : vector<256x32xf32>
    %41 = tpu.matmul %39, %40, %cst_19 {dimension_numbers = #tpu.dot_dimension_numbers<[1], [0], [0], [1], [0, 0, 1, 1], [], []>} : vector<256x32xbf16>, vector<32x32xbf16>, vector<256x32xf32> -> vector<256x32xf32>
    %42 = arith.addf %37, %41 : vector<256x32xf32>
    %43 = vector.extract_strided_slice %1 {offsets = [2, 2, 0], sizes = [16, 16, 32], strides = [1, 1, 1]} : vector<18x18x32xbf16> to vector<16x16x32xbf16>
    %44 = vector.shape_cast %43 : vector<16x16x32xbf16> to vector<256x32xbf16>
    %c256 = arith.constant 256 : index
    %c0_20 = arith.constant 0 : index
    %45 = vector.load %arg3[%c256, %c0_20] : memref<288x32xbf16, #tpu.memory_space<vmem>>, vector<32x32xbf16>
    %cst_21 = arith.constant dense<0.000000e+00> : vector<256x32xf32>
    %46 = tpu.matmul %44, %45, %cst_21 {dimension_numbers = #tpu.dot_dimension_numbers<[1], [0], [0], [1], [0, 0, 1, 1], [], []>} : vector<256x32xbf16>, vector<32x32xbf16>, vector<256x32xf32> -> vector<256x32xf32>
    %47 = arith.addf %42, %46 : vector<256x32xf32>
    %c0_22 = arith.constant 0 : index
    %c0_23 = arith.constant 0 : index
    %48 = vector.load %arg4[%c0_22, %c0_23] : memref<1x32xf32, #tpu.memory_space<vmem>>, vector<1x32xf32>
    %49 = vector.broadcast %48 : vector<1x32xf32> to vector<256x32xf32>
    %50 = arith.addf %47, %49 : vector<256x32xf32>
    %c0_24 = arith.constant 0 : index
    %c0_25 = arith.constant 0 : index
    %c0_26 = arith.constant 0 : index
    %51 = vector.load %arg2[%c0_24, %c0_25, %c0_26] : memref<1x256x32xf32, #tpu.memory_space<vmem>>, vector<1x256x32xf32>
    %52 = vector.shape_cast %51 : vector<1x256x32xf32> to vector<256x32xf32>
    %53 = arith.addf %52, %50 : vector<256x32xf32>
    %c0_27 = arith.constant 0 : index
    %c0_28 = arith.constant 0 : index
    %c0_29 = arith.constant 0 : index
    %54 = vector.load %arg5[%c0_27, %c0_28, %c0_29] : memref<1x256x32xf32, #tpu.memory_space<vmem>>, vector<1x256x32xf32>
    %55 = vector.shape_cast %54 : vector<1x256x32xf32> to vector<256x32xf32>
    %56 = vector.shape_cast %53 : vector<256x32xf32> to vector<1x256x32xf32>
    tpu.vector_store %arg5[%c0_27, %c0_28, %c0_29], %56 {strides = array<i32>} : memref<1x256x32xf32, #tpu.memory_space<vmem>>, vector<1x256x32xf32>,
    return
  }
  func.func @transform_0(%arg0: i32) -> (i32, i32, i32, i32) {
    %c0_i32 = arith.constant 0 : i32
    %c0_i32_0 = arith.constant 0 : i32
    %c0_i32_1 = arith.constant 0 : i32
    %c0_i32_2 = arith.constant 0 : i32
    return %arg0, %c0_i32, %c0_i32_0, %c0_i32_1 : i32, i32, i32, i32
  }
  func.func @transform_1(%arg0: i32) -> (i32, i32, i32) {
    %c0_i32 = arith.constant 0 : i32
    %c0_i32_0 = arith.constant 0 : i32
    %c0_i32_1 = arith.constant 0 : i32
    return %arg0, %c0_i32, %c0_i32_0 : i32, i32, i32
  }
  func.func @transform_2(%arg0: i32) -> (i32, i32) {
    %c0_i32 = arith.constant 0 : i32
    %c0_i32_0 = arith.constant 0 : i32
    %c0_i32_1 = arith.constant 0 : i32
    return %c0_i32, %c0_i32_0 : i32, i32
  }
  func.func @transform_3(%arg0: i32) -> (i32, i32) {
    %c0_i32 = arith.constant 0 : i32
    %c0_i32_0 = arith.constant 0 : i32
    %c0_i32_1 = arith.constant 0 : i32
    return %c0_i32, %c0_i32_0 : i32, i32
  }
  func.func @transform_4(%arg0: i32) -> (i32, i32, i32) {
    %c0_i32 = arith.constant 0 : i32
    %c0_i32_0 = arith.constant 0 : i32
    %c0_i32_1 = arith.constant 0 : i32
    return %arg0, %c0_i32, %c0_i32_0 : i32, i32, i32
  }
}

</mosaic_0001>

<llo_original>
// kernel: transformer_stage.9
$region0: #{transformer_stage.9}
  #allocation0 [shape = 'u32[]', space=smem, size = 0x4, offset = 0x4, fixed_abs, tag = 'smem constant byte address 0x4 - core index']
  #allocation1 [shape = 'u32[72,128]{1,0:T(1,128)}', space=vmem, size = 0x9000, scoped, tag = 'internal scratch']
  %s0 = inlined_call_operand.vmem [shape: f32[512,16], index: 0, kind: input, shape index: {}]
  %s1 = inlined_call_operand.vmem [shape: f32[512,16], index: 1, kind: input, shape index: {}]
  %s2 = inlined_call_operand.vmem [shape: f32[512,32], index: 2, kind: input, shape index: {}]
  %s3 = inlined_call_operand.vmem [shape: bf16[16,32], index: 3, kind: input, shape index: {}]
  %s4 = inlined_call_operand.vmem [shape: bf16[16,32], index: 4, kind: input, shape index: {}]
  %s5 = inlined_call_operand.vmem [shape: f32[1,32], index: 5, kind: input, shape index: {}]
  %s6 = inlined_call_operand.vmem [shape: f32[1,32], index: 6, kind: input, shape index: {}]
  %s7 = inlined_call_operand.vmem [shape: f32[1,32], index: 7, kind: input, shape index: {}]
  %s8 = inlined_call_operand.vmem [shape: bf16[32,64], index: 8, kind: input, shape index: {}]
  %s9 = inlined_call_operand.vmem [shape: f32[1,64], index: 9, kind: input, shape index: {}]
  %s10 = inlined_call_operand.vmem [shape: bf16[64,32], index: 10, kind: input, shape index: {}]
  %s11 = inlined_call_operand.vmem [shape: f32[1,32], index: 11, kind: input, shape index: {}]
  %s12 = inlined_call_operand.vmem [shape: f32[1,32], index: 12, kind: input, shape index: {}]
  %s13 = inlined_call_operand.vmem [shape: f32[1,32], index: 13, kind: input, shape index: {}]
  %s14 = inlined_call_operand.vmem [shape: f32[512,32], index: 14, kind: output, shape index: {}]
  %s15 = sld [smem:[#allocation0]]
  $region89: #{transformer_stage.9} parent=0
    _
  %s17 = ssub.s32 1, %s15
  %s18 = scalar_select 0, %s17, %s15
  loop: start=0, step=1, limit=4
  $region2: #{transformer_stage.9} parent=0 // loop_pre_header
    _
  $region3: #{transformer_stage.9} parent=0 // loop_header
    %s20 = sphi 0, %s24
    %p21 = scmp.ge.s32.totalorder %s20, 4
    %s30 = sphi 0, %s32
    %s33 = sphi 0, %s30
    %s34 = sphi 0, %s33
    %s50 = sphi 0, %s34
    %s56 = sphi 0, %s58
    %s59 = sphi 0, %s56
    %s60 = sphi 0, %s59
    %s76 = sphi 0, %s60
    %s82 = sphi 0, %s84
    %s85 = sphi 0, %s82
    %s86 = sphi 0, %s85
    %s102 = sphi 0, %s86
    %s106 = sphi 0, %s106
    %s108 = sphi 0, %s106
    %s109 = sphi 0, %s108
    %s123 = sphi 0, %s109
    %s127 = sphi 0, %s127
    %s129 = sphi 0, %s127
    %s130 = sphi 0, %s129
    %s144 = sphi 0, %s130
    %s148 = sphi 0, %s148
    %s150 = sphi 0, %s148
    %s151 = sphi 0, %s150
    %s165 = sphi 0, %s151
    %s169 = sphi 0, %s169
    %s171 = sphi 0, %s169
    %s172 = sphi 0, %s171
    %s186 = sphi 0, %s172
    %s190 = sphi 0, %s190
    %s192 = sphi 0, %s190
    %s193 = sphi 0, %s192
    %s207 = sphi 0, %s193
    %s211 = sphi 0, %s211
    %s213 = sphi 0, %s211
    %s214 = sphi 0, %s213
    %s228 = sphi 0, %s214
    %s232 = sphi 0, %s232
    %s234 = sphi 0, %s232
    %s235 = sphi 0, %s234
    %s249 = sphi 0, %s235
    %s253 = sphi 0, %s253
    %s255 = sphi 0, %s253
    %s256 = sphi 0, %s255
    %s270 = sphi 0, %s256
    %s274 = sphi 0, %s274
    %s276 = sphi 0, %s274
    %s277 = sphi 0, %s276
    %s291 = sphi 0, %s277
    %s295 = sphi 0, %s295
    %s297 = sphi 0, %s295
    %s298 = sphi 0, %s297
    %s312 = sphi 0, %s298
    %s316 = sphi 0, %s316
    %s318 = sphi 0, %s316
    %s319 = sphi 0, %s318
    %s333 = sphi 0, %s319
    %s339 = sphi 0, %s341
    %s342 = sphi 0, %s339
    %s343 = sphi 0, %s342
    %s359 = sphi 0, %s343
  $region4: #{transformer_stage.9} parent=0 // loop_header_branch
    %23 = sbr.rel (%p21) target = $region8
  $region5: #{transformer_stage.9} parent=0 // loop_body
    %s25 = ssub.s32 %s20, 1
    %s26 = ssub.s32 %s20, 2
    %s27 = sadd.s32 %s20, 1
    %s28 = ssub.s32 %s20, %s27
    %p29 = scmp.eq.s32.totalorder %s28, 0
    %s31 = sadd.s32 %s30, 1
    %s32 = scalar_select %p29, %s30, %s31
    %p35 = pneg %p29
    %p36 = scmp.eq.s32.totalorder %s20, 1
    %p37 = por %p35, %p36
    %p38 = scmp.ne.s32.totalorder %s30, %s33
    %p39 = scmp.eq.s32.totalorder %s20, 0
    %p40 = por %p38, %p39
    %p41 = scmp.ne.s32.totalorder %s30, %s33
    %p42 = scmp.eq.s32.totalorder %s25, 1
    %p43 = por %p41, %p42
    %p44 = scmp.ne.s32.totalorder %s33, %s34
    %p45 = scmp.eq.s32.totalorder %s25, 0
    %p46 = por %p44, %p45
    %p47 = scmp.ne.s32.totalorder %s33, %s34
    %p48 = scmp.eq.s32.totalorder %s26, 1
    %p49 = por %p47, %p48
    %p51 = scmp.ne.s32.totalorder %s34, %s50
    %p52 = scmp.eq.s32.totalorder %s26, 0
    %p53 = por %p51, %p52
    %s54 = ssub.s32 %s20, %s27
    %p55 = scmp.eq.s32.totalorder %s54, 0
    %s57 = sadd.s32 %s56, 1
    %s58 = scalar_select %p55, %s56, %s57
    %p61 = pneg %p55
    %p62 = scmp.eq.s32.totalorder %s20, 1
    %p63 = por %p61, %p62
    %p64 = scmp.ne.s32.totalorder %s56, %s59
    %p65 = scmp.eq.s32.totalorder %s20, 0
    %p66 = por %p64, %p65
    %p67 = scmp.ne.s32.totalorder %s56, %s59
    %p68 = scmp.eq.s32.totalorder %s25, 1
    %p69 = por %p67, %p68
    %p70 = scmp.ne.s32.totalorder %s59, %s60
    %p71 = scmp.eq.s32.totalorder %s25, 0
    %p72 = por %p70, %p71
    %p73 = scmp.ne.s32.totalorder %s59, %s60
    %p74 = scmp.eq.s32.totalorder %s26, 1
    %p75 = por %p73, %p74
    %p77 = scmp.ne.s32.totalorder %s60, %s76
    %p78 = scmp.eq.s32.totalorder %s26, 0
    %p79 = por %p77, %p78
    %s80 = ssub.s32 %s20, %s27
    %p81 = scmp.eq.s32.totalorder %s80, 0
    %s83 = sadd.s32 %s82, 1
    %s84 = scalar_select %p81, %s82, %s83
    %p87 = pneg %p81
    %p88 = scmp.eq.s32.totalorder %s20, 1
    %p89 = por %p87, %p88
    %p90 = scmp.ne.s32.totalorder %s82, %s85
    %p91 = scmp.eq.s32.totalorder %s20, 0
    %p92 = por %p90, %p91
    %p93 = scmp.ne.s32.totalorder %s82, %s85
    %p94 = scmp.eq.s32.totalorder %s25, 1
    %p95 = por %p93, %p94
    %p96 = scmp.ne.s32.totalorder %s85, %s86
    %p97 = scmp.eq.s32.totalorder %s25, 0
    %p98 = por %p96, %p97
    %p99 = scmp.ne.s32.totalorder %s85, %s86
    %p100 = scmp.eq.s32.totalorder %s26, 1
    %p101 = por %p99, %p100
    %p103 = scmp.ne.s32.totalorder %s86, %s102
    %p104 = scmp.eq.s32.totalorder %s26, 0
    %p105 = por %p103, %p104
    %s107 = sadd.s32 %s106, 1
    %p110 = scmp.eq.s32.totalorder %s20, 1
    %p111 = scmp.ne.s32.totalorder %s106, %s108
    %p112 = scmp.eq.s32.totalorder %s20, 0
    %p113 = por %p111, %p112
    %p114 = scmp.ne.s32.totalorder %s106, %s108
    %p115 = scmp.eq.s32.totalorder %s25, 1
    %p116 = por %p114, %p115
    %p117 = scmp.ne.s32.totalorder %s108, %s109
    %p118 = scmp.eq.s32.totalorder %s25, 0
    %p119 = por %p117, %p118
    %p120 = scmp.ne.s32.totalorder %s108, %s109
    %p121 = scmp.eq.s32.totalorder %s26, 1
    %p122 = por %p120, %p121
    %p124 = scmp.ne.s32.totalorder %s109, %s123
    %p125 = scmp.eq.s32.totalorder %s26, 0
    %p126 = por %p124, %p125
    %s128 = sadd.s32 %s127, 1
    %p131 = scmp.eq.s32.totalorder %s20, 1
    %p132 = scmp.ne.s32.totalorder %s127, %s129
    %p133 = scmp.eq.s32.totalorder %s20, 0
    %p134 = por %p132, %p133
    %p135 = scmp.ne.s32.totalorder %s127, %s129
    %p136 = scmp.eq.s32.totalorder %s25, 1
    %p137 = por %p135, %p136
    %p138 = scmp.ne.s32.totalorder %s129, %s130
    %p139 = scmp.eq.s32.totalorder %s25, 0
    %p140 = por %p138, %p139
    %p141 = scmp.ne.s32.totalorder %s129, %s130
    %p142 = scmp.eq.s32.totalorder %s26, 1
    %p143 = por %p141, %p142
    %p145 = scmp.ne.s32.totalorder %s130, %s144
    %p146 = scmp.eq.s32.totalorder %s26, 0
    %p147 = por %p145, %p146
    %s149 = sadd.s32 %s148, 1
    %p152 = scmp.eq.s32.totalorder %s20, 1
    %p153 = scmp.ne.s32.totalorder %s148, %s150
    %p154 = scmp.eq.s32.totalorder %s20, 0
    %p155 = por %p153, %p154
    %p156 = scmp.ne.s32.totalorder %s148, %s150
    %p157 = scmp.eq.s32.totalorder %s25, 1
    %p158 = por %p156, %p157
    %p159 = scmp.ne.s32.totalorder %s150, %s151
    %p160 = scmp.eq.s32.totalorder %s25, 0
    %p161 = por %p159, %p160
    %p162 = scmp.ne.s32.totalorder %s150, %s151
    %p163 = scmp.eq.s32.totalorder %s26, 1
    %p164 = por %p162, %p163
    %p166 = scmp.ne.s32.totalorder %s151, %s165
    %p167 = scmp.eq.s32.totalorder %s26, 0
    %p168 = por %p166, %p167
    %s170 = sadd.s32 %s169, 1
    %p173 = scmp.eq.s32.totalorder %s20, 1
    %p174 = scmp.ne.s32.totalorder %s169, %s171
    %p175 = scmp.eq.s32.totalorder %s20, 0
    %p176 = por %p174, %p175
    %p177 = scmp.ne.s32.totalorder %s169, %s171
    %p178 = scmp.eq.s32.totalorder %s25, 1
    %p179 = por %p177, %p178
    %p180 = scmp.ne.s32.totalorder %s171, %s172
    %p181 = scmp.eq.s32.totalorder %s25, 0
    %p182 = por %p180, %p181
    %p183 = scmp.ne.s32.totalorder %s171, %s172
    %p184 = scmp.eq.s32.totalorder %s26, 1
    %p185 = por %p183, %p184
    %p187 = scmp.ne.s32.totalorder %s172, %s186
    %p188 = scmp.eq.s32.totalorder %s26, 0
    %p189 = por %p187, %p188
    %s191 = sadd.s32 %s190, 1
    %p194 = scmp.eq.s32.totalorder %s20, 1
    %p195 = scmp.ne.s32.totalorder %s190, %s192
    %p196 = scmp.eq.s32.totalorder %s20, 0
    %p197 = por %p195, %p196
    %p198 = scmp.ne.s32.totalorder %s190, %s192
    %p199 = scmp.eq.s32.totalorder %s25, 1
    %p200 = por %p198, %p199
    %p201 = scmp.ne.s32.totalorder %s192, %s193
    %p202 = scmp.eq.s32.totalorder %s25, 0
    %p203 = por %p201, %p202
    %p204 = scmp.ne.s32.totalorder %s192, %s193
    %p205 = scmp.eq.s32.totalorder %s26, 1
    %p206 = por %p204, %p205
    %p208 = scmp.ne.s32.totalorder %s193, %s207
    %p209 = scmp.eq.s32.totalorder %s26, 0
    %p210 = por %p208, %p209
    %s212 = sadd.s32 %s211, 1
    %p215 = scmp.eq.s32.totalorder %s20, 1
    %p216 = scmp.ne.s32.totalorder %s211, %s213
    %p217 = scmp.eq.s32.totalorder %s20, 0
    %p218 = por %p216, %p217
    %p219 = scmp.ne.s32.totalorder %s211, %s213
    %p220 = scmp.eq.s32.totalorder %s25, 1
    %p221 = por %p219, %p220
    %p222 = scmp.ne.s32.totalorder %s213, %s214
    %p223 = scmp.eq.s32.totalorder %s25, 0
    %p224 = por %p222, %p223
    %p225 = scmp.ne.s32.totalorder %s213, %s214
    %p226 = scmp.eq.s32.totalorder %s26, 1
    %p227 = por %p225, %p226
    %p229 = scmp.ne.s32.totalorder %s214, %s228
    %p230 = scmp.eq.s32.totalorder %s26, 0
    %p231 = por %p229, %p230
    %s233 = sadd.s32 %s232, 1
    %p236 = scmp.eq.s32.totalorder %s20, 1
    %p237 = scmp.ne.s32.totalorder %s232, %s234
    %p238 = scmp.eq.s32.totalorder %s20, 0
    %p239 = por %p237, %p238
    %p240 = scmp.ne.s32.totalorder %s232, %s234
    %p241 = scmp.eq.s32.totalorder %s25, 1
    %p242 = por %p240, %p241
    %p243 = scmp.ne.s32.totalorder %s234, %s235
    %p244 = scmp.eq.s32.totalorder %s25, 0
    %p245 = por %p243, %p244
    %p246 = scmp.ne.s32.totalorder %s234, %s235
    %p247 = scmp.eq.s32.totalorder %s26, 1
    %p248 = por %p246, %p247
    %p250 = scmp.ne.s32.totalorder %s235, %s249
    %p251 = scmp.eq.s32.totalorder %s26, 0
    %p252 = por %p250, %p251
    %s254 = sadd.s32 %s253, 1
    %p257 = scmp.eq.s32.totalorder %s20, 1
    %p258 = scmp.ne.s32.totalorder %s253, %s255
    %p259 = scmp.eq.s32.totalorder %s20, 0
    %p260 = por %p258, %p259
    %p261 = scmp.ne.s32.totalorder %s253, %s255
    %p262 = scmp.eq.s32.totalorder %s25, 1
    %p263 = por %p261, %p262
    %p264 = scmp.ne.s32.totalorder %s255, %s256
    %p265 = scmp.eq.s32.totalorder %s25, 0
    %p266 = por %p264, %p265
    %p267 = scmp.ne.s32.totalorder %s255, %s256
    %p268 = scmp.eq.s32.totalorder %s26, 1
    %p269 = por %p267, %p268
    %p271 = scmp.ne.s32.totalorder %s256, %s270
    %p272 = scmp.eq.s32.totalorder %s26, 0
    %p273 = por %p271, %p272
    %s275 = sadd.s32 %s274, 1
    %p278 = scmp.eq.s32.totalorder %s20, 1
    %p279 = scmp.ne.s32.totalorder %s274, %s276
    %p280 = scmp.eq.s32.totalorder %s20, 0
    %p281 = por %p279, %p280
    %p282 = scmp.ne.s32.totalorder %s274, %s276
    %p283 = scmp.eq.s32.totalorder %s25, 1
    %p284 = por %p282, %p283
    %p285 = scmp.ne.s32.totalorder %s276, %s277
    %p286 = scmp.eq.s32.totalorder %s25, 0
    %p287 = por %p285, %p286
    %p288 = scmp.ne.s32.totalorder %s276, %s277
    %p289 = scmp.eq.s32.totalorder %s26, 1
    %p290 = por %p288, %p289
    %p292 = scmp.ne.s32.totalorder %s277, %s291
    %p293 = scmp.eq.s32.totalorder %s26, 0
    %p294 = por %p292, %p293
    %s296 = sadd.s32 %s295, 1
    %p299 = scmp.eq.s32.totalorder %s20, 1
    %p300 = scmp.ne.s32.totalorder %s295, %s297
    %p301 = scmp.eq.s32.totalorder %s20, 0
    %p302 = por %p300, %p301
    %p303 = scmp.ne.s32.totalorder %s295, %s297
    %p304 = scmp.eq.s32.totalorder %s25, 1
    %p305 = por %p303, %p304
    %p306 = scmp.ne.s32.totalorder %s297, %s298
    %p307 = scmp.eq.s32.totalorder %s25, 0
    %p308 = por %p306, %p307
    %p309 = scmp.ne.s32.totalorder %s297, %s298
    %p310 = scmp.eq.s32.totalorder %s26, 1
    %p311 = por %p309, %p310
    %p313 = scmp.ne.s32.totalorder %s298, %s312
    %p314 = scmp.eq.s32.totalorder %s26, 0
    %p315 = por %p313, %p314
    %s317 = sadd.s32 %s316, 1
    %p320 = scmp.eq.s32.totalorder %s20, 1
    %p321 = scmp.ne.s32.totalorder %s316, %s318
    %p322 = scmp.eq.s32.totalorder %s20, 0
    %p323 = por %p321, %p322
    %p324 = scmp.ne.s32.totalorder %s316, %s318
    %p325 = scmp.eq.s32.totalorder %s25, 1
    %p326 = por %p324, %p325
    %p327 = scmp.ne.s32.totalorder %s318, %s319
    %p328 = scmp.eq.s32.totalorder %s25, 0
    %p329 = por %p327, %p328
    %p330 = scmp.ne.s32.totalorder %s318, %s319
    %p331 = scmp.eq.s32.totalorder %s26, 1
    %p332 = por %p330, %p331
    %p334 = scmp.ne.s32.totalorder %s319, %s333
    %p335 = scmp.eq.s32.totalorder %s26, 0
    %p336 = por %p334, %p335
    %s337 = ssub.s32 %s20, %s27
    %p338 = scmp.eq.s32.totalorder %s337, 0
    %s340 = sadd.s32 %s339, 1
    %s341 = scalar_select %p338, %s339, %s340
    %p344 = pneg %p338
    %p345 = scmp.eq.s32.totalorder %s20, 1
    %p346 = por %p344, %p345
    %p347 = scmp.ne.s32.totalorder %s339, %s342
    %p348 = scmp.eq.s32.totalorder %s20, 0
    %p349 = por %p347, %p348
    %p350 = scmp.ne.s32.totalorder %s339, %s342
    %p351 = scmp.eq.s32.totalorder %s25, 1
    %p352 = por %p350, %p351
    %p353 = scmp.ne.s32.totalorder %s342, %s343
    %p354 = scmp.eq.s32.totalorder %s25, 0
    %p355 = por %p353, %p354
    %p356 = scmp.ne.s32.totalorder %s342, %s343
    %p357 = scmp.eq.s32.totalorder %s26, 1
    %p358 = por %p356, %p357
    %p360 = scmp.ne.s32.totalorder %s343, %s359
    %p361 = scmp.eq.s32.totalorder %s26, 0
    %p362 = por %p360, %p361
    %p363 = scmp.le.s32.totalorder 1, %s20
    %p364 = scmp.lt.s32.totalorder %s20, 3
    %p365 = pnand %p363, %p364
    %p366 = pneg %p365
    // Predicated region
    $region9: #{transformer_stage.9} parent=5 // pred_check
      _
    $region10: #{transformer_stage.9} parent=5 // pred_check_branch
      %368 = sbr.rel (%p365) target = $region12
    $region11: #{transformer_stage.9} parent=5 // pred_region
      %s369 = ssub.s32 %s20, 1
      // Predicated region
      $region13: #{transformer_stage.9} parent=11 // pred_check
        %p370 = pneg %p119
      $region14: #{transformer_stage.9} parent=11 // pred_check_branch
        %372 = sbr.rel (%p370) target = $region16
      $region15: #{transformer_stage.9} parent=11 // pred_region
        _
      $region16: #{transformer_stage.9} parent=11 // pred_fallthru
        _
      // Predicated region
      $region17: #{transformer_stage.9} parent=11 // pred_check
        %p373 = pneg %p140
      $region18: #{transformer_stage.9} parent=11 // pred_check_branch
        %375 = sbr.rel (%p373) target = $region20
      $region19: #{transformer_stage.9} parent=11 // pred_region
        _
      $region20: #{transformer_stage.9} parent=11 // pred_fallthru
        _
      // Predicated region
      $region21: #{transformer_stage.9} parent=11 // pred_check
        %p376 = pneg %p161
      $region22: #{transformer_stage.9} parent=11 // pred_check_branch
        %378 = sbr.rel (%p376) target = $region24
      $region23: #{transformer_stage.9} parent=11 // pred_region
        _
      $region24: #{transformer_stage.9} parent=11 // pred_fallthru
        _
      // Predicated region
      $region25: #{transformer_stage.9} parent=11 // pred_check
        %p379 = pneg %p182
      $region26: #{transformer_stage.9} parent=11 // pred_check_branch
        %381 = sbr.rel (%p379) target = $region28
      $region27: #{transformer_stage.9} parent=11 // pred_region
        _
      $region28: #{transformer_stage.9} parent=11 // pred_fallthru
        _
      // Predicated region
      $region29: #{transformer_stage.9} parent=11 // pred_check
        %p382 = pneg %p203
      $region30: #{transformer_stage.9} parent=11 // pred_check_branch
        %384 = sbr.rel (%p382) target = $region32
      $region31: #{transformer_stage.9} parent=11 // pred_region
        _
      $region32: #{transformer_stage.9} parent=11 // pred_fallthru
        _
      // Predicated region
      $region33: #{transformer_stage.9} parent=11 // pred_check
        %p385 = pneg %p224
      $region34: #{transformer_stage.9} parent=11 // pred_check_branch
        %387 = sbr.rel (%p385) target = $region36
      $region35: #{transformer_stage.9} parent=11 // pred_region
        _
      $region36: #{transformer_stage.9} parent=11 // pred_fallthru
        _
      // Predicated region
      $region37: #{transformer_stage.9} parent=11 // pred_check
        %p388 = pneg %p245
      $region38: #{transformer_stage.9} parent=11 // pred_check_branch
        %390 = sbr.rel (%p388) target = $region40
      $region39: #{transformer_stage.9} parent=11 // pred_region
        _
      $region40: #{transformer_stage.9} parent=11 // pred_fallthru
        _
      // Predicated region
      $region41: #{transformer_stage.9} parent=11 // pred_check
        %p391 = pneg %p266
      $region42: #{transformer_stage.9} parent=11 // pred_check_branch
        %393 = sbr.rel (%p391) target = $region44
      $region43: #{transformer_stage.9} parent=11 // pred_region
        _
      $region44: #{transformer_stage.9} parent=11 // pred_fallthru
        _
      // Predicated region
      $region45: #{transformer_stage.9} parent=11 // pred_check
        %p394 = pneg %p287
      $region46: #{transformer_stage.9} parent=11 // pred_check_branch
        %396 = sbr.rel (%p394) target = $region48
      $region47: #{transformer_stage.9} parent=11 // pred_region
        _
      $region48: #{transformer_stage.9} parent=11 // pred_fallthru
        _
      // Predicated region
      $region49: #{transformer_stage.9} parent=11 // pred_check
        %p397 = pneg %p308
      $region50: #{transformer_stage.9} parent=11 // pred_check_branch
        %399 = sbr.rel (%p397) target = $region52
      $region51: #{transformer_stage.9} parent=11 // pred_region
        _
      $region52: #{transformer_stage.9} parent=11 // pred_fallthru
        _
      // Predicated region
      $region53: #{transformer_stage.9} parent=11 // pred_check
        %p400 = pneg %p329
      $region54: #{transformer_stage.9} parent=11 // pred_check_branch
        %402 = sbr.rel (%p400) target = $region56
      $region55: #{transformer_stage.9} parent=11 // pred_region
        _
      $region56: #{transformer_stage.9} parent=11 // pred_fallthru
        _
    $region12: #{transformer_stage.9} parent=5 // pred_fallthru
      _
    %p403 = scmp.lt.s32.totalorder %s20, 2
    // Predicated region
    $region57: #{transformer_stage.9} parent=5 // pred_check
      %p404 = pneg %p403
    $region58: #{transformer_stage.9} parent=5 // pred_check_branch
      %406 = sbr.rel (%p404) target = $region60
    $region59: #{transformer_stage.9} parent=5 // pred_region
      // Predicated region
      $region61: #{transformer_stage.9} parent=59 // pred_check
        %p407 = pneg %p40
      $region62: #{transformer_stage.9} parent=59 // pred_check_branch
        %409 = sbr.rel (%p407) target = $region64
      $region63: #{transformer_stage.9} parent=59 // pred_region
        %s410 = smul.u32 32, %s20
        %p411 = scmp.lt.s32.totalorder %s410, 63
        %s412 = scalar_select %p411, %s410, 63
        %s413 = smul.addr %s412, 8
        %s414 = scalar_lea.vmem %s0, %s413
        %s415 = smul.u32 32, %s20
      $region64: #{transformer_stage.9} parent=59 // pred_fallthru
        _
      // Predicated region
      $region65: #{transformer_stage.9} parent=59 // pred_check
        %p416 = pneg %p66
      $region66: #{transformer_stage.9} parent=59 // pred_check_branch
        %418 = sbr.rel (%p416) target = $region68
      $region67: #{transformer_stage.9} parent=59 // pred_region
        %s419 = smul.u32 32, %s20
        %p420 = scmp.lt.s32.totalorder %s419, 63
        %s421 = scalar_select %p420, %s419, 63
        %s422 = smul.addr %s421, 8
        %s423 = scalar_lea.vmem %s1, %s422
        %s424 = smul.u32 32, %s20
      $region68: #{transformer_stage.9} parent=59 // pred_fallthru
        _
      // Predicated region
      $region69: #{transformer_stage.9} parent=59 // pred_check
        %p425 = pneg %p92
      $region70: #{transformer_stage.9} parent=59 // pred_check_branch
        %427 = sbr.rel (%p425) target = $region72
      $region71: #{transformer_stage.9} parent=59 // pred_region
        %s428 = smul.u32 32, %s20
        %p429 = scmp.lt.s32.totalorder %s428, 63
        %s430 = scalar_select %p429, %s428, 63
        %s431 = smul.addr %s430, 8
        %s432 = scalar_lea.vmem %s2, %s431
        %s433 = smul.u32 32, %s20
      $region72: #{transformer_stage.9} parent=59 // pred_fallthru
        _
    $region60: #{transformer_stage.9} parent=5 // pred_fallthru
      _
    %p434 = scmp.le.s32.totalorder 1, %s20
    %p435 = scmp.lt.s32.totalorder %s20, 3
    %p436 = pnand %p434, %p435
    %p437 = pneg %p436
    // Predicated region
    $region73: #{transformer_stage.9} parent=5 // pred_check
      _
    $region74: #{transformer_stage.9} parent=5 // pred_check_branch
      %439 = sbr.rel (%p436) target = $region76
    $region75: #{transformer_stage.9} parent=5 // pred_region
      %s440 = ssub.s32 %s20, 1
      %s441 = smul.u32 32, %s25
      %p442 = scmp.lt.s32.totalorder %s441, 63
      %s443 = scalar_select %p442, %s441, 63
      %s444 = smul.addr %s443, 8
      %s445 = scalar_lea.vmem %s0, %s444
      %p446 = pneg %p46
      %p447 = pneg %p43
      %s448 = smul.u32 32, %s25
      %p449 = scmp.lt.s32.totalorder %s448, 63
      %s450 = scalar_select %p449, %s448, 63
      %s451 = smul.addr %s450, 8
      %s452 = scalar_lea.vmem %s1, %s451
      %p453 = pneg %p72
      %p454 = pneg %p69
      %s455 = smul.u32 32, %s25
      %p456 = scmp.lt.s32.totalorder %s455, 63
      %s457 = scalar_select %p456, %s455, 63
      %s458 = smul.addr %s457, 8
      %s459 = scalar_lea.vmem %s2, %s458
      %p460 = pneg %p98
      %p461 = pneg %p95
      %p462 = pneg %p119
      %p463 = pneg %p116
      %p464 = pneg %p140
      %p465 = pneg %p137
      %p466 = pneg %p161
      %p467 = pneg %p158
      %p468 = pneg %p182
      %p469 = pneg %p179
      %p470 = pneg %p203
      %p471 = pneg %p200
      %p472 = pneg %p224
      %p473 = pneg %p221
      %p474 = pneg %p245
      %p475 = pneg %p242
      %p476 = pneg %p266
      %p477 = pneg %p263
      %p478 = pneg %p287
      %p479 = pneg %p284
      %p480 = pneg %p308
      %p481 = pneg %p305
      %p482 = pneg %p329
      %p483 = pneg %p326
      %p484 = pneg %p355
      %p485 = pneg %p352
      %s486 = smul.u32 32, %s25
      %p487 = scmp.lt.s32.totalorder %s486, 63
      %s488 = scalar_select %p487, %s486, 63
      %s489 = smul.addr %s488, 8
      %s490 = scalar_lea.vmem %s14, %s489
      %s491 = smul.u32 32, %s25
      %p492 = scmp.lt.s32.totalorder %s491, 63
      %s493 = scalar_select %p492, %s491, 63
      %s494 = smul.addr %s493, 8
      %s495 = scalar_lea.vmem %s0, %s494
      %s496 = smul.u32 32, %s25
      %s497 = smul.u32 32, %s25
      %p498 = scmp.lt.s32.totalorder %s497, 63
      %s499 = scalar_select %p498, %s497, 63
      %s500 = smul.addr %s499, 8
      %s501 = scalar_lea.vmem %s1, %s500
      %s502 = smul.u32 32, %s25
      %s503 = smul.u32 32, %s25
      %p504 = scmp.lt.s32.totalorder %s503, 63
      %s505 = scalar_select %p504, %s503, 63
      %s506 = smul.addr %s505, 8
      %s507 = scalar_lea.vmem %s2, %s506
      %s508 = smul.u32 32, %s25
      %s509 = smul.u32 32, %s25
      %p510 = scmp.lt.s32.totalorder %s509, 63
      %s511 = scalar_select %p510, %s509, 63
      %s512 = smul.addr %s511, 8
      %s513 = scalar_lea.vmem %s14, %s512
      %s514 = smul.u32 32, %s25
      %v516 = vld [vmem:[%s507] sm:$0xff]
      %v517 = vld [vmem:[%s507 + $0x8] sm:$0xff]
      %v518 = vld [vmem:[%s507 + $0x10] sm:$0xff]
      %v519 = vld [vmem:[%s507 + $0x18] sm:$0xff]
      %v520 = vld [vmem:[%s507 + $0x20] sm:$0xff]
      %v521 = vld [vmem:[%s507 + $0x28] sm:$0xff]
      %v522 = vld [vmem:[%s507 + $0x30] sm:$0xff]
      %v523 = vld [vmem:[%s507 + $0x38] sm:$0xff]
      %v524 = vld [vmem:[%s507 + $0x40] sm:$0xff]
      %v525 = vld [vmem:[%s507 + $0x48] sm:$0xff]
      %v526 = vld [vmem:[%s507 + $0x50] sm:$0xff]
      %v527 = vld [vmem:[%s507 + $0x58] sm:$0xff]
      %v528 = vld [vmem:[%s507 + $0x60] sm:$0xff]
      %v529 = vld [vmem:[%s507 + $0x68] sm:$0xff]
      %v530 = vld [vmem:[%s507 + $0x70] sm:$0xff]
      %v531 = vld [vmem:[%s507 + $0x78] sm:$0xff]
      %v532 = vld [vmem:[%s507 + $0x80] sm:$0xff]
      %v533 = vld [vmem:[%s507 + $0x88] sm:$0xff]
      %v534 = vld [vmem:[%s507 + $0x90] sm:$0xff]
      %v535 = vld [vmem:[%s507 + $0x98] sm:$0xff]
      %v536 = vld [vmem:[%s507 + $0xa0] sm:$0xff]
      %v537 = vld [vmem:[%s507 + $0xa8] sm:$0xff]
      %v538 = vld [vmem:[%s507 + $0xb0] sm:$0xff]
      %v539 = vld [vmem:[%s507 + $0xb8] sm:$0xff]
      %v540 = vld [vmem:[%s507 + $0xc0] sm:$0xff]
      %v541 = vld [vmem:[%s507 + $0xc8] sm:$0xff]
      %v542 = vld [vmem:[%s507 + $0xd0] sm:$0xff]
      %v543 = vld [vmem:[%s507 + $0xd8] sm:$0xff]
      %v544 = vld [vmem:[%s507 + $0xe0] sm:$0xff]
      %v545 = vld [vmem:[%s507 + $0xe8] sm:$0xff]
      %v546 = vld [vmem:[%s507 + $0xf0] sm:$0xff]
      %v547 = vld [vmem:[%s507 + $0xf8] sm:$0xff]
      %v548 = vld [vmem:[%s495] sm:$0xff]
      %v549 = vld [vmem:[%s495 + $0x8] sm:$0xff]
      %v550 = vld [vmem:[%s495 + $0x10] sm:$0xff]
      %v551 = vld [vmem:[%s495 + $0x18] sm:$0xff]
      %v552 = vld [vmem:[%s495 + $0x20] sm:$0xff]
      %v553 = vld [vmem:[%s495 + $0x28] sm:$0xff]
      %v554 = vld [vmem:[%s495 + $0x30] sm:$0xff]
      %v555 = vld [vmem:[%s495 + $0x38] sm:$0xff]
      %v556 = vld [vmem:[%s495 + $0x40] sm:$0xff]
      %v557 = vld [vmem:[%s495 + $0x48] sm:$0xff]
      %v558 = vld [vmem:[%s495 + $0x50] sm:$0xff]
      %v559 = vld [vmem:[%s495 + $0x58] sm:$0xff]
      %v560 = vld [vmem:[%s495 + $0x60] sm:$0xff]
      %v561 = vld [vmem:[%s495 + $0x68] sm:$0xff]
      %v562 = vld [vmem:[%s495 + $0x70] sm:$0xff]
      %v563 = vld [vmem:[%s495 + $0x78] sm:$0xff]
      %v564 = vld [vmem:[%s495 + $0x80] sm:$0xff]
      %v565 = vld [vmem:[%s495 + $0x88] sm:$0xff]
      %v566 = vld [vmem:[%s495 + $0x90] sm:$0xff]
      %v567 = vld [vmem:[%s495 + $0x98] sm:$0xff]
      %v568 = vld [vmem:[%s495 + $0xa0] sm:$0xff]
      %v569 = vld [vmem:[%s495 + $0xa8] sm:$0xff]
      %v570 = vld [vmem:[%s495 + $0xb0] sm:$0xff]
      %v571 = vld [vmem:[%s495 + $0xb8] sm:$0xff]
      %v572 = vld [vmem:[%s495 + $0xc0] sm:$0xff]
      %v573 = vld [vmem:[%s495 + $0xc8] sm:$0xff]
      %v574 = vld [vmem:[%s495 + $0xd0] sm:$0xff]
      %v575 = vld [vmem:[%s495 + $0xd8] sm:$0xff]
      %v576 = vld [vmem:[%s495 + $0xe0] sm:$0xff]
      %v577 = vld [vmem:[%s495 + $0xe8] sm:$0xff]
      %v578 = vld [vmem:[%s495 + $0xf0] sm:$0xff]
      %v579 = vld [vmem:[%s495 + $0xf8] sm:$0xff]
      %v580 = vpack.c.bf16 %v549, %v548
      %v581 = vpack.c.bf16 %v551, %v550
      %v582 = vpack.c.bf16 %v553, %v552
      %v583 = vpack.c.bf16 %v555, %v554
      %v584 = vpack.c.bf16 %v557, %v556
      %v585 = vpack.c.bf16 %v559, %v558
      %v586 = vpack.c.bf16 %v561, %v560
      %v587 = vpack.c.bf16 %v563, %v562
      %v588 = vpack.c.bf16 %v565, %v564
      %v589 = vpack.c.bf16 %v567, %v566
      %v590 = vpack.c.bf16 %v569, %v568
      %v591 = vpack.c.bf16 %v571, %v570
      %v592 = vpack.c.bf16 %v573, %v572
      %v593 = vpack.c.bf16 %v575, %v574
      %v594 = vpack.c.bf16 %v577, %v576
      %v595 = vpack.c.bf16 %v579, %v578
      %v596 = vld [vmem:[%s3] sm:$0xf]
      %v597 = vld [vmem:[%s3 + $0x4] sm:$0xf]
      %v598 = vld [vmem:[%s501] sm:$0xff]
      %v599 = vld [vmem:[%s501 + $0x8] sm:$0xff]
      %v600 = vld [vmem:[%s501 + $0x10] sm:$0xff]
      %v601 = vld [vmem:[%s501 + $0x18] sm:$0xff]
      %v602 = vld [vmem:[%s501 + $0x20] sm:$0xff]
      %v603 = vld [vmem:[%s501 + $0x28] sm:$0xff]
      %v604 = vld [vmem:[%s501 + $0x30] sm:$0xff]
      %v605 = vld [vmem:[%s501 + $0x38] sm:$0xff]
      %v606 = vld [vmem:[%s501 + $0x40] sm:$0xff]
      %v607 = vld [vmem:[%s501 + $0x48] sm:$0xff]
      %v608 = vld [vmem:[%s501 + $0x50] sm:$0xff]
      %v609 = vld [vmem:[%s501 + $0x58] sm:$0xff]
      %v610 = vld [vmem:[%s501 + $0x60] sm:$0xff]
      %v611 = vld [vmem:[%s501 + $0x68] sm:$0xff]
      %v612 = vld [vmem:[%s501 + $0x70] sm:$0xff]
      %v613 = vld [vmem:[%s501 + $0x78] sm:$0xff]
      %v614 = vld [vmem:[%s501 + $0x80] sm:$0xff]
      %v615 = vld [vmem:[%s501 + $0x88] sm:$0xff]
      %v616 = vld [vmem:[%s501 + $0x90] sm:$0xff]
      %v617 = vld [vmem:[%s501 + $0x98] sm:$0xff]
      %v618 = vld [vmem:[%s501 + $0xa0] sm:$0xff]
      %v619 = vld [vmem:[%s501 + $0xa8] sm:$0xff]
      %v620 = vld [vmem:[%s501 + $0xb0] sm:$0xff]
      %v621 = vld [vmem:[%s501 + $0xb8] sm:$0xff]
      %v622 = vld [vmem:[%s501 + $0xc0] sm:$0xff]
      %v623 = vld [vmem:[%s501 + $0xc8] sm:$0xff]
      %v624 = vld [vmem:[%s501 + $0xd0] sm:$0xff]
      %v625 = vld [vmem:[%s501 + $0xd8] sm:$0xff]
      %v626 = vld [vmem:[%s501 + $0xe0] sm:$0xff]
      %v627 = vld [vmem:[%s501 + $0xe8] sm:$0xff]
      %v628 = vld [vmem:[%s501 + $0xf0] sm:$0xff]
      %v629 = vld [vmem:[%s501 + $0xf8] sm:$0xff]
      %v630 = vpack.c.bf16 %v599, %v598
      %v631 = vpack.c.bf16 %v601, %v600
      %v632 = vpack.c.bf16 %v603, %v602
      %v633 = vpack.c.bf16 %v605, %v604
      %v634 = vpack.c.bf16 %v607, %v606
      %v635 = vpack.c.bf16 %v609, %v608
      %v636 = vpack.c.bf16 %v611, %v610
      %v637 = vpack.c.bf16 %v613, %v612
      %v638 = vpack.c.bf16 %v615, %v614
      %v639 = vpack.c.bf16 %v617, %v616
      %v640 = vpack.c.bf16 %v619, %v618
      %v641 = vpack.c.bf16 %v621, %v620
      %v642 = vpack.c.bf16 %v623, %v622
      %v643 = vpack.c.bf16 %v625, %v624
      %v644 = vpack.c.bf16 %v627, %v626
      %v645 = vpack.c.bf16 %v629, %v628
      %v646 = vld [vmem:[%s4] sm:$0xf]
      %v647 = vld [vmem:[%s4 + $0x4] sm:$0xf]
      %v650 = vunpack.c.l.b16 %v646
      %v651 = vunpack.c.l.b16 %v647
      %v652 = vpack.c.b16 %v651, %v650
      %vm654 = vcmask 130048
      %v656 = vsel %vm654, %v630, 0
      %v659 = vsel %vm654, %v631, 0
      %v662 = vsel %vm654, %v632, 0
      %v665 = vsel %vm654, %v633, 0
      %v668 = vsel %vm654, %v634, 0
      %v671 = vsel %vm654, %v635, 0
      %v674 = vsel %vm654, %v636, 0
      %v677 = vsel %vm654, %v637, 0
      %v680 = vsel %vm654, %v638, 0
      %v683 = vsel %vm654, %v639, 0
      %v686 = vsel %vm654, %v640, 0
      %v689 = vsel %vm654, %v641, 0
      %v692 = vsel %vm654, %v642, 0
      %v695 = vsel %vm654, %v643, 0
      %v698 = vsel %vm654, %v644, 0
      %v701 = vsel %vm654, %v645, 0
      %703 = vmatpush.bf16.msra.mxu0 0
      %704 = vmatpush.bf16.msra.mxu0 0
      %705 = vmatpush.bf16.msra.mxu0 0
      %706 = vmatpush.bf16.msra.mxu0 0
      %707 = vmatpush.bf16.msra.mxu0 0
      %708 = vmatpush.bf16.msra.mxu0 0
      %709 = vmatpush.bf16.msra.mxu0 0
      %710 = vmatpush.bf16.msra.mxu0 %v652
      %711 = vmatmul.bf16.gmra.mxu0 %v656
      %v712 = vpop.f32.mrf.mxu0
      %v713 = vadd.f32 0.0, %v712
      %v714 = vpop.f32.mrf.mxu0
      %v715 = vadd.f32 0.0, %v714
      %716 = vmatmul.bf16.gmra.mxu0 %v659
      %v717 = vpop.f32.mrf.mxu0
      %v718 = vadd.f32 0.0, %v717
      %v719 = vpop.f32.mrf.mxu0
      %v720 = vadd.f32 0.0, %v719
      %721 = vmatmul.bf16.gmra.mxu0 %v662
      %v722 = vpop.f32.mrf.mxu0
      %v723 = vadd.f32 0.0, %v722
      %v724 = vpop.f32.mrf.mxu0
      %v725 = vadd.f32 0.0, %v724
      %726 = vmatmul.bf16.gmra.mxu0 %v665
      %v727 = vpop.f32.mrf.mxu0
      %v728 = vadd.f32 0.0, %v727
      %v729 = vpop.f32.mrf.mxu0
      %v730 = vadd.f32 0.0, %v729
      %731 = vmatmul.bf16.gmra.mxu0 %v668
      %v732 = vpop.f32.mrf.mxu0
      %v733 = vadd.f32 0.0, %v732
      %v734 = vpop.f32.mrf.mxu0
      %v735 = vadd.f32 0.0, %v734
      %736 = vmatmul.bf16.gmra.mxu0 %v671
      %v737 = vpop.f32.mrf.mxu0
      %v738 = vadd.f32 0.0, %v737
      %v739 = vpop.f32.mrf.mxu0
      %v740 = vadd.f32 0.0, %v739
      %741 = vmatmul.bf16.gmra.mxu0 %v674
      %v742 = vpop.f32.mrf.mxu0
      %v743 = vadd.f32 0.0, %v742
      %v744 = vpop.f32.mrf.mxu0
      %v745 = vadd.f32 0.0, %v744
      %746 = vmatmul.bf16.gmra.mxu0 %v677
      %v747 = vpop.f32.mrf.mxu0
      %v748 = vadd.f32 0.0, %v747
      %v749 = vpop.f32.mrf.mxu0
      %v750 = vadd.f32 0.0, %v749
      %751 = vmatmul.bf16.gmra.mxu0 %v680
      %v752 = vpop.f32.mrf.mxu0
      %v753 = vadd.f32 0.0, %v752
      %v754 = vpop.f32.mrf.mxu0
      %v755 = vadd.f32 0.0, %v754
      %756 = vmatmul.bf16.gmra.mxu0 %v683
      %v757 = vpop.f32.mrf.mxu0
      %v758 = vadd.f32 0.0, %v757
      %v759 = vpop.f32.mrf.mxu0
      %v760 = vadd.f32 0.0, %v759
      %761 = vmatmul.bf16.gmra.mxu0 %v686
      %v762 = vpop.f32.mrf.mxu0
      %v763 = vadd.f32 0.0, %v762
      %v764 = vpop.f32.mrf.mxu0
      %v765 = vadd.f32 0.0, %v764
      %766 = vmatmul.bf16.gmra.mxu0 %v689
      %v767 = vpop.f32.mrf.mxu0
      %v768 = vadd.f32 0.0, %v767
      %v769 = vpop.f32.mrf.mxu0
      %v770 = vadd.f32 0.0, %v769
      %771 = vmatmul.bf16.gmra.mxu0 %v692
      %v772 = vpop.f32.mrf.mxu0
      %v773 = vadd.f32 0.0, %v772
      %v774 = vpop.f32.mrf.mxu0
      %v775 = vadd.f32 0.0, %v774
      %776 = vmatmul.bf16.gmra.mxu0 %v695
      %v777 = vpop.f32.mrf.mxu0
      %v778 = vadd.f32 0.0, %v777
      %v779 = vpop.f32.mrf.mxu0
      %v780 = vadd.f32 0.0, %v779
      %781 = vmatmul.bf16.gmra.mxu0 %v698
      %v782 = vpop.f32.mrf.mxu0
      %v783 = vadd.f32 0.0, %v782
      %v784 = vpop.f32.mrf.mxu0
      %v785 = vadd.f32 0.0, %v784
      %786 = vmatmul.bf16.gmra.mxu0 %v701
      %v787 = vpop.f32.mrf.mxu0
      %v788 = vadd.f32 0.0, %v787
      %v789 = vpop.f32.mrf.mxu0
      %v790 = vadd.f32 0.0, %v789
      %791 = vdwg.mxu0
      %v794 = vunpack.c.l.b16 %v596
      %v795 = vunpack.c.l.b16 %v597
      %v796 = vpack.c.b16 %v795, %v794
      %v799 = vsel %vm654, %v580, 0
      %v802 = vsel %vm654, %v581, 0
      %v805 = vsel %vm654, %v582, 0
      %v808 = vsel %vm654, %v583, 0
      %v811 = vsel %vm654, %v584, 0
      %v814 = vsel %vm654, %v585, 0
      %v817 = vsel %vm654, %v586, 0
      %v820 = vsel %vm654, %v587, 0
      %v823 = vsel %vm654, %v588, 0
      %v826 = vsel %vm654, %v589, 0
      %v829 = vsel %vm654, %v590, 0
      %v832 = vsel %vm654, %v591, 0
      %v835 = vsel %vm654, %v592, 0
      %v838 = vsel %vm654, %v593, 0
      %v841 = vsel %vm654, %v594, 0
      %v844 = vsel %vm654, %v595, 0
      %846 = vmatpush.bf16.msra.mxu0 0
      %847 = vmatpush.bf16.msra.mxu0 0
      %848 = vmatpush.bf16.msra.mxu0 0
      %849 = vmatpush.bf16.msra.mxu0 0
      %850 = vmatpush.bf16.msra.mxu0 0
      %851 = vmatpush.bf16.msra.mxu0 0
      %852 = vmatpush.bf16.msra.mxu0 0
      %853 = vmatpush.bf16.msra.mxu0 %v796
      %854 = vmatmul.bf16.gmra.mxu0 %v799
      %v855 = vpop.f32.mrf.mxu0
      %v856 = vadd.f32 %v713, %v855
      %v857 = vpop.f32.mrf.mxu0
      %v858 = vadd.f32 %v715, %v857
      %859 = vmatmul.bf16.gmra.mxu0 %v802
      %v860 = vpop.f32.mrf.mxu0
      %v861 = vadd.f32 %v718, %v860
      %v862 = vpop.f32.mrf.mxu0
      %v863 = vadd.f32 %v720, %v862
      %864 = vmatmul.bf16.gmra.mxu0 %v805
      %v865 = vpop.f32.mrf.mxu0
      %v866 = vadd.f32 %v723, %v865
      %v867 = vpop.f32.mrf.mxu0
      %v868 = vadd.f32 %v725, %v867
      %869 = vmatmul.bf16.gmra.mxu0 %v808
      %v870 = vpop.f32.mrf.mxu0
      %v871 = vadd.f32 %v728, %v870
      %v872 = vpop.f32.mrf.mxu0
      %v873 = vadd.f32 %v730, %v872
      %874 = vmatmul.bf16.gmra.mxu0 %v811
      %v875 = vpop.f32.mrf.mxu0
      %v876 = vadd.f32 %v733, %v875
      %v877 = vpop.f32.mrf.mxu0
      %v878 = vadd.f32 %v735, %v877
      %879 = vmatmul.bf16.gmra.mxu0 %v814
      %v880 = vpop.f32.mrf.mxu0
      %v881 = vadd.f32 %v738, %v880
      %v882 = vpop.f32.mrf.mxu0
      %v883 = vadd.f32 %v740, %v882
      %884 = vmatmul.bf16.gmra.mxu0 %v817
      %v885 = vpop.f32.mrf.mxu0
      %v886 = vadd.f32 %v743, %v885
      %v887 = vpop.f32.mrf.mxu0
      %v888 = vadd.f32 %v745, %v887
      %889 = vmatmul.bf16.gmra.mxu0 %v820
      %v890 = vpop.f32.mrf.mxu0
      %v891 = vadd.f32 %v748, %v890
      %v892 = vpop.f32.mrf.mxu0
      %v893 = vadd.f32 %v750, %v892
      %894 = vmatmul.bf16.gmra.mxu0 %v823
      %v895 = vpop.f32.mrf.mxu0
      %v896 = vadd.f32 %v753, %v895
      %v897 = vpop.f32.mrf.mxu0
      %v898 = vadd.f32 %v755, %v897
      %899 = vmatmul.bf16.gmra.mxu0 %v826
      %v900 = vpop.f32.mrf.mxu0
      %v901 = vadd.f32 %v758, %v900
      %v902 = vpop.f32.mrf.mxu0
      %v903 = vadd.f32 %v760, %v902
      %904 = vmatmul.bf16.gmra.mxu0 %v829
      %v905 = vpop.f32.mrf.mxu0
      %v906 = vadd.f32 %v763, %v905
      %v907 = vpop.f32.mrf.mxu0
      %v908 = vadd.f32 %v765, %v907
      %909 = vmatmul.bf16.gmra.mxu0 %v832
      %v910 = vpop.f32.mrf.mxu0
      %v911 = vadd.f32 %v768, %v910
      %v912 = vpop.f32.mrf.mxu0
      %v913 = vadd.f32 %v770, %v912
      %914 = vmatmul.bf16.gmra.mxu0 %v835
      %v915 = vpop.f32.mrf.mxu0
      %v916 = vadd.f32 %v773, %v915
      %v917 = vpop.f32.mrf.mxu0
      %v918 = vadd.f32 %v775, %v917
      %919 = vmatmul.bf16.gmra.mxu0 %v838
      %v920 = vpop.f32.mrf.mxu0
      %v921 = vadd.f32 %v778, %v920
      %v922 = vpop.f32.mrf.mxu0
      %v923 = vadd.f32 %v780, %v922
      %924 = vmatmul.bf16.gmra.mxu0 %v841
      %v925 = vpop.f32.mrf.mxu0
      %v926 = vadd.f32 %v783, %v925
      %v927 = vpop.f32.mrf.mxu0
      %v928 = vadd.f32 %v785, %v927
      %929 = vmatmul.bf16.gmra.mxu0 %v844
      %v930 = vpop.f32.mrf.mxu0
      %v931 = vadd.f32 %v788, %v930
      %v932 = vpop.f32.mrf.mxu0
      %v933 = vadd.f32 %v790, %v932
      %934 = vdwg.mxu0
      %v935 = vld [vmem:[%s5] sm:$0x1]
      %v937 = vperm.slane %v935, 0
      %v939 = vadd.f32 %v856, %v937
      %v940 = vadd.f32 %v858, %v937
      %v941 = vadd.f32 %v861, %v937
      %v942 = vadd.f32 %v863, %v937
      %v943 = vadd.f32 %v866, %v937
      %v944 = vadd.f32 %v868, %v937
      %v945 = vadd.f32 %v871, %v937
      %v946 = vadd.f32 %v873, %v937
      %v947 = vadd.f32 %v876, %v937
      %v948 = vadd.f32 %v878, %v937
      %v949 = vadd.f32 %v881, %v937
      %v950 = vadd.f32 %v883, %v937
      %v951 = vadd.f32 %v886, %v937
      %v952 = vadd.f32 %v888, %v937
      %v953 = vadd.f32 %v891, %v937
      %v954 = vadd.f32 %v893, %v937
      %v955 = vadd.f32 %v896, %v937
      %v956 = vadd.f32 %v898, %v937
      %v957 = vadd.f32 %v901, %v937
      %v958 = vadd.f32 %v903, %v937
      %v959 = vadd.f32 %v906, %v937
      %v960 = vadd.f32 %v908, %v937
      %v961 = vadd.f32 %v911, %v937
      %v962 = vadd.f32 %v913, %v937
      %v963 = vadd.f32 %v916, %v937
      %v964 = vadd.f32 %v918, %v937
      %v965 = vadd.f32 %v921, %v937
      %v966 = vadd.f32 %v923, %v937
      %v967 = vadd.f32 %v926, %v937
      %v968 = vadd.f32 %v928, %v937
      %v969 = vadd.f32 %v931, %v937
      %v970 = vadd.f32 %v933, %v937
      %v971 = vld [vmem:[%s6] sm:$0x1]
      %v972 = vld [vmem:[%s7] sm:$0x1]
      %vm973 = vcmask 261120
      %v974 = vsel %vm973, %v939, 0.0
      %975 = vadd.xlane.f32.xlu0 %v974
      %v976 = vpop.xlane.xlu0 %975
      %v977 = vsel %vm973, %v940, 0.0
      %978 = vadd.xlane.f32.xlu0 %v977
      %v979 = vpop.xlane.xlu0 %978
      %v980 = vsel %vm973, %v941, 0.0
      %981 = vadd.xlane.f32.xlu0 %v980
      %v982 = vpop.xlane.xlu0 %981
      %v983 = vsel %vm973, %v942, 0.0
      %984 = vadd.xlane.f32.xlu0 %v983
      %v985 = vpop.xlane.xlu0 %984
      %v986 = vsel %vm973, %v943, 0.0
      %987 = vadd.xlane.f32.xlu0 %v986
      %v988 = vpop.xlane.xlu0 %987
      %v989 = vsel %vm973, %v944, 0.0
      %990 = vadd.xlane.f32.xlu0 %v989
      %v991 = vpop.xlane.xlu0 %990
      %v992 = vsel %vm973, %v945, 0.0
      %993 = vadd.xlane.f32.xlu0 %v992
      %v994 = vpop.xlane.xlu0 %993
      %v995 = vsel %vm973, %v946, 0.0
      %996 = vadd.xlane.f32.xlu0 %v995
      %v997 = vpop.xlane.xlu0 %996
      %v998 = vsel %vm973, %v947, 0.0
      %999 = vadd.xlane.f32.xlu0 %v998
      %v1000 = vpop.xlane.xlu0 %999
      %v1001 = vsel %vm973, %v948, 0.0
      %1002 = vadd.xlane.f32.xlu0 %v1001
      %v1003 = vpop.xlane.xlu0 %1002
      %v1004 = vsel %vm973, %v949, 0.0
      %1005 = vadd.xlane.f32.xlu0 %v1004
      %v1006 = vpop.xlane.xlu0 %1005
      %v1007 = vsel %vm973, %v950, 0.0
      %1008 = vadd.xlane.f32.xlu0 %v1007
      %v1009 = vpop.xlane.xlu0 %1008
      %v1010 = vsel %vm973, %v951, 0.0
      %1011 = vadd.xlane.f32.xlu0 %v1010
      %v1012 = vpop.xlane.xlu0 %1011
      %v1013 = vsel %vm973, %v952, 0.0
      %1014 = vadd.xlane.f32.xlu0 %v1013
      %v1015 = vpop.xlane.xlu0 %1014
      %v1016 = vsel %vm973, %v953, 0.0
      %1017 = vadd.xlane.f32.xlu0 %v1016
      %v1018 = vpop.xlane.xlu0 %1017
      %v1019 = vsel %vm973, %v954, 0.0
      %1020 = vadd.xlane.f32.xlu0 %v1019
      %v1021 = vpop.xlane.xlu0 %1020
      %v1022 = vsel %vm973, %v955, 0.0
      %1023 = vadd.xlane.f32.xlu0 %v1022
      %v1024 = vpop.xlane.xlu0 %1023
      %v1025 = vsel %vm973, %v956, 0.0
      %1026 = vadd.xlane.f32.xlu0 %v1025
      %v1027 = vpop.xlane.xlu0 %1026
      %v1028 = vsel %vm973, %v957, 0.0
      %1029 = vadd.xlane.f32.xlu0 %v1028
      %v1030 = vpop.xlane.xlu0 %1029
      %v1031 = vsel %vm973, %v958, 0.0
      %1032 = vadd.xlane.f32.xlu0 %v1031
      %v1033 = vpop.xlane.xlu0 %1032
      %v1034 = vsel %vm973, %v959, 0.0
      %1035 = vadd.xlane.f32.xlu0 %v1034
      %v1036 = vpop.xlane.xlu0 %1035
      %v1037 = vsel %vm973, %v960, 0.0
      %1038 = vadd.xlane.f32.xlu0 %v1037
      %v1039 = vpop.xlane.xlu0 %1038
      %v1040 = vsel %vm973, %v961, 0.0
      %1041 = vadd.xlane.f32.xlu0 %v1040
      %v1042 = vpop.xlane.xlu0 %1041
      %v1043 = vsel %vm973, %v962, 0.0
      %1044 = vadd.xlane.f32.xlu0 %v1043
      %v1045 = vpop.xlane.xlu0 %1044
      %v1046 = vsel %vm973, %v963, 0.0
      %1047 = vadd.xlane.f32.xlu0 %v1046
      %v1048 = vpop.xlane.xlu0 %1047
      %v1049 = vsel %vm973, %v964, 0.0
      %1050 = vadd.xlane.f32.xlu0 %v1049
      %v1051 = vpop.xlane.xlu0 %1050
      %v1052 = vsel %vm973, %v965, 0.0
      %1053 = vadd.xlane.f32.xlu0 %v1052
      %v1054 = vpop.xlane.xlu0 %1053
      %v1055 = vsel %vm973, %v966, 0.0
      %1056 = vadd.xlane.f32.xlu0 %v1055
      %v1057 = vpop.xlane.xlu0 %1056
      %v1058 = vsel %vm973, %v967, 0.0
      %1059 = vadd.xlane.f32.xlu0 %v1058
      %v1060 = vpop.xlane.xlu0 %1059
      %v1061 = vsel %vm973, %v968, 0.0
      %1062 = vadd.xlane.f32.xlu0 %v1061
      %v1063 = vpop.xlane.xlu0 %1062
      %v1064 = vsel %vm973, %v969, 0.0
      %1065 = vadd.xlane.f32.xlu0 %v1064
      %v1066 = vpop.xlane.xlu0 %1065
      %v1067 = vsel %vm973, %v970, 0.0
      %1068 = vadd.xlane.f32.xlu0 %v1067
      %v1069 = vpop.xlane.xlu0 %1068
      %v1070 = vrcp.pop 32.0
      %v1071 = vmul.f32 32.0, %v1070
      %v1072 = vsub.f32 1.0, %v1071
      %v1073 = vmul.f32 %v1070, %v1072
      %v1074 = vadd.f32 %v1070, %v1073
      %vm1075 = vweird.f32 %v1070
      %v1076 = vsel %vm1075, %v1070, %v1074
      %v1077 = vmul.f32 %v976, %v1076
      %v1078 = vmul.f32 %v979, %v1076
      %v1079 = vmul.f32 %v982, %v1076
      %v1080 = vmul.f32 %v985, %v1076
      %v1081 = vmul.f32 %v988, %v1076
      %v1082 = vmul.f32 %v991, %v1076
      %v1083 = vmul.f32 %v994, %v1076
      %v1084 = vmul.f32 %v997, %v1076
      %v1085 = vmul.f32 %v1000, %v1076
      %v1086 = vmul.f32 %v1003, %v1076
      %v1087 = vmul.f32 %v1006, %v1076
      %v1088 = vmul.f32 %v1009, %v1076
      %v1089 = vmul.f32 %v1012, %v1076
      %v1090 = vmul.f32 %v1015, %v1076
      %v1091 = vmul.f32 %v1018, %v1076
      %v1092 = vmul.f32 %v1021, %v1076
      %v1093 = vmul.f32 %v1024, %v1076
      %v1094 = vmul.f32 %v1027, %v1076
      %v1095 = vmul.f32 %v1030, %v1076
      %v1096 = vmul.f32 %v1033, %v1076
      %v1097 = vmul.f32 %v1036, %v1076
      %v1098 = vmul.f32 %v1039, %v1076
      %v1099 = vmul.f32 %v1042, %v1076
      %v1100 = vmul.f32 %v1045, %v1076
      %v1101 = vmul.f32 %v1048, %v1076
      %v1102 = vmul.f32 %v1051, %v1076
      %v1103 = vmul.f32 %v1054, %v1076
      %v1104 = vmul.f32 %v1057, %v1076
      %v1105 = vmul.f32 %v1060, %v1076
      %v1106 = vmul.f32 %v1063, %v1076
      %v1107 = vmul.f32 %v1066, %v1076
      %v1108 = vmul.f32 %v1069, %v1076
      %v1109 = vsub.f32 %v939, %v1077
      %v1110 = vsub.f32 %v940, %v1078
      %v1111 = vsub.f32 %v941, %v1079
      %v1112 = vsub.f32 %v942, %v1080
      %v1113 = vsub.f32 %v943, %v1081
      %v1114 = vsub.f32 %v944, %v1082
      %v1115 = vsub.f32 %v945, %v1083
      %v1116 = vsub.f32 %v946, %v1084
      %v1117 = vsub.f32 %v947, %v1085
      %v1118 = vsub.f32 %v948, %v1086
      %v1119 = vsub.f32 %v949, %v1087
      %v1120 = vsub.f32 %v950, %v1088
      %v1121 = vsub.f32 %v951, %v1089
      %v1122 = vsub.f32 %v952, %v1090
      %v1123 = vsub.f32 %v953, %v1091
      %v1124 = vsub.f32 %v954, %v1092
      %v1125 = vsub.f32 %v955, %v1093
      %v1126 = vsub.f32 %v956, %v1094
      %v1127 = vsub.f32 %v957, %v1095
      %v1128 = vsub.f32 %v958, %v1096
      %v1129 = vsub.f32 %v959, %v1097
      %v1130 = vsub.f32 %v960, %v1098
      %v1131 = vsub.f32 %v961, %v1099
      %v1132 = vsub.f32 %v962, %v1100
      %v1133 = vsub.f32 %v963, %v1101
      %v1134 = vsub.f32 %v964, %v1102
      %v1135 = vsub.f32 %v965, %v1103
      %v1136 = vsub.f32 %v966, %v1104
      %v1137 = vsub.f32 %v967, %v1105
      %v1138 = vsub.f32 %v968, %v1106
      %v1139 = vsub.f32 %v969, %v1107
      %v1140 = vsub.f32 %v970, %v1108
      %v1141 = vmul.f32 %v1109, %v1109
      %v1142 = vmul.f32 %v1110, %v1110
      %v1143 = vmul.f32 %v1111, %v1111
      %v1144 = vmul.f32 %v1112, %v1112
      %v1145 = vmul.f32 %v1113, %v1113
      %v1146 = vmul.f32 %v1114, %v1114
      %v1147 = vmul.f32 %v1115, %v1115
      %v1148 = vmul.f32 %v1116, %v1116
      %v1149 = vmul.f32 %v1117, %v1117
      %v1150 = vmul.f32 %v1118, %v1118
      %v1151 = vmul.f32 %v1119, %v1119
      %v1152 = vmul.f32 %v1120, %v1120
      %v1153 = vmul.f32 %v1121, %v1121
      %v1154 = vmul.f32 %v1122, %v1122
      %v1155 = vmul.f32 %v1123, %v1123
      %v1156 = vmul.f32 %v1124, %v1124
      %v1157 = vmul.f32 %v1125, %v1125
      %v1158 = vmul.f32 %v1126, %v1126
      %v1159 = vmul.f32 %v1127, %v1127
      %v1160 = vmul.f32 %v1128, %v1128
      %v1161 = vmul.f32 %v1129, %v1129
      %v1162 = vmul.f32 %v1130, %v1130
      %v1163 = vmul.f32 %v1131, %v1131
      %v1164 = vmul.f32 %v1132, %v1132
      %v1165 = vmul.f32 %v1133, %v1133
      %v1166 = vmul.f32 %v1134, %v1134
      %v1167 = vmul.f32 %v1135, %v1135
      %v1168 = vmul.f32 %v1136, %v1136
      %v1169 = vmul.f32 %v1137, %v1137
      %v1170 = vmul.f32 %v1138, %v1138
      %v1171 = vmul.f32 %v1139, %v1139
      %v1172 = vmul.f32 %v1140, %v1140
      %v1173 = vsel %vm973, %v1141, 0.0
      %1174 = vadd.xlane.f32.xlu0 %v1173
      %v1175 = vpop.xlane.xlu0 %1174
      %v1176 = vsel %vm973, %v1142, 0.0
      %1177 = vadd.xlane.f32.xlu0 %v1176
      %v1178 = vpop.xlane.xlu0 %1177
      %v1179 = vsel %vm973, %v1143, 0.0
      %1180 = vadd.xlane.f32.xlu0 %v1179
      %v1181 = vpop.xlane.xlu0 %1180
      %v1182 = vsel %vm973, %v1144, 0.0
      %1183 = vadd.xlane.f32.xlu0 %v1182
      %v1184 = vpop.xlane.xlu0 %1183
      %v1185 = vsel %vm973, %v1145, 0.0
      %1186 = vadd.xlane.f32.xlu0 %v1185
      %v1187 = vpop.xlane.xlu0 %1186
      %v1188 = vsel %vm973, %v1146, 0.0
      %1189 = vadd.xlane.f32.xlu0 %v1188
      %v1190 = vpop.xlane.xlu0 %1189
      %v1191 = vsel %vm973, %v1147, 0.0
      %1192 = vadd.xlane.f32.xlu0 %v1191
      %v1193 = vpop.xlane.xlu0 %1192
      %v1194 = vsel %vm973, %v1148, 0.0
      %1195 = vadd.xlane.f32.xlu0 %v1194
      %v1196 = vpop.xlane.xlu0 %1195
      %v1197 = vsel %vm973, %v1149, 0.0
      %1198 = vadd.xlane.f32.xlu0 %v1197
      %v1199 = vpop.xlane.xlu0 %1198
      %v1200 = vsel %vm973, %v1150, 0.0
      %1201 = vadd.xlane.f32.xlu0 %v1200
      %v1202 = vpop.xlane.xlu0 %1201
      %v1203 = vsel %vm973, %v1151, 0.0
      %1204 = vadd.xlane.f32.xlu0 %v1203
      %v1205 = vpop.xlane.xlu0 %1204
      %v1206 = vsel %vm973, %v1152, 0.0
      %1207 = vadd.xlane.f32.xlu0 %v1206
      %v1208 = vpop.xlane.xlu0 %1207
      %v1209 = vsel %vm973, %v1153, 0.0
      %1210 = vadd.xlane.f32.xlu0 %v1209
      %v1211 = vpop.xlane.xlu0 %1210
      %v1212 = vsel %vm973, %v1154, 0.0
      %1213 = vadd.xlane.f32.xlu0 %v1212
      %v1214 = vpop.xlane.xlu0 %1213
      %v1215 = vsel %vm973, %v1155, 0.0
      %1216 = vadd.xlane.f32.xlu0 %v1215
      %v1217 = vpop.xlane.xlu0 %1216
      %v1218 = vsel %vm973, %v1156, 0.0
      %1219 = vadd.xlane.f32.xlu0 %v1218
      %v1220 = vpop.xlane.xlu0 %1219
      %v1221 = vsel %vm973, %v1157, 0.0
      %1222 = vadd.xlane.f32.xlu0 %v1221
      %v1223 = vpop.xlane.xlu0 %1222
      %v1224 = vsel %vm973, %v1158, 0.0
      %1225 = vadd.xlane.f32.xlu0 %v1224
      %v1226 = vpop.xlane.xlu0 %1225
      %v1227 = vsel %vm973, %v1159, 0.0
      %1228 = vadd.xlane.f32.xlu0 %v1227
      %v1229 = vpop.xlane.xlu0 %1228
      %v1230 = vsel %vm973, %v1160, 0.0
      %1231 = vadd.xlane.f32.xlu0 %v1230
      %v1232 = vpop.xlane.xlu0 %1231
      %v1233 = vsel %vm973, %v1161, 0.0
      %1234 = vadd.xlane.f32.xlu0 %v1233
      %v1235 = vpop.xlane.xlu0 %1234
      %v1236 = vsel %vm973, %v1162, 0.0
      %1237 = vadd.xlane.f32.xlu0 %v1236
      %v1238 = vpop.xlane.xlu0 %1237
      %v1239 = vsel %vm973, %v1163, 0.0
      %1240 = vadd.xlane.f32.xlu0 %v1239
      %v1241 = vpop.xlane.xlu0 %1240
      %v1242 = vsel %vm973, %v1164, 0.0
      %1243 = vadd.xlane.f32.xlu0 %v1242
      %v1244 = vpop.xlane.xlu0 %1243
      %v1245 = vsel %vm973, %v1165, 0.0
      %1246 = vadd.xlane.f32.xlu0 %v1245
      %v1247 = vpop.xlane.xlu0 %1246
      %v1248 = vsel %vm973, %v1166, 0.0
      %1249 = vadd.xlane.f32.xlu0 %v1248
      %v1250 = vpop.xlane.xlu0 %1249
      %v1251 = vsel %vm973, %v1167, 0.0
      %1252 = vadd.xlane.f32.xlu0 %v1251
      %v1253 = vpop.xlane.xlu0 %1252
      %v1254 = vsel %vm973, %v1168, 0.0
      %1255 = vadd.xlane.f32.xlu0 %v1254
      %v1256 = vpop.xlane.xlu0 %1255
      %v1257 = vsel %vm973, %v1169, 0.0
      %1258 = vadd.xlane.f32.xlu0 %v1257
      %v1259 = vpop.xlane.xlu0 %1258
      %v1260 = vsel %vm973, %v1170, 0.0
      %1261 = vadd.xlane.f32.xlu0 %v1260
      %v1262 = vpop.xlane.xlu0 %1261
      %v1263 = vsel %vm973, %v1171, 0.0
      %1264 = vadd.xlane.f32.xlu0 %v1263
      %v1265 = vpop.xlane.xlu0 %1264
      %v1266 = vsel %vm973, %v1172, 0.0
      %1267 = vadd.xlane.f32.xlu0 %v1266
      %v1268 = vpop.xlane.xlu0 %1267
      %v1269 = vmul.f32 %v1175, %v1076
      %v1270 = vmul.f32 %v1178, %v1076
      %v1271 = vmul.f32 %v1181, %v1076
      %v1272 = vmul.f32 %v1184, %v1076
      %v1273 = vmul.f32 %v1187, %v1076
      %v1274 = vmul.f32 %v1190, %v1076
      %v1275 = vmul.f32 %v1193, %v1076
      %v1276 = vmul.f32 %v1196, %v1076
      %v1277 = vmul.f32 %v1199, %v1076
      %v1278 = vmul.f32 %v1202, %v1076
      %v1279 = vmul.f32 %v1205, %v1076
      %v1280 = vmul.f32 %v1208, %v1076
      %v1281 = vmul.f32 %v1211, %v1076
      %v1282 = vmul.f32 %v1214, %v1076
      %v1283 = vmul.f32 %v1217, %v1076
      %v1284 = vmul.f32 %v1220, %v1076
      %v1285 = vmul.f32 %v1223, %v1076
      %v1286 = vmul.f32 %v1226, %v1076
      %v1287 = vmul.f32 %v1229, %v1076
      %v1288 = vmul.f32 %v1232, %v1076
      %v1289 = vmul.f32 %v1235, %v1076
      %v1290 = vmul.f32 %v1238, %v1076
      %v1291 = vmul.f32 %v1241, %v1076
      %v1292 = vmul.f32 %v1244, %v1076
      %v1293 = vmul.f32 %v1247, %v1076
      %v1294 = vmul.f32 %v1250, %v1076
      %v1295 = vmul.f32 %v1253, %v1076
      %v1296 = vmul.f32 %v1256, %v1076
      %v1297 = vmul.f32 %v1259, %v1076
      %v1298 = vmul.f32 %v1262, %v1076
      %v1299 = vmul.f32 %v1265, %v1076
      %v1300 = vmul.f32 %v1268, %v1076
      %v1301 = vadd.f32 %v1269, 1e-05
      %v1302 = vadd.f32 %v1270, 1e-05
      %v1303 = vadd.f32 %v1271, 1e-05
      %v1304 = vadd.f32 %v1272, 1e-05
      %v1305 = vadd.f32 %v1273, 1e-05
      %v1306 = vadd.f32 %v1274, 1e-05
      %v1307 = vadd.f32 %v1275, 1e-05
      %v1308 = vadd.f32 %v1276, 1e-05
      %v1309 = vadd.f32 %v1277, 1e-05
      %v1310 = vadd.f32 %v1278, 1e-05
      %v1311 = vadd.f32 %v1279, 1e-05
      %v1312 = vadd.f32 %v1280, 1e-05
      %v1313 = vadd.f32 %v1281, 1e-05
      %v1314 = vadd.f32 %v1282, 1e-05
      %v1315 = vadd.f32 %v1283, 1e-05
      %v1316 = vadd.f32 %v1284, 1e-05
      %v1317 = vadd.f32 %v1285, 1e-05
      %v1318 = vadd.f32 %v1286, 1e-05
      %v1319 = vadd.f32 %v1287, 1e-05
      %v1320 = vadd.f32 %v1288, 1e-05
      %v1321 = vadd.f32 %v1289, 1e-05
      %v1322 = vadd.f32 %v1290, 1e-05
      %v1323 = vadd.f32 %v1291, 1e-05
      %v1324 = vadd.f32 %v1292, 1e-05
      %v1325 = vadd.f32 %v1293, 1e-05
      %v1326 = vadd.f32 %v1294, 1e-05
      %v1327 = vadd.f32 %v1295, 1e-05
      %v1328 = vadd.f32 %v1296, 1e-05
      %v1329 = vadd.f32 %v1297, 1e-05
      %v1330 = vadd.f32 %v1298, 1e-05
      %v1331 = vadd.f32 %v1299, 1e-05
      %v1332 = vadd.f32 %v1300, 1e-05
      %v1333 = vrsqrt.pop %v1301
      %v1334 = vmul.f32 %v1333, %v1301
      %v1335 = vmul.f32 %v1334, %v1333
      %v1336 = vmul.f32 0.5, %v1335
      %v1337 = vsub.f32 1.5, %v1336
      %v1338 = vmul.f32 %v1333, %v1337
      %vm1339 = vweird.f32 %v1301
      %vm1340 = vweird.f32 %v1333
      %vm1341 = vmor %vm1339, %vm1340
      %v1342 = vsel %vm1341, %v1333, %v1338
      %v1343 = vrsqrt.pop %v1302
      %v1344 = vmul.f32 %v1343, %v1302
      %v1345 = vmul.f32 %v1344, %v1343
      %v1346 = vmul.f32 0.5, %v1345
      %v1347 = vsub.f32 1.5, %v1346
      %v1348 = vmul.f32 %v1343, %v1347
      %vm1349 = vweird.f32 %v1302
      %vm1350 = vweird.f32 %v1343
      %vm1351 = vmor %vm1349, %vm1350
      %v1352 = vsel %vm1351, %v1343, %v1348
      %v1353 = vrsqrt.pop %v1303
      %v1354 = vmul.f32 %v1353, %v1303
      %v1355 = vmul.f32 %v1354, %v1353
      %v1356 = vmul.f32 0.5, %v1355
      %v1357 = vsub.f32 1.5, %v1356
      %v1358 = vmul.f32 %v1353, %v1357
      %vm1359 = vweird.f32 %v1303
      %vm1360 = vweird.f32 %v1353
      %vm1361 = vmor %vm1359, %vm1360
      %v1362 = vsel %vm1361, %v1353, %v1358
      %v1363 = vrsqrt.pop %v1304
      %v1364 = vmul.f32 %v1363, %v1304
      %v1365 = vmul.f32 %v1364, %v1363
      %v1366 = vmul.f32 0.5, %v1365
      %v1367 = vsub.f32 1.5, %v1366
      %v1368 = vmul.f32 %v1363, %v1367
      %vm1369 = vweird.f32 %v1304
      %vm1370 = vweird.f32 %v1363
      %vm1371 = vmor %vm1369, %vm1370
      %v1372 = vsel %vm1371, %v1363, %v1368
      %v1373 = vrsqrt.pop %v1305
      %v1374 = vmul.f32 %v1373, %v1305
      %v1375 = vmul.f32 %v1374, %v1373
      %v1376 = vmul.f32 0.5, %v1375
      %v1377 = vsub.f32 1.5, %v1376
      %v1378 = vmul.f32 %v1373, %v1377
      %vm1379 = vweird.f32 %v1305
      %vm1380 = vweird.f32 %v1373
      %vm1381 = vmor %vm1379, %vm1380
      %v1382 = vsel %vm1381, %v1373, %v1378
      %v1383 = vrsqrt.pop %v1306
      %v1384 = vmul.f32 %v1383, %v1306
      %v1385 = vmul.f32 %v1384, %v1383
      %v1386 = vmul.f32 0.5, %v1385
      %v1387 = vsub.f32 1.5, %v1386
      %v1388 = vmul.f32 %v1383, %v1387
      %vm1389 = vweird.f32 %v1306
      %vm1390 = vweird.f32 %v1383
      %vm1391 = vmor %vm1389, %vm1390
      %v1392 = vsel %vm1391, %v1383, %v1388
      %v1393 = vrsqrt.pop %v1307
      %v1394 = vmul.f32 %v1393, %v1307
      %v1395 = vmul.f32 %v1394, %v1393
      %v1396 = vmul.f32 0.5, %v1395
      %v1397 = vsub.f32 1.5, %v1396
      %v1398 = vmul.f32 %v1393, %v1397
      %vm1399 = vweird.f32 %v1307
      %vm1400 = vweird.f32 %v1393
      %vm1401 = vmor %vm1399, %vm1400
      %v1402 = vsel %vm1401, %v1393, %v1398
      %v1403 = vrsqrt.pop %v1308
      %v1404 = vmul.f32 %v1403, %v1308
      %v1405 = vmul.f32 %v1404, %v1403
      %v1406 = vmul.f32 0.5, %v1405
      %v1407 = vsub.f32 1.5, %v1406
      %v1408 = vmul.f32 %v1403, %v1407
      %vm1409 = vweird.f32 %v1308
      %vm1410 = vweird.f32 %v1403
      %vm1411 = vmor %vm1409, %vm1410
      %v1412 = vsel %vm1411, %v1403, %v1408
      %v1413 = vrsqrt.pop %v1309
      %v1414 = vmul.f32 %v1413, %v1309
      %v1415 = vmul.f32 %v1414, %v1413
      %v1416 = vmul.f32 0.5, %v1415
      %v1417 = vsub.f32 1.5, %v1416
      %v1418 = vmul.f32 %v1413, %v1417
      %vm1419 = vweird.f32 %v1309
      %vm1420 = vweird.f32 %v1413
      %vm1421 = vmor %vm1419, %vm1420
      %v1422 = vsel %vm1421, %v1413, %v1418
      %v1423 = vrsqrt.pop %v1310
      %v1424 = vmul.f32 %v1423, %v1310
      %v1425 = vmul.f32 %v1424, %v1423
      %v1426 = vmul.f32 0.5, %v1425
      %v1427 = vsub.f32 1.5, %v1426
      %v1428 = vmul.f32 %v1423, %v1427
      %vm1429 = vweird.f32 %v1310
      %vm1430 = vweird.f32 %v1423
      %vm1431 = vmor %vm1429, %vm1430
      %v1432 = vsel %vm1431, %v1423, %v1428
      %v1433 = vrsqrt.pop %v1311
      %v1434 = vmul.f32 %v1433, %v1311
      %v1435 = vmul.f32 %v1434, %v1433
      %v1436 = vmul.f32 0.5, %v1435
      %v1437 = vsub.f32 1.5, %v1436
      %v1438 = vmul.f32 %v1433, %v1437
      %vm1439 = vweird.f32 %v1311
      %vm1440 = vweird.f32 %v1433
      %vm1441 = vmor %vm1439, %vm1440
      %v1442 = vsel %vm1441, %v1433, %v1438
      %v1443 = vrsqrt.pop %v1312
      %v1444 = vmul.f32 %v1443, %v1312
      %v1445 = vmul.f32 %v1444, %v1443
      %v1446 = vmul.f32 0.5, %v1445
      %v1447 = vsub.f32 1.5, %v1446
      %v1448 = vmul.f32 %v1443, %v1447
      %vm1449 = vweird.f32 %v1312
      %vm1450 = vweird.f32 %v1443
      %vm1451 = vmor %vm1449, %vm1450
      %v1452 = vsel %vm1451, %v1443, %v1448
      %v1453 = vrsqrt.pop %v1313
      %v1454 = vmul.f32 %v1453, %v1313
      %v1455 = vmul.f32 %v1454, %v1453
      %v1456 = vmul.f32 0.5, %v1455
      %v1457 = vsub.f32 1.5, %v1456
      %v1458 = vmul.f32 %v1453, %v1457
      %vm1459 = vweird.f32 %v1313
      %vm1460 = vweird.f32 %v1453
      %vm1461 = vmor %vm1459, %vm1460
      %v1462 = vsel %vm1461, %v1453, %v1458
      %v1463 = vrsqrt.pop %v1314
      %v1464 = vmul.f32 %v1463, %v1314
      %v1465 = vmul.f32 %v1464, %v1463
      %v1466 = vmul.f32 0.5, %v1465
      %v1467 = vsub.f32 1.5, %v1466
      %v1468 = vmul.f32 %v1463, %v1467
      %vm1469 = vweird.f32 %v1314
      %vm1470 = vweird.f32 %v1463
      %vm1471 = vmor %vm1469, %vm1470
      %v1472 = vsel %vm1471, %v1463, %v1468
      %v1473 = vrsqrt.pop %v1315
      %v1474 = vmul.f32 %v1473, %v1315
      %v1475 = vmul.f32 %v1474, %v1473
      %v1476 = vmul.f32 0.5, %v1475
      %v1477 = vsub.f32 1.5, %v1476
      %v1478 = vmul.f32 %v1473, %v1477
      %vm1479 = vweird.f32 %v1315
      %vm1480 = vweird.f32 %v1473
      %vm1481 = vmor %vm1479, %vm1480
      %v1482 = vsel %vm1481, %v1473, %v1478
      %v1483 = vrsqrt.pop %v1316
      %v1484 = vmul.f32 %v1483, %v1316
      %v1485 = vmul.f32 %v1484, %v1483
      %v1486 = vmul.f32 0.5, %v1485
      %v1487 = vsub.f32 1.5, %v1486
      %v1488 = vmul.f32 %v1483, %v1487
      %vm1489 = vweird.f32 %v1316
      %vm1490 = vweird.f32 %v1483
      %vm1491 = vmor %vm1489, %vm1490
      %v1492 = vsel %vm1491, %v1483, %v1488
      %v1493 = vrsqrt.pop %v1317
      %v1494 = vmul.f32 %v1493, %v1317
      %v1495 = vmul.f32 %v1494, %v1493
      %v1496 = vmul.f32 0.5, %v1495
      %v1497 = vsub.f32 1.5, %v1496
      %v1498 = vmul.f32 %v1493, %v1497
      %vm1499 = vweird.f32 %v1317
      %vm1500 = vweird.f32 %v1493
      %vm1501 = vmor %vm1499, %vm1500
      %v1502 = vsel %vm1501, %v1493, %v1498
      %v1503 = vrsqrt.pop %v1318
      %v1504 = vmul.f32 %v1503, %v1318
      %v1505 = vmul.f32 %v1504, %v1503
      %v1506 = vmul.f32 0.5, %v1505
      %v1507 = vsub.f32 1.5, %v1506
      %v1508 = vmul.f32 %v1503, %v1507
      %vm1509 = vweird.f32 %v1318
      %vm1510 = vweird.f32 %v1503
      %vm1511 = vmor %vm1509, %vm1510
      %v1512 = vsel %vm1511, %v1503, %v1508
      %v1513 = vrsqrt.pop %v1319
      %v1514 = vmul.f32 %v1513, %v1319
      %v1515 = vmul.f32 %v1514, %v1513
      %v1516 = vmul.f32 0.5, %v1515
      %v1517 = vsub.f32 1.5, %v1516
      %v1518 = vmul.f32 %v1513, %v1517
      %vm1519 = vweird.f32 %v1319
      %vm1520 = vweird.f32 %v1513
      %vm1521 = vmor %vm1519, %vm1520
      %v1522 = vsel %vm1521, %v1513, %v1518
      %v1523 = vrsqrt.pop %v1320
      %v1524 = vmul.f32 %v1523, %v1320
      %v1525 = vmul.f32 %v1524, %v1523
      %v1526 = vmul.f32 0.5, %v1525
      %v1527 = vsub.f32 1.5, %v1526
      %v1528 = vmul.f32 %v1523, %v1527
      %vm1529 = vweird.f32 %v1320
      %vm1530 = vweird.f32 %v1523
      %vm1531 = vmor %vm1529, %vm1530
      %v1532 = vsel %vm1531, %v1523, %v1528
      %v1533 = vrsqrt.pop %v1321
      %v1534 = vmul.f32 %v1533, %v1321
      %v1535 = vmul.f32 %v1534, %v1533
      %v1536 = vmul.f32 0.5, %v1535
      %v1537 = vsub.f32 1.5, %v1536
      %v1538 = vmul.f32 %v1533, %v1537
      %vm1539 = vweird.f32 %v1321
      %vm1540 = vweird.f32 %v1533
      %vm1541 = vmor %vm1539, %vm1540
      %v1542 = vsel %vm1541, %v1533, %v1538
      %v1543 = vrsqrt.pop %v1322
      %v1544 = vmul.f32 %v1543, %v1322
      %v1545 = vmul.f32 %v1544, %v1543
      %v1546 = vmul.f32 0.5, %v1545
      %v1547 = vsub.f32 1.5, %v1546
      %v1548 = vmul.f32 %v1543, %v1547
      %vm1549 = vweird.f32 %v1322
      %vm1550 = vweird.f32 %v1543
      %vm1551 = vmor %vm1549, %vm1550
      %v1552 = vsel %vm1551, %v1543, %v1548
      %v1553 = vrsqrt.pop %v1323
      %v1554 = vmul.f32 %v1553, %v1323
      %v1555 = vmul.f32 %v1554, %v1553
      %v1556 = vmul.f32 0.5, %v1555
      %v1557 = vsub.f32 1.5, %v1556
      %v1558 = vmul.f32 %v1553, %v1557
      %vm1559 = vweird.f32 %v1323
      %vm1560 = vweird.f32 %v1553
      %vm1561 = vmor %vm1559, %vm1560
      %v1562 = vsel %vm1561, %v1553, %v1558
      %v1563 = vrsqrt.pop %v1324
      %v1564 = vmul.f32 %v1563, %v1324
      %v1565 = vmul.f32 %v1564, %v1563
      %v1566 = vmul.f32 0.5, %v1565
      %v1567 = vsub.f32 1.5, %v1566
      %v1568 = vmul.f32 %v1563, %v1567
      %vm1569 = vweird.f32 %v1324
      %vm1570 = vweird.f32 %v1563
      %vm1571 = vmor %vm1569, %vm1570
      %v1572 = vsel %vm1571, %v1563, %v1568
      %v1573 = vrsqrt.pop %v1325
      %v1574 = vmul.f32 %v1573, %v1325
      %v1575 = vmul.f32 %v1574, %v1573
      %v1576 = vmul.f32 0.5, %v1575
      %v1577 = vsub.f32 1.5, %v1576
      %v1578 = vmul.f32 %v1573, %v1577
      %vm1579 = vweird.f32 %v1325
      %vm1580 = vweird.f32 %v1573
      %vm1581 = vmor %vm1579, %vm1580
      %v1582 = vsel %vm1581, %v1573, %v1578
      %v1583 = vrsqrt.pop %v1326
      %v1584 = vmul.f32 %v1583, %v1326
      %v1585 = vmul.f32 %v1584, %v1583
      %v1586 = vmul.f32 0.5, %v1585
      %v1587 = vsub.f32 1.5, %v1586
      %v1588 = vmul.f32 %v1583, %v1587
      %vm1589 = vweird.f32 %v1326
      %vm1590 = vweird.f32 %v1583
      %vm1591 = vmor %vm1589, %vm1590
      %v1592 = vsel %vm1591, %v1583, %v1588
      %v1593 = vrsqrt.pop %v1327
      %v1594 = vmul.f32 %v1593, %v1327
      %v1595 = vmul.f32 %v1594, %v1593
      %v1596 = vmul.f32 0.5, %v1595
      %v1597 = vsub.f32 1.5, %v1596
      %v1598 = vmul.f32 %v1593, %v1597
      %vm1599 = vweird.f32 %v1327
      %vm1600 = vweird.f32 %v1593
      %vm1601 = vmor %vm1599, %vm1600
      %v1602 = vsel %vm1601, %v1593, %v1598
      %v1603 = vrsqrt.pop %v1328
      %v1604 = vmul.f32 %v1603, %v1328
      %v1605 = vmul.f32 %v1604, %v1603
      %v1606 = vmul.f32 0.5, %v1605
      %v1607 = vsub.f32 1.5, %v1606
      %v1608 = vmul.f32 %v1603, %v1607
      %vm1609 = vweird.f32 %v1328
      %vm1610 = vweird.f32 %v1603
      %vm1611 = vmor %vm1609, %vm1610
      %v1612 = vsel %vm1611, %v1603, %v1608
      %v1613 = vrsqrt.pop %v1329
      %v1614 = vmul.f32 %v1613, %v1329
      %v1615 = vmul.f32 %v1614, %v1613
      %v1616 = vmul.f32 0.5, %v1615
      %v1617 = vsub.f32 1.5, %v1616
      %v1618 = vmul.f32 %v1613, %v1617
      %vm1619 = vweird.f32 %v1329
      %vm1620 = vweird.f32 %v1613
      %vm1621 = vmor %vm1619, %vm1620
      %v1622 = vsel %vm1621, %v1613, %v1618
      %v1623 = vrsqrt.pop %v1330
      %v1624 = vmul.f32 %v1623, %v1330
      %v1625 = vmul.f32 %v1624, %v1623
      %v1626 = vmul.f32 0.5, %v1625
      %v1627 = vsub.f32 1.5, %v1626
      %v1628 = vmul.f32 %v1623, %v1627
      %vm1629 = vweird.f32 %v1330
      %vm1630 = vweird.f32 %v1623
      %vm1631 = vmor %vm1629, %vm1630
      %v1632 = vsel %vm1631, %v1623, %v1628
      %v1633 = vrsqrt.pop %v1331
      %v1634 = vmul.f32 %v1633, %v1331
      %v1635 = vmul.f32 %v1634, %v1633
      %v1636 = vmul.f32 0.5, %v1635
      %v1637 = vsub.f32 1.5, %v1636
      %v1638 = vmul.f32 %v1633, %v1637
      %vm1639 = vweird.f32 %v1331
      %vm1640 = vweird.f32 %v1633
      %vm1641 = vmor %vm1639, %vm1640
      %v1642 = vsel %vm1641, %v1633, %v1638
      %v1643 = vrsqrt.pop %v1332
      %v1644 = vmul.f32 %v1643, %v1332
      %v1645 = vmul.f32 %v1644, %v1643
      %v1646 = vmul.f32 0.5, %v1645
      %v1647 = vsub.f32 1.5, %v1646
      %v1648 = vmul.f32 %v1643, %v1647
      %vm1649 = vweird.f32 %v1332
      %vm1650 = vweird.f32 %v1643
      %vm1651 = vmor %vm1649, %vm1650
      %v1652 = vsel %vm1651, %v1643, %v1648
      %v1653 = vmul.f32 %v1109, %v1342
      %v1654 = vmul.f32 %v1110, %v1352
      %v1655 = vmul.f32 %v1111, %v1362
      %v1656 = vmul.f32 %v1112, %v1372
      %v1657 = vmul.f32 %v1113, %v1382
      %v1658 = vmul.f32 %v1114, %v1392
      %v1659 = vmul.f32 %v1115, %v1402
      %v1660 = vmul.f32 %v1116, %v1412
      %v1661 = vmul.f32 %v1117, %v1422
      %v1662 = vmul.f32 %v1118, %v1432
      %v1663 = vmul.f32 %v1119, %v1442
      %v1664 = vmul.f32 %v1120, %v1452
      %v1665 = vmul.f32 %v1121, %v1462
      %v1666 = vmul.f32 %v1122, %v1472
      %v1667 = vmul.f32 %v1123, %v1482
      %v1668 = vmul.f32 %v1124, %v1492
      %v1669 = vmul.f32 %v1125, %v1502
      %v1670 = vmul.f32 %v1126, %v1512
      %v1671 = vmul.f32 %v1127, %v1522
      %v1672 = vmul.f32 %v1128, %v1532
      %v1673 = vmul.f32 %v1129, %v1542
      %v1674 = vmul.f32 %v1130, %v1552
      %v1675 = vmul.f32 %v1131, %v1562
      %v1676 = vmul.f32 %v1132, %v1572
      %v1677 = vmul.f32 %v1133, %v1582
      %v1678 = vmul.f32 %v1134, %v1592
      %v1679 = vmul.f32 %v1135, %v1602
      %v1680 = vmul.f32 %v1136, %v1612
      %v1681 = vmul.f32 %v1137, %v1622
      %v1682 = vmul.f32 %v1138, %v1632
      %v1683 = vmul.f32 %v1139, %v1642
      %v1684 = vmul.f32 %v1140, %v1652
      %v1686 = vperm.slane %v971, 0
      %v1688 = vmul.f32 %v1653, %v1686
      %v1689 = vmul.f32 %v1654, %v1686
      %v1690 = vmul.f32 %v1655, %v1686
      %v1691 = vmul.f32 %v1656, %v1686
      %v1692 = vmul.f32 %v1657, %v1686
      %v1693 = vmul.f32 %v1658, %v1686
      %v1694 = vmul.f32 %v1659, %v1686
      %v1695 = vmul.f32 %v1660, %v1686
      %v1696 = vmul.f32 %v1661, %v1686
      %v1697 = vmul.f32 %v1662, %v1686
      %v1698 = vmul.f32 %v1663, %v1686
      %v1699 = vmul.f32 %v1664, %v1686
      %v1700 = vmul.f32 %v1665, %v1686
      %v1701 = vmul.f32 %v1666, %v1686
      %v1702 = vmul.f32 %v1667, %v1686
      %v1703 = vmul.f32 %v1668, %v1686
      %v1704 = vmul.f32 %v1669, %v1686
      %v1705 = vmul.f32 %v1670, %v1686
      %v1706 = vmul.f32 %v1671, %v1686
      %v1707 = vmul.f32 %v1672, %v1686
      %v1708 = vmul.f32 %v1673, %v1686
      %v1709 = vmul.f32 %v1674, %v1686
      %v1710 = vmul.f32 %v1675, %v1686
      %v1711 = vmul.f32 %v1676, %v1686
      %v1712 = vmul.f32 %v1677, %v1686
      %v1713 = vmul.f32 %v1678, %v1686
      %v1714 = vmul.f32 %v1679, %v1686
      %v1715 = vmul.f32 %v1680, %v1686
      %v1716 = vmul.f32 %v1681, %v1686
      %v1717 = vmul.f32 %v1682, %v1686
      %v1718 = vmul.f32 %v1683, %v1686
      %v1719 = vmul.f32 %v1684, %v1686
      %v1721 = vperm.slane %v972, 0
      %v1723 = vadd.f32 %v1688, %v1721
      %v1724 = vadd.f32 %v1689, %v1721
      %v1725 = vadd.f32 %v1690, %v1721
      %v1726 = vadd.f32 %v1691, %v1721
      %v1727 = vadd.f32 %v1692, %v1721
      %v1728 = vadd.f32 %v1693, %v1721
      %v1729 = vadd.f32 %v1694, %v1721
      %v1730 = vadd.f32 %v1695, %v1721
      %v1731 = vadd.f32 %v1696, %v1721
      %v1732 = vadd.f32 %v1697, %v1721
      %v1733 = vadd.f32 %v1698, %v1721
      %v1734 = vadd.f32 %v1699, %v1721
      %v1735 = vadd.f32 %v1700, %v1721
      %v1736 = vadd.f32 %v1701, %v1721
      %v1737 = vadd.f32 %v1702, %v1721
      %v1738 = vadd.f32 %v1703, %v1721
      %v1739 = vadd.f32 %v1704, %v1721
      %v1740 = vadd.f32 %v1705, %v1721
      %v1741 = vadd.f32 %v1706, %v1721
      %v1742 = vadd.f32 %v1707, %v1721
      %v1743 = vadd.f32 %v1708, %v1721
      %v1744 = vadd.f32 %v1709, %v1721
      %v1745 = vadd.f32 %v1710, %v1721
      %v1746 = vadd.f32 %v1711, %v1721
      %v1747 = vadd.f32 %v1712, %v1721
      %v1748 = vadd.f32 %v1713, %v1721
      %v1749 = vadd.f32 %v1714, %v1721
      %v1750 = vadd.f32 %v1715, %v1721
      %v1751 = vadd.f32 %v1716, %v1721
      %v1752 = vadd.f32 %v1717, %v1721
      %v1753 = vadd.f32 %v1718, %v1721
      %v1754 = vadd.f32 %v1719, %v1721
      %v1755 = vadd.f32 %v516, %v1723
      %v1756 = vadd.f32 %v517, %v1724
      %v1757 = vadd.f32 %v518, %v1725
      %v1758 = vadd.f32 %v519, %v1726
      %v1759 = vadd.f32 %v520, %v1727
      %v1760 = vadd.f32 %v521, %v1728
      %v1761 = vadd.f32 %v522, %v1729
      %v1762 = vadd.f32 %v523, %v1730
      %v1763 = vadd.f32 %v524, %v1731
      %v1764 = vadd.f32 %v525, %v1732
      %v1765 = vadd.f32 %v526, %v1733
      %v1766 = vadd.f32 %v527, %v1734
      %v1767 = vadd.f32 %v528, %v1735
      %v1768 = vadd.f32 %v529, %v1736
      %v1769 = vadd.f32 %v530, %v1737
      %v1770 = vadd.f32 %v531, %v1738
      %v1771 = vadd.f32 %v532, %v1739
      %v1772 = vadd.f32 %v533, %v1740
      %v1773 = vadd.f32 %v534, %v1741
      %v1774 = vadd.f32 %v535, %v1742
      %v1775 = vadd.f32 %v536, %v1743
      %v1776 = vadd.f32 %v537, %v1744
      %v1777 = vadd.f32 %v538, %v1745
      %v1778 = vadd.f32 %v539, %v1746
      %v1779 = vadd.f32 %v540, %v1747
      %v1780 = vadd.f32 %v541, %v1748
      %v1781 = vadd.f32 %v542, %v1749
      %v1782 = vadd.f32 %v543, %v1750
      %v1783 = vadd.f32 %v544, %v1751
      %v1784 = vadd.f32 %v545, %v1752
      %v1785 = vadd.f32 %v546, %v1753
      %v1786 = vadd.f32 %v547, %v1754
      %v1787 = vpack.c.bf16 %v1756, %v1755
      %v1788 = vpack.c.bf16 %v1758, %v1757
      %v1789 = vpack.c.bf16 %v1760, %v1759
      %v1790 = vpack.c.bf16 %v1762, %v1761
      %v1791 = vpack.c.bf16 %v1764, %v1763
      %v1792 = vpack.c.bf16 %v1766, %v1765
      %v1793 = vpack.c.bf16 %v1768, %v1767
      %v1794 = vpack.c.bf16 %v1770, %v1769
      %v1795 = vpack.c.bf16 %v1772, %v1771
      %v1796 = vpack.c.bf16 %v1774, %v1773
      %v1797 = vpack.c.bf16 %v1776, %v1775
      %v1798 = vpack.c.bf16 %v1778, %v1777
      %v1799 = vpack.c.bf16 %v1780, %v1779
      %v1800 = vpack.c.bf16 %v1782, %v1781
      %v1801 = vpack.c.bf16 %v1784, %v1783
      %v1802 = vpack.c.bf16 %v1786, %v1785
      %v1803 = vld [vmem:[%s8] sm:$0xf]
      %v1804 = vld [vmem:[%s8 + $0x4] sm:$0xf]
      %v1805 = vld [vmem:[%s8 + $0x8] sm:$0xf]
      %v1806 = vld [vmem:[%s8 + $0xc] sm:$0xf]
      %v1807 = vld [vmem:[%s9] sm:$0x1]
      %v1809 = vperm.slane %v1807, 0
      %v1815 = vunpack.c.l.b16 %v1803
      %v1816 = vunpack.c.l.b16 %v1804
      %v1817 = vunpack.c.l.b16 %v1805
      %v1818 = vunpack.c.l.b16 %v1806
      %v1819 = vpack.c.b16 %v1816, %v1815
      %v1820 = vpack.c.b16 %v1818, %v1817
      %v1824 = vsel %vm973, %v1787, 0
      %v1827 = vsel %vm973, %v1788, 0
      %v1830 = vsel %vm973, %v1789, 0
      %v1833 = vsel %vm973, %v1790, 0
      %v1836 = vsel %vm973, %v1791, 0
      %v1839 = vsel %vm973, %v1792, 0
      %v1842 = vsel %vm973, %v1793, 0
      %v1845 = vsel %vm973, %v1794, 0
      %v1848 = vsel %vm973, %v1795, 0
      %v1851 = vsel %vm973, %v1796, 0
      %v1854 = vsel %vm973, %v1797, 0
      %v1857 = vsel %vm973, %v1798, 0
      %v1860 = vsel %vm973, %v1799, 0
      %v1863 = vsel %vm973, %v1800, 0
      %v1866 = vsel %vm973, %v1801, 0
      %v1869 = vsel %vm973, %v1802, 0
      %1871 = vmatpush.bf16.msra.mxu0 0
      %1872 = vmatpush.bf16.msra.mxu0 0
      %1873 = vmatpush.bf16.msra.mxu0 0
      %1874 = vmatpush.bf16.msra.mxu0 0
      %1875 = vmatpush.bf16.msra.mxu0 0
      %1876 = vmatpush.bf16.msra.mxu0 0
      %1877 = vmatpush.bf16.msra.mxu0 %v1820
      %1878 = vmatpush.bf16.msra.mxu0 %v1819
      %1879 = vmatmul.bf16.gmra.mxu0 %v1824
      %v1880 = vpop.f32.mrf.mxu0
      %v1881 = vadd.f32 %v1809, %v1880
      %v1882 = vpop.f32.mrf.mxu0
      %v1883 = vadd.f32 %v1809, %v1882
      %1884 = vmatmul.bf16.gmra.mxu0 %v1827
      %v1885 = vpop.f32.mrf.mxu0
      %v1886 = vadd.f32 %v1809, %v1885
      %v1887 = vpop.f32.mrf.mxu0
      %v1888 = vadd.f32 %v1809, %v1887
      %1889 = vmatmul.bf16.gmra.mxu0 %v1830
      %v1890 = vpop.f32.mrf.mxu0
      %v1891 = vadd.f32 %v1809, %v1890
      %v1892 = vpop.f32.mrf.mxu0
      %v1893 = vadd.f32 %v1809, %v1892
      %1894 = vmatmul.bf16.gmra.mxu0 %v1833
      %v1895 = vpop.f32.mrf.mxu0
      %v1896 = vadd.f32 %v1809, %v1895
      %v1897 = vpop.f32.mrf.mxu0
      %v1898 = vadd.f32 %v1809, %v1897
      %1899 = vmatmul.bf16.gmra.mxu0 %v1836
      %v1900 = vpop.f32.mrf.mxu0
      %v1901 = vadd.f32 %v1809, %v1900
      %v1902 = vpop.f32.mrf.mxu0
      %v1903 = vadd.f32 %v1809, %v1902
      %1904 = vmatmul.bf16.gmra.mxu0 %v1839
      %v1905 = vpop.f32.mrf.mxu0
      %v1906 = vadd.f32 %v1809, %v1905
      %v1907 = vpop.f32.mrf.mxu0
      %v1908 = vadd.f32 %v1809, %v1907
      %1909 = vmatmul.bf16.gmra.mxu0 %v1842
      %v1910 = vpop.f32.mrf.mxu0
      %v1911 = vadd.f32 %v1809, %v1910
      %v1912 = vpop.f32.mrf.mxu0
      %v1913 = vadd.f32 %v1809, %v1912
      %1914 = vmatmul.bf16.gmra.mxu0 %v1845
      %v1915 = vpop.f32.mrf.mxu0
      %v1916 = vadd.f32 %v1809, %v1915
      %v1917 = vpop.f32.mrf.mxu0
      %v1918 = vadd.f32 %v1809, %v1917
      %1919 = vmatmul.bf16.gmra.mxu0 %v1848
      %v1920 = vpop.f32.mrf.mxu0
      %v1921 = vadd.f32 %v1809, %v1920
      %v1922 = vpop.f32.mrf.mxu0
      %v1923 = vadd.f32 %v1809, %v1922
      %1924 = vmatmul.bf16.gmra.mxu0 %v1851
      %v1925 = vpop.f32.mrf.mxu0
      %v1926 = vadd.f32 %v1809, %v1925
      %v1927 = vpop.f32.mrf.mxu0
      %v1928 = vadd.f32 %v1809, %v1927
      %1929 = vmatmul.bf16.gmra.mxu0 %v1854
      %v1930 = vpop.f32.mrf.mxu0
      %v1931 = vadd.f32 %v1809, %v1930
      %v1932 = vpop.f32.mrf.mxu0
      %v1933 = vadd.f32 %v1809, %v1932
      %1934 = vmatmul.bf16.gmra.mxu0 %v1857
      %v1935 = vpop.f32.mrf.mxu0
      %v1936 = vadd.f32 %v1809, %v1935
      %v1937 = vpop.f32.mrf.mxu0
      %v1938 = vadd.f32 %v1809, %v1937
      %1939 = vmatmul.bf16.gmra.mxu0 %v1860
      %v1940 = vpop.f32.mrf.mxu0
      %v1941 = vadd.f32 %v1809, %v1940
      %v1942 = vpop.f32.mrf.mxu0
      %v1943 = vadd.f32 %v1809, %v1942
      %1944 = vmatmul.bf16.gmra.mxu0 %v1863
      %v1945 = vpop.f32.mrf.mxu0
      %v1946 = vadd.f32 %v1809, %v1945
      %v1947 = vpop.f32.mrf.mxu0
      %v1948 = vadd.f32 %v1809, %v1947
      %1949 = vmatmul.bf16.gmra.mxu0 %v1866
      %v1950 = vpop.f32.mrf.mxu0
      %v1951 = vadd.f32 %v1809, %v1950
      %v1952 = vpop.f32.mrf.mxu0
      %v1953 = vadd.f32 %v1809, %v1952
      %1954 = vmatmul.bf16.gmra.mxu0 %v1869
      %v1955 = vpop.f32.mrf.mxu0
      %v1956 = vadd.f32 %v1809, %v1955
      %v1957 = vpop.f32.mrf.mxu0
      %v1958 = vadd.f32 %v1809, %v1957
      %1959 = vdwg.mxu0
      %v1960 = vmul.f32 %v1881, %v1881
      %v1961 = vmul.f32 %v1883, %v1883
      %v1962 = vmul.f32 %v1886, %v1886
      %v1963 = vmul.f32 %v1888, %v1888
      %v1964 = vmul.f32 %v1891, %v1891
      %v1965 = vmul.f32 %v1893, %v1893
      %v1966 = vmul.f32 %v1896, %v1896
      %v1967 = vmul.f32 %v1898, %v1898
      %v1968 = vmul.f32 %v1901, %v1901
      %v1969 = vmul.f32 %v1903, %v1903
      %v1970 = vmul.f32 %v1906, %v1906
      %v1971 = vmul.f32 %v1908, %v1908
      %v1972 = vmul.f32 %v1911, %v1911
      %v1973 = vmul.f32 %v1913, %v1913
      %v1974 = vmul.f32 %v1916, %v1916
      %v1975 = vmul.f32 %v1918, %v1918
      %v1976 = vmul.f32 %v1921, %v1921
      %v1977 = vmul.f32 %v1923, %v1923
      %v1978 = vmul.f32 %v1926, %v1926
      %v1979 = vmul.f32 %v1928, %v1928
      %v1980 = vmul.f32 %v1931, %v1931
      %v1981 = vmul.f32 %v1933, %v1933
      %v1982 = vmul.f32 %v1936, %v1936
      %v1983 = vmul.f32 %v1938, %v1938
      %v1984 = vmul.f32 %v1941, %v1941
      %v1985 = vmul.f32 %v1943, %v1943
      %v1986 = vmul.f32 %v1946, %v1946
      %v1987 = vmul.f32 %v1948, %v1948
      %v1988 = vmul.f32 %v1951, %v1951
      %v1989 = vmul.f32 %v1953, %v1953
      %v1990 = vmul.f32 %v1956, %v1956
      %v1991 = vmul.f32 %v1958, %v1958
      %v1992 = vmul.f32 %v1881, %v1960
      %v1993 = vmul.f32 %v1883, %v1961
      %v1994 = vmul.f32 %v1886, %v1962
      %v1995 = vmul.f32 %v1888, %v1963
      %v1996 = vmul.f32 %v1891, %v1964
      %v1997 = vmul.f32 %v1893, %v1965
      %v1998 = vmul.f32 %v1896, %v1966
      %v1999 = vmul.f32 %v1898, %v1967
      %v2000 = vmul.f32 %v1901, %v1968
      %v2001 = vmul.f32 %v1903, %v1969
      %v2002 = vmul.f32 %v1906, %v1970
      %v2003 = vmul.f32 %v1908, %v1971
      %v2004 = vmul.f32 %v1911, %v1972
      %v2005 = vmul.f32 %v1913, %v1973
      %v2006 = vmul.f32 %v1916, %v1974
      %v2007 = vmul.f32 %v1918, %v1975
      %v2008 = vmul.f32 %v1921, %v1976
      %v2009 = vmul.f32 %v1923, %v1977
      %v2010 = vmul.f32 %v1926, %v1978
      %v2011 = vmul.f32 %v1928, %v1979
      %v2012 = vmul.f32 %v1931, %v1980
      %v2013 = vmul.f32 %v1933, %v1981
      %v2014 = vmul.f32 %v1936, %v1982
      %v2015 = vmul.f32 %v1938, %v1983
      %v2016 = vmul.f32 %v1941, %v1984
      %v2017 = vmul.f32 %v1943, %v1985
      %v2018 = vmul.f32 %v1946, %v1986
      %v2019 = vmul.f32 %v1948, %v1987
      %v2020 = vmul.f32 %v1951, %v1988
      %v2021 = vmul.f32 %v1953, %v1989
      %v2022 = vmul.f32 %v1956, %v1990
      %v2023 = vmul.f32 %v1958, %v1991
      %v2024 = vmul.f32 %v1992, 0.044715
      %v2025 = vmul.f32 %v1993, 0.044715
      %v2026 = vmul.f32 %v1994, 0.044715
      %v2027 = vmul.f32 %v1995, 0.044715
      %v2028 = vmul.f32 %v1996, 0.044715
      %v2029 = vmul.f32 %v1997, 0.044715
      %v2030 = vmul.f32 %v1998, 0.044715
      %v2031 = vmul.f32 %v1999, 0.044715
      %v2032 = vmul.f32 %v2000, 0.044715
      %v2033 = vmul.f32 %v2001, 0.044715
      %v2034 = vmul.f32 %v2002, 0.044715
      %v2035 = vmul.f32 %v2003, 0.044715
      %v2036 = vmul.f32 %v2004, 0.044715
      %v2037 = vmul.f32 %v2005, 0.044715
      %v2038 = vmul.f32 %v2006, 0.044715
      %v2039 = vmul.f32 %v2007, 0.044715
      %v2040 = vmul.f32 %v2008, 0.044715
      %v2041 = vmul.f32 %v2009, 0.044715
      %v2042 = vmul.f32 %v2010, 0.044715
      %v2043 = vmul.f32 %v2011, 0.044715
      %v2044 = vmul.f32 %v2012, 0.044715
      %v2045 = vmul.f32 %v2013, 0.044715
      %v2046 = vmul.f32 %v2014, 0.044715
      %v2047 = vmul.f32 %v2015, 0.044715
      %v2048 = vmul.f32 %v2016, 0.044715
      %v2049 = vmul.f32 %v2017, 0.044715
      %v2050 = vmul.f32 %v2018, 0.044715
      %v2051 = vmul.f32 %v2019, 0.044715
      %v2052 = vmul.f32 %v2020, 0.044715
      %v2053 = vmul.f32 %v2021, 0.044715
      %v2054 = vmul.f32 %v2022, 0.044715
      %v2055 = vmul.f32 %v2023, 0.044715
      %v2056 = vadd.f32 %v1881, %v2024
      %v2057 = vadd.f32 %v1883, %v2025
      %v2058 = vadd.f32 %v1886, %v2026
      %v2059 = vadd.f32 %v1888, %v2027
      %v2060 = vadd.f32 %v1891, %v2028
      %v2061 = vadd.f32 %v1893, %v2029
      %v2062 = vadd.f32 %v1896, %v2030
      %v2063 = vadd.f32 %v1898, %v2031
      %v2064 = vadd.f32 %v1901, %v2032
      %v2065 = vadd.f32 %v1903, %v2033
      %v2066 = vadd.f32 %v1906, %v2034
      %v2067 = vadd.f32 %v1908, %v2035
      %v2068 = vadd.f32 %v1911, %v2036
      %v2069 = vadd.f32 %v1913, %v2037
      %v2070 = vadd.f32 %v1916, %v2038
      %v2071 = vadd.f32 %v1918, %v2039
      %v2072 = vadd.f32 %v1921, %v2040
      %v2073 = vadd.f32 %v1923, %v2041
      %v2074 = vadd.f32 %v1926, %v2042
      %v2075 = vadd.f32 %v1928, %v2043
      %v2076 = vadd.f32 %v1931, %v2044
      %v2077 = vadd.f32 %v1933, %v2045
      %v2078 = vadd.f32 %v1936, %v2046
      %v2079 = vadd.f32 %v1938, %v2047
      %v2080 = vadd.f32 %v1941, %v2048
      %v2081 = vadd.f32 %v1943, %v2049
      %v2082 = vadd.f32 %v1946, %v2050
      %v2083 = vadd.f32 %v1948, %v2051
      %v2084 = vadd.f32 %v1951, %v2052
      %v2085 = vadd.f32 %v1953, %v2053
      %v2086 = vadd.f32 %v1956, %v2054
      %v2087 = vadd.f32 %v1958, %v2055
      %v2088 = vmul.f32 %v2056, 0.7978846
      %v2089 = vmul.f32 %v2057, 0.7978846
      %v2090 = vmul.f32 %v2058, 0.7978846
      %v2091 = vmul.f32 %v2059, 0.7978846
      %v2092 = vmul.f32 %v2060, 0.7978846
      %v2093 = vmul.f32 %v2061, 0.7978846
      %v2094 = vmul.f32 %v2062, 0.7978846
      %v2095 = vmul.f32 %v2063, 0.7978846
      %v2096 = vmul.f32 %v2064, 0.7978846
      %v2097 = vmul.f32 %v2065, 0.7978846
      %v2098 = vmul.f32 %v2066, 0.7978846
      %v2099 = vmul.f32 %v2067, 0.7978846
      %v2100 = vmul.f32 %v2068, 0.7978846
      %v2101 = vmul.f32 %v2069, 0.7978846
      %v2102 = vmul.f32 %v2070, 0.7978846
      %v2103 = vmul.f32 %v2071, 0.7978846
      %v2104 = vmul.f32 %v2072, 0.7978846
      %v2105 = vmul.f32 %v2073, 0.7978846
      %v2106 = vmul.f32 %v2074, 0.7978846
      %v2107 = vmul.f32 %v2075, 0.7978846
      %v2108 = vmul.f32 %v2076, 0.7978846
      %v2109 = vmul.f32 %v2077, 0.7978846
      %v2110 = vmul.f32 %v2078, 0.7978846
      %v2111 = vmul.f32 %v2079, 0.7978846
      %v2112 = vmul.f32 %v2080, 0.7978846
      %v2113 = vmul.f32 %v2081, 0.7978846
      %v2114 = vmul.f32 %v2082, 0.7978846
      %v2115 = vmul.f32 %v2083, 0.7978846
      %v2116 = vmul.f32 %v2084, 0.7978846
      %v2117 = vmul.f32 %v2085, 0.7978846
      %v2118 = vmul.f32 %v2086, 0.7978846
      %v2119 = vmul.f32 %v2087, 0.7978846
      %v2120 = vtanh.pop %v2088
      %v2121 = vtanh.pop %v2089
      %v2122 = vtanh.pop %v2090
      %v2123 = vtanh.pop %v2091
      %v2124 = vtanh.pop %v2092
      %v2125 = vtanh.pop %v2093
      %v2126 = vtanh.pop %v2094
      %v2127 = vtanh.pop %v2095
      %v2128 = vtanh.pop %v2096
      %v2129 = vtanh.pop %v2097
      %v2130 = vtanh.pop %v2098
      %v2131 = vtanh.pop %v2099
      %v2132 = vtanh.pop %v2100
      %v2133 = vtanh.pop %v2101
      %v2134 = vtanh.pop %v2102
      %v2135 = vtanh.pop %v2103
      %v2136 = vtanh.pop %v2104
      %v2137 = vtanh.pop %v2105
      %v2138 = vtanh.pop %v2106
      %v2139 = vtanh.pop %v2107
      %v2140 = vtanh.pop %v2108
      %v2141 = vtanh.pop %v2109
      %v2142 = vtanh.pop %v2110
      %v2143 = vtanh.pop %v2111
      %v2144 = vtanh.pop %v2112
      %v2145 = vtanh.pop %v2113
      %v2146 = vtanh.pop %v2114
      %v2147 = vtanh.pop %v2115
      %v2148 = vtanh.pop %v2116
      %v2149 = vtanh.pop %v2117
      %v2150 = vtanh.pop %v2118
      %v2151 = vtanh.pop %v2119
      %v2152 = vadd.f32 %v2120, 1.0
      %v2153 = vadd.f32 %v2121, 1.0
      %v2154 = vadd.f32 %v2122, 1.0
      %v2155 = vadd.f32 %v2123, 1.0
      %v2156 = vadd.f32 %v2124, 1.0
      %v2157 = vadd.f32 %v2125, 1.0
      %v2158 = vadd.f32 %v2126, 1.0
      %v2159 = vadd.f32 %v2127, 1.0
      %v2160 = vadd.f32 %v2128, 1.0
      %v2161 = vadd.f32 %v2129, 1.0
      %v2162 = vadd.f32 %v2130, 1.0
      %v2163 = vadd.f32 %v2131, 1.0
      %v2164 = vadd.f32 %v2132, 1.0
      %v2165 = vadd.f32 %v2133, 1.0
      %v2166 = vadd.f32 %v2134, 1.0
      %v2167 = vadd.f32 %v2135, 1.0
      %v2168 = vadd.f32 %v2136, 1.0
      %v2169 = vadd.f32 %v2137, 1.0
      %v2170 = vadd.f32 %v2138, 1.0
      %v2171 = vadd.f32 %v2139, 1.0
      %v2172 = vadd.f32 %v2140, 1.0
      %v2173 = vadd.f32 %v2141, 1.0
      %v2174 = vadd.f32 %v2142, 1.0
      %v2175 = vadd.f32 %v2143, 1.0
      %v2176 = vadd.f32 %v2144, 1.0
      %v2177 = vadd.f32 %v2145, 1.0
      %v2178 = vadd.f32 %v2146, 1.0
      %v2179 = vadd.f32 %v2147, 1.0
      %v2180 = vadd.f32 %v2148, 1.0
      %v2181 = vadd.f32 %v2149, 1.0
      %v2182 = vadd.f32 %v2150, 1.0
      %v2183 = vadd.f32 %v2151, 1.0
      %v2184 = vmul.f32 %v2152, 0.5
      %v2185 = vmul.f32 %v2153, 0.5
      %v2186 = vmul.f32 %v2154, 0.5
      %v2187 = vmul.f32 %v2155, 0.5
      %v2188 = vmul.f32 %v2156, 0.5
      %v2189 = vmul.f32 %v2157, 0.5
      %v2190 = vmul.f32 %v2158, 0.5
      %v2191 = vmul.f32 %v2159, 0.5
      %v2192 = vmul.f32 %v2160, 0.5
      %v2193 = vmul.f32 %v2161, 0.5
      %v2194 = vmul.f32 %v2162, 0.5
      %v2195 = vmul.f32 %v2163, 0.5
      %v2196 = vmul.f32 %v2164, 0.5
      %v2197 = vmul.f32 %v2165, 0.5
      %v2198 = vmul.f32 %v2166, 0.5
      %v2199 = vmul.f32 %v2167, 0.5
      %v2200 = vmul.f32 %v2168, 0.5
      %v2201 = vmul.f32 %v2169, 0.5
      %v2202 = vmul.f32 %v2170, 0.5
      %v2203 = vmul.f32 %v2171, 0.5
      %v2204 = vmul.f32 %v2172, 0.5
      %v2205 = vmul.f32 %v2173, 0.5
      %v2206 = vmul.f32 %v2174, 0.5
      %v2207 = vmul.f32 %v2175, 0.5
      %v2208 = vmul.f32 %v2176, 0.5
      %v2209 = vmul.f32 %v2177, 0.5
      %v2210 = vmul.f32 %v2178, 0.5
      %v2211 = vmul.f32 %v2179, 0.5
      %v2212 = vmul.f32 %v2180, 0.5
      %v2213 = vmul.f32 %v2181, 0.5
      %v2214 = vmul.f32 %v2182, 0.5
      %v2215 = vmul.f32 %v2183, 0.5
      %v2216 = vmul.f32 %v1881, %v2184
      %v2217 = vmul.f32 %v1883, %v2185
      %v2218 = vmul.f32 %v1886, %v2186
      %v2219 = vmul.f32 %v1888, %v2187
      %v2220 = vmul.f32 %v1891, %v2188
      %v2221 = vmul.f32 %v1893, %v2189
      %v2222 = vmul.f32 %v1896, %v2190
      %v2223 = vmul.f32 %v1898, %v2191
      %v2224 = vmul.f32 %v1901, %v2192
      %v2225 = vmul.f32 %v1903, %v2193
      %v2226 = vmul.f32 %v1906, %v2194
      %v2227 = vmul.f32 %v1908, %v2195
      %v2228 = vmul.f32 %v1911, %v2196
      %v2229 = vmul.f32 %v1913, %v2197
      %v2230 = vmul.f32 %v1916, %v2198
      %v2231 = vmul.f32 %v1918, %v2199
      %v2232 = vmul.f32 %v1921, %v2200
      %v2233 = vmul.f32 %v1923, %v2201
      %v2234 = vmul.f32 %v1926, %v2202
      %v2235 = vmul.f32 %v1928, %v2203
      %v2236 = vmul.f32 %v1931, %v2204
      %v2237 = vmul.f32 %v1933, %v2205
      %v2238 = vmul.f32 %v1936, %v2206
      %v2239 = vmul.f32 %v1938, %v2207
      %v2240 = vmul.f32 %v1941, %v2208
      %v2241 = vmul.f32 %v1943, %v2209
      %v2242 = vmul.f32 %v1946, %v2210
      %v2243 = vmul.f32 %v1948, %v2211
      %v2244 = vmul.f32 %v1951, %v2212
      %v2245 = vmul.f32 %v1953, %v2213
      %v2246 = vmul.f32 %v1956, %v2214
      %v2247 = vmul.f32 %v1958, %v2215
      %v2248 = vpack.c.bf16 %v2217, %v2216
      %v2249 = vpack.c.bf16 %v2219, %v2218
      %v2250 = vpack.c.bf16 %v2221, %v2220
      %v2251 = vpack.c.bf16 %v2223, %v2222
      %v2252 = vpack.c.bf16 %v2225, %v2224
      %v2253 = vpack.c.bf16 %v2227, %v2226
      %v2254 = vpack.c.bf16 %v2229, %v2228
      %v2255 = vpack.c.bf16 %v2231, %v2230
      %v2256 = vpack.c.bf16 %v2233, %v2232
      %v2257 = vpack.c.bf16 %v2235, %v2234
      %v2258 = vpack.c.bf16 %v2237, %v2236
      %v2259 = vpack.c.bf16 %v2239, %v2238
      %v2260 = vpack.c.bf16 %v2241, %v2240
      %v2261 = vpack.c.bf16 %v2243, %v2242
      %v2262 = vpack.c.bf16 %v2245, %v2244
      %v2263 = vpack.c.bf16 %v2247, %v2246
      %v2264 = vld [vmem:[%s10] sm:$0xf]
      %v2265 = vld [vmem:[%s10 + $0x4] sm:$0xf]
      %v2266 = vld [vmem:[%s10 + $0x8] sm:$0xf]
      %v2267 = vld [vmem:[%s10 + $0xc] sm:$0xf]
      %v2268 = vld [vmem:[%s10 + $0x10] sm:$0xf]
      %v2269 = vld [vmem:[%s10 + $0x14] sm:$0xf]
      %v2270 = vld [vmem:[%s10 + $0x18] sm:$0xf]
      %v2271 = vld [vmem:[%s10 + $0x1c] sm:$0xf]
      %v2272 = vld [vmem:[%s11] sm:$0x1]
      %v2274 = vperm.slane %v2272, 0
      %v2284 = vunpack.c.l.b16 %v2264
      %v2285 = vunpack.c.l.b16 %v2265
      %v2286 = vunpack.c.l.b16 %v2266
      %v2287 = vunpack.c.l.b16 %v2267
      %v2288 = vunpack.c.l.b16 %v2268
      %v2289 = vunpack.c.l.b16 %v2269
      %v2290 = vunpack.c.l.b16 %v2270
      %v2291 = vunpack.c.l.b16 %v2271
      %v2292 = vpack.c.b16 %v2285, %v2284
      %v2293 = vpack.c.b16 %v2287, %v2286
      %v2294 = vpack.c.b16 %v2289, %v2288
      %v2295 = vpack.c.b16 %v2291, %v2290
      %vm2300 = vcmask 523264
      %v2302 = vsel %vm2300, %v2248, 0
      %v2305 = vsel %vm2300, %v2249, 0
      %v2308 = vsel %vm2300, %v2250, 0
      %v2311 = vsel %vm2300, %v2251, 0
      %v2314 = vsel %vm2300, %v2252, 0
      %v2317 = vsel %vm2300, %v2253, 0
      %v2320 = vsel %vm2300, %v2254, 0
      %v2323 = vsel %vm2300, %v2255, 0
      %v2326 = vsel %vm2300, %v2256, 0
      %v2329 = vsel %vm2300, %v2257, 0
      %v2332 = vsel %vm2300, %v2258, 0
      %v2335 = vsel %vm2300, %v2259, 0
      %v2338 = vsel %vm2300, %v2260, 0
      %v2341 = vsel %vm2300, %v2261, 0
      %v2344 = vsel %vm2300, %v2262, 0
      %v2347 = vsel %vm2300, %v2263, 0
      %2349 = vmatpush.bf16.msra.mxu0 0
      %2350 = vmatpush.bf16.msra.mxu0 0
      %2351 = vmatpush.bf16.msra.mxu0 0
      %2352 = vmatpush.bf16.msra.mxu0 0
      %2353 = vmatpush.bf16.msra.mxu0 %v2295
      %2354 = vmatpush.bf16.msra.mxu0 %v2294
      %2355 = vmatpush.bf16.msra.mxu0 %v2293
      %2356 = vmatpush.bf16.msra.mxu0 %v2292
      %2357 = vmatmul.bf16.gmra.mxu0 %v2302
      %v2358 = vpop.f32.mrf.mxu0
      %v2359 = vadd.f32 %v2274, %v2358
      %v2360 = vpop.f32.mrf.mxu0
      %v2361 = vadd.f32 %v2274, %v2360
      %2362 = vmatmul.bf16.gmra.mxu0 %v2305
      %v2363 = vpop.f32.mrf.mxu0
      %v2364 = vadd.f32 %v2274, %v2363
      %v2365 = vpop.f32.mrf.mxu0
      %v2366 = vadd.f32 %v2274, %v2365
      %2367 = vmatmul.bf16.gmra.mxu0 %v2308
      %v2368 = vpop.f32.mrf.mxu0
      %v2369 = vadd.f32 %v2274, %v2368
      %v2370 = vpop.f32.mrf.mxu0
      %v2371 = vadd.f32 %v2274, %v2370
      %2372 = vmatmul.bf16.gmra.mxu0 %v2311
      %v2373 = vpop.f32.mrf.mxu0
      %v2374 = vadd.f32 %v2274, %v2373
      %v2375 = vpop.f32.mrf.mxu0
      %v2376 = vadd.f32 %v2274, %v2375
      %2377 = vmatmul.bf16.gmra.mxu0 %v2314
      %v2378 = vpop.f32.mrf.mxu0
      %v2379 = vadd.f32 %v2274, %v2378
      %v2380 = vpop.f32.mrf.mxu0
      %v2381 = vadd.f32 %v2274, %v2380
      %2382 = vmatmul.bf16.gmra.mxu0 %v2317
      %v2383 = vpop.f32.mrf.mxu0
      %v2384 = vadd.f32 %v2274, %v2383
      %v2385 = vpop.f32.mrf.mxu0
      %v2386 = vadd.f32 %v2274, %v2385
      %2387 = vmatmul.bf16.gmra.mxu0 %v2320
      %v2388 = vpop.f32.mrf.mxu0
      %v2389 = vadd.f32 %v2274, %v2388
      %v2390 = vpop.f32.mrf.mxu0
      %v2391 = vadd.f32 %v2274, %v2390
      %2392 = vmatmul.bf16.gmra.mxu0 %v2323
      %v2393 = vpop.f32.mrf.mxu0
      %v2394 = vadd.f32 %v2274, %v2393
      %v2395 = vpop.f32.mrf.mxu0
      %v2396 = vadd.f32 %v2274, %v2395
      %2397 = vmatmul.bf16.gmra.mxu0 %v2326
      %v2398 = vpop.f32.mrf.mxu0
      %v2399 = vadd.f32 %v2274, %v2398
      %v2400 = vpop.f32.mrf.mxu0
      %v2401 = vadd.f32 %v2274, %v2400
      %2402 = vmatmul.bf16.gmra.mxu0 %v2329
      %v2403 = vpop.f32.mrf.mxu0
      %v2404 = vadd.f32 %v2274, %v2403
      %v2405 = vpop.f32.mrf.mxu0
      %v2406 = vadd.f32 %v2274, %v2405
      %2407 = vmatmul.bf16.gmra.mxu0 %v2332
      %v2408 = vpop.f32.mrf.mxu0
      %v2409 = vadd.f32 %v2274, %v2408
      %v2410 = vpop.f32.mrf.mxu0
      %v2411 = vadd.f32 %v2274, %v2410
      %2412 = vmatmul.bf16.gmra.mxu0 %v2335
      %v2413 = vpop.f32.mrf.mxu0
      %v2414 = vadd.f32 %v2274, %v2413
      %v2415 = vpop.f32.mrf.mxu0
      %v2416 = vadd.f32 %v2274, %v2415
      %2417 = vmatmul.bf16.gmra.mxu0 %v2338
      %v2418 = vpop.f32.mrf.mxu0
      %v2419 = vadd.f32 %v2274, %v2418
      %v2420 = vpop.f32.mrf.mxu0
      %v2421 = vadd.f32 %v2274, %v2420
      %2422 = vmatmul.bf16.gmra.mxu0 %v2341
      %v2423 = vpop.f32.mrf.mxu0
      %v2424 = vadd.f32 %v2274, %v2423
      %v2425 = vpop.f32.mrf.mxu0
      %v2426 = vadd.f32 %v2274, %v2425
      %2427 = vmatmul.bf16.gmra.mxu0 %v2344
      %v2428 = vpop.f32.mrf.mxu0
      %v2429 = vadd.f32 %v2274, %v2428
      %v2430 = vpop.f32.mrf.mxu0
      %v2431 = vadd.f32 %v2274, %v2430
      %2432 = vmatmul.bf16.gmra.mxu0 %v2347
      %v2433 = vpop.f32.mrf.mxu0
      %v2434 = vadd.f32 %v2274, %v2433
      %v2435 = vpop.f32.mrf.mxu0
      %v2436 = vadd.f32 %v2274, %v2435
      %2437 = vdwg.mxu0
      %v2438 = vld [vmem:[%s12] sm:$0x1]
      %v2439 = vld [vmem:[%s13] sm:$0x1]
      %v2440 = vsel %vm973, %v2359, 0.0
      %2441 = vadd.xlane.f32.xlu0 %v2440
      %v2442 = vpop.xlane.xlu0 %2441
      %v2443 = vsel %vm973, %v2361, 0.0
      %2444 = vadd.xlane.f32.xlu0 %v2443
      %v2445 = vpop.xlane.xlu0 %2444
      %v2446 = vsel %vm973, %v2364, 0.0
      %2447 = vadd.xlane.f32.xlu0 %v2446
      %v2448 = vpop.xlane.xlu0 %2447
      %v2449 = vsel %vm973, %v2366, 0.0
      %2450 = vadd.xlane.f32.xlu0 %v2449
      %v2451 = vpop.xlane.xlu0 %2450
      %v2452 = vsel %vm973, %v2369, 0.0
      %2453 = vadd.xlane.f32.xlu0 %v2452
      %v2454 = vpop.xlane.xlu0 %2453
      %v2455 = vsel %vm973, %v2371, 0.0
      %2456 = vadd.xlane.f32.xlu0 %v2455
      %v2457 = vpop.xlane.xlu0 %2456
      %v2458 = vsel %vm973, %v2374, 0.0
      %2459 = vadd.xlane.f32.xlu0 %v2458
      %v2460 = vpop.xlane.xlu0 %2459
      %v2461 = vsel %vm973, %v2376, 0.0
      %2462 = vadd.xlane.f32.xlu0 %v2461
      %v2463 = vpop.xlane.xlu0 %2462
      %v2464 = vsel %vm973, %v2379, 0.0
      %2465 = vadd.xlane.f32.xlu0 %v2464
      %v2466 = vpop.xlane.xlu0 %2465
      %v2467 = vsel %vm973, %v2381, 0.0
      %2468 = vadd.xlane.f32.xlu0 %v2467
      %v2469 = vpop.xlane.xlu0 %2468
      %v2470 = vsel %vm973, %v2384, 0.0
      %2471 = vadd.xlane.f32.xlu0 %v2470
      %v2472 = vpop.xlane.xlu0 %2471
      %v2473 = vsel %vm973, %v2386, 0.0
      %2474 = vadd.xlane.f32.xlu0 %v2473
      %v2475 = vpop.xlane.xlu0 %2474
      %v2476 = vsel %vm973, %v2389, 0.0
      %2477 = vadd.xlane.f32.xlu0 %v2476
      %v2478 = vpop.xlane.xlu0 %2477
      %v2479 = vsel %vm973, %v2391, 0.0
      %2480 = vadd.xlane.f32.xlu0 %v2479
      %v2481 = vpop.xlane.xlu0 %2480
      %v2482 = vsel %vm973, %v2394, 0.0
      %2483 = vadd.xlane.f32.xlu0 %v2482
      %v2484 = vpop.xlane.xlu0 %2483
      %v2485 = vsel %vm973, %v2396, 0.0
      %2486 = vadd.xlane.f32.xlu0 %v2485
      %v2487 = vpop.xlane.xlu0 %2486
      %v2488 = vsel %vm973, %v2399, 0.0
      %2489 = vadd.xlane.f32.xlu0 %v2488
      %v2490 = vpop.xlane.xlu0 %2489
      %v2491 = vsel %vm973, %v2401, 0.0
      %2492 = vadd.xlane.f32.xlu0 %v2491
      %v2493 = vpop.xlane.xlu0 %2492
      %v2494 = vsel %vm973, %v2404, 0.0
      %2495 = vadd.xlane.f32.xlu0 %v2494
      %v2496 = vpop.xlane.xlu0 %2495
      %v2497 = vsel %vm973, %v2406, 0.0
      %2498 = vadd.xlane.f32.xlu0 %v2497
      %v2499 = vpop.xlane.xlu0 %2498
      %v2500 = vsel %vm973, %v2409, 0.0
      %2501 = vadd.xlane.f32.xlu0 %v2500
      %v2502 = vpop.xlane.xlu0 %2501
      %v2503 = vsel %vm973, %v2411, 0.0
      %2504 = vadd.xlane.f32.xlu0 %v2503
      %v2505 = vpop.xlane.xlu0 %2504
      %v2506 = vsel %vm973, %v2414, 0.0
      %2507 = vadd.xlane.f32.xlu0 %v2506
      %v2508 = vpop.xlane.xlu0 %2507
      %v2509 = vsel %vm973, %v2416, 0.0
      %2510 = vadd.xlane.f32.xlu0 %v2509
      %v2511 = vpop.xlane.xlu0 %2510
      %v2512 = vsel %vm973, %v2419, 0.0
      %2513 = vadd.xlane.f32.xlu0 %v2512
      %v2514 = vpop.xlane.xlu0 %2513
      %v2515 = vsel %vm973, %v2421, 0.0
      %2516 = vadd.xlane.f32.xlu0 %v2515
      %v2517 = vpop.xlane.xlu0 %2516
      %v2518 = vsel %vm973, %v2424, 0.0
      %2519 = vadd.xlane.f32.xlu0 %v2518
      %v2520 = vpop.xlane.xlu0 %2519
      %v2521 = vsel %vm973, %v2426, 0.0
      %2522 = vadd.xlane.f32.xlu0 %v2521
      %v2523 = vpop.xlane.xlu0 %2522
      %v2524 = vsel %vm973, %v2429, 0.0
      %2525 = vadd.xlane.f32.xlu0 %v2524
      %v2526 = vpop.xlane.xlu0 %2525
      %v2527 = vsel %vm973, %v2431, 0.0
      %2528 = vadd.xlane.f32.xlu0 %v2527
      %v2529 = vpop.xlane.xlu0 %2528
      %v2530 = vsel %vm973, %v2434, 0.0
      %2531 = vadd.xlane.f32.xlu0 %v2530
      %v2532 = vpop.xlane.xlu0 %2531
      %v2533 = vsel %vm973, %v2436, 0.0
      %2534 = vadd.xlane.f32.xlu0 %v2533
      %v2535 = vpop.xlane.xlu0 %2534
      %v2536 = vmul.f32 %v2442, %v1076
      %v2537 = vmul.f32 %v2445, %v1076
      %v2538 = vmul.f32 %v2448, %v1076
      %v2539 = vmul.f32 %v2451, %v1076
      %v2540 = vmul.f32 %v2454, %v1076
      %v2541 = vmul.f32 %v2457, %v1076
      %v2542 = vmul.f32 %v2460, %v1076
      %v2543 = vmul.f32 %v2463, %v1076
      %v2544 = vmul.f32 %v2466, %v1076
      %v2545 = vmul.f32 %v2469, %v1076
      %v2546 = vmul.f32 %v2472, %v1076
      %v2547 = vmul.f32 %v2475, %v1076
      %v2548 = vmul.f32 %v2478, %v1076
      %v2549 = vmul.f32 %v2481, %v1076
      %v2550 = vmul.f32 %v2484, %v1076
      %v2551 = vmul.f32 %v2487, %v1076
      %v2552 = vmul.f32 %v2490, %v1076
      %v2553 = vmul.f32 %v2493, %v1076
      %v2554 = vmul.f32 %v2496, %v1076
      %v2555 = vmul.f32 %v2499, %v1076
      %v2556 = vmul.f32 %v2502, %v1076
      %v2557 = vmul.f32 %v2505, %v1076
      %v2558 = vmul.f32 %v2508, %v1076
      %v2559 = vmul.f32 %v2511, %v1076
      %v2560 = vmul.f32 %v2514, %v1076
      %v2561 = vmul.f32 %v2517, %v1076
      %v2562 = vmul.f32 %v2520, %v1076
      %v2563 = vmul.f32 %v2523, %v1076
      %v2564 = vmul.f32 %v2526, %v1076
      %v2565 = vmul.f32 %v2529, %v1076
      %v2566 = vmul.f32 %v2532, %v1076
      %v2567 = vmul.f32 %v2535, %v1076
      %v2568 = vsub.f32 %v2359, %v2536
      %v2569 = vsub.f32 %v2361, %v2537
      %v2570 = vsub.f32 %v2364, %v2538
      %v2571 = vsub.f32 %v2366, %v2539
      %v2572 = vsub.f32 %v2369, %v2540
      %v2573 = vsub.f32 %v2371, %v2541
      %v2574 = vsub.f32 %v2374, %v2542
      %v2575 = vsub.f32 %v2376, %v2543
      %v2576 = vsub.f32 %v2379, %v2544
      %v2577 = vsub.f32 %v2381, %v2545
      %v2578 = vsub.f32 %v2384, %v2546
      %v2579 = vsub.f32 %v2386, %v2547
      %v2580 = vsub.f32 %v2389, %v2548
      %v2581 = vsub.f32 %v2391, %v2549
      %v2582 = vsub.f32 %v2394, %v2550
      %v2583 = vsub.f32 %v2396, %v2551
      %v2584 = vsub.f32 %v2399, %v2552
      %v2585 = vsub.f32 %v2401, %v2553
      %v2586 = vsub.f32 %v2404, %v2554
      %v2587 = vsub.f32 %v2406, %v2555
      %v2588 = vsub.f32 %v2409, %v2556
      %v2589 = vsub.f32 %v2411, %v2557
      %v2590 = vsub.f32 %v2414, %v2558
      %v2591 = vsub.f32 %v2416, %v2559
      %v2592 = vsub.f32 %v2419, %v2560
      %v2593 = vsub.f32 %v2421, %v2561
      %v2594 = vsub.f32 %v2424, %v2562
      %v2595 = vsub.f32 %v2426, %v2563
      %v2596 = vsub.f32 %v2429, %v2564
      %v2597 = vsub.f32 %v2431, %v2565
      %v2598 = vsub.f32 %v2434, %v2566
      %v2599 = vsub.f32 %v2436, %v2567
      %v2600 = vmul.f32 %v2568, %v2568
      %v2601 = vmul.f32 %v2569, %v2569
      %v2602 = vmul.f32 %v2570, %v2570
      %v2603 = vmul.f32 %v2571, %v2571
      %v2604 = vmul.f32 %v2572, %v2572
      %v2605 = vmul.f32 %v2573, %v2573
      %v2606 = vmul.f32 %v2574, %v2574
      %v2607 = vmul.f32 %v2575, %v2575
      %v2608 = vmul.f32 %v2576, %v2576
      %v2609 = vmul.f32 %v2577, %v2577
      %v2610 = vmul.f32 %v2578, %v2578
      %v2611 = vmul.f32 %v2579, %v2579
      %v2612 = vmul.f32 %v2580, %v2580
      %v2613 = vmul.f32 %v2581, %v2581
      %v2614 = vmul.f32 %v2582, %v2582
      %v2615 = vmul.f32 %v2583, %v2583
      %v2616 = vmul.f32 %v2584, %v2584
      %v2617 = vmul.f32 %v2585, %v2585
      %v2618 = vmul.f32 %v2586, %v2586
      %v2619 = vmul.f32 %v2587, %v2587
      %v2620 = vmul.f32 %v2588, %v2588
      %v2621 = vmul.f32 %v2589, %v2589
      %v2622 = vmul.f32 %v2590, %v2590
      %v2623 = vmul.f32 %v2591, %v2591
      %v2624 = vmul.f32 %v2592, %v2592
      %v2625 = vmul.f32 %v2593, %v2593
      %v2626 = vmul.f32 %v2594, %v2594
      %v2627 = vmul.f32 %v2595, %v2595
      %v2628 = vmul.f32 %v2596, %v2596
      %v2629 = vmul.f32 %v2597, %v2597
      %v2630 = vmul.f32 %v2598, %v2598
      %v2631 = vmul.f32 %v2599, %v2599
      %v2632 = vsel %vm973, %v2600, 0.0
      %2633 = vadd.xlane.f32.xlu0 %v2632
      %v2634 = vpop.xlane.xlu0 %2633
      %v2635 = vsel %vm973, %v2601, 0.0
      %2636 = vadd.xlane.f32.xlu0 %v2635
      %v2637 = vpop.xlane.xlu0 %2636
      %v2638 = vsel %vm973, %v2602, 0.0
      %2639 = vadd.xlane.f32.xlu0 %v2638
      %v2640 = vpop.xlane.xlu0 %2639
      %v2641 = vsel %vm973, %v2603, 0.0
      %2642 = vadd.xlane.f32.xlu0 %v2641
      %v2643 = vpop.xlane.xlu0 %2642
      %v2644 = vsel %vm973, %v2604, 0.0
      %2645 = vadd.xlane.f32.xlu0 %v2644
      %v2646 = vpop.xlane.xlu0 %2645
      %v2647 = vsel %vm973, %v2605, 0.0
      %2648 = vadd.xlane.f32.xlu0 %v2647
      %v2649 = vpop.xlane.xlu0 %2648
      %v2650 = vsel %vm973, %v2606, 0.0
      %2651 = vadd.xlane.f32.xlu0 %v2650
      %v2652 = vpop.xlane.xlu0 %2651
      %v2653 = vsel %vm973, %v2607, 0.0
      %2654 = vadd.xlane.f32.xlu0 %v2653
      %v2655 = vpop.xlane.xlu0 %2654
      %v2656 = vsel %vm973, %v2608, 0.0
      %2657 = vadd.xlane.f32.xlu0 %v2656
      %v2658 = vpop.xlane.xlu0 %2657
      %v2659 = vsel %vm973, %v2609, 0.0
      %2660 = vadd.xlane.f32.xlu0 %v2659
      %v2661 = vpop.xlane.xlu0 %2660
      %v2662 = vsel %vm973, %v2610, 0.0
      %2663 = vadd.xlane.f32.xlu0 %v2662
      %v2664 = vpop.xlane.xlu0 %2663
      %v2665 = vsel %vm973, %v2611, 0.0
      %2666 = vadd.xlane.f32.xlu0 %v2665
      %v2667 = vpop.xlane.xlu0 %2666
      %v2668 = vsel %vm973, %v2612, 0.0
      %2669 = vadd.xlane.f32.xlu0 %v2668
      %v2670 = vpop.xlane.xlu0 %2669
      %v2671 = vsel %vm973, %v2613, 0.0
      %2672 = vadd.xlane.f32.xlu0 %v2671
      %v2673 = vpop.xlane.xlu0 %2672
      %v2674 = vsel %vm973, %v2614, 0.0
      %2675 = vadd.xlane.f32.xlu0 %v2674
      %v2676 = vpop.xlane.xlu0 %2675
      %v2677 = vsel %vm973, %v2615, 0.0
      %2678 = vadd.xlane.f32.xlu0 %v2677
      %v2679 = vpop.xlane.xlu0 %2678
      %v2680 = vsel %vm973, %v2616, 0.0
      %2681 = vadd.xlane.f32.xlu0 %v2680
      %v2682 = vpop.xlane.xlu0 %2681
      %v2683 = vsel %vm973, %v2617, 0.0
      %2684 = vadd.xlane.f32.xlu0 %v2683
      %v2685 = vpop.xlane.xlu0 %2684
      %v2686 = vsel %vm973, %v2618, 0.0
      %2687 = vadd.xlane.f32.xlu0 %v2686
      %v2688 = vpop.xlane.xlu0 %2687
      %v2689 = vsel %vm973, %v2619, 0.0
      %2690 = vadd.xlane.f32.xlu0 %v2689
      %v2691 = vpop.xlane.xlu0 %2690
      %v2692 = vsel %vm973, %v2620, 0.0
      %2693 = vadd.xlane.f32.xlu0 %v2692
      %v2694 = vpop.xlane.xlu0 %2693
      %v2695 = vsel %vm973, %v2621, 0.0
      %2696 = vadd.xlane.f32.xlu0 %v2695
      %v2697 = vpop.xlane.xlu0 %2696
      %v2698 = vsel %vm973, %v2622, 0.0
      %2699 = vadd.xlane.f32.xlu0 %v2698
      %v2700 = vpop.xlane.xlu0 %2699
      %v2701 = vsel %vm973, %v2623, 0.0
      %2702 = vadd.xlane.f32.xlu0 %v2701
      %v2703 = vpop.xlane.xlu0 %2702
      %v2704 = vsel %vm973, %v2624, 0.0
      %2705 = vadd.xlane.f32.xlu0 %v2704
      %v2706 = vpop.xlane.xlu0 %2705
      %v2707 = vsel %vm973, %v2625, 0.0
      %2708 = vadd.xlane.f32.xlu0 %v2707
      %v2709 = vpop.xlane.xlu0 %2708
      %v2710 = vsel %vm973, %v2626, 0.0
      %2711 = vadd.xlane.f32.xlu0 %v2710
      %v2712 = vpop.xlane.xlu0 %2711
      %v2713 = vsel %vm973, %v2627, 0.0
      %2714 = vadd.xlane.f32.xlu0 %v2713
      %v2715 = vpop.xlane.xlu0 %2714
      %v2716 = vsel %vm973, %v2628, 0.0
      %2717 = vadd.xlane.f32.xlu0 %v2716
      %v2718 = vpop.xlane.xlu0 %2717
      %v2719 = vsel %vm973, %v2629, 0.0
      %2720 = vadd.xlane.f32.xlu0 %v2719
      %v2721 = vpop.xlane.xlu0 %2720
      %v2722 = vsel %vm973, %v2630, 0.0
      %2723 = vadd.xlane.f32.xlu0 %v2722
      %v2724 = vpop.xlane.xlu0 %2723
      %v2725 = vsel %vm973, %v2631, 0.0
      %2726 = vadd.xlane.f32.xlu0 %v2725
      %v2727 = vpop.xlane.xlu0 %2726
      %v2728 = vmul.f32 %v2634, %v1076
      %v2729 = vmul.f32 %v2637, %v1076
      %v2730 = vmul.f32 %v2640, %v1076
      %v2731 = vmul.f32 %v2643, %v1076
      %v2732 = vmul.f32 %v2646, %v1076
      %v2733 = vmul.f32 %v2649, %v1076
      %v2734 = vmul.f32 %v2652, %v1076
      %v2735 = vmul.f32 %v2655, %v1076
      %v2736 = vmul.f32 %v2658, %v1076
      %v2737 = vmul.f32 %v2661, %v1076
      %v2738 = vmul.f32 %v2664, %v1076
      %v2739 = vmul.f32 %v2667, %v1076
      %v2740 = vmul.f32 %v2670, %v1076
      %v2741 = vmul.f32 %v2673, %v1076
      %v2742 = vmul.f32 %v2676, %v1076
      %v2743 = vmul.f32 %v2679, %v1076
      %v2744 = vmul.f32 %v2682, %v1076
      %v2745 = vmul.f32 %v2685, %v1076
      %v2746 = vmul.f32 %v2688, %v1076
      %v2747 = vmul.f32 %v2691, %v1076
      %v2748 = vmul.f32 %v2694, %v1076
      %v2749 = vmul.f32 %v2697, %v1076
      %v2750 = vmul.f32 %v2700, %v1076
      %v2751 = vmul.f32 %v2703, %v1076
      %v2752 = vmul.f32 %v2706, %v1076
      %v2753 = vmul.f32 %v2709, %v1076
      %v2754 = vmul.f32 %v2712, %v1076
      %v2755 = vmul.f32 %v2715, %v1076
      %v2756 = vmul.f32 %v2718, %v1076
      %v2757 = vmul.f32 %v2721, %v1076
      %v2758 = vmul.f32 %v2724, %v1076
      %v2759 = vmul.f32 %v2727, %v1076
      %v2760 = vadd.f32 %v2728, 1e-05
      %v2761 = vadd.f32 %v2729, 1e-05
      %v2762 = vadd.f32 %v2730, 1e-05
      %v2763 = vadd.f32 %v2731, 1e-05
      %v2764 = vadd.f32 %v2732, 1e-05
      %v2765 = vadd.f32 %v2733, 1e-05
      %v2766 = vadd.f32 %v2734, 1e-05
      %v2767 = vadd.f32 %v2735, 1e-05
      %v2768 = vadd.f32 %v2736, 1e-05
      %v2769 = vadd.f32 %v2737, 1e-05
      %v2770 = vadd.f32 %v2738, 1e-05
      %v2771 = vadd.f32 %v2739, 1e-05
      %v2772 = vadd.f32 %v2740, 1e-05
      %v2773 = vadd.f32 %v2741, 1e-05
      %v2774 = vadd.f32 %v2742, 1e-05
      %v2775 = vadd.f32 %v2743, 1e-05
      %v2776 = vadd.f32 %v2744, 1e-05
      %v2777 = vadd.f32 %v2745, 1e-05
      %v2778 = vadd.f32 %v2746, 1e-05
      %v2779 = vadd.f32 %v2747, 1e-05
      %v2780 = vadd.f32 %v2748, 1e-05
      %v2781 = vadd.f32 %v2749, 1e-05
      %v2782 = vadd.f32 %v2750, 1e-05
      %v2783 = vadd.f32 %v2751, 1e-05
      %v2784 = vadd.f32 %v2752, 1e-05
      %v2785 = vadd.f32 %v2753, 1e-05
      %v2786 = vadd.f32 %v2754, 1e-05
      %v2787 = vadd.f32 %v2755, 1e-05
      %v2788 = vadd.f32 %v2756, 1e-05
      %v2789 = vadd.f32 %v2757, 1e-05
      %v2790 = vadd.f32 %v2758, 1e-05
      %v2791 = vadd.f32 %v2759, 1e-05
      %v2792 = vrsqrt.pop %v2760
      %v2793 = vmul.f32 %v2792, %v2760
      %v2794 = vmul.f32 %v2793, %v2792
      %v2795 = vmul.f32 0.5, %v2794
      %v2796 = vsub.f32 1.5, %v2795
      %v2797 = vmul.f32 %v2792, %v2796
      %vm2798 = vweird.f32 %v2760
      %vm2799 = vweird.f32 %v2792
      %vm2800 = vmor %vm2798, %vm2799
      %v2801 = vsel %vm2800, %v2792, %v2797
      %v2802 = vrsqrt.pop %v2761
      %v2803 = vmul.f32 %v2802, %v2761
      %v2804 = vmul.f32 %v2803, %v2802
      %v2805 = vmul.f32 0.5, %v2804
      %v2806 = vsub.f32 1.5, %v2805
      %v2807 = vmul.f32 %v2802, %v2806
      %vm2808 = vweird.f32 %v2761
      %vm2809 = vweird.f32 %v2802
      %vm2810 = vmor %vm2808, %vm2809
      %v2811 = vsel %vm2810, %v2802, %v2807
      %v2812 = vrsqrt.pop %v2762
      %v2813 = vmul.f32 %v2812, %v2762
      %v2814 = vmul.f32 %v2813, %v2812
      %v2815 = vmul.f32 0.5, %v2814
      %v2816 = vsub.f32 1.5, %v2815
      %v2817 = vmul.f32 %v2812, %v2816
      %vm2818 = vweird.f32 %v2762
      %vm2819 = vweird.f32 %v2812
      %vm2820 = vmor %vm2818, %vm2819
      %v2821 = vsel %vm2820, %v2812, %v2817
      %v2822 = vrsqrt.pop %v2763
      %v2823 = vmul.f32 %v2822, %v2763
      %v2824 = vmul.f32 %v2823, %v2822
      %v2825 = vmul.f32 0.5, %v2824
      %v2826 = vsub.f32 1.5, %v2825
      %v2827 = vmul.f32 %v2822, %v2826
      %vm2828 = vweird.f32 %v2763
      %vm2829 = vweird.f32 %v2822
      %vm2830 = vmor %vm2828, %vm2829
      %v2831 = vsel %vm2830, %v2822, %v2827
      %v2832 = vrsqrt.pop %v2764
      %v2833 = vmul.f32 %v2832, %v2764
      %v2834 = vmul.f32 %v2833, %v2832
      %v2835 = vmul.f32 0.5, %v2834
      %v2836 = vsub.f32 1.5, %v2835
      %v2837 = vmul.f32 %v2832, %v2836
      %vm2838 = vweird.f32 %v2764
      %vm2839 = vweird.f32 %v2832
      %vm2840 = vmor %vm2838, %vm2839
      %v2841 = vsel %vm2840, %v2832, %v2837
      %v2842 = vrsqrt.pop %v2765
      %v2843 = vmul.f32 %v2842, %v2765
      %v2844 = vmul.f32 %v2843, %v2842
      %v2845 = vmul.f32 0.5, %v2844
      %v2846 = vsub.f32 1.5, %v2845
      %v2847 = vmul.f32 %v2842, %v2846
      %vm2848 = vweird.f32 %v2765
      %vm2849 = vweird.f32 %v2842
      %vm2850 = vmor %vm2848, %vm2849
      %v2851 = vsel %vm2850, %v2842, %v2847
      %v2852 = vrsqrt.pop %v2766
      %v2853 = vmul.f32 %v2852, %v2766
      %v2854 = vmul.f32 %v2853, %v2852
      %v2855 = vmul.f32 0.5, %v2854
      %v2856 = vsub.f32 1.5, %v2855
      %v2857 = vmul.f32 %v2852, %v2856
      %vm2858 = vweird.f32 %v2766
      %vm2859 = vweird.f32 %v2852
      %vm2860 = vmor %vm2858, %vm2859
      %v2861 = vsel %vm2860, %v2852, %v2857
      %v2862 = vrsqrt.pop %v2767
      %v2863 = vmul.f32 %v2862, %v2767
      %v2864 = vmul.f32 %v2863, %v2862
      %v2865 = vmul.f32 0.5, %v2864
      %v2866 = vsub.f32 1.5, %v2865
      %v2867 = vmul.f32 %v2862, %v2866
      %vm2868 = vweird.f32 %v2767
      %vm2869 = vweird.f32 %v2862
      %vm2870 = vmor %vm2868, %vm2869
      %v2871 = vsel %vm2870, %v2862, %v2867
      %v2872 = vrsqrt.pop %v2768
      %v2873 = vmul.f32 %v2872, %v2768
      %v2874 = vmul.f32 %v2873, %v2872
      %v2875 = vmul.f32 0.5, %v2874
      %v2876 = vsub.f32 1.5, %v2875
      %v2877 = vmul.f32 %v2872, %v2876
      %vm2878 = vweird.f32 %v2768
      %vm2879 = vweird.f32 %v2872
      %vm2880 = vmor %vm2878, %vm2879
      %v2881 = vsel %vm2880, %v2872, %v2877
      %v2882 = vrsqrt.pop %v2769
      %v2883 = vmul.f32 %v2882, %v2769
      %v2884 = vmul.f32 %v2883, %v2882
      %v2885 = vmul.f32 0.5, %v2884
      %v2886 = vsub.f32 1.5, %v2885
      %v2887 = vmul.f32 %v2882, %v2886
      %vm2888 = vweird.f32 %v2769
      %vm2889 = vweird.f32 %v2882
      %vm2890 = vmor %vm2888, %vm2889
      %v2891 = vsel %vm2890, %v2882, %v2887
      %v2892 = vrsqrt.pop %v2770
      %v2893 = vmul.f32 %v2892, %v2770
      %v2894 = vmul.f32 %v2893, %v2892
      %v2895 = vmul.f32 0.5, %v2894
      %v2896 = vsub.f32 1.5, %v2895
      %v2897 = vmul.f32 %v2892, %v2896
      %vm2898 = vweird.f32 %v2770
      %vm2899 = vweird.f32 %v2892
      %vm2900 = vmor %vm2898, %vm2899
      %v2901 = vsel %vm2900, %v2892, %v2897
      %v2902 = vrsqrt.pop %v2771
      %v2903 = vmul.f32 %v2902, %v2771
      %v2904 = vmul.f32 %v2903, %v2902
      %v2905 = vmul.f32 0.5, %v2904
      %v2906 = vsub.f32 1.5, %v2905
      %v2907 = vmul.f32 %v2902, %v2906
      %vm2908 = vweird.f32 %v2771
      %vm2909 = vweird.f32 %v2902
      %vm2910 = vmor %vm2908, %vm2909
      %v2911 = vsel %vm2910, %v2902, %v2907
      %v2912 = vrsqrt.pop %v2772
      %v2913 = vmul.f32 %v2912, %v2772
      %v2914 = vmul.f32 %v2913, %v2912
      %v2915 = vmul.f32 0.5, %v2914
      %v2916 = vsub.f32 1.5, %v2915
      %v2917 = vmul.f32 %v2912, %v2916
      %vm2918 = vweird.f32 %v2772
      %vm2919 = vweird.f32 %v2912
      %vm2920 = vmor %vm2918, %vm2919
      %v2921 = vsel %vm2920, %v2912, %v2917
      %v2922 = vrsqrt.pop %v2773
      %v2923 = vmul.f32 %v2922, %v2773
      %v2924 = vmul.f32 %v2923, %v2922
      %v2925 = vmul.f32 0.5, %v2924
      %v2926 = vsub.f32 1.5, %v2925
      %v2927 = vmul.f32 %v2922, %v2926
      %vm2928 = vweird.f32 %v2773
      %vm2929 = vweird.f32 %v2922
      %vm2930 = vmor %vm2928, %vm2929
      %v2931 = vsel %vm2930, %v2922, %v2927
      %v2932 = vrsqrt.pop %v2774
      %v2933 = vmul.f32 %v2932, %v2774
      %v2934 = vmul.f32 %v2933, %v2932
      %v2935 = vmul.f32 0.5, %v2934
      %v2936 = vsub.f32 1.5, %v2935
      %v2937 = vmul.f32 %v2932, %v2936
      %vm2938 = vweird.f32 %v2774
      %vm2939 = vweird.f32 %v2932
      %vm2940 = vmor %vm2938, %vm2939
      %v2941 = vsel %vm2940, %v2932, %v2937
      %v2942 = vrsqrt.pop %v2775
      %v2943 = vmul.f32 %v2942, %v2775
      %v2944 = vmul.f32 %v2943, %v2942
      %v2945 = vmul.f32 0.5, %v2944
      %v2946 = vsub.f32 1.5, %v2945
      %v2947 = vmul.f32 %v2942, %v2946
      %vm2948 = vweird.f32 %v2775
      %vm2949 = vweird.f32 %v2942
      %vm2950 = vmor %vm2948, %vm2949
      %v2951 = vsel %vm2950, %v2942, %v2947
      %v2952 = vrsqrt.pop %v2776
      %v2953 = vmul.f32 %v2952, %v2776
      %v2954 = vmul.f32 %v2953, %v2952
      %v2955 = vmul.f32 0.5, %v2954
      %v2956 = vsub.f32 1.5, %v2955
      %v2957 = vmul.f32 %v2952, %v2956
      %vm2958 = vweird.f32 %v2776
      %vm2959 = vweird.f32 %v2952
      %vm2960 = vmor %vm2958, %vm2959
      %v2961 = vsel %vm2960, %v2952, %v2957
      %v2962 = vrsqrt.pop %v2777
      %v2963 = vmul.f32 %v2962, %v2777
      %v2964 = vmul.f32 %v2963, %v2962
      %v2965 = vmul.f32 0.5, %v2964
      %v2966 = vsub.f32 1.5, %v2965
      %v2967 = vmul.f32 %v2962, %v2966
      %vm2968 = vweird.f32 %v2777
      %vm2969 = vweird.f32 %v2962
      %vm2970 = vmor %vm2968, %vm2969
      %v2971 = vsel %vm2970, %v2962, %v2967
      %v2972 = vrsqrt.pop %v2778
      %v2973 = vmul.f32 %v2972, %v2778
      %v2974 = vmul.f32 %v2973, %v2972
      %v2975 = vmul.f32 0.5, %v2974
      %v2976 = vsub.f32 1.5, %v2975
      %v2977 = vmul.f32 %v2972, %v2976
      %vm2978 = vweird.f32 %v2778
      %vm2979 = vweird.f32 %v2972
      %vm2980 = vmor %vm2978, %vm2979
      %v2981 = vsel %vm2980, %v2972, %v2977
      %v2982 = vrsqrt.pop %v2779
      %v2983 = vmul.f32 %v2982, %v2779
      %v2984 = vmul.f32 %v2983, %v2982
      %v2985 = vmul.f32 0.5, %v2984
      %v2986 = vsub.f32 1.5, %v2985
      %v2987 = vmul.f32 %v2982, %v2986
      %vm2988 = vweird.f32 %v2779
      %vm2989 = vweird.f32 %v2982
      %vm2990 = vmor %vm2988, %vm2989
      %v2991 = vsel %vm2990, %v2982, %v2987
      %v2992 = vrsqrt.pop %v2780
      %v2993 = vmul.f32 %v2992, %v2780
      %v2994 = vmul.f32 %v2993, %v2992
      %v2995 = vmul.f32 0.5, %v2994
      %v2996 = vsub.f32 1.5, %v2995
      %v2997 = vmul.f32 %v2992, %v2996
      %vm2998 = vweird.f32 %v2780
      %vm2999 = vweird.f32 %v2992
      %vm3000 = vmor %vm2998, %vm2999
      %v3001 = vsel %vm3000, %v2992, %v2997
      %v3002 = vrsqrt.pop %v2781
      %v3003 = vmul.f32 %v3002, %v2781
      %v3004 = vmul.f32 %v3003, %v3002
      %v3005 = vmul.f32 0.5, %v3004
      %v3006 = vsub.f32 1.5, %v3005
      %v3007 = vmul.f32 %v3002, %v3006
      %vm3008 = vweird.f32 %v2781
      %vm3009 = vweird.f32 %v3002
      %vm3010 = vmor %vm3008, %vm3009
      %v3011 = vsel %vm3010, %v3002, %v3007
      %v3012 = vrsqrt.pop %v2782
      %v3013 = vmul.f32 %v3012, %v2782
      %v3014 = vmul.f32 %v3013, %v3012
      %v3015 = vmul.f32 0.5, %v3014
      %v3016 = vsub.f32 1.5, %v3015
      %v3017 = vmul.f32 %v3012, %v3016
      %vm3018 = vweird.f32 %v2782
      %vm3019 = vweird.f32 %v3012
      %vm3020 = vmor %vm3018, %vm3019
      %v3021 = vsel %vm3020, %v3012, %v3017
      %v3022 = vrsqrt.pop %v2783
      %v3023 = vmul.f32 %v3022, %v2783
      %v3024 = vmul.f32 %v3023, %v3022
      %v3025 = vmul.f32 0.5, %v3024
      %v3026 = vsub.f32 1.5, %v3025
      %v3027 = vmul.f32 %v3022, %v3026
      %vm3028 = vweird.f32 %v2783
      %vm3029 = vweird.f32 %v3022
      %vm3030 = vmor %vm3028, %vm3029
      %v3031 = vsel %vm3030, %v3022, %v3027
      %v3032 = vrsqrt.pop %v2784
      %v3033 = vmul.f32 %v3032, %v2784
      %v3034 = vmul.f32 %v3033, %v3032
      %v3035 = vmul.f32 0.5, %v3034
      %v3036 = vsub.f32 1.5, %v3035
      %v3037 = vmul.f32 %v3032, %v3036
      %vm3038 = vweird.f32 %v2784
      %vm3039 = vweird.f32 %v3032
      %vm3040 = vmor %vm3038, %vm3039
      %v3041 = vsel %vm3040, %v3032, %v3037
      %v3042 = vrsqrt.pop %v2785
      %v3043 = vmul.f32 %v3042, %v2785
      %v3044 = vmul.f32 %v3043, %v3042
      %v3045 = vmul.f32 0.5, %v3044
      %v3046 = vsub.f32 1.5, %v3045
      %v3047 = vmul.f32 %v3042, %v3046
      %vm3048 = vweird.f32 %v2785
      %vm3049 = vweird.f32 %v3042
      %vm3050 = vmor %vm3048, %vm3049
      %v3051 = vsel %vm3050, %v3042, %v3047
      %v3052 = vrsqrt.pop %v2786
      %v3053 = vmul.f32 %v3052, %v2786
      %v3054 = vmul.f32 %v3053, %v3052
      %v3055 = vmul.f32 0.5, %v3054
      %v3056 = vsub.f32 1.5, %v3055
      %v3057 = vmul.f32 %v3052, %v3056
      %vm3058 = vweird.f32 %v2786
      %vm3059 = vweird.f32 %v3052
      %vm3060 = vmor %vm3058, %vm3059
      %v3061 = vsel %vm3060, %v3052, %v3057
      %v3062 = vrsqrt.pop %v2787
      %v3063 = vmul.f32 %v3062, %v2787
      %v3064 = vmul.f32 %v3063, %v3062
      %v3065 = vmul.f32 0.5, %v3064
      %v3066 = vsub.f32 1.5, %v3065
      %v3067 = vmul.f32 %v3062, %v3066
      %vm3068 = vweird.f32 %v2787
      %vm3069 = vweird.f32 %v3062
      %vm3070 = vmor %vm3068, %vm3069
      %v3071 = vsel %vm3070, %v3062, %v3067
      %v3072 = vrsqrt.pop %v2788
      %v3073 = vmul.f32 %v3072, %v2788
      %v3074 = vmul.f32 %v3073, %v3072
      %v3075 = vmul.f32 0.5, %v3074
      %v3076 = vsub.f32 1.5, %v3075
      %v3077 = vmul.f32 %v3072, %v3076
      %vm3078 = vweird.f32 %v2788
      %vm3079 = vweird.f32 %v3072
      %vm3080 = vmor %vm3078, %vm3079
      %v3081 = vsel %vm3080, %v3072, %v3077
      %v3082 = vrsqrt.pop %v2789
      %v3083 = vmul.f32 %v3082, %v2789
      %v3084 = vmul.f32 %v3083, %v3082
      %v3085 = vmul.f32 0.5, %v3084
      %v3086 = vsub.f32 1.5, %v3085
      %v3087 = vmul.f32 %v3082, %v3086
      %vm3088 = vweird.f32 %v2789
      %vm3089 = vweird.f32 %v3082
      %vm3090 = vmor %vm3088, %vm3089
      %v3091 = vsel %vm3090, %v3082, %v3087
      %v3092 = vrsqrt.pop %v2790
      %v3093 = vmul.f32 %v3092, %v2790
      %v3094 = vmul.f32 %v3093, %v3092
      %v3095 = vmul.f32 0.5, %v3094
      %v3096 = vsub.f32 1.5, %v3095
      %v3097 = vmul.f32 %v3092, %v3096
      %vm3098 = vweird.f32 %v2790
      %vm3099 = vweird.f32 %v3092
      %vm3100 = vmor %vm3098, %vm3099
      %v3101 = vsel %vm3100, %v3092, %v3097
      %v3102 = vrsqrt.pop %v2791
      %v3103 = vmul.f32 %v3102, %v2791
      %v3104 = vmul.f32 %v3103, %v3102
      %v3105 = vmul.f32 0.5, %v3104
      %v3106 = vsub.f32 1.5, %v3105
      %v3107 = vmul.f32 %v3102, %v3106
      %vm3108 = vweird.f32 %v2791
      %vm3109 = vweird.f32 %v3102
      %vm3110 = vmor %vm3108, %vm3109
      %v3111 = vsel %vm3110, %v3102, %v3107
      %v3112 = vmul.f32 %v2568, %v2801
      %v3113 = vmul.f32 %v2569, %v2811
      %v3114 = vmul.f32 %v2570, %v2821
      %v3115 = vmul.f32 %v2571, %v2831
      %v3116 = vmul.f32 %v2572, %v2841
      %v3117 = vmul.f32 %v2573, %v2851
      %v3118 = vmul.f32 %v2574, %v2861
      %v3119 = vmul.f32 %v2575, %v2871
      %v3120 = vmul.f32 %v2576, %v2881
      %v3121 = vmul.f32 %v2577, %v2891
      %v3122 = vmul.f32 %v2578, %v2901
      %v3123 = vmul.f32 %v2579, %v2911
      %v3124 = vmul.f32 %v2580, %v2921
      %v3125 = vmul.f32 %v2581, %v2931
      %v3126 = vmul.f32 %v2582, %v2941
      %v3127 = vmul.f32 %v2583, %v2951
      %v3128 = vmul.f32 %v2584, %v2961
      %v3129 = vmul.f32 %v2585, %v2971
      %v3130 = vmul.f32 %v2586, %v2981
      %v3131 = vmul.f32 %v2587, %v2991
      %v3132 = vmul.f32 %v2588, %v3001
      %v3133 = vmul.f32 %v2589, %v3011
      %v3134 = vmul.f32 %v2590, %v3021
      %v3135 = vmul.f32 %v2591, %v3031
      %v3136 = vmul.f32 %v2592, %v3041
      %v3137 = vmul.f32 %v2593, %v3051
      %v3138 = vmul.f32 %v2594, %v3061
      %v3139 = vmul.f32 %v2595, %v3071
      %v3140 = vmul.f32 %v2596, %v3081
      %v3141 = vmul.f32 %v2597, %v3091
      %v3142 = vmul.f32 %v2598, %v3101
      %v3143 = vmul.f32 %v2599, %v3111
      %v3145 = vperm.slane %v2438, 0
      %v3147 = vmul.f32 %v3112, %v3145
      %v3148 = vmul.f32 %v3113, %v3145
      %v3149 = vmul.f32 %v3114, %v3145
      %v3150 = vmul.f32 %v3115, %v3145
      %v3151 = vmul.f32 %v3116, %v3145
      %v3152 = vmul.f32 %v3117, %v3145
      %v3153 = vmul.f32 %v3118, %v3145
      %v3154 = vmul.f32 %v3119, %v3145
      %v3155 = vmul.f32 %v3120, %v3145
      %v3156 = vmul.f32 %v3121, %v3145
      %v3157 = vmul.f32 %v3122, %v3145
      %v3158 = vmul.f32 %v3123, %v3145
      %v3159 = vmul.f32 %v3124, %v3145
      %v3160 = vmul.f32 %v3125, %v3145
      %v3161 = vmul.f32 %v3126, %v3145
      %v3162 = vmul.f32 %v3127, %v3145
      %v3163 = vmul.f32 %v3128, %v3145
      %v3164 = vmul.f32 %v3129, %v3145
      %v3165 = vmul.f32 %v3130, %v3145
      %v3166 = vmul.f32 %v3131, %v3145
      %v3167 = vmul.f32 %v3132, %v3145
      %v3168 = vmul.f32 %v3133, %v3145
      %v3169 = vmul.f32 %v3134, %v3145
      %v3170 = vmul.f32 %v3135, %v3145
      %v3171 = vmul.f32 %v3136, %v3145
      %v3172 = vmul.f32 %v3137, %v3145
      %v3173 = vmul.f32 %v3138, %v3145
      %v3174 = vmul.f32 %v3139, %v3145
      %v3175 = vmul.f32 %v3140, %v3145
      %v3176 = vmul.f32 %v3141, %v3145
      %v3177 = vmul.f32 %v3142, %v3145
      %v3178 = vmul.f32 %v3143, %v3145
      %v3180 = vperm.slane %v2439, 0
      %v3182 = vadd.f32 %v3147, %v3180
      %v3183 = vadd.f32 %v3148, %v3180
      %v3184 = vadd.f32 %v3149, %v3180
      %v3185 = vadd.f32 %v3150, %v3180
      %v3186 = vadd.f32 %v3151, %v3180
      %v3187 = vadd.f32 %v3152, %v3180
      %v3188 = vadd.f32 %v3153, %v3180
      %v3189 = vadd.f32 %v3154, %v3180
      %v3190 = vadd.f32 %v3155, %v3180
      %v3191 = vadd.f32 %v3156, %v3180
      %v3192 = vadd.f32 %v3157, %v3180
      %v3193 = vadd.f32 %v3158, %v3180
      %v3194 = vadd.f32 %v3159, %v3180
      %v3195 = vadd.f32 %v3160, %v3180
      %v3196 = vadd.f32 %v3161, %v3180
      %v3197 = vadd.f32 %v3162, %v3180
      %v3198 = vadd.f32 %v3163, %v3180
      %v3199 = vadd.f32 %v3164, %v3180
      %v3200 = vadd.f32 %v3165, %v3180
      %v3201 = vadd.f32 %v3166, %v3180
      %v3202 = vadd.f32 %v3167, %v3180
      %v3203 = vadd.f32 %v3168, %v3180
      %v3204 = vadd.f32 %v3169, %v3180
      %v3205 = vadd.f32 %v3170, %v3180
      %v3206 = vadd.f32 %v3171, %v3180
      %v3207 = vadd.f32 %v3172, %v3180
      %v3208 = vadd.f32 %v3173, %v3180
      %v3209 = vadd.f32 %v3174, %v3180
      %v3210 = vadd.f32 %v3175, %v3180
      %v3211 = vadd.f32 %v3176, %v3180
      %v3212 = vadd.f32 %v3177, %v3180
      %v3213 = vadd.f32 %v3178, %v3180
      %v3214 = vadd.f32 %v1755, %v3182
      %v3215 = vadd.f32 %v1756, %v3183
      %v3216 = vadd.f32 %v1757, %v3184
      %v3217 = vadd.f32 %v1758, %v3185
      %v3218 = vadd.f32 %v1759, %v3186
      %v3219 = vadd.f32 %v1760, %v3187
      %v3220 = vadd.f32 %v1761, %v3188
      %v3221 = vadd.f32 %v1762, %v3189
      %v3222 = vadd.f32 %v1763, %v3190
      %v3223 = vadd.f32 %v1764, %v3191
      %v3224 = vadd.f32 %v1765, %v3192
      %v3225 = vadd.f32 %v1766, %v3193
      %v3226 = vadd.f32 %v1767, %v3194
      %v3227 = vadd.f32 %v1768, %v3195
      %v3228 = vadd.f32 %v1769, %v3196
      %v3229 = vadd.f32 %v1770, %v3197
      %v3230 = vadd.f32 %v1771, %v3198
      %v3231 = vadd.f32 %v1772, %v3199
      %v3232 = vadd.f32 %v1773, %v3200
      %v3233 = vadd.f32 %v1774, %v3201
      %v3234 = vadd.f32 %v1775, %v3202
      %v3235 = vadd.f32 %v1776, %v3203
      %v3236 = vadd.f32 %v1777, %v3204
      %v3237 = vadd.f32 %v1778, %v3205
      %v3238 = vadd.f32 %v1779, %v3206
      %v3239 = vadd.f32 %v1780, %v3207
      %v3240 = vadd.f32 %v1781, %v3208
      %v3241 = vadd.f32 %v1782, %v3209
      %v3242 = vadd.f32 %v1783, %v3210
      %v3243 = vadd.f32 %v1784, %v3211
      %v3244 = vadd.f32 %v1785, %v3212
      %v3245 = vadd.f32 %v1786, %v3213
      %3246 = vst.msk [vmem:[%s513] sm:$0xff] %vm973, %v3214
      %3247 = vst.msk [vmem:[%s513 + $0x8] sm:$0xff] %vm973, %v3215
      %3248 = vst.msk [vmem:[%s513 + $0x10] sm:$0xff] %vm973, %v3216
      %3249 = vst.msk [vmem:[%s513 + $0x18] sm:$0xff] %vm973, %v3217
      %3250 = vst.msk [vmem:[%s513 + $0x20] sm:$0xff] %vm973, %v3218
      %3251 = vst.msk [vmem:[%s513 + $0x28] sm:$0xff] %vm973, %v3219
      %3252 = vst.msk [vmem:[%s513 + $0x30] sm:$0xff] %vm973, %v3220
      %3253 = vst.msk [vmem:[%s513 + $0x38] sm:$0xff] %vm973, %v3221
      %3254 = vst.msk [vmem:[%s513 + $0x40] sm:$0xff] %vm973, %v3222
      %3255 = vst.msk [vmem:[%s513 + $0x48] sm:$0xff] %vm973, %v3223
      %3256 = vst.msk [vmem:[%s513 + $0x50] sm:$0xff] %vm973, %v3224
      %3257 = vst.msk [vmem:[%s513 + $0x58] sm:$0xff] %vm973, %v3225
      %3258 = vst.msk [vmem:[%s513 + $0x60] sm:$0xff] %vm973, %v3226
      %3259 = vst.msk [vmem:[%s513 + $0x68] sm:$0xff] %vm973, %v3227
      %3260 = vst.msk [vmem:[%s513 + $0x70] sm:$0xff] %vm973, %v3228
      %3261 = vst.msk [vmem:[%s513 + $0x78] sm:$0xff] %vm973, %v3229
      %3262 = vst.msk [vmem:[%s513 + $0x80] sm:$0xff] %vm973, %v3230
      %3263 = vst.msk [vmem:[%s513 + $0x88] sm:$0xff] %vm973, %v3231
      %3264 = vst.msk [vmem:[%s513 + $0x90] sm:$0xff] %vm973, %v3232
      %3265 = vst.msk [vmem:[%s513 + $0x98] sm:$0xff] %vm973, %v3233
      %3266 = vst.msk [vmem:[%s513 + $0xa0] sm:$0xff] %vm973, %v3234
      %3267 = vst.msk [vmem:[%s513 + $0xa8] sm:$0xff] %vm973, %v3235
      %3268 = vst.msk [vmem:[%s513 + $0xb0] sm:$0xff] %vm973, %v3236
      %3269 = vst.msk [vmem:[%s513 + $0xb8] sm:$0xff] %vm973, %v3237
      %3270 = vst.msk [vmem:[%s513 + $0xc0] sm:$0xff] %vm973, %v3238
      %3271 = vst.msk [vmem:[%s513 + $0xc8] sm:$0xff] %vm973, %v3239
      %3272 = vst.msk [vmem:[%s513 + $0xd0] sm:$0xff] %vm973, %v3240
      %3273 = vst.msk [vmem:[%s513 + $0xd8] sm:$0xff] %vm973, %v3241
      %3274 = vst.msk [vmem:[%s513 + $0xe0] sm:$0xff] %vm973, %v3242
      %3275 = vst.msk [vmem:[%s513 + $0xe8] sm:$0xff] %vm973, %v3243
      %3276 = vst.msk [vmem:[%s513 + $0xf0] sm:$0xff] %vm973, %v3244
      %3277 = vst.msk [vmem:[%s513 + $0xf8] sm:$0xff] %vm973, %v3245
      %s3278 = smul.u32 32, %s25
      %p3279 = scmp.lt.s32.totalorder %s3278, 63
      %s3280 = scalar_select %p3279, %s3278, 63
      %s3281 = smul.addr %s3280, 8
      %s3282 = scalar_lea.vmem %s14, %s3281
      // Predicated region
      $region77: #{transformer_stage.9} parent=75 // pred_check
        %p3283 = pneg %p352
      $region78: #{transformer_stage.9} parent=75 // pred_check_branch
        %3285 = sbr.rel (%p3283) target = $region80
      $region79: #{transformer_stage.9} parent=75 // pred_region
        %s3286 = smul.u32 32, %s25
      $region80: #{transformer_stage.9} parent=75 // pred_fallthru
        _
    $region76: #{transformer_stage.9} parent=5 // pred_fallthru
      _
    %p3287 = scmp.le.s32.totalorder 2, %s20
    // Predicated region
    $region81: #{transformer_stage.9} parent=5 // pred_check
      %p3288 = pneg %p3287
    $region82: #{transformer_stage.9} parent=5 // pred_check_branch
      %3290 = sbr.rel (%p3288) target = $region84
    $region83: #{transformer_stage.9} parent=5 // pred_region
      %s3291 = ssub.s32 %s20, 2
      // Predicated region
      $region85: #{transformer_stage.9} parent=83 // pred_check
        %p3292 = pneg %p358
      $region86: #{transformer_stage.9} parent=83 // pred_check_branch
        %3294 = sbr.rel (%p3292) target = $region88
      $region87: #{transformer_stage.9} parent=83 // pred_region
        %s3295 = smul.u32 32, %s26
        %p3296 = scmp.lt.s32.totalorder %s3295, 63
        %s3297 = scalar_select %p3296, %s3295, 63
        %s3298 = smul.addr %s3297, 8
        %s3299 = scalar_lea.vmem %s14, %s3298
      $region88: #{transformer_stage.9} parent=83 // pred_fallthru
        _
    $region84: #{transformer_stage.9} parent=5 // pred_fallthru
      _
  $region6: #{transformer_stage.9} parent=0 // loop_footer
    %s24 = sadd.s32 1, %s20
  $region7: #{transformer_stage.9} parent=0 // loop_footer_branch
    %19 = sbr.rel target = $region3
  $region8: #{transformer_stage.9} parent=0 // loop_exit
    _

// kernel: transformer_stage.7
$region0: #{transformer_stage.7}
  #allocation0 [shape = 'u32[]', space=smem, size = 0x4, offset = 0x4, fixed_abs, tag = 'smem constant byte address 0x4 - core index']
  #allocation1 [shape = 'u32[72,128]{1,0:T(1,128)}', space=vmem, size = 0x9000, scoped, tag = 'internal scratch']
  %s0 = inlined_call_operand.vmem [shape: f32[2,16,16,32], index: 0, kind: input, shape index: {}]
  %s1 = inlined_call_operand.vmem [shape: bf16[32,48], index: 1, kind: input, shape index: {}]
  %s2 = inlined_call_operand.vmem [shape: f32[1,48], index: 2, kind: input, shape index: {}]
  %s3 = inlined_call_operand.vmem [shape: f32[2,16,16,16], index: 3, kind: output, shape index: {}]
  %s4 = sld [smem:[#allocation0]]
  $region117: #{transformer_stage.7} parent=0
    _
  %s6 = ssub.s32 1, %s4
  %s7 = scalar_select 0, %s6, %s4
  $region1: #{transformer_stage.7} parent=0
    #allocation2 [shape = 'u8[65536]{0}', space=vmem, size = 0x10000, scoped, tag = 'input window, operand 0']
    #allocation3 [shape = 'u8[65536]{0}', space=vmem, size = 0x10000, scoped, tag = 'output window, operand 0']
    loop: start=0, step=1, limit=10
    $region2: #{transformer_stage.7} parent=1 // loop_pre_header
      _
    $region3: #{transformer_stage.7} parent=1 // loop_header
      %s9 = sphi 0, %s13
      %p10 = scmp.ge.s32.totalorder %s9, 10
      %s16 = sphi 0, %s35
      %s17 = sphi 0, %s31
      %s18 = sphi 0, %s27
      %s19 = sphi 0, %s16
      %s20 = sphi 0, %s17
      %s21 = sphi 0, %s18
      %s22 = sphi 0, %s19
      %s23 = sphi 0, %s20
      %s24 = sphi 0, %s21
      %s42 = sphi 0, %s44
      %s45 = sphi 0, %s42
      %s46 = sphi 0, %s45
      %s62 = sphi 0, %s46
      %s66 = sphi 0, %s66
      %s68 = sphi 0, %s66
      %s69 = sphi 0, %s68
      %s83 = sphi 0, %s69
      %s87 = sphi 0, %s87
      %s89 = sphi 0, %s87
      %s90 = sphi 0, %s89
      %s104 = sphi 0, %s90
      %s114 = sphi 0, %s116
      %s117 = sphi 0, %s114
      %s118 = sphi 0, %s117
      %s134 = sphi 0, %s118
    $region4: #{transformer_stage.7} parent=1 // loop_header_branch
      %12 = sbr.rel (%p10) target = $region8
    $region5: #{transformer_stage.7} parent=1 // loop_body
      %s14 = ssub.s32 %s9, 1
      %s15 = ssub.s32 %s9, 2
      %s25 = sadd.s32 1, %s18
      %p26 = scmp.ge.s32.totalorder %s25, 2
      %s27 = scalar_select %p26, 0, %s25
      %s28 = sadd.s32 1, %s17
      %s29 = scalar_select %p26, %s28, %s17
      %p30 = scmp.ge.s32.totalorder %s29, 2
      %s31 = scalar_select %p30, 0, %s29
      %s32 = sadd.s32 1, %s16
      %s33 = scalar_select %p30, %s32, %s16
      %p34 = scmp.ge.s32.totalorder %s33, 2
      %s35 = scalar_select %p34, 0, %s33
      %s36 = ssub.s32 %s16, %s35
      %s37 = ssub.s32 %s17, %s31
      %s38 = sor.u32 %s36, %s37
      %s39 = ssub.s32 %s18, %s27
      %s40 = sor.u32 %s38, %s39
      %p41 = scmp.eq.s32.totalorder %s40, 0
      %s43 = sadd.s32 %s42, 1
      %s44 = scalar_select %p41, %s42, %s43
      %p47 = pneg %p41
      %p48 = scmp.eq.s32.totalorder %s9, 7
      %p49 = por %p47, %p48
      %p50 = scmp.ne.s32.totalorder %s42, %s45
      %p51 = scmp.eq.s32.totalorder %s9, 0
      %p52 = por %p50, %p51
      %p53 = scmp.ne.s32.totalorder %s42, %s45
      %p54 = scmp.eq.s32.totalorder %s14, 7
      %p55 = por %p53, %p54
      %p56 = scmp.ne.s32.totalorder %s45, %s46
      %p57 = scmp.eq.s32.totalorder %s14, 0
      %p58 = por %p56, %p57
      %p59 = scmp.ne.s32.totalorder %s45, %s46
      %p60 = scmp.eq.s32.totalorder %s15, 7
      %p61 = por %p59, %p60
      %p63 = scmp.ne.s32.totalorder %s46, %s62
      %p64 = scmp.eq.s32.totalorder %s15, 0
      %p65 = por %p63, %p64
      %s67 = sadd.s32 %s66, 1
      %p70 = scmp.eq.s32.totalorder %s9, 7
      %p71 = scmp.ne.s32.totalorder %s66, %s68
      %p72 = scmp.eq.s32.totalorder %s9, 0
      %p73 = por %p71, %p72
      %p74 = scmp.ne.s32.totalorder %s66, %s68
      %p75 = scmp.eq.s32.totalorder %s14, 7
      %p76 = por %p74, %p75
      %p77 = scmp.ne.s32.totalorder %s68, %s69
      %p78 = scmp.eq.s32.totalorder %s14, 0
      %p79 = por %p77, %p78
      %p80 = scmp.ne.s32.totalorder %s68, %s69
      %p81 = scmp.eq.s32.totalorder %s15, 7
      %p82 = por %p80, %p81
      %p84 = scmp.ne.s32.totalorder %s69, %s83
      %p85 = scmp.eq.s32.totalorder %s15, 0
      %p86 = por %p84, %p85
      %s88 = sadd.s32 %s87, 1
      %p91 = scmp.eq.s32.totalorder %s9, 7
      %p92 = scmp.ne.s32.totalorder %s87, %s89
      %p93 = scmp.eq.s32.totalorder %s9, 0
      %p94 = por %p92, %p93
      %p95 = scmp.ne.s32.totalorder %s87, %s89
      %p96 = scmp.eq.s32.totalorder %s14, 7
      %p97 = por %p95, %p96
      %p98 = scmp.ne.s32.totalorder %s89, %s90
      %p99 = scmp.eq.s32.totalorder %s14, 0
      %p100 = por %p98, %p99
      %p101 = scmp.ne.s32.totalorder %s89, %s90
      %p102 = scmp.eq.s32.totalorder %s15, 7
      %p103 = por %p101, %p102
      %p105 = scmp.ne.s32.totalorder %s90, %s104
      %p106 = scmp.eq.s32.totalorder %s15, 0
      %p107 = por %p105, %p106
      %s108 = ssub.s32 %s16, %s35
      %s109 = ssub.s32 %s17, %s31
      %s110 = sor.u32 %s108, %s109
      %s111 = ssub.s32 %s18, %s27
      %s112 = sor.u32 %s110, %s111
      %p113 = scmp.eq.s32.totalorder %s112, 0
      %s115 = sadd.s32 %s114, 1
      %s116 = scalar_select %p113, %s114, %s115
      %p119 = pneg %p113
      %p120 = scmp.eq.s32.totalorder %s9, 7
      %p121 = por %p119, %p120
      %p122 = scmp.ne.s32.totalorder %s114, %s117
      %p123 = scmp.eq.s32.totalorder %s9, 0
      %p124 = por %p122, %p123
      %p125 = scmp.ne.s32.totalorder %s114, %s117
      %p126 = scmp.eq.s32.totalorder %s14, 7
      %p127 = por %p125, %p126
      %p128 = scmp.ne.s32.totalorder %s117, %s118
      %p129 = scmp.eq.s32.totalorder %s14, 0
      %p130 = por %p128, %p129
      %p131 = scmp.ne.s32.totalorder %s117, %s118
      %p132 = scmp.eq.s32.totalorder %s15, 7
      %p133 = por %p131, %p132
      %p135 = scmp.ne.s32.totalorder %s118, %s134
      %p136 = scmp.eq.s32.totalorder %s15, 0
      %p137 = por %p135, %p136
      %p138 = scmp.le.s32.totalorder 1, %s9
      %p139 = scmp.lt.s32.totalorder %s9, 9
      %p140 = pnand %p138, %p139
      %p141 = pneg %p140
      // Predicated region
      $region9: #{transformer_stage.7} parent=5 // pred_check
        _
      $region10: #{transformer_stage.7} parent=5 // pred_check_branch
        %143 = sbr.rel (%p140) target = $region12
      $region11: #{transformer_stage.7} parent=5 // pred_region
        %s144 = ssub.s32 %s9, 1
        // Predicated region
        $region13: #{transformer_stage.7} parent=11 // pred_check
          %p145 = pneg %p79
        $region14: #{transformer_stage.7} parent=11 // pred_check_branch
          %147 = sbr.rel (%p145) target = $region16
        $region15: #{transformer_stage.7} parent=11 // pred_region
          _
        $region16: #{transformer_stage.7} parent=11 // pred_fallthru
          _
        // Predicated region
        $region17: #{transformer_stage.7} parent=11 // pred_check
          %p148 = pneg %p100
        $region18: #{transformer_stage.7} parent=11 // pred_check_branch
          %150 = sbr.rel (%p148) target = $region20
        $region19: #{transformer_stage.7} parent=11 // pred_region
          _
        $region20: #{transformer_stage.7} parent=11 // pred_fallthru
          _
      $region12: #{transformer_stage.7} parent=5 // pred_fallthru
        _
      %p151 = scmp.lt.s32.totalorder %s9, 8
      // Predicated region
      $region21: #{transformer_stage.7} parent=5 // pred_check
        %p152 = pneg %p151
      $region22: #{transformer_stage.7} parent=5 // pred_check_branch
        %154 = sbr.rel (%p152) target = $region24
      $region23: #{transformer_stage.7} parent=5 // pred_region
        // Predicated region
        $region25: #{transformer_stage.7} parent=23 // pred_check
          %p155 = pneg %p52
        $region26: #{transformer_stage.7} parent=23 // pred_check_branch
          %157 = sbr.rel (%p155) target = $region28
        $region27: #{transformer_stage.7} parent=23 // pred_region
          %s158 = sand.u32 %s42, 1
          %s159 = sand.u32 %s42, 1
          %s160 = smul.addr %s159, 64
          %s161 = scalar_lea.vmem [#allocation2], %s160
          %s162 = smul.u32 8, %s17
          %s163 = smul.addr %s162, 2
          %s164 = sadd.s32 %s18, %s163
          %s165 = smul.addr %s16, 32
          %s166 = sadd.s32 %s164, %s165
          %s167 = smul.addr %s166, 8
          %s168 = scalar_lea.vmem %s0, %s167
          // Predicated region
          $region29: #{transformer_stage.7} parent=27 // pred_check
            _
          $region30: #{transformer_stage.7} parent=27 // pred_check_branch
            %170 = sbr.rel (0) target = $region32
          $region31: #{transformer_stage.7} parent=27 // pred_region
            // Predicated region
            $region33: #{transformer_stage.7} parent=31 // pred_check
              _
            $region34: #{transformer_stage.7} parent=31 // pred_check_branch
              %172 = sbr.rel (0) target = $region36
            $region35: #{transformer_stage.7} parent=31 // pred_region
              // Predicated region
              $region48: #{transformer_stage.7} parent=35 // pred_check
                _
              $region49: #{transformer_stage.7} parent=35 // pred_check_branch
                %202 = sbr.rel (0) target = $region51
              $region50: #{transformer_stage.7} parent=35 // pred_region
                loop: start=0, step=1, limit=1
                $region52: #{transformer_stage.7} parent=50 // loop_pre_header
                  _
                $region53: #{transformer_stage.7} parent=50 // loop_header
                  %s204 = sphi 0, %s208
                  %p205 = scmp.ge.s32.totalorder %s204, 1
                  %s209 = sphi %s168, %s168
                  %s210 = sphi %s161, %s161
                $region54: #{transformer_stage.7} parent=50 // loop_header_branch
                  %207 = sbr.rel (%p205) target = $region58
                $region55: #{transformer_stage.7} parent=50 // loop_body
                  %v211 = vld [vmem:[%s209] sm:$0xff]
                  %212 = vst [vmem:[%s210] sm:$0xff] %v211
                  %v213 = vld [vmem:[%s209 + $0x10] sm:$0xff]
                  %214 = vst [vmem:[%s210 + $0x8] sm:$0xff] %v213
                  %v215 = vld [vmem:[%s209 + $0x20] sm:$0xff]
                  %216 = vst [vmem:[%s210 + $0x10] sm:$0xff] %v215
                  %v217 = vld [vmem:[%s209 + $0x30] sm:$0xff]
                  %218 = vst [vmem:[%s210 + $0x18] sm:$0xff] %v217
                  %v219 = vld [vmem:[%s209 + $0x40] sm:$0xff]
                  %220 = vst [vmem:[%s210 + $0x20] sm:$0xff] %v219
                  %v221 = vld [vmem:[%s209 + $0x50] sm:$0xff]
                  %222 = vst [vmem:[%s210 + $0x28] sm:$0xff] %v221
                  %v223 = vld [vmem:[%s209 + $0x60] sm:$0xff]
                  %224 = vst [vmem:[%s210 + $0x30] sm:$0xff] %v223
                  %v225 = vld [vmem:[%s209 + $0x70] sm:$0xff]
                  %226 = vst [vmem:[%s210 + $0x38] sm:$0xff] %v225
                $region56: #{transformer_stage.7} parent=50 // loop_footer
                  %s208 = sadd.s32 1, %s204
                $region57: #{transformer_stage.7} parent=50 // loop_footer_branch
                  %203 = sbr.rel target = $region53
                $region58: #{transformer_stage.7} parent=50 // loop_exit
                  _
              $region51: #{transformer_stage.7} parent=35 // pred_fallthru
                _
              // Predicated region
              $region59: #{transformer_stage.7} parent=35 // pred_check
                _
              $region60: #{transformer_stage.7} parent=35 // pred_check_branch
                %228 = sbr.rel target = $region62
              $region61: #{transformer_stage.7} parent=35 // pred_region
                _
              $region62: #{transformer_stage.7} parent=35 // pred_fallthru
                _
            $region36: #{transformer_stage.7} parent=31 // pred_fallthru
              _
            // Predicated region
            $region37: #{transformer_stage.7} parent=31 // pred_check
              _
            $region38: #{transformer_stage.7} parent=31 // pred_check_branch
              %174 = sbr.rel target = $region40
            $region39: #{transformer_stage.7} parent=31 // pred_region
              %s176 = ssub.s32 256, 1
              loop: start=0, step=1, limit=1
              $region41: #{transformer_stage.7} parent=39 // loop_pre_header
                _
              $region42: #{transformer_stage.7} parent=39 // loop_header
                %s178 = sphi 0, %s182
                %p179 = scmp.ge.s32.totalorder %s178, 1
                %s183 = sphi %s168, %s168
                %s184 = sphi %s161, %s161
              $region43: #{transformer_stage.7} parent=39 // loop_header_branch
                %181 = sbr.rel (%p179) target = $region47
              $region44: #{transformer_stage.7} parent=39 // loop_body
                %v185 = vld [vmem:[%s183] sm:%s176]
                %186 = vst [vmem:[%s184] sm:%s176] %v185
                %v187 = vld [vmem:[%s183 + $0x10] sm:%s176]
                %188 = vst [vmem:[%s184 + $0x8] sm:%s176] %v187
                %v189 = vld [vmem:[%s183 + $0x20] sm:%s176]
                %190 = vst [vmem:[%s184 + $0x10] sm:%s176] %v189
                %v191 = vld [vmem:[%s183 + $0x30] sm:%s176]
                %192 = vst [vmem:[%s184 + $0x18] sm:%s176] %v191
                %v193 = vld [vmem:[%s183 + $0x40] sm:%s176]
                %194 = vst [vmem:[%s184 + $0x20] sm:%s176] %v193
                %v195 = vld [vmem:[%s183 + $0x50] sm:%s176]
                %196 = vst [vmem:[%s184 + $0x28] sm:%s176] %v195
                %v197 = vld [vmem:[%s183 + $0x60] sm:%s176]
                %198 = vst [vmem:[%s184 + $0x30] sm:%s176] %v197
                %v199 = vld [vmem:[%s183 + $0x70] sm:%s176]
                %200 = vst [vmem:[%s184 + $0x38] sm:%s176] %v199
              $region45: #{transformer_stage.7} parent=39 // loop_footer
                %s182 = sadd.s32 1, %s178
              $region46: #{transformer_stage.7} parent=39 // loop_footer_branch
                %177 = sbr.rel target = $region42
              $region47: #{transformer_stage.7} parent=39 // loop_exit
                _
            $region40: #{transformer_stage.7} parent=31 // pred_fallthru
              _
          $region32: #{transformer_stage.7} parent=27 // pred_fallthru
            _
          %229 = vnop
        $region28: #{transformer_stage.7} parent=23 // pred_fallthru
          _
      $region24: #{transformer_stage.7} parent=5 // pred_fallthru
        _
      %p230 = scmp.le.s32.totalorder 1, %s9
      %p231 = scmp.lt.s32.totalorder %s9, 9
      %p232 = pnand %p230, %p231
      %p233 = pneg %p232
      // Predicated region
      $region63: #{transformer_stage.7} parent=5 // pred_check
        _
      $region64: #{transformer_stage.7} parent=5 // pred_check_branch
        %235 = sbr.rel (%p232) target = $region66
      $region65: #{transformer_stage.7} parent=5 // pred_region
        %s236 = ssub.s32 %s9, 1
        %s237 = sand.u32 %s45, 1
        %s238 = sand.u32 %s45, 1
        %s239 = smul.addr %s238, 64
        %s240 = scalar_lea.vmem [#allocation2], %s239
        // Predicated region
        $region67: #{transformer_stage.7} parent=65 // pred_check
          %p241 = pneg %p58
        $region68: #{transformer_stage.7} parent=65 // pred_check_branch
          %243 = sbr.rel (%p241) target = $region70
        $region69: #{transformer_stage.7} parent=65 // pred_region
          _
        $region70: #{transformer_stage.7} parent=65 // pred_fallthru
          _
        %s244 = sand.u32 %s45, 1
        %s245 = sand.u32 %s45, 1
        %s246 = smul.addr %s245, 64
        %s247 = scalar_lea.vmem [#allocation2], %s246
        %p248 = pneg %p58
        %p249 = pneg %p55
        %p250 = pneg %p79
        %p251 = pneg %p76
        %p252 = pneg %p100
        %p253 = pneg %p97
        %p254 = pneg %p130
        %p255 = pneg %p127
        %s256 = sand.u32 %s117, 1
        %s257 = sand.u32 %s117, 1
        %s258 = smul.addr %s257, 64
        %s259 = scalar_lea.vmem [#allocation3], %s258
        %s260 = smul.u32 8, %s20
        %s261 = smul.u32 8, %s20
        %v263 = vld [vmem:[%s240] sm:$0xff]
        %v264 = vld [vmem:[%s240 + $0x8] sm:$0xff]
        %v265 = vld [vmem:[%s240 + $0x10] sm:$0xff]
        %v266 = vld [vmem:[%s240 + $0x18] sm:$0xff]
        %v267 = vld [vmem:[%s240 + $0x20] sm:$0xff]
        %v268 = vld [vmem:[%s240 + $0x28] sm:$0xff]
        %v269 = vld [vmem:[%s240 + $0x30] sm:$0xff]
        %v270 = vld [vmem:[%s240 + $0x38] sm:$0xff]
        %v271 = vpack.c.bf16 %v264, %v263
        %v272 = vpack.c.bf16 %v266, %v265
        %v273 = vpack.c.bf16 %v268, %v267
        %v274 = vpack.c.bf16 %v270, %v269
        %v275 = vld [vmem:[%s1] sm:$0xf]
        %v276 = vld [vmem:[%s1 + $0x4] sm:$0xf]
        %v277 = vld [vmem:[%s1 + $0x8] sm:$0xf]
        %v278 = vld [vmem:[%s1 + $0xc] sm:$0xf]
        %v279 = vld [vmem:[%s2] sm:$0x1]
        %v281 = vperm.slane %v279, 0
        %v287 = vunpack.c.l.b16 %v275
        %v288 = vunpack.c.l.b16 %v276
        %v289 = vunpack.c.l.b16 %v277
        %v290 = vunpack.c.l.b16 %v278
        %v291 = vpack.c.b16 %v288, %v287
        %v292 = vpack.c.b16 %v290, %v289
        %vm295 = vcmask 261120
        %v297 = vsel %vm295, %v271, 0
        %v300 = vsel %vm295, %v272, 0
        %v303 = vsel %vm295, %v273, 0
        %v306 = vsel %vm295, %v274, 0
        %308 = vmatpush.bf16.msra.mxu0 0
        %309 = vmatpush.bf16.msra.mxu0 0
        %310 = vmatpush.bf16.msra.mxu0 0
        %311 = vmatpush.bf16.msra.mxu0 0
        %312 = vmatpush.bf16.msra.mxu0 0
        %313 = vmatpush.bf16.msra.mxu0 0
        %314 = vmatpush.bf16.msra.mxu0 %v292
        %315 = vmatpush.bf16.msra.mxu0 %v291
        %316 = vmatmul.bf16.gmra.mxu0 %v297
        %v317 = vpop.f32.mrf.mxu0
        %v318 = vadd.f32 %v281, %v317
        %v319 = vpop.f32.mrf.mxu0
        %v320 = vadd.f32 %v281, %v319
        %321 = vmatmul.bf16.gmra.mxu0 %v300
        %v322 = vpop.f32.mrf.mxu0
        %v323 = vadd.f32 %v281, %v322
        %v324 = vpop.f32.mrf.mxu0
        %v325 = vadd.f32 %v281, %v324
        %326 = vmatmul.bf16.gmra.mxu0 %v303
        %v327 = vpop.f32.mrf.mxu0
        %v328 = vadd.f32 %v281, %v327
        %v329 = vpop.f32.mrf.mxu0
        %v330 = vadd.f32 %v281, %v329
        %331 = vmatmul.bf16.gmra.mxu0 %v306
        %v332 = vpop.f32.mrf.mxu0
        %v333 = vadd.f32 %v281, %v332
        %v334 = vpop.f32.mrf.mxu0
        %v335 = vadd.f32 %v281, %v334
        %336 = vdwg.mxu0
        %v337 = vmul.f32 %v318, 0.35355338
        %v338 = vmul.f32 %v320, 0.35355338
        %v339 = vmul.f32 %v323, 0.35355338
        %v340 = vmul.f32 %v325, 0.35355338
        %v341 = vmul.f32 %v328, 0.35355338
        %v342 = vmul.f32 %v330, 0.35355338
        %v343 = vmul.f32 %v333, 0.35355338
        %v344 = vmul.f32 %v335, 0.35355338
        %353 = vrot.lane.b32.xlu0 %v337, 120
        %v354 = vpop.permute.xlu0 %353
        %355 = vrot.lane.b32.xlu0 %v338, 120
        %v356 = vpop.permute.xlu0 %355
        %357 = vrot.lane.b32.xlu0 %v339, 120
        %v358 = vpop.permute.xlu0 %357
        %359 = vrot.lane.b32.xlu0 %v340, 120
        %v360 = vpop.permute.xlu0 %359
        %361 = vrot.lane.b32.xlu0 %v341, 120
        %v362 = vpop.permute.xlu0 %361
        %363 = vrot.lane.b32.xlu0 %v342, 120
        %v364 = vpop.permute.xlu0 %363
        %365 = vrot.lane.b32.xlu0 %v343, 120
        %v366 = vpop.permute.xlu0 %365
        %367 = vrot.lane.b32.xlu0 %v344, 120
        %v368 = vpop.permute.xlu0 %367
        %v377 = vrot.slane %v337, 4
        %vm378 = vcmask 1047556
        %v379 = vsel %vm378, 0.0, %v377
        %v381 = vunpack.c.l.s4 1983009808
        %v382 = vunpack.c.0.s8 %v381
        %v383 = vperm.slane %v337, %v382
        %v385 = vunpack.c.l.s4 1983009808
        %v386 = vunpack.c.0.s8 %v385
        %v387 = vperm.slane %v379, %v386
        %v388 = vrot.slane %v354, 4
        %v389 = vsel %vm378, 0.0, %v388
        %v391 = vunpack.c.l.s4 1983009808
        %v392 = vunpack.c.0.s8 %v391
        %v393 = vperm.slane %v354, %v392
        %v395 = vunpack.c.l.s4 1983009808
        %v396 = vunpack.c.0.s8 %v395
        %v397 = vperm.slane %v389, %v396
        %v398 = vrot.slane %v393, 4
        %v399 = vsel %vm378, %v398, %v383
        %v400 = vrot.slane %v383, 4
        %v401 = vsel %vm378, %v393, %v400
        %v403 = vunpack.c.l.s4 1934713408
        %v404 = vunpack.c.0.s8 %v403
        %v405 = vperm.slane %v399, %v404
        %v407 = vunpack.c.l.s4 1934713408
        %v408 = vunpack.c.0.s8 %v407
        %v409 = vperm.slane %v401, %v408
        %v410 = vrot.slane %v397, 4
        %v411 = vsel %vm378, %v410, %v387
        %v412 = vrot.slane %v387, 4
        %v413 = vsel %vm378, %v397, %v412
        %v415 = vunpack.c.l.s4 1934713408
        %v416 = vunpack.c.0.s8 %v415
        %v417 = vperm.slane %v411, %v416
        %v419 = vunpack.c.l.s4 1934713408
        %v420 = vunpack.c.0.s8 %v419
        %v421 = vperm.slane %v413, %v420
        %v422 = vrot.slane %v405, 4
        %v423 = vsel %vm378, 0.0, %v422
        %v424 = vrot.slane %v409, 4
        %v425 = vsel %vm378, 0.0, %v424
        %v426 = vrot.slane %v417, 4
        %v427 = vsel %vm378, 0.0, %v426
        %v428 = vrot.slane %v421, 4
        %v429 = vsel %vm378, 0.0, %v428
        %v430 = vrot.slane %v338, 4
        %v431 = vsel %vm378, 0.0, %v430
        %v433 = vunpack.c.l.s4 1983009808
        %v434 = vunpack.c.0.s8 %v433
        %v435 = vperm.slane %v338, %v434
        %v437 = vunpack.c.l.s4 1983009808
        %v438 = vunpack.c.0.s8 %v437
        %v439 = vperm.slane %v431, %v438
        %v440 = vrot.slane %v356, 4
        %v441 = vsel %vm378, 0.0, %v440
        %v443 = vunpack.c.l.s4 1983009808
        %v444 = vunpack.c.0.s8 %v443
        %v445 = vperm.slane %v356, %v444
        %v447 = vunpack.c.l.s4 1983009808
        %v448 = vunpack.c.0.s8 %v447
        %v449 = vperm.slane %v441, %v448
        %v450 = vrot.slane %v445, 4
        %v451 = vsel %vm378, %v450, %v435
        %v452 = vrot.slane %v435, 4
        %v453 = vsel %vm378, %v445, %v452
        %v455 = vunpack.c.l.s4 1934713408
        %v456 = vunpack.c.0.s8 %v455
        %v457 = vperm.slane %v451, %v456
        %v459 = vunpack.c.l.s4 1934713408
        %v460 = vunpack.c.0.s8 %v459
        %v461 = vperm.slane %v453, %v460
        %v462 = vrot.slane %v449, 4
        %v463 = vsel %vm378, %v462, %v439
        %v464 = vrot.slane %v439, 4
        %v465 = vsel %vm378, %v449, %v464
        %v467 = vunpack.c.l.s4 1934713408
        %v468 = vunpack.c.0.s8 %v467
        %v469 = vperm.slane %v463, %v468
        %v471 = vunpack.c.l.s4 1934713408
        %v472 = vunpack.c.0.s8 %v471
        %v473 = vperm.slane %v465, %v472
        %v474 = vrot.slane %v457, 4
        %v475 = vsel %vm378, 0.0, %v474
        %v476 = vrot.slane %v461, 4
        %v477 = vsel %vm378, 0.0, %v476
        %v478 = vrot.slane %v469, 4
        %v479 = vsel %vm378, 0.0, %v478
        %v480 = vrot.slane %v473, 4
        %v481 = vsel %vm378, 0.0, %v480
        %v482 = vrot.slane %v339, 4
        %v483 = vsel %vm378, 0.0, %v482
        %v485 = vunpack.c.l.s4 1983009808
        %v486 = vunpack.c.0.s8 %v485
        %v487 = vperm.slane %v339, %v486
        %v489 = vunpack.c.l.s4 1983009808
        %v490 = vunpack.c.0.s8 %v489
        %v491 = vperm.slane %v483, %v490
        %v492 = vrot.slane %v358, 4
        %v493 = vsel %vm378, 0.0, %v492
        %v495 = vunpack.c.l.s4 1983009808
        %v496 = vunpack.c.0.s8 %v495
        %v497 = vperm.slane %v358, %v496
        %v499 = vunpack.c.l.s4 1983009808
        %v500 = vunpack.c.0.s8 %v499
        %v501 = vperm.slane %v493, %v500
        %v502 = vrot.slane %v497, 4
        %v503 = vsel %vm378, %v502, %v487
        %v504 = vrot.slane %v487, 4
        %v505 = vsel %vm378, %v497, %v504
        %v507 = vunpack.c.l.s4 1934713408
        %v508 = vunpack.c.0.s8 %v507
        %v509 = vperm.slane %v503, %v508
        %v511 = vunpack.c.l.s4 1934713408
        %v512 = vunpack.c.0.s8 %v511
        %v513 = vperm.slane %v505, %v512
        %v514 = vrot.slane %v501, 4
        %v515 = vsel %vm378, %v514, %v491
        %v516 = vrot.slane %v491, 4
        %v517 = vsel %vm378, %v501, %v516
        %v519 = vunpack.c.l.s4 1934713408
        %v520 = vunpack.c.0.s8 %v519
        %v521 = vperm.slane %v515, %v520
        %v523 = vunpack.c.l.s4 1934713408
        %v524 = vunpack.c.0.s8 %v523
        %v525 = vperm.slane %v517, %v524
        %v526 = vrot.slane %v509, 4
        %v527 = vsel %vm378, 0.0, %v526
        %v528 = vrot.slane %v513, 4
        %v529 = vsel %vm378, 0.0, %v528
        %v530 = vrot.slane %v521, 4
        %v531 = vsel %vm378, 0.0, %v530
        %v532 = vrot.slane %v525, 4
        %v533 = vsel %vm378, 0.0, %v532
        %v534 = vrot.slane %v340, 4
        %v535 = vsel %vm378, 0.0, %v534
        %v537 = vunpack.c.l.s4 1983009808
        %v538 = vunpack.c.0.s8 %v537
        %v539 = vperm.slane %v340, %v538
        %v541 = vunpack.c.l.s4 1983009808
        %v542 = vunpack.c.0.s8 %v541
        %v543 = vperm.slane %v535, %v542
        %v544 = vrot.slane %v360, 4
        %v545 = vsel %vm378, 0.0, %v544
        %v547 = vunpack.c.l.s4 1983009808
        %v548 = vunpack.c.0.s8 %v547
        %v549 = vperm.slane %v360, %v548
        %v551 = vunpack.c.l.s4 1983009808
        %v552 = vunpack.c.0.s8 %v551
        %v553 = vperm.slane %v545, %v552
        %v554 = vrot.slane %v549, 4
        %v555 = vsel %vm378, %v554, %v539
        %v556 = vrot.slane %v539, 4
        %v557 = vsel %vm378, %v549, %v556
        %v559 = vunpack.c.l.s4 1934713408
        %v560 = vunpack.c.0.s8 %v559
        %v561 = vperm.slane %v555, %v560
        %v563 = vunpack.c.l.s4 1934713408
        %v564 = vunpack.c.0.s8 %v563
        %v565 = vperm.slane %v557, %v564
        %v566 = vrot.slane %v553, 4
        %v567 = vsel %vm378, %v566, %v543
        %v568 = vrot.slane %v543, 4
        %v569 = vsel %vm378, %v553, %v568
        %v571 = vunpack.c.l.s4 1934713408
        %v572 = vunpack.c.0.s8 %v571
        %v573 = vperm.slane %v567, %v572
        %v575 = vunpack.c.l.s4 1934713408
        %v576 = vunpack.c.0.s8 %v575
        %v577 = vperm.slane %v569, %v576
        %v578 = vrot.slane %v561, 4
        %v579 = vsel %vm378, 0.0, %v578
        %v580 = vrot.slane %v565, 4
        %v581 = vsel %vm378, 0.0, %v580
        %v582 = vrot.slane %v573, 4
        %v583 = vsel %vm378, 0.0, %v582
        %v584 = vrot.slane %v577, 4
        %v585 = vsel %vm378, 0.0, %v584
        %v586 = vrot.slane %v341, 4
        %v587 = vsel %vm378, 0.0, %v586
        %v589 = vunpack.c.l.s4 1983009808
        %v590 = vunpack.c.0.s8 %v589
        %v591 = vperm.slane %v341, %v590
        %v593 = vunpack.c.l.s4 1983009808
        %v594 = vunpack.c.0.s8 %v593
        %v595 = vperm.slane %v587, %v594
        %v596 = vrot.slane %v362, 4
        %v597 = vsel %vm378, 0.0, %v596
        %v599 = vunpack.c.l.s4 1983009808
        %v600 = vunpack.c.0.s8 %v599
        %v601 = vperm.slane %v362, %v600
        %v603 = vunpack.c.l.s4 1983009808
        %v604 = vunpack.c.0.s8 %v603
        %v605 = vperm.slane %v597, %v604
        %v606 = vrot.slane %v601, 4
        %v607 = vsel %vm378, %v606, %v591
        %v608 = vrot.slane %v591, 4
        %v609 = vsel %vm378, %v601, %v608
        %v611 = vunpack.c.l.s4 1934713408
        %v612 = vunpack.c.0.s8 %v611
        %v613 = vperm.slane %v607, %v612
        %v615 = vunpack.c.l.s4 1934713408
        %v616 = vunpack.c.0.s8 %v615
        %v617 = vperm.slane %v609, %v616
        %v618 = vrot.slane %v605, 4
        %v619 = vsel %vm378, %v618, %v595
        %v620 = vrot.slane %v595, 4
        %v621 = vsel %vm378, %v605, %v620
        %v623 = vunpack.c.l.s4 1934713408
        %v624 = vunpack.c.0.s8 %v623
        %v625 = vperm.slane %v619, %v624
        %v627 = vunpack.c.l.s4 1934713408
        %v628 = vunpack.c.0.s8 %v627
        %v629 = vperm.slane %v621, %v628
        %v630 = vrot.slane %v613, 4
        %v631 = vsel %vm378, 0.0, %v630
        %v632 = vrot.slane %v617, 4
        %v633 = vsel %vm378, 0.0, %v632
        %v634 = vrot.slane %v625, 4
        %v635 = vsel %vm378, 0.0, %v634
        %v636 = vrot.slane %v629, 4
        %v637 = vsel %vm378, 0.0, %v636
        %v638 = vrot.slane %v342, 4
        %v639 = vsel %vm378, 0.0, %v638
        %v641 = vunpack.c.l.s4 1983009808
        %v642 = vunpack.c.0.s8 %v641
        %v643 = vperm.slane %v342, %v642
        %v645 = vunpack.c.l.s4 1983009808
        %v646 = vunpack.c.0.s8 %v645
        %v647 = vperm.slane %v639, %v646
        %v648 = vrot.slane %v364, 4
        %v649 = vsel %vm378, 0.0, %v648
        %v651 = vunpack.c.l.s4 1983009808
        %v652 = vunpack.c.0.s8 %v651
        %v653 = vperm.slane %v364, %v652
        %v655 = vunpack.c.l.s4 1983009808
        %v656 = vunpack.c.0.s8 %v655
        %v657 = vperm.slane %v649, %v656
        %v658 = vrot.slane %v653, 4
        %v659 = vsel %vm378, %v658, %v643
        %v660 = vrot.slane %v643, 4
        %v661 = vsel %vm378, %v653, %v660
        %v663 = vunpack.c.l.s4 1934713408
        %v664 = vunpack.c.0.s8 %v663
        %v665 = vperm.slane %v659, %v664
        %v667 = vunpack.c.l.s4 1934713408
        %v668 = vunpack.c.0.s8 %v667
        %v669 = vperm.slane %v661, %v668
        %v670 = vrot.slane %v657, 4
        %v671 = vsel %vm378, %v670, %v647
        %v672 = vrot.slane %v647, 4
        %v673 = vsel %vm378, %v657, %v672
        %v675 = vunpack.c.l.s4 1934713408
        %v676 = vunpack.c.0.s8 %v675
        %v677 = vperm.slane %v671, %v676
        %v679 = vunpack.c.l.s4 1934713408
        %v680 = vunpack.c.0.s8 %v679
        %v681 = vperm.slane %v673, %v680
        %v682 = vrot.slane %v665, 4
        %v683 = vsel %vm378, 0.0, %v682
        %v684 = vrot.slane %v669, 4
        %v685 = vsel %vm378, 0.0, %v684
        %v686 = vrot.slane %v677, 4
        %v687 = vsel %vm378, 0.0, %v686
        %v688 = vrot.slane %v681, 4
        %v689 = vsel %vm378, 0.0, %v688
        %v690 = vrot.slane %v343, 4
        %v691 = vsel %vm378, 0.0, %v690
        %v693 = vunpack.c.l.s4 1983009808
        %v694 = vunpack.c.0.s8 %v693
        %v695 = vperm.slane %v343, %v694
        %v697 = vunpack.c.l.s4 1983009808
        %v698 = vunpack.c.0.s8 %v697
        %v699 = vperm.slane %v691, %v698
        %v700 = vrot.slane %v366, 4
        %v701 = vsel %vm378, 0.0, %v700
        %v703 = vunpack.c.l.s4 1983009808
        %v704 = vunpack.c.0.s8 %v703
        %v705 = vperm.slane %v366, %v704
        %v707 = vunpack.c.l.s4 1983009808
        %v708 = vunpack.c.0.s8 %v707
        %v709 = vperm.slane %v701, %v708
        %v710 = vrot.slane %v705, 4
        %v711 = vsel %vm378, %v710, %v695
        %v712 = vrot.slane %v695, 4
        %v713 = vsel %vm378, %v705, %v712
        %v715 = vunpack.c.l.s4 1934713408
        %v716 = vunpack.c.0.s8 %v715
        %v717 = vperm.slane %v711, %v716
        %v719 = vunpack.c.l.s4 1934713408
        %v720 = vunpack.c.0.s8 %v719
        %v721 = vperm.slane %v713, %v720
        %v722 = vrot.slane %v709, 4
        %v723 = vsel %vm378, %v722, %v699
        %v724 = vrot.slane %v699, 4
        %v725 = vsel %vm378, %v709, %v724
        %v727 = vunpack.c.l.s4 1934713408
        %v728 = vunpack.c.0.s8 %v727
        %v729 = vperm.slane %v723, %v728
        %v731 = vunpack.c.l.s4 1934713408
        %v732 = vunpack.c.0.s8 %v731
        %v733 = vperm.slane %v725, %v732
        %v734 = vrot.slane %v717, 4
        %v735 = vsel %vm378, 0.0, %v734
        %v736 = vrot.slane %v721, 4
        %v737 = vsel %vm378, 0.0, %v736
        %v738 = vrot.slane %v729, 4
        %v739 = vsel %vm378, 0.0, %v738
        %v740 = vrot.slane %v733, 4
        %v741 = vsel %vm378, 0.0, %v740
        %v742 = vrot.slane %v344, 4
        %v743 = vsel %vm378, 0.0, %v742
        %v745 = vunpack.c.l.s4 1983009808
        %v746 = vunpack.c.0.s8 %v745
        %v747 = vperm.slane %v344, %v746
        %v749 = vunpack.c.l.s4 1983009808
        %v750 = vunpack.c.0.s8 %v749
        %v751 = vperm.slane %v743, %v750
        %v752 = vrot.slane %v368, 4
        %v753 = vsel %vm378, 0.0, %v752
        %v755 = vunpack.c.l.s4 1983009808
        %v756 = vunpack.c.0.s8 %v755
        %v757 = vperm.slane %v368, %v756
        %v759 = vunpack.c.l.s4 1983009808
        %v760 = vunpack.c.0.s8 %v759
        %v761 = vperm.slane %v753, %v760
        %v762 = vrot.slane %v757, 4
        %v763 = vsel %vm378, %v762, %v747
        %v764 = vrot.slane %v747, 4
        %v765 = vsel %vm378, %v757, %v764
        %v767 = vunpack.c.l.s4 1934713408
        %v768 = vunpack.c.0.s8 %v767
        %v769 = vperm.slane %v763, %v768
        %v771 = vunpack.c.l.s4 1934713408
        %v772 = vunpack.c.0.s8 %v771
        %v773 = vperm.slane %v765, %v772
        %v774 = vrot.slane %v761, 4
        %v775 = vsel %vm378, %v774, %v751
        %v776 = vrot.slane %v751, 4
        %v777 = vsel %vm378, %v761, %v776
        %v779 = vunpack.c.l.s4 1934713408
        %v780 = vunpack.c.0.s8 %v779
        %v781 = vperm.slane %v775, %v780
        %v783 = vunpack.c.l.s4 1934713408
        %v784 = vunpack.c.0.s8 %v783
        %v785 = vperm.slane %v777, %v784
        %v786 = vrot.slane %v769, 4
        %v787 = vsel %vm378, 0.0, %v786
        %v788 = vrot.slane %v773, 4
        %v789 = vsel %vm378, 0.0, %v788
        %v790 = vrot.slane %v781, 4
        %v791 = vsel %vm378, 0.0, %v790
        %v792 = vrot.slane %v785, 4
        %v793 = vsel %vm378, 0.0, %v792
        %802 = vrot.lane.b32.xlu0 %v318, 120
        %v803 = vpop.permute.xlu0 %802
        %804 = vrot.lane.b32.xlu0 %v320, 120
        %v805 = vpop.permute.xlu0 %804
        %806 = vrot.lane.b32.xlu0 %v323, 120
        %v807 = vpop.permute.xlu0 %806
        %808 = vrot.lane.b32.xlu0 %v325, 120
        %v809 = vpop.permute.xlu0 %808
        %810 = vrot.lane.b32.xlu0 %v328, 120
        %v811 = vpop.permute.xlu0 %810
        %812 = vrot.lane.b32.xlu0 %v330, 120
        %v813 = vpop.permute.xlu0 %812
        %814 = vrot.lane.b32.xlu0 %v333, 120
        %v815 = vpop.permute.xlu0 %814
        %816 = vrot.lane.b32.xlu0 %v335, 120
        %v817 = vpop.permute.xlu0 %816
        %818 = vrot.lane.b32.xlu0 %v318, 112
        %v819 = vpop.permute.xlu0 %818
        %820 = vrot.lane.b32.xlu0 %v320, 112
        %v821 = vpop.permute.xlu0 %820
        %822 = vrot.lane.b32.xlu0 %v323, 112
        %v823 = vpop.permute.xlu0 %822
        %824 = vrot.lane.b32.xlu0 %v325, 112
        %v825 = vpop.permute.xlu0 %824
        %826 = vrot.lane.b32.xlu0 %v328, 112
        %v827 = vpop.permute.xlu0 %826
        %828 = vrot.lane.b32.xlu0 %v330, 112
        %v829 = vpop.permute.xlu0 %828
        %830 = vrot.lane.b32.xlu0 %v333, 112
        %v831 = vpop.permute.xlu0 %830
        %832 = vrot.lane.b32.xlu0 %v335, 112
        %v833 = vpop.permute.xlu0 %832
        %834 = vrot.lane.b32.xlu0 %v803, 112
        %v835 = vpop.permute.xlu0 %834
        %836 = vrot.lane.b32.xlu0 %v805, 112
        %v837 = vpop.permute.xlu0 %836
        %838 = vrot.lane.b32.xlu0 %v807, 112
        %v839 = vpop.permute.xlu0 %838
        %840 = vrot.lane.b32.xlu0 %v809, 112
        %v841 = vpop.permute.xlu0 %840
        %842 = vrot.lane.b32.xlu0 %v811, 112
        %v843 = vpop.permute.xlu0 %842
        %844 = vrot.lane.b32.xlu0 %v813, 112
        %v845 = vpop.permute.xlu0 %844
        %846 = vrot.lane.b32.xlu0 %v815, 112
        %v847 = vpop.permute.xlu0 %846
        %848 = vrot.lane.b32.xlu0 %v817, 112
        %v849 = vpop.permute.xlu0 %848
        %v866 = vrot.slane %v819, 4
        %v867 = vsel %vm378, 0.0, %v866
        %v869 = vunpack.c.l.s4 1983009808
        %v870 = vunpack.c.0.s8 %v869
        %v871 = vperm.slane %v819, %v870
        %v873 = vunpack.c.l.s4 1983009808
        %v874 = vunpack.c.0.s8 %v873
        %v875 = vperm.slane %v867, %v874
        %v876 = vrot.slane %v835, 4
        %v877 = vsel %vm378, 0.0, %v876
        %v879 = vunpack.c.l.s4 1983009808
        %v880 = vunpack.c.0.s8 %v879
        %v881 = vperm.slane %v835, %v880
        %v883 = vunpack.c.l.s4 1983009808
        %v884 = vunpack.c.0.s8 %v883
        %v885 = vperm.slane %v877, %v884
        %v886 = vrot.slane %v881, 4
        %v887 = vsel %vm378, %v886, %v871
        %v888 = vrot.slane %v871, 4
        %v889 = vsel %vm378, %v881, %v888
        %v891 = vunpack.c.l.s4 1934713408
        %v892 = vunpack.c.0.s8 %v891
        %v893 = vperm.slane %v887, %v892
        %v895 = vunpack.c.l.s4 1934713408
        %v896 = vunpack.c.0.s8 %v895
        %v897 = vperm.slane %v889, %v896
        %v898 = vrot.slane %v885, 4
        %v899 = vsel %vm378, %v898, %v875
        %v900 = vrot.slane %v875, 4
        %v901 = vsel %vm378, %v885, %v900
        %v903 = vunpack.c.l.s4 1934713408
        %v904 = vunpack.c.0.s8 %v903
        %v905 = vperm.slane %v899, %v904
        %v907 = vunpack.c.l.s4 1934713408
        %v908 = vunpack.c.0.s8 %v907
        %v909 = vperm.slane %v901, %v908
        %v910 = vrot.slane %v893, 4
        %v911 = vsel %vm378, 0.0, %v910
        %v912 = vrot.slane %v897, 4
        %v913 = vsel %vm378, 0.0, %v912
        %v914 = vrot.slane %v905, 4
        %v915 = vsel %vm378, 0.0, %v914
        %v916 = vrot.slane %v909, 4
        %v917 = vsel %vm378, 0.0, %v916
        %v918 = vrot.slane %v821, 4
        %v919 = vsel %vm378, 0.0, %v918
        %v921 = vunpack.c.l.s4 1983009808
        %v922 = vunpack.c.0.s8 %v921
        %v923 = vperm.slane %v821, %v922
        %v925 = vunpack.c.l.s4 1983009808
        %v926 = vunpack.c.0.s8 %v925
        %v927 = vperm.slane %v919, %v926
        %v928 = vrot.slane %v837, 4
        %v929 = vsel %vm378, 0.0, %v928
        %v931 = vunpack.c.l.s4 1983009808
        %v932 = vunpack.c.0.s8 %v931
        %v933 = vperm.slane %v837, %v932
        %v935 = vunpack.c.l.s4 1983009808
        %v936 = vunpack.c.0.s8 %v935
        %v937 = vperm.slane %v929, %v936
        %v938 = vrot.slane %v933, 4
        %v939 = vsel %vm378, %v938, %v923
        %v940 = vrot.slane %v923, 4
        %v941 = vsel %vm378, %v933, %v940
        %v943 = vunpack.c.l.s4 1934713408
        %v944 = vunpack.c.0.s8 %v943
        %v945 = vperm.slane %v939, %v944
        %v947 = vunpack.c.l.s4 1934713408
        %v948 = vunpack.c.0.s8 %v947
        %v949 = vperm.slane %v941, %v948
        %v950 = vrot.slane %v937, 4
        %v951 = vsel %vm378, %v950, %v927
        %v952 = vrot.slane %v927, 4
        %v953 = vsel %vm378, %v937, %v952
        %v955 = vunpack.c.l.s4 1934713408
        %v956 = vunpack.c.0.s8 %v955
        %v957 = vperm.slane %v951, %v956
        %v959 = vunpack.c.l.s4 1934713408
        %v960 = vunpack.c.0.s8 %v959
        %v961 = vperm.slane %v953, %v960
        %v962 = vrot.slane %v945, 4
        %v963 = vsel %vm378, 0.0, %v962
        %v964 = vrot.slane %v949, 4
        %v965 = vsel %vm378, 0.0, %v964
        %v966 = vrot.slane %v957, 4
        %v967 = vsel %vm378, 0.0, %v966
        %v968 = vrot.slane %v961, 4
        %v969 = vsel %vm378, 0.0, %v968
        %v970 = vrot.slane %v823, 4
        %v971 = vsel %vm378, 0.0, %v970
        %v973 = vunpack.c.l.s4 1983009808
        %v974 = vunpack.c.0.s8 %v973
        %v975 = vperm.slane %v823, %v974
        %v977 = vunpack.c.l.s4 1983009808
        %v978 = vunpack.c.0.s8 %v977
        %v979 = vperm.slane %v971, %v978
        %v980 = vrot.slane %v839, 4
        %v981 = vsel %vm378, 0.0, %v980
        %v983 = vunpack.c.l.s4 1983009808
        %v984 = vunpack.c.0.s8 %v983
        %v985 = vperm.slane %v839, %v984
        %v987 = vunpack.c.l.s4 1983009808
        %v988 = vunpack.c.0.s8 %v987
        %v989 = vperm.slane %v981, %v988
        %v990 = vrot.slane %v985, 4
        %v991 = vsel %vm378, %v990, %v975
        %v992 = vrot.slane %v975, 4
        %v993 = vsel %vm378, %v985, %v992
        %v995 = vunpack.c.l.s4 1934713408
        %v996 = vunpack.c.0.s8 %v995
        %v997 = vperm.slane %v991, %v996
        %v999 = vunpack.c.l.s4 1934713408
        %v1000 = vunpack.c.0.s8 %v999
        %v1001 = vperm.slane %v993, %v1000
        %v1002 = vrot.slane %v989, 4
        %v1003 = vsel %vm378, %v1002, %v979
        %v1004 = vrot.slane %v979, 4
        %v1005 = vsel %vm378, %v989, %v1004
        %v1007 = vunpack.c.l.s4 1934713408
        %v1008 = vunpack.c.0.s8 %v1007
        %v1009 = vperm.slane %v1003, %v1008
        %v1011 = vunpack.c.l.s4 1934713408
        %v1012 = vunpack.c.0.s8 %v1011
        %v1013 = vperm.slane %v1005, %v1012
        %v1014 = vrot.slane %v997, 4
        %v1015 = vsel %vm378, 0.0, %v1014
        %v1016 = vrot.slane %v1001, 4
        %v1017 = vsel %vm378, 0.0, %v1016
        %v1018 = vrot.slane %v1009, 4
        %v1019 = vsel %vm378, 0.0, %v1018
        %v1020 = vrot.slane %v1013, 4
        %v1021 = vsel %vm378, 0.0, %v1020
        %v1022 = vrot.slane %v825, 4
        %v1023 = vsel %vm378, 0.0, %v1022
        %v1025 = vunpack.c.l.s4 1983009808
        %v1026 = vunpack.c.0.s8 %v1025
        %v1027 = vperm.slane %v825, %v1026
        %v1029 = vunpack.c.l.s4 1983009808
        %v1030 = vunpack.c.0.s8 %v1029
        %v1031 = vperm.slane %v1023, %v1030
        %v1032 = vrot.slane %v841, 4
        %v1033 = vsel %vm378, 0.0, %v1032
        %v1035 = vunpack.c.l.s4 1983009808
        %v1036 = vunpack.c.0.s8 %v1035
        %v1037 = vperm.slane %v841, %v1036
        %v1039 = vunpack.c.l.s4 1983009808
        %v1040 = vunpack.c.0.s8 %v1039
        %v1041 = vperm.slane %v1033, %v1040
        %v1042 = vrot.slane %v1037, 4
        %v1043 = vsel %vm378, %v1042, %v1027
        %v1044 = vrot.slane %v1027, 4
        %v1045 = vsel %vm378, %v1037, %v1044
        %v1047 = vunpack.c.l.s4 1934713408
        %v1048 = vunpack.c.0.s8 %v1047
        %v1049 = vperm.slane %v1043, %v1048
        %v1051 = vunpack.c.l.s4 1934713408
        %v1052 = vunpack.c.0.s8 %v1051
        %v1053 = vperm.slane %v1045, %v1052
        %v1054 = vrot.slane %v1041, 4
        %v1055 = vsel %vm378, %v1054, %v1031
        %v1056 = vrot.slane %v1031, 4
        %v1057 = vsel %vm378, %v1041, %v1056
        %v1059 = vunpack.c.l.s4 1934713408
        %v1060 = vunpack.c.0.s8 %v1059
        %v1061 = vperm.slane %v1055, %v1060
        %v1063 = vunpack.c.l.s4 1934713408
        %v1064 = vunpack.c.0.s8 %v1063
        %v1065 = vperm.slane %v1057, %v1064
        %v1066 = vrot.slane %v1049, 4
        %v1067 = vsel %vm378, 0.0, %v1066
        %v1068 = vrot.slane %v1053, 4
        %v1069 = vsel %vm378, 0.0, %v1068
        %v1070 = vrot.slane %v1061, 4
        %v1071 = vsel %vm378, 0.0, %v1070
        %v1072 = vrot.slane %v1065, 4
        %v1073 = vsel %vm378, 0.0, %v1072
        %v1074 = vrot.slane %v827, 4
        %v1075 = vsel %vm378, 0.0, %v1074
        %v1077 = vunpack.c.l.s4 1983009808
        %v1078 = vunpack.c.0.s8 %v1077
        %v1079 = vperm.slane %v827, %v1078
        %v1081 = vunpack.c.l.s4 1983009808
        %v1082 = vunpack.c.0.s8 %v1081
        %v1083 = vperm.slane %v1075, %v1082
        %v1084 = vrot.slane %v843, 4
        %v1085 = vsel %vm378, 0.0, %v1084
        %v1087 = vunpack.c.l.s4 1983009808
        %v1088 = vunpack.c.0.s8 %v1087
        %v1089 = vperm.slane %v843, %v1088
        %v1091 = vunpack.c.l.s4 1983009808
        %v1092 = vunpack.c.0.s8 %v1091
        %v1093 = vperm.slane %v1085, %v1092
        %v1094 = vrot.slane %v1089, 4
        %v1095 = vsel %vm378, %v1094, %v1079
        %v1096 = vrot.slane %v1079, 4
        %v1097 = vsel %vm378, %v1089, %v1096
        %v1099 = vunpack.c.l.s4 1934713408
        %v1100 = vunpack.c.0.s8 %v1099
        %v1101 = vperm.slane %v1095, %v1100
        %v1103 = vunpack.c.l.s4 1934713408
        %v1104 = vunpack.c.0.s8 %v1103
        %v1105 = vperm.slane %v1097, %v1104
        %v1106 = vrot.slane %v1093, 4
        %v1107 = vsel %vm378, %v1106, %v1083
        %v1108 = vrot.slane %v1083, 4
        %v1109 = vsel %vm378, %v1093, %v1108
        %v1111 = vunpack.c.l.s4 1934713408
        %v1112 = vunpack.c.0.s8 %v1111
        %v1113 = vperm.slane %v1107, %v1112
        %v1115 = vunpack.c.l.s4 1934713408
        %v1116 = vunpack.c.0.s8 %v1115
        %v1117 = vperm.slane %v1109, %v1116
        %v1118 = vrot.slane %v1101, 4
        %v1119 = vsel %vm378, 0.0, %v1118
        %v1120 = vrot.slane %v1105, 4
        %v1121 = vsel %vm378, 0.0, %v1120
        %v1122 = vrot.slane %v1113, 4
        %v1123 = vsel %vm378, 0.0, %v1122
        %v1124 = vrot.slane %v1117, 4
        %v1125 = vsel %vm378, 0.0, %v1124
        %v1126 = vrot.slane %v829, 4
        %v1127 = vsel %vm378, 0.0, %v1126
        %v1129 = vunpack.c.l.s4 1983009808
        %v1130 = vunpack.c.0.s8 %v1129
        %v1131 = vperm.slane %v829, %v1130
        %v1133 = vunpack.c.l.s4 1983009808
        %v1134 = vunpack.c.0.s8 %v1133
        %v1135 = vperm.slane %v1127, %v1134
        %v1136 = vrot.slane %v845, 4
        %v1137 = vsel %vm378, 0.0, %v1136
        %v1139 = vunpack.c.l.s4 1983009808
        %v1140 = vunpack.c.0.s8 %v1139
        %v1141 = vperm.slane %v845, %v1140
        %v1143 = vunpack.c.l.s4 1983009808
        %v1144 = vunpack.c.0.s8 %v1143
        %v1145 = vperm.slane %v1137, %v1144
        %v1146 = vrot.slane %v1141, 4
        %v1147 = vsel %vm378, %v1146, %v1131
        %v1148 = vrot.slane %v1131, 4
        %v1149 = vsel %vm378, %v1141, %v1148
        %v1151 = vunpack.c.l.s4 1934713408
        %v1152 = vunpack.c.0.s8 %v1151
        %v1153 = vperm.slane %v1147, %v1152
        %v1155 = vunpack.c.l.s4 1934713408
        %v1156 = vunpack.c.0.s8 %v1155
        %v1157 = vperm.slane %v1149, %v1156
        %v1158 = vrot.slane %v1145, 4
        %v1159 = vsel %vm378, %v1158, %v1135
        %v1160 = vrot.slane %v1135, 4
        %v1161 = vsel %vm378, %v1145, %v1160
        %v1163 = vunpack.c.l.s4 1934713408
        %v1164 = vunpack.c.0.s8 %v1163
        %v1165 = vperm.slane %v1159, %v1164
        %v1167 = vunpack.c.l.s4 1934713408
        %v1168 = vunpack.c.0.s8 %v1167
        %v1169 = vperm.slane %v1161, %v1168
        %v1170 = vrot.slane %v1153, 4
        %v1171 = vsel %vm378, 0.0, %v1170
        %v1172 = vrot.slane %v1157, 4
        %v1173 = vsel %vm378, 0.0, %v1172
        %v1174 = vrot.slane %v1165, 4
        %v1175 = vsel %vm378, 0.0, %v1174
        %v1176 = vrot.slane %v1169, 4
        %v1177 = vsel %vm378, 0.0, %v1176
        %v1178 = vrot.slane %v831, 4
        %v1179 = vsel %vm378, 0.0, %v1178
        %v1181 = vunpack.c.l.s4 1983009808
        %v1182 = vunpack.c.0.s8 %v1181
        %v1183 = vperm.slane %v831, %v1182
        %v1185 = vunpack.c.l.s4 1983009808
        %v1186 = vunpack.c.0.s8 %v1185
        %v1187 = vperm.slane %v1179, %v1186
        %v1188 = vrot.slane %v847, 4
        %v1189 = vsel %vm378, 0.0, %v1188
        %v1191 = vunpack.c.l.s4 1983009808
        %v1192 = vunpack.c.0.s8 %v1191
        %v1193 = vperm.slane %v847, %v1192
        %v1195 = vunpack.c.l.s4 1983009808
        %v1196 = vunpack.c.0.s8 %v1195
        %v1197 = vperm.slane %v1189, %v1196
        %v1198 = vrot.slane %v1193, 4
        %v1199 = vsel %vm378, %v1198, %v1183
        %v1200 = vrot.slane %v1183, 4
        %v1201 = vsel %vm378, %v1193, %v1200
        %v1203 = vunpack.c.l.s4 1934713408
        %v1204 = vunpack.c.0.s8 %v1203
        %v1205 = vperm.slane %v1199, %v1204
        %v1207 = vunpack.c.l.s4 1934713408
        %v1208 = vunpack.c.0.s8 %v1207
        %v1209 = vperm.slane %v1201, %v1208
        %v1210 = vrot.slane %v1197, 4
        %v1211 = vsel %vm378, %v1210, %v1187
        %v1212 = vrot.slane %v1187, 4
        %v1213 = vsel %vm378, %v1197, %v1212
        %v1215 = vunpack.c.l.s4 1934713408
        %v1216 = vunpack.c.0.s8 %v1215
        %v1217 = vperm.slane %v1211, %v1216
        %v1219 = vunpack.c.l.s4 1934713408
        %v1220 = vunpack.c.0.s8 %v1219
        %v1221 = vperm.slane %v1213, %v1220
        %v1222 = vrot.slane %v1205, 4
        %v1223 = vsel %vm378, 0.0, %v1222
        %v1224 = vrot.slane %v1209, 4
        %v1225 = vsel %vm378, 0.0, %v1224
        %v1226 = vrot.slane %v1217, 4
        %v1227 = vsel %vm378, 0.0, %v1226
        %v1228 = vrot.slane %v1221, 4
        %v1229 = vsel %vm378, 0.0, %v1228
        %v1230 = vrot.slane %v833, 4
        %v1231 = vsel %vm378, 0.0, %v1230
        %v1233 = vunpack.c.l.s4 1983009808
        %v1234 = vunpack.c.0.s8 %v1233
        %v1235 = vperm.slane %v833, %v1234
        %v1237 = vunpack.c.l.s4 1983009808
        %v1238 = vunpack.c.0.s8 %v1237
        %v1239 = vperm.slane %v1231, %v1238
        %v1240 = vrot.slane %v849, 4
        %v1241 = vsel %vm378, 0.0, %v1240
        %v1243 = vunpack.c.l.s4 1983009808
        %v1244 = vunpack.c.0.s8 %v1243
        %v1245 = vperm.slane %v849, %v1244
        %v1247 = vunpack.c.l.s4 1983009808
        %v1248 = vunpack.c.0.s8 %v1247
        %v1249 = vperm.slane %v1241, %v1248
        %v1250 = vrot.slane %v1245, 4
        %v1251 = vsel %vm378, %v1250, %v1235
        %v1252 = vrot.slane %v1235, 4
        %v1253 = vsel %vm378, %v1245, %v1252
        %v1255 = vunpack.c.l.s4 1934713408
        %v1256 = vunpack.c.0.s8 %v1255
        %v1257 = vperm.slane %v1251, %v1256
        %v1259 = vunpack.c.l.s4 1934713408
        %v1260 = vunpack.c.0.s8 %v1259
        %v1261 = vperm.slane %v1253, %v1260
        %v1262 = vrot.slane %v1249, 4
        %v1263 = vsel %vm378, %v1262, %v1239
        %v1264 = vrot.slane %v1239, 4
        %v1265 = vsel %vm378, %v1249, %v1264
        %v1267 = vunpack.c.l.s4 1934713408
        %v1268 = vunpack.c.0.s8 %v1267
        %v1269 = vperm.slane %v1263, %v1268
        %v1271 = vunpack.c.l.s4 1934713408
        %v1272 = vunpack.c.0.s8 %v1271
        %v1273 = vperm.slane %v1265, %v1272
        %v1274 = vrot.slane %v1257, 4
        %v1275 = vsel %vm378, 0.0, %v1274
        %v1276 = vrot.slane %v1261, 4
        %v1277 = vsel %vm378, 0.0, %v1276
        %v1278 = vrot.slane %v1269, 4
        %v1279 = vsel %vm378, 0.0, %v1278
        %v1280 = vrot.slane %v1273, 4
        %v1281 = vsel %vm378, 0.0, %v1280
        %1282 = vrot.lane.b32.xlu0 %v318, 96
        %v1283 = vpop.permute.xlu0 %1282
        %1284 = vrot.lane.b32.xlu0 %v320, 96
        %v1285 = vpop.permute.xlu0 %1284
        %1286 = vrot.lane.b32.xlu0 %v323, 96
        %v1287 = vpop.permute.xlu0 %1286
        %1288 = vrot.lane.b32.xlu0 %v325, 96
        %v1289 = vpop.permute.xlu0 %1288
        %1290 = vrot.lane.b32.xlu0 %v328, 96
        %v1291 = vpop.permute.xlu0 %1290
        %1292 = vrot.lane.b32.xlu0 %v330, 96
        %v1293 = vpop.permute.xlu0 %1292
        %1294 = vrot.lane.b32.xlu0 %v333, 96
        %v1295 = vpop.permute.xlu0 %1294
        %1296 = vrot.lane.b32.xlu0 %v335, 96
        %v1297 = vpop.permute.xlu0 %1296
        %1298 = vrot.lane.b32.xlu0 %v803, 96
        %v1299 = vpop.permute.xlu0 %1298
        %1300 = vrot.lane.b32.xlu0 %v805, 96
        %v1301 = vpop.permute.xlu0 %1300
        %1302 = vrot.lane.b32.xlu0 %v807, 96
        %v1303 = vpop.permute.xlu0 %1302
        %1304 = vrot.lane.b32.xlu0 %v809, 96
        %v1305 = vpop.permute.xlu0 %1304
        %1306 = vrot.lane.b32.xlu0 %v811, 96
        %v1307 = vpop.permute.xlu0 %1306
        %1308 = vrot.lane.b32.xlu0 %v813, 96
        %v1309 = vpop.permute.xlu0 %1308
        %1310 = vrot.lane.b32.xlu0 %v815, 96
        %v1311 = vpop.permute.xlu0 %1310
        %1312 = vrot.lane.b32.xlu0 %v817, 96
        %v1313 = vpop.permute.xlu0 %1312
        %v1330 = vrot.slane %v1283, 4
        %v1331 = vsel %vm378, 0.0, %v1330
        %v1333 = vunpack.c.l.s4 1983009808
        %v1334 = vunpack.c.0.s8 %v1333
        %v1335 = vperm.slane %v1283, %v1334
        %v1337 = vunpack.c.l.s4 1983009808
        %v1338 = vunpack.c.0.s8 %v1337
        %v1339 = vperm.slane %v1331, %v1338
        %v1340 = vrot.slane %v1299, 4
        %v1341 = vsel %vm378, 0.0, %v1340
        %v1343 = vunpack.c.l.s4 1983009808
        %v1344 = vunpack.c.0.s8 %v1343
        %v1345 = vperm.slane %v1299, %v1344
        %v1347 = vunpack.c.l.s4 1983009808
        %v1348 = vunpack.c.0.s8 %v1347
        %v1349 = vperm.slane %v1341, %v1348
        %v1350 = vrot.slane %v1345, 4
        %v1351 = vsel %vm378, %v1350, %v1335
        %v1352 = vrot.slane %v1335, 4
        %v1353 = vsel %vm378, %v1345, %v1352
        %v1355 = vunpack.c.l.s4 1934713408
        %v1356 = vunpack.c.0.s8 %v1355
        %v1357 = vperm.slane %v1351, %v1356
        %v1359 = vunpack.c.l.s4 1934713408
        %v1360 = vunpack.c.0.s8 %v1359
        %v1361 = vperm.slane %v1353, %v1360
        %v1362 = vrot.slane %v1349, 4
        %v1363 = vsel %vm378, %v1362, %v1339
        %v1364 = vrot.slane %v1339, 4
        %v1365 = vsel %vm378, %v1349, %v1364
        %v1367 = vunpack.c.l.s4 1934713408
        %v1368 = vunpack.c.0.s8 %v1367
        %v1369 = vperm.slane %v1363, %v1368
        %v1371 = vunpack.c.l.s4 1934713408
        %v1372 = vunpack.c.0.s8 %v1371
        %v1373 = vperm.slane %v1365, %v1372
        %v1374 = vrot.slane %v1357, 4
        %v1375 = vsel %vm378, 0.0, %v1374
        %v1376 = vrot.slane %v1361, 4
        %v1377 = vsel %vm378, 0.0, %v1376
        %v1378 = vrot.slane %v1369, 4
        %v1379 = vsel %vm378, 0.0, %v1378
        %v1380 = vrot.slane %v1373, 4
        %v1381 = vsel %vm378, 0.0, %v1380
        %v1382 = vrot.slane %v1285, 4
        %v1383 = vsel %vm378, 0.0, %v1382
        %v1385 = vunpack.c.l.s4 1983009808
        %v1386 = vunpack.c.0.s8 %v1385
        %v1387 = vperm.slane %v1285, %v1386
        %v1389 = vunpack.c.l.s4 1983009808
        %v1390 = vunpack.c.0.s8 %v1389
        %v1391 = vperm.slane %v1383, %v1390
        %v1392 = vrot.slane %v1301, 4
        %v1393 = vsel %vm378, 0.0, %v1392
        %v1395 = vunpack.c.l.s4 1983009808
        %v1396 = vunpack.c.0.s8 %v1395
        %v1397 = vperm.slane %v1301, %v1396
        %v1399 = vunpack.c.l.s4 1983009808
        %v1400 = vunpack.c.0.s8 %v1399
        %v1401 = vperm.slane %v1393, %v1400
        %v1402 = vrot.slane %v1397, 4
        %v1403 = vsel %vm378, %v1402, %v1387
        %v1404 = vrot.slane %v1387, 4
        %v1405 = vsel %vm378, %v1397, %v1404
        %v1407 = vunpack.c.l.s4 1934713408
        %v1408 = vunpack.c.0.s8 %v1407
        %v1409 = vperm.slane %v1403, %v1408
        %v1411 = vunpack.c.l.s4 1934713408
        %v1412 = vunpack.c.0.s8 %v1411
        %v1413 = vperm.slane %v1405, %v1412
        %v1414 = vrot.slane %v1401, 4
        %v1415 = vsel %vm378, %v1414, %v1391
        %v1416 = vrot.slane %v1391, 4
        %v1417 = vsel %vm378, %v1401, %v1416
        %v1419 = vunpack.c.l.s4 1934713408
        %v1420 = vunpack.c.0.s8 %v1419
        %v1421 = vperm.slane %v1415, %v1420
        %v1423 = vunpack.c.l.s4 1934713408
        %v1424 = vunpack.c.0.s8 %v1423
        %v1425 = vperm.slane %v1417, %v1424
        %v1426 = vrot.slane %v1409, 4
        %v1427 = vsel %vm378, 0.0, %v1426
        %v1428 = vrot.slane %v1413, 4
        %v1429 = vsel %vm378, 0.0, %v1428
        %v1430 = vrot.slane %v1421, 4
        %v1431 = vsel %vm378, 0.0, %v1430
        %v1432 = vrot.slane %v1425, 4
        %v1433 = vsel %vm378, 0.0, %v1432
        %v1434 = vrot.slane %v1287, 4
        %v1435 = vsel %vm378, 0.0, %v1434
        %v1437 = vunpack.c.l.s4 1983009808
        %v1438 = vunpack.c.0.s8 %v1437
        %v1439 = vperm.slane %v1287, %v1438
        %v1441 = vunpack.c.l.s4 1983009808
        %v1442 = vunpack.c.0.s8 %v1441
        %v1443 = vperm.slane %v1435, %v1442
        %v1444 = vrot.slane %v1303, 4
        %v1445 = vsel %vm378, 0.0, %v1444
        %v1447 = vunpack.c.l.s4 1983009808
        %v1448 = vunpack.c.0.s8 %v1447
        %v1449 = vperm.slane %v1303, %v1448
        %v1451 = vunpack.c.l.s4 1983009808
        %v1452 = vunpack.c.0.s8 %v1451
        %v1453 = vperm.slane %v1445, %v1452
        %v1454 = vrot.slane %v1449, 4
        %v1455 = vsel %vm378, %v1454, %v1439
        %v1456 = vrot.slane %v1439, 4
        %v1457 = vsel %vm378, %v1449, %v1456
        %v1459 = vunpack.c.l.s4 1934713408
        %v1460 = vunpack.c.0.s8 %v1459
        %v1461 = vperm.slane %v1455, %v1460
        %v1463 = vunpack.c.l.s4 1934713408
        %v1464 = vunpack.c.0.s8 %v1463
        %v1465 = vperm.slane %v1457, %v1464
        %v1466 = vrot.slane %v1453, 4
        %v1467 = vsel %vm378, %v1466, %v1443
        %v1468 = vrot.slane %v1443, 4
        %v1469 = vsel %vm378, %v1453, %v1468
        %v1471 = vunpack.c.l.s4 1934713408
        %v1472 = vunpack.c.0.s8 %v1471
        %v1473 = vperm.slane %v1467, %v1472
        %v1475 = vunpack.c.l.s4 1934713408
        %v1476 = vunpack.c.0.s8 %v1475
        %v1477 = vperm.slane %v1469, %v1476
        %v1478 = vrot.slane %v1461, 4
        %v1479 = vsel %vm378, 0.0, %v1478
        %v1480 = vrot.slane %v1465, 4
        %v1481 = vsel %vm378, 0.0, %v1480
        %v1482 = vrot.slane %v1473, 4
        %v1483 = vsel %vm378, 0.0, %v1482
        %v1484 = vrot.slane %v1477, 4
        %v1485 = vsel %vm378, 0.0, %v1484
        %v1486 = vrot.slane %v1289, 4
        %v1487 = vsel %vm378, 0.0, %v1486
        %v1489 = vunpack.c.l.s4 1983009808
        %v1490 = vunpack.c.0.s8 %v1489
        %v1491 = vperm.slane %v1289, %v1490
        %v1493 = vunpack.c.l.s4 1983009808
        %v1494 = vunpack.c.0.s8 %v1493
        %v1495 = vperm.slane %v1487, %v1494
        %v1496 = vrot.slane %v1305, 4
        %v1497 = vsel %vm378, 0.0, %v1496
        %v1499 = vunpack.c.l.s4 1983009808
        %v1500 = vunpack.c.0.s8 %v1499
        %v1501 = vperm.slane %v1305, %v1500
        %v1503 = vunpack.c.l.s4 1983009808
        %v1504 = vunpack.c.0.s8 %v1503
        %v1505 = vperm.slane %v1497, %v1504
        %v1506 = vrot.slane %v1501, 4
        %v1507 = vsel %vm378, %v1506, %v1491
        %v1508 = vrot.slane %v1491, 4
        %v1509 = vsel %vm378, %v1501, %v1508
        %v1511 = vunpack.c.l.s4 1934713408
        %v1512 = vunpack.c.0.s8 %v1511
        %v1513 = vperm.slane %v1507, %v1512
        %v1515 = vunpack.c.l.s4 1934713408
        %v1516 = vunpack.c.0.s8 %v1515
        %v1517 = vperm.slane %v1509, %v1516
        %v1518 = vrot.slane %v1505, 4
        %v1519 = vsel %vm378, %v1518, %v1495
        %v1520 = vrot.slane %v1495, 4
        %v1521 = vsel %vm378, %v1505, %v1520
        %v1523 = vunpack.c.l.s4 1934713408
        %v1524 = vunpack.c.0.s8 %v1523
        %v1525 = vperm.slane %v1519, %v1524
        %v1527 = vunpack.c.l.s4 1934713408
        %v1528 = vunpack.c.0.s8 %v1527
        %v1529 = vperm.slane %v1521, %v1528
        %v1530 = vrot.slane %v1513, 4
        %v1531 = vsel %vm378, 0.0, %v1530
        %v1532 = vrot.slane %v1517, 4
        %v1533 = vsel %vm378, 0.0, %v1532
        %v1534 = vrot.slane %v1525, 4
        %v1535 = vsel %vm378, 0.0, %v1534
        %v1536 = vrot.slane %v1529, 4
        %v1537 = vsel %vm378, 0.0, %v1536
        %v1538 = vrot.slane %v1291, 4
        %v1539 = vsel %vm378, 0.0, %v1538
        %v1541 = vunpack.c.l.s4 1983009808
        %v1542 = vunpack.c.0.s8 %v1541
        %v1543 = vperm.slane %v1291, %v1542
        %v1545 = vunpack.c.l.s4 1983009808
        %v1546 = vunpack.c.0.s8 %v1545
        %v1547 = vperm.slane %v1539, %v1546
        %v1548 = vrot.slane %v1307, 4
        %v1549 = vsel %vm378, 0.0, %v1548
        %v1551 = vunpack.c.l.s4 1983009808
        %v1552 = vunpack.c.0.s8 %v1551
        %v1553 = vperm.slane %v1307, %v1552
        %v1555 = vunpack.c.l.s4 1983009808
        %v1556 = vunpack.c.0.s8 %v1555
        %v1557 = vperm.slane %v1549, %v1556
        %v1558 = vrot.slane %v1553, 4
        %v1559 = vsel %vm378, %v1558, %v1543
        %v1560 = vrot.slane %v1543, 4
        %v1561 = vsel %vm378, %v1553, %v1560
        %v1563 = vunpack.c.l.s4 1934713408
        %v1564 = vunpack.c.0.s8 %v1563
        %v1565 = vperm.slane %v1559, %v1564
        %v1567 = vunpack.c.l.s4 1934713408
        %v1568 = vunpack.c.0.s8 %v1567
        %v1569 = vperm.slane %v1561, %v1568
        %v1570 = vrot.slane %v1557, 4
        %v1571 = vsel %vm378, %v1570, %v1547
        %v1572 = vrot.slane %v1547, 4
        %v1573 = vsel %vm378, %v1557, %v1572
        %v1575 = vunpack.c.l.s4 1934713408
        %v1576 = vunpack.c.0.s8 %v1575
        %v1577 = vperm.slane %v1571, %v1576
        %v1579 = vunpack.c.l.s4 1934713408
        %v1580 = vunpack.c.0.s8 %v1579
        %v1581 = vperm.slane %v1573, %v1580
        %v1582 = vrot.slane %v1565, 4
        %v1583 = vsel %vm378, 0.0, %v1582
        %v1584 = vrot.slane %v1569, 4
        %v1585 = vsel %vm378, 0.0, %v1584
        %v1586 = vrot.slane %v1577, 4
        %v1587 = vsel %vm378, 0.0, %v1586
        %v1588 = vrot.slane %v1581, 4
        %v1589 = vsel %vm378, 0.0, %v1588
        %v1590 = vrot.slane %v1293, 4
        %v1591 = vsel %vm378, 0.0, %v1590
        %v1593 = vunpack.c.l.s4 1983009808
        %v1594 = vunpack.c.0.s8 %v1593
        %v1595 = vperm.slane %v1293, %v1594
        %v1597 = vunpack.c.l.s4 1983009808
        %v1598 = vunpack.c.0.s8 %v1597
        %v1599 = vperm.slane %v1591, %v1598
        %v1600 = vrot.slane %v1309, 4
        %v1601 = vsel %vm378, 0.0, %v1600
        %v1603 = vunpack.c.l.s4 1983009808
        %v1604 = vunpack.c.0.s8 %v1603
        %v1605 = vperm.slane %v1309, %v1604
        %v1607 = vunpack.c.l.s4 1983009808
        %v1608 = vunpack.c.0.s8 %v1607
        %v1609 = vperm.slane %v1601, %v1608
        %v1610 = vrot.slane %v1605, 4
        %v1611 = vsel %vm378, %v1610, %v1595
        %v1612 = vrot.slane %v1595, 4
        %v1613 = vsel %vm378, %v1605, %v1612
        %v1615 = vunpack.c.l.s4 1934713408
        %v1616 = vunpack.c.0.s8 %v1615
        %v1617 = vperm.slane %v1611, %v1616
        %v1619 = vunpack.c.l.s4 1934713408
        %v1620 = vunpack.c.0.s8 %v1619
        %v1621 = vperm.slane %v1613, %v1620
        %v1622 = vrot.slane %v1609, 4
        %v1623 = vsel %vm378, %v1622, %v1599
        %v1624 = vrot.slane %v1599, 4
        %v1625 = vsel %vm378, %v1609, %v1624
        %v1627 = vunpack.c.l.s4 1934713408
        %v1628 = vunpack.c.0.s8 %v1627
        %v1629 = vperm.slane %v1623, %v1628
        %v1631 = vunpack.c.l.s4 1934713408
        %v1632 = vunpack.c.0.s8 %v1631
        %v1633 = vperm.slane %v1625, %v1632
        %v1634 = vrot.slane %v1617, 4
        %v1635 = vsel %vm378, 0.0, %v1634
        %v1636 = vrot.slane %v1621, 4
        %v1637 = vsel %vm378, 0.0, %v1636
        %v1638 = vrot.slane %v1629, 4
        %v1639 = vsel %vm378, 0.0, %v1638
        %v1640 = vrot.slane %v1633, 4
        %v1641 = vsel %vm378, 0.0, %v1640
        %v1642 = vrot.slane %v1295, 4
        %v1643 = vsel %vm378, 0.0, %v1642
        %v1645 = vunpack.c.l.s4 1983009808
        %v1646 = vunpack.c.0.s8 %v1645
        %v1647 = vperm.slane %v1295, %v1646
        %v1649 = vunpack.c.l.s4 1983009808
        %v1650 = vunpack.c.0.s8 %v1649
        %v1651 = vperm.slane %v1643, %v1650
        %v1652 = vrot.slane %v1311, 4
        %v1653 = vsel %vm378, 0.0, %v1652
        %v1655 = vunpack.c.l.s4 1983009808
        %v1656 = vunpack.c.0.s8 %v1655
        %v1657 = vperm.slane %v1311, %v1656
        %v1659 = vunpack.c.l.s4 1983009808
        %v1660 = vunpack.c.0.s8 %v1659
        %v1661 = vperm.slane %v1653, %v1660
        %v1662 = vrot.slane %v1657, 4
        %v1663 = vsel %vm378, %v1662, %v1647
        %v1664 = vrot.slane %v1647, 4
        %v1665 = vsel %vm378, %v1657, %v1664
        %v1667 = vunpack.c.l.s4 1934713408
        %v1668 = vunpack.c.0.s8 %v1667
        %v1669 = vperm.slane %v1663, %v1668
        %v1671 = vunpack.c.l.s4 1934713408
        %v1672 = vunpack.c.0.s8 %v1671
        %v1673 = vperm.slane %v1665, %v1672
        %v1674 = vrot.slane %v1661, 4
        %v1675 = vsel %vm378, %v1674, %v1651
        %v1676 = vrot.slane %v1651, 4
        %v1677 = vsel %vm378, %v1661, %v1676
        %v1679 = vunpack.c.l.s4 1934713408
        %v1680 = vunpack.c.0.s8 %v1679
        %v1681 = vperm.slane %v1675, %v1680
        %v1683 = vunpack.c.l.s4 1934713408
        %v1684 = vunpack.c.0.s8 %v1683
        %v1685 = vperm.slane %v1677, %v1684
        %v1686 = vrot.slane %v1669, 4
        %v1687 = vsel %vm378, 0.0, %v1686
        %v1688 = vrot.slane %v1673, 4
        %v1689 = vsel %vm378, 0.0, %v1688
        %v1690 = vrot.slane %v1681, 4
        %v1691 = vsel %vm378, 0.0, %v1690
        %v1692 = vrot.slane %v1685, 4
        %v1693 = vsel %vm378, 0.0, %v1692
        %v1694 = vrot.slane %v1297, 4
        %v1695 = vsel %vm378, 0.0, %v1694
        %v1697 = vunpack.c.l.s4 1983009808
        %v1698 = vunpack.c.0.s8 %v1697
        %v1699 = vperm.slane %v1297, %v1698
        %v1701 = vunpack.c.l.s4 1983009808
        %v1702 = vunpack.c.0.s8 %v1701
        %v1703 = vperm.slane %v1695, %v1702
        %v1704 = vrot.slane %v1313, 4
        %v1705 = vsel %vm378, 0.0, %v1704
        %v1707 = vunpack.c.l.s4 1983009808
        %v1708 = vunpack.c.0.s8 %v1707
        %v1709 = vperm.slane %v1313, %v1708
        %v1711 = vunpack.c.l.s4 1983009808
        %v1712 = vunpack.c.0.s8 %v1711
        %v1713 = vperm.slane %v1705, %v1712
        %v1714 = vrot.slane %v1709, 4
        %v1715 = vsel %vm378, %v1714, %v1699
        %v1716 = vrot.slane %v1699, 4
        %v1717 = vsel %vm378, %v1709, %v1716
        %v1719 = vunpack.c.l.s4 1934713408
        %v1720 = vunpack.c.0.s8 %v1719
        %v1721 = vperm.slane %v1715, %v1720
        %v1723 = vunpack.c.l.s4 1934713408
        %v1724 = vunpack.c.0.s8 %v1723
        %v1725 = vperm.slane %v1717, %v1724
        %v1726 = vrot.slane %v1713, 4
        %v1727 = vsel %vm378, %v1726, %v1703
        %v1728 = vrot.slane %v1703, 4
        %v1729 = vsel %vm378, %v1713, %v1728
        %v1731 = vunpack.c.l.s4 1934713408
        %v1732 = vunpack.c.0.s8 %v1731
        %v1733 = vperm.slane %v1727, %v1732
        %v1735 = vunpack.c.l.s4 1934713408
        %v1736 = vunpack.c.0.s8 %v1735
        %v1737 = vperm.slane %v1729, %v1736
        %v1738 = vrot.slane %v1721, 4
        %v1739 = vsel %vm378, 0.0, %v1738
        %v1740 = vrot.slane %v1725, 4
        %v1741 = vsel %vm378, 0.0, %v1740
        %v1742 = vrot.slane %v1733, 4
        %v1743 = vsel %vm378, 0.0, %v1742
        %v1744 = vrot.slane %v1737, 4
        %v1745 = vsel %vm378, 0.0, %v1744
        %v1746 = vsel %vm378, %v424, %v405
        %v1748 = vunpack.c.l.s4 1983009808
        %v1749 = vunpack.c.0.s8 %v1748
        %v1750 = vperm.slane %v1746, %v1749
        %v1751 = vrot.slane %v425, 4
        %v1752 = vsel %vm378, %v1751, %v423
        %v1754 = vunpack.c.l.s4 1983009808
        %v1755 = vunpack.c.0.s8 %v1754
        %v1756 = vperm.slane %v1752, %v1755
        %v1757 = vsel %vm378, %v428, %v417
        %v1759 = vunpack.c.l.s4 1983009808
        %v1760 = vunpack.c.0.s8 %v1759
        %v1761 = vperm.slane %v1757, %v1760
        %v1762 = vrot.slane %v429, 4
        %v1763 = vsel %vm378, %v1762, %v427
        %v1765 = vunpack.c.l.s4 1983009808
        %v1766 = vunpack.c.0.s8 %v1765
        %v1767 = vperm.slane %v1763, %v1766
        %v1768 = vrot.slane %v1756, 4
        %v1769 = vsel %vm378, %v1768, %v1750
        %v1771 = vunpack.c.l.s4 1934713408
        %v1772 = vunpack.c.0.s8 %v1771
        %v1773 = vperm.slane %v1769, %v1772
        %v1774 = vrot.slane %v1767, 4
        %v1775 = vsel %vm378, %v1774, %v1761
        %v1777 = vunpack.c.l.s4 1934713408
        %v1778 = vunpack.c.0.s8 %v1777
        %v1779 = vperm.slane %v1775, %v1778
        %v1780 = vrot.slane %v1779, 4
        %v1781 = vsel %vm378, %v1780, %v1773
        %v1782 = vrot.slane %v1773, 4
        %v1783 = vsel %vm378, %v1779, %v1782
        %v1784 = vsel %vm378, %v476, %v457
        %v1786 = vunpack.c.l.s4 1983009808
        %v1787 = vunpack.c.0.s8 %v1786
        %v1788 = vperm.slane %v1784, %v1787
        %v1789 = vrot.slane %v477, 4
        %v1790 = vsel %vm378, %v1789, %v475
        %v1792 = vunpack.c.l.s4 1983009808
        %v1793 = vunpack.c.0.s8 %v1792
        %v1794 = vperm.slane %v1790, %v1793
        %v1795 = vsel %vm378, %v480, %v469
        %v1797 = vunpack.c.l.s4 1983009808
        %v1798 = vunpack.c.0.s8 %v1797
        %v1799 = vperm.slane %v1795, %v1798
        %v1800 = vrot.slane %v481, 4
        %v1801 = vsel %vm378, %v1800, %v479
        %v1803 = vunpack.c.l.s4 1983009808
        %v1804 = vunpack.c.0.s8 %v1803
        %v1805 = vperm.slane %v1801, %v1804
        %v1806 = vrot.slane %v1794, 4
        %v1807 = vsel %vm378, %v1806, %v1788
        %v1809 = vunpack.c.l.s4 1934713408
        %v1810 = vunpack.c.0.s8 %v1809
        %v1811 = vperm.slane %v1807, %v1810
        %v1812 = vrot.slane %v1805, 4
        %v1813 = vsel %vm378, %v1812, %v1799
        %v1815 = vunpack.c.l.s4 1934713408
        %v1816 = vunpack.c.0.s8 %v1815
        %v1817 = vperm.slane %v1813, %v1816
        %v1818 = vrot.slane %v1817, 4
        %v1819 = vsel %vm378, %v1818, %v1811
        %v1820 = vrot.slane %v1811, 4
        %v1821 = vsel %vm378, %v1817, %v1820
        %v1822 = vsel %vm378, %v528, %v509
        %v1824 = vunpack.c.l.s4 1983009808
        %v1825 = vunpack.c.0.s8 %v1824
        %v1826 = vperm.slane %v1822, %v1825
        %v1827 = vrot.slane %v529, 4
        %v1828 = vsel %vm378, %v1827, %v527
        %v1830 = vunpack.c.l.s4 1983009808
        %v1831 = vunpack.c.0.s8 %v1830
        %v1832 = vperm.slane %v1828, %v1831
        %v1833 = vsel %vm378, %v532, %v521
        %v1835 = vunpack.c.l.s4 1983009808
        %v1836 = vunpack.c.0.s8 %v1835
        %v1837 = vperm.slane %v1833, %v1836
        %v1838 = vrot.slane %v533, 4
        %v1839 = vsel %vm378, %v1838, %v531
        %v1841 = vunpack.c.l.s4 1983009808
        %v1842 = vunpack.c.0.s8 %v1841
        %v1843 = vperm.slane %v1839, %v1842
        %v1844 = vrot.slane %v1832, 4
        %v1845 = vsel %vm378, %v1844, %v1826
        %v1847 = vunpack.c.l.s4 1934713408
        %v1848 = vunpack.c.0.s8 %v1847
        %v1849 = vperm.slane %v1845, %v1848
        %v1850 = vrot.slane %v1843, 4
        %v1851 = vsel %vm378, %v1850, %v1837
        %v1853 = vunpack.c.l.s4 1934713408
        %v1854 = vunpack.c.0.s8 %v1853
        %v1855 = vperm.slane %v1851, %v1854
        %v1856 = vrot.slane %v1855, 4
        %v1857 = vsel %vm378, %v1856, %v1849
        %v1858 = vrot.slane %v1849, 4
        %v1859 = vsel %vm378, %v1855, %v1858
        %v1860 = vsel %vm378, %v580, %v561
        %v1862 = vunpack.c.l.s4 1983009808
        %v1863 = vunpack.c.0.s8 %v1862
        %v1864 = vperm.slane %v1860, %v1863
        %v1865 = vrot.slane %v581, 4
        %v1866 = vsel %vm378, %v1865, %v579
        %v1868 = vunpack.c.l.s4 1983009808
        %v1869 = vunpack.c.0.s8 %v1868
        %v1870 = vperm.slane %v1866, %v1869
        %v1871 = vsel %vm378, %v584, %v573
        %v1873 = vunpack.c.l.s4 1983009808
        %v1874 = vunpack.c.0.s8 %v1873
        %v1875 = vperm.slane %v1871, %v1874
        %v1876 = vrot.slane %v585, 4
        %v1877 = vsel %vm378, %v1876, %v583
        %v1879 = vunpack.c.l.s4 1983009808
        %v1880 = vunpack.c.0.s8 %v1879
        %v1881 = vperm.slane %v1877, %v1880
        %v1882 = vrot.slane %v1870, 4
        %v1883 = vsel %vm378, %v1882, %v1864
        %v1885 = vunpack.c.l.s4 1934713408
        %v1886 = vunpack.c.0.s8 %v1885
        %v1887 = vperm.slane %v1883, %v1886
        %v1888 = vrot.slane %v1881, 4
        %v1889 = vsel %vm378, %v1888, %v1875
        %v1891 = vunpack.c.l.s4 1934713408
        %v1892 = vunpack.c.0.s8 %v1891
        %v1893 = vperm.slane %v1889, %v1892
        %v1894 = vrot.slane %v1893, 4
        %v1895 = vsel %vm378, %v1894, %v1887
        %v1896 = vrot.slane %v1887, 4
        %v1897 = vsel %vm378, %v1893, %v1896
        %v1898 = vsel %vm378, %v632, %v613
        %v1900 = vunpack.c.l.s4 1983009808
        %v1901 = vunpack.c.0.s8 %v1900
        %v1902 = vperm.slane %v1898, %v1901
        %v1903 = vrot.slane %v633, 4
        %v1904 = vsel %vm378, %v1903, %v631
        %v1906 = vunpack.c.l.s4 1983009808
        %v1907 = vunpack.c.0.s8 %v1906
        %v1908 = vperm.slane %v1904, %v1907
        %v1909 = vsel %vm378, %v636, %v625
        %v1911 = vunpack.c.l.s4 1983009808
        %v1912 = vunpack.c.0.s8 %v1911
        %v1913 = vperm.slane %v1909, %v1912
        %v1914 = vrot.slane %v637, 4
        %v1915 = vsel %vm378, %v1914, %v635
        %v1917 = vunpack.c.l.s4 1983009808
        %v1918 = vunpack.c.0.s8 %v1917
        %v1919 = vperm.slane %v1915, %v1918
        %v1920 = vrot.slane %v1908, 4
        %v1921 = vsel %vm378, %v1920, %v1902
        %v1923 = vunpack.c.l.s4 1934713408
        %v1924 = vunpack.c.0.s8 %v1923
        %v1925 = vperm.slane %v1921, %v1924
        %v1926 = vrot.slane %v1919, 4
        %v1927 = vsel %vm378, %v1926, %v1913
        %v1929 = vunpack.c.l.s4 1934713408
        %v1930 = vunpack.c.0.s8 %v1929
        %v1931 = vperm.slane %v1927, %v1930
        %v1932 = vrot.slane %v1931, 4
        %v1933 = vsel %vm378, %v1932, %v1925
        %v1934 = vrot.slane %v1925, 4
        %v1935 = vsel %vm378, %v1931, %v1934
        %v1936 = vsel %vm378, %v684, %v665
        %v1938 = vunpack.c.l.s4 1983009808
        %v1939 = vunpack.c.0.s8 %v1938
        %v1940 = vperm.slane %v1936, %v1939
        %v1941 = vrot.slane %v685, 4
        %v1942 = vsel %vm378, %v1941, %v683
        %v1944 = vunpack.c.l.s4 1983009808
        %v1945 = vunpack.c.0.s8 %v1944
        %v1946 = vperm.slane %v1942, %v1945
        %v1947 = vsel %vm378, %v688, %v677
        %v1949 = vunpack.c.l.s4 1983009808
        %v1950 = vunpack.c.0.s8 %v1949
        %v1951 = vperm.slane %v1947, %v1950
        %v1952 = vrot.slane %v689, 4
        %v1953 = vsel %vm378, %v1952, %v687
        %v1955 = vunpack.c.l.s4 1983009808
        %v1956 = vunpack.c.0.s8 %v1955
        %v1957 = vperm.slane %v1953, %v1956
        %v1958 = vrot.slane %v1946, 4
        %v1959 = vsel %vm378, %v1958, %v1940
        %v1961 = vunpack.c.l.s4 1934713408
        %v1962 = vunpack.c.0.s8 %v1961
        %v1963 = vperm.slane %v1959, %v1962
        %v1964 = vrot.slane %v1957, 4
        %v1965 = vsel %vm378, %v1964, %v1951
        %v1967 = vunpack.c.l.s4 1934713408
        %v1968 = vunpack.c.0.s8 %v1967
        %v1969 = vperm.slane %v1965, %v1968
        %v1970 = vrot.slane %v1969, 4
        %v1971 = vsel %vm378, %v1970, %v1963
        %v1972 = vrot.slane %v1963, 4
        %v1973 = vsel %vm378, %v1969, %v1972
        %v1974 = vsel %vm378, %v736, %v717
        %v1976 = vunpack.c.l.s4 1983009808
        %v1977 = vunpack.c.0.s8 %v1976
        %v1978 = vperm.slane %v1974, %v1977
        %v1979 = vrot.slane %v737, 4
        %v1980 = vsel %vm378, %v1979, %v735
        %v1982 = vunpack.c.l.s4 1983009808
        %v1983 = vunpack.c.0.s8 %v1982
        %v1984 = vperm.slane %v1980, %v1983
        %v1985 = vsel %vm378, %v740, %v729
        %v1987 = vunpack.c.l.s4 1983009808
        %v1988 = vunpack.c.0.s8 %v1987
        %v1989 = vperm.slane %v1985, %v1988
        %v1990 = vrot.slane %v741, 4
        %v1991 = vsel %vm378, %v1990, %v739
        %v1993 = vunpack.c.l.s4 1983009808
        %v1994 = vunpack.c.0.s8 %v1993
        %v1995 = vperm.slane %v1991, %v1994
        %v1996 = vrot.slane %v1984, 4
        %v1997 = vsel %vm378, %v1996, %v1978
        %v1999 = vunpack.c.l.s4 1934713408
        %v2000 = vunpack.c.0.s8 %v1999
        %v2001 = vperm.slane %v1997, %v2000
        %v2002 = vrot.slane %v1995, 4
        %v2003 = vsel %vm378, %v2002, %v1989
        %v2005 = vunpack.c.l.s4 1934713408
        %v2006 = vunpack.c.0.s8 %v2005
        %v2007 = vperm.slane %v2003, %v2006
        %v2008 = vrot.slane %v2007, 4
        %v2009 = vsel %vm378, %v2008, %v2001
        %v2010 = vrot.slane %v2001, 4
        %v2011 = vsel %vm378, %v2007, %v2010
        %v2012 = vsel %vm378, %v788, %v769
        %v2014 = vunpack.c.l.s4 1983009808
        %v2015 = vunpack.c.0.s8 %v2014
        %v2016 = vperm.slane %v2012, %v2015
        %v2017 = vrot.slane %v789, 4
        %v2018 = vsel %vm378, %v2017, %v787
        %v2020 = vunpack.c.l.s4 1983009808
        %v2021 = vunpack.c.0.s8 %v2020
        %v2022 = vperm.slane %v2018, %v2021
        %v2023 = vsel %vm378, %v792, %v781
        %v2025 = vunpack.c.l.s4 1983009808
        %v2026 = vunpack.c.0.s8 %v2025
        %v2027 = vperm.slane %v2023, %v2026
        %v2028 = vrot.slane %v793, 4
        %v2029 = vsel %vm378, %v2028, %v791
        %v2031 = vunpack.c.l.s4 1983009808
        %v2032 = vunpack.c.0.s8 %v2031
        %v2033 = vperm.slane %v2029, %v2032
        %v2034 = vrot.slane %v2022, 4
        %v2035 = vsel %vm378, %v2034, %v2016
        %v2037 = vunpack.c.l.s4 1934713408
        %v2038 = vunpack.c.0.s8 %v2037
        %v2039 = vperm.slane %v2035, %v2038
        %v2040 = vrot.slane %v2033, 4
        %v2041 = vsel %vm378, %v2040, %v2027
        %v2043 = vunpack.c.l.s4 1934713408
        %v2044 = vunpack.c.0.s8 %v2043
        %v2045 = vperm.slane %v2041, %v2044
        %v2046 = vrot.slane %v2045, 4
        %v2047 = vsel %vm378, %v2046, %v2039
        %v2048 = vrot.slane %v2039, 4
        %v2049 = vsel %vm378, %v2045, %v2048
        %v2050 = vpack.c.bf16 %v1781, %v1781
        %v2051 = vpack.c.bf16 %v1819, %v1819
        %v2052 = vpack.c.bf16 %v1857, %v1857
        %v2053 = vpack.c.bf16 %v1895, %v1895
        %v2054 = vpack.c.bf16 %v1933, %v1933
        %v2055 = vpack.c.bf16 %v1971, %v1971
        %v2056 = vpack.c.bf16 %v2009, %v2009
        %v2057 = vpack.c.bf16 %v2047, %v2047
        %v2058 = vpack.c.bf16 %v1783, %v1783
        %v2059 = vpack.c.bf16 %v1821, %v1821
        %v2060 = vpack.c.bf16 %v1859, %v1859
        %v2061 = vpack.c.bf16 %v1897, %v1897
        %v2062 = vpack.c.bf16 %v1935, %v1935
        %v2063 = vpack.c.bf16 %v1973, %v1973
        %v2064 = vpack.c.bf16 %v2011, %v2011
        %v2065 = vpack.c.bf16 %v2049, %v2049
        %v2066 = vsel %vm378, %v912, %v893
        %v2068 = vunpack.c.l.s4 1983009808
        %v2069 = vunpack.c.0.s8 %v2068
        %v2070 = vperm.slane %v2066, %v2069
        %v2071 = vrot.slane %v913, 4
        %v2072 = vsel %vm378, %v2071, %v911
        %v2074 = vunpack.c.l.s4 1983009808
        %v2075 = vunpack.c.0.s8 %v2074
        %v2076 = vperm.slane %v2072, %v2075
        %v2077 = vsel %vm378, %v916, %v905
        %v2079 = vunpack.c.l.s4 1983009808
        %v2080 = vunpack.c.0.s8 %v2079
        %v2081 = vperm.slane %v2077, %v2080
        %v2082 = vrot.slane %v917, 4
        %v2083 = vsel %vm378, %v2082, %v915
        %v2085 = vunpack.c.l.s4 1983009808
        %v2086 = vunpack.c.0.s8 %v2085
        %v2087 = vperm.slane %v2083, %v2086
        %v2088 = vrot.slane %v2076, 4
        %v2089 = vsel %vm378, %v2088, %v2070
        %v2091 = vunpack.c.l.s4 1934713408
        %v2092 = vunpack.c.0.s8 %v2091
        %v2093 = vperm.slane %v2089, %v2092
        %v2094 = vrot.slane %v2087, 4
        %v2095 = vsel %vm378, %v2094, %v2081
        %v2097 = vunpack.c.l.s4 1934713408
        %v2098 = vunpack.c.0.s8 %v2097
        %v2099 = vperm.slane %v2095, %v2098
        %v2100 = vrot.slane %v2099, 4
        %v2101 = vsel %vm378, %v2100, %v2093
        %v2102 = vrot.slane %v2093, 4
        %v2103 = vsel %vm378, %v2099, %v2102
        %v2104 = vsel %vm378, %v964, %v945
        %v2106 = vunpack.c.l.s4 1983009808
        %v2107 = vunpack.c.0.s8 %v2106
        %v2108 = vperm.slane %v2104, %v2107
        %v2109 = vrot.slane %v965, 4
        %v2110 = vsel %vm378, %v2109, %v963
        %v2112 = vunpack.c.l.s4 1983009808
        %v2113 = vunpack.c.0.s8 %v2112
        %v2114 = vperm.slane %v2110, %v2113
        %v2115 = vsel %vm378, %v968, %v957
        %v2117 = vunpack.c.l.s4 1983009808
        %v2118 = vunpack.c.0.s8 %v2117
        %v2119 = vperm.slane %v2115, %v2118
        %v2120 = vrot.slane %v969, 4
        %v2121 = vsel %vm378, %v2120, %v967
        %v2123 = vunpack.c.l.s4 1983009808
        %v2124 = vunpack.c.0.s8 %v2123
        %v2125 = vperm.slane %v2121, %v2124
        %v2126 = vrot.slane %v2114, 4
        %v2127 = vsel %vm378, %v2126, %v2108
        %v2129 = vunpack.c.l.s4 1934713408
        %v2130 = vunpack.c.0.s8 %v2129
        %v2131 = vperm.slane %v2127, %v2130
        %v2132 = vrot.slane %v2125, 4
        %v2133 = vsel %vm378, %v2132, %v2119
        %v2135 = vunpack.c.l.s4 1934713408
        %v2136 = vunpack.c.0.s8 %v2135
        %v2137 = vperm.slane %v2133, %v2136
        %v2138 = vrot.slane %v2137, 4
        %v2139 = vsel %vm378, %v2138, %v2131
        %v2140 = vrot.slane %v2131, 4
        %v2141 = vsel %vm378, %v2137, %v2140
        %v2142 = vsel %vm378, %v1016, %v997
        %v2144 = vunpack.c.l.s4 1983009808
        %v2145 = vunpack.c.0.s8 %v2144
        %v2146 = vperm.slane %v2142, %v2145
        %v2147 = vrot.slane %v1017, 4
        %v2148 = vsel %vm378, %v2147, %v1015
        %v2150 = vunpack.c.l.s4 1983009808
        %v2151 = vunpack.c.0.s8 %v2150
        %v2152 = vperm.slane %v2148, %v2151
        %v2153 = vsel %vm378, %v1020, %v1009
        %v2155 = vunpack.c.l.s4 1983009808
        %v2156 = vunpack.c.0.s8 %v2155
        %v2157 = vperm.slane %v2153, %v2156
        %v2158 = vrot.slane %v1021, 4
        %v2159 = vsel %vm378, %v2158, %v1019
        %v2161 = vunpack.c.l.s4 1983009808
        %v2162 = vunpack.c.0.s8 %v2161
        %v2163 = vperm.slane %v2159, %v2162
        %v2164 = vrot.slane %v2152, 4
        %v2165 = vsel %vm378, %v2164, %v2146
        %v2167 = vunpack.c.l.s4 1934713408
        %v2168 = vunpack.c.0.s8 %v2167
        %v2169 = vperm.slane %v2165, %v2168
        %v2170 = vrot.slane %v2163, 4
        %v2171 = vsel %vm378, %v2170, %v2157
        %v2173 = vunpack.c.l.s4 1934713408
        %v2174 = vunpack.c.0.s8 %v2173
        %v2175 = vperm.slane %v2171, %v2174
        %v2176 = vrot.slane %v2175, 4
        %v2177 = vsel %vm378, %v2176, %v2169
        %v2178 = vrot.slane %v2169, 4
        %v2179 = vsel %vm378, %v2175, %v2178
        %v2180 = vsel %vm378, %v1068, %v1049
        %v2182 = vunpack.c.l.s4 1983009808
        %v2183 = vunpack.c.0.s8 %v2182
        %v2184 = vperm.slane %v2180, %v2183
        %v2185 = vrot.slane %v1069, 4
        %v2186 = vsel %vm378, %v2185, %v1067
        %v2188 = vunpack.c.l.s4 1983009808
        %v2189 = vunpack.c.0.s8 %v2188
        %v2190 = vperm.slane %v2186, %v2189
        %v2191 = vsel %vm378, %v1072, %v1061
        %v2193 = vunpack.c.l.s4 1983009808
        %v2194 = vunpack.c.0.s8 %v2193
        %v2195 = vperm.slane %v2191, %v2194
        %v2196 = vrot.slane %v1073, 4
        %v2197 = vsel %vm378, %v2196, %v1071
        %v2199 = vunpack.c.l.s4 1983009808
        %v2200 = vunpack.c.0.s8 %v2199
        %v2201 = vperm.slane %v2197, %v2200
        %v2202 = vrot.slane %v2190, 4
        %v2203 = vsel %vm378, %v2202, %v2184
        %v2205 = vunpack.c.l.s4 1934713408
        %v2206 = vunpack.c.0.s8 %v2205
        %v2207 = vperm.slane %v2203, %v2206
        %v2208 = vrot.slane %v2201, 4
        %v2209 = vsel %vm378, %v2208, %v2195
        %v2211 = vunpack.c.l.s4 1934713408
        %v2212 = vunpack.c.0.s8 %v2211
        %v2213 = vperm.slane %v2209, %v2212
        %v2214 = vrot.slane %v2213, 4
        %v2215 = vsel %vm378, %v2214, %v2207
        %v2216 = vrot.slane %v2207, 4
        %v2217 = vsel %vm378, %v2213, %v2216
        %v2218 = vsel %vm378, %v1120, %v1101
        %v2220 = vunpack.c.l.s4 1983009808
        %v2221 = vunpack.c.0.s8 %v2220
        %v2222 = vperm.slane %v2218, %v2221
        %v2223 = vrot.slane %v1121, 4
        %v2224 = vsel %vm378, %v2223, %v1119
        %v2226 = vunpack.c.l.s4 1983009808
        %v2227 = vunpack.c.0.s8 %v2226
        %v2228 = vperm.slane %v2224, %v2227
        %v2229 = vsel %vm378, %v1124, %v1113
        %v2231 = vunpack.c.l.s4 1983009808
        %v2232 = vunpack.c.0.s8 %v2231
        %v2233 = vperm.slane %v2229, %v2232
        %v2234 = vrot.slane %v1125, 4
        %v2235 = vsel %vm378, %v2234, %v1123
        %v2237 = vunpack.c.l.s4 1983009808
        %v2238 = vunpack.c.0.s8 %v2237
        %v2239 = vperm.slane %v2235, %v2238
        %v2240 = vrot.slane %v2228, 4
        %v2241 = vsel %vm378, %v2240, %v2222
        %v2243 = vunpack.c.l.s4 1934713408
        %v2244 = vunpack.c.0.s8 %v2243
        %v2245 = vperm.slane %v2241, %v2244
        %v2246 = vrot.slane %v2239, 4
        %v2247 = vsel %vm378, %v2246, %v2233
        %v2249 = vunpack.c.l.s4 1934713408
        %v2250 = vunpack.c.0.s8 %v2249
        %v2251 = vperm.slane %v2247, %v2250
        %v2252 = vrot.slane %v2251, 4
        %v2253 = vsel %vm378, %v2252, %v2245
        %v2254 = vrot.slane %v2245, 4
        %v2255 = vsel %vm378, %v2251, %v2254
        %v2256 = vsel %vm378, %v1172, %v1153
        %v2258 = vunpack.c.l.s4 1983009808
        %v2259 = vunpack.c.0.s8 %v2258
        %v2260 = vperm.slane %v2256, %v2259
        %v2261 = vrot.slane %v1173, 4
        %v2262 = vsel %vm378, %v2261, %v1171
        %v2264 = vunpack.c.l.s4 1983009808
        %v2265 = vunpack.c.0.s8 %v2264
        %v2266 = vperm.slane %v2262, %v2265
        %v2267 = vsel %vm378, %v1176, %v1165
        %v2269 = vunpack.c.l.s4 1983009808
        %v2270 = vunpack.c.0.s8 %v2269
        %v2271 = vperm.slane %v2267, %v2270
        %v2272 = vrot.slane %v1177, 4
        %v2273 = vsel %vm378, %v2272, %v1175
        %v2275 = vunpack.c.l.s4 1983009808
        %v2276 = vunpack.c.0.s8 %v2275
        %v2277 = vperm.slane %v2273, %v2276
        %v2278 = vrot.slane %v2266, 4
        %v2279 = vsel %vm378, %v2278, %v2260
        %v2281 = vunpack.c.l.s4 1934713408
        %v2282 = vunpack.c.0.s8 %v2281
        %v2283 = vperm.slane %v2279, %v2282
        %v2284 = vrot.slane %v2277, 4
        %v2285 = vsel %vm378, %v2284, %v2271
        %v2287 = vunpack.c.l.s4 1934713408
        %v2288 = vunpack.c.0.s8 %v2287
        %v2289 = vperm.slane %v2285, %v2288
        %v2290 = vrot.slane %v2289, 4
        %v2291 = vsel %vm378, %v2290, %v2283
        %v2292 = vrot.slane %v2283, 4
        %v2293 = vsel %vm378, %v2289, %v2292
        %v2294 = vsel %vm378, %v1224, %v1205
        %v2296 = vunpack.c.l.s4 1983009808
        %v2297 = vunpack.c.0.s8 %v2296
        %v2298 = vperm.slane %v2294, %v2297
        %v2299 = vrot.slane %v1225, 4
        %v2300 = vsel %vm378, %v2299, %v1223
        %v2302 = vunpack.c.l.s4 1983009808
        %v2303 = vunpack.c.0.s8 %v2302
        %v2304 = vperm.slane %v2300, %v2303
        %v2305 = vsel %vm378, %v1228, %v1217
        %v2307 = vunpack.c.l.s4 1983009808
        %v2308 = vunpack.c.0.s8 %v2307
        %v2309 = vperm.slane %v2305, %v2308
        %v2310 = vrot.slane %v1229, 4
        %v2311 = vsel %vm378, %v2310, %v1227
        %v2313 = vunpack.c.l.s4 1983009808
        %v2314 = vunpack.c.0.s8 %v2313
        %v2315 = vperm.slane %v2311, %v2314
        %v2316 = vrot.slane %v2304, 4
        %v2317 = vsel %vm378, %v2316, %v2298
        %v2319 = vunpack.c.l.s4 1934713408
        %v2320 = vunpack.c.0.s8 %v2319
        %v2321 = vperm.slane %v2317, %v2320
        %v2322 = vrot.slane %v2315, 4
        %v2323 = vsel %vm378, %v2322, %v2309
        %v2325 = vunpack.c.l.s4 1934713408
        %v2326 = vunpack.c.0.s8 %v2325
        %v2327 = vperm.slane %v2323, %v2326
        %v2328 = vrot.slane %v2327, 4
        %v2329 = vsel %vm378, %v2328, %v2321
        %v2330 = vrot.slane %v2321, 4
        %v2331 = vsel %vm378, %v2327, %v2330
        %v2332 = vsel %vm378, %v1276, %v1257
        %v2334 = vunpack.c.l.s4 1983009808
        %v2335 = vunpack.c.0.s8 %v2334
        %v2336 = vperm.slane %v2332, %v2335
        %v2337 = vrot.slane %v1277, 4
        %v2338 = vsel %vm378, %v2337, %v1275
        %v2340 = vunpack.c.l.s4 1983009808
        %v2341 = vunpack.c.0.s8 %v2340
        %v2342 = vperm.slane %v2338, %v2341
        %v2343 = vsel %vm378, %v1280, %v1269
        %v2345 = vunpack.c.l.s4 1983009808
        %v2346 = vunpack.c.0.s8 %v2345
        %v2347 = vperm.slane %v2343, %v2346
        %v2348 = vrot.slane %v1281, 4
        %v2349 = vsel %vm378, %v2348, %v1279
        %v2351 = vunpack.c.l.s4 1983009808
        %v2352 = vunpack.c.0.s8 %v2351
        %v2353 = vperm.slane %v2349, %v2352
        %v2354 = vrot.slane %v2342, 4
        %v2355 = vsel %vm378, %v2354, %v2336
        %v2357 = vunpack.c.l.s4 1934713408
        %v2358 = vunpack.c.0.s8 %v2357
        %v2359 = vperm.slane %v2355, %v2358
        %v2360 = vrot.slane %v2353, 4
        %v2361 = vsel %vm378, %v2360, %v2347
        %v2363 = vunpack.c.l.s4 1934713408
        %v2364 = vunpack.c.0.s8 %v2363
        %v2365 = vperm.slane %v2361, %v2364
        %v2366 = vrot.slane %v2365, 4
        %v2367 = vsel %vm378, %v2366, %v2359
        %v2368 = vrot.slane %v2359, 4
        %v2369 = vsel %vm378, %v2365, %v2368
        %v2370 = vpack.c.bf16 %v2101, %v2101
        %v2371 = vpack.c.bf16 %v2139, %v2139
        %v2372 = vpack.c.bf16 %v2177, %v2177
        %v2373 = vpack.c.bf16 %v2215, %v2215
        %v2374 = vpack.c.bf16 %v2253, %v2253
        %v2375 = vpack.c.bf16 %v2291, %v2291
        %v2376 = vpack.c.bf16 %v2329, %v2329
        %v2377 = vpack.c.bf16 %v2367, %v2367
        %v2378 = vpack.c.bf16 %v2103, %v2103
        %v2379 = vpack.c.bf16 %v2141, %v2141
        %v2380 = vpack.c.bf16 %v2179, %v2179
        %v2381 = vpack.c.bf16 %v2217, %v2217
        %v2382 = vpack.c.bf16 %v2255, %v2255
        %v2383 = vpack.c.bf16 %v2293, %v2293
        %v2384 = vpack.c.bf16 %v2331, %v2331
        %v2385 = vpack.c.bf16 %v2369, %v2369
        %v2386 = vsel %vm378, %v1376, %v1357
        %v2388 = vunpack.c.l.s4 1983009808
        %v2389 = vunpack.c.0.s8 %v2388
        %v2390 = vperm.slane %v2386, %v2389
        %v2391 = vrot.slane %v1377, 4
        %v2392 = vsel %vm378, %v2391, %v1375
        %v2394 = vunpack.c.l.s4 1983009808
        %v2395 = vunpack.c.0.s8 %v2394
        %v2396 = vperm.slane %v2392, %v2395
        %v2397 = vsel %vm378, %v1380, %v1369
        %v2399 = vunpack.c.l.s4 1983009808
        %v2400 = vunpack.c.0.s8 %v2399
        %v2401 = vperm.slane %v2397, %v2400
        %v2402 = vrot.slane %v1381, 4
        %v2403 = vsel %vm378, %v2402, %v1379
        %v2405 = vunpack.c.l.s4 1983009808
        %v2406 = vunpack.c.0.s8 %v2405
        %v2407 = vperm.slane %v2403, %v2406
        %v2408 = vrot.slane %v2396, 4
        %v2409 = vsel %vm378, %v2408, %v2390
        %v2411 = vunpack.c.l.s4 1934713408
        %v2412 = vunpack.c.0.s8 %v2411
        %v2413 = vperm.slane %v2409, %v2412
        %v2414 = vrot.slane %v2407, 4
        %v2415 = vsel %vm378, %v2414, %v2401
        %v2417 = vunpack.c.l.s4 1934713408
        %v2418 = vunpack.c.0.s8 %v2417
        %v2419 = vperm.slane %v2415, %v2418
        %v2420 = vrot.slane %v2419, 4
        %v2421 = vsel %vm378, %v2420, %v2413
        %v2422 = vrot.slane %v2413, 4
        %v2423 = vsel %vm378, %v2419, %v2422
        %v2424 = vsel %vm378, %v1428, %v1409
        %v2426 = vunpack.c.l.s4 1983009808
        %v2427 = vunpack.c.0.s8 %v2426
        %v2428 = vperm.slane %v2424, %v2427
        %v2429 = vrot.slane %v1429, 4
        %v2430 = vsel %vm378, %v2429, %v1427
        %v2432 = vunpack.c.l.s4 1983009808
        %v2433 = vunpack.c.0.s8 %v2432
        %v2434 = vperm.slane %v2430, %v2433
        %v2435 = vsel %vm378, %v1432, %v1421
        %v2437 = vunpack.c.l.s4 1983009808
        %v2438 = vunpack.c.0.s8 %v2437
        %v2439 = vperm.slane %v2435, %v2438
        %v2440 = vrot.slane %v1433, 4
        %v2441 = vsel %vm378, %v2440, %v1431
        %v2443 = vunpack.c.l.s4 1983009808
        %v2444 = vunpack.c.0.s8 %v2443
        %v2445 = vperm.slane %v2441, %v2444
        %v2446 = vrot.slane %v2434, 4
        %v2447 = vsel %vm378, %v2446, %v2428
        %v2449 = vunpack.c.l.s4 1934713408
        %v2450 = vunpack.c.0.s8 %v2449
        %v2451 = vperm.slane %v2447, %v2450
        %v2452 = vrot.slane %v2445, 4
        %v2453 = vsel %vm378, %v2452, %v2439
        %v2455 = vunpack.c.l.s4 1934713408
        %v2456 = vunpack.c.0.s8 %v2455
        %v2457 = vperm.slane %v2453, %v2456
        %v2458 = vrot.slane %v2457, 4
        %v2459 = vsel %vm378, %v2458, %v2451
        %v2460 = vrot.slane %v2451, 4
        %v2461 = vsel %vm378, %v2457, %v2460
        %v2462 = vsel %vm378, %v1480, %v1461
        %v2464 = vunpack.c.l.s4 1983009808
        %v2465 = vunpack.c.0.s8 %v2464
        %v2466 = vperm.slane %v2462, %v2465
        %v2467 = vrot.slane %v1481, 4
        %v2468 = vsel %vm378, %v2467, %v1479
        %v2470 = vunpack.c.l.s4 1983009808
        %v2471 = vunpack.c.0.s8 %v2470
        %v2472 = vperm.slane %v2468, %v2471
        %v2473 = vsel %vm378, %v1484, %v1473
        %v2475 = vunpack.c.l.s4 1983009808
        %v2476 = vunpack.c.0.s8 %v2475
        %v2477 = vperm.slane %v2473, %v2476
        %v2478 = vrot.slane %v1485, 4
        %v2479 = vsel %vm378, %v2478, %v1483
        %v2481 = vunpack.c.l.s4 1983009808
        %v2482 = vunpack.c.0.s8 %v2481
        %v2483 = vperm.slane %v2479, %v2482
        %v2484 = vrot.slane %v2472, 4
        %v2485 = vsel %vm378, %v2484, %v2466
        %v2487 = vunpack.c.l.s4 1934713408
        %v2488 = vunpack.c.0.s8 %v2487
        %v2489 = vperm.slane %v2485, %v2488
        %v2490 = vrot.slane %v2483, 4
        %v2491 = vsel %vm378, %v2490, %v2477
        %v2493 = vunpack.c.l.s4 1934713408
        %v2494 = vunpack.c.0.s8 %v2493
        %v2495 = vperm.slane %v2491, %v2494
        %v2496 = vrot.slane %v2495, 4
        %v2497 = vsel %vm378, %v2496, %v2489
        %v2498 = vrot.slane %v2489, 4
        %v2499 = vsel %vm378, %v2495, %v2498
        %v2500 = vsel %vm378, %v1532, %v1513
        %v2502 = vunpack.c.l.s4 1983009808
        %v2503 = vunpack.c.0.s8 %v2502
        %v2504 = vperm.slane %v2500, %v2503
        %v2505 = vrot.slane %v1533, 4
        %v2506 = vsel %vm378, %v2505, %v1531
        %v2508 = vunpack.c.l.s4 1983009808
        %v2509 = vunpack.c.0.s8 %v2508
        %v2510 = vperm.slane %v2506, %v2509
        %v2511 = vsel %vm378, %v1536, %v1525
        %v2513 = vunpack.c.l.s4 1983009808
        %v2514 = vunpack.c.0.s8 %v2513
        %v2515 = vperm.slane %v2511, %v2514
        %v2516 = vrot.slane %v1537, 4
        %v2517 = vsel %vm378, %v2516, %v1535
        %v2519 = vunpack.c.l.s4 1983009808
        %v2520 = vunpack.c.0.s8 %v2519
        %v2521 = vperm.slane %v2517, %v2520
        %v2522 = vrot.slane %v2510, 4
        %v2523 = vsel %vm378, %v2522, %v2504
        %v2525 = vunpack.c.l.s4 1934713408
        %v2526 = vunpack.c.0.s8 %v2525
        %v2527 = vperm.slane %v2523, %v2526
        %v2528 = vrot.slane %v2521, 4
        %v2529 = vsel %vm378, %v2528, %v2515
        %v2531 = vunpack.c.l.s4 1934713408
        %v2532 = vunpack.c.0.s8 %v2531
        %v2533 = vperm.slane %v2529, %v2532
        %v2534 = vrot.slane %v2533, 4
        %v2535 = vsel %vm378, %v2534, %v2527
        %v2536 = vrot.slane %v2527, 4
        %v2537 = vsel %vm378, %v2533, %v2536
        %v2538 = vsel %vm378, %v1584, %v1565
        %v2540 = vunpack.c.l.s4 1983009808
        %v2541 = vunpack.c.0.s8 %v2540
        %v2542 = vperm.slane %v2538, %v2541
        %v2543 = vrot.slane %v1585, 4
        %v2544 = vsel %vm378, %v2543, %v1583
        %v2546 = vunpack.c.l.s4 1983009808
        %v2547 = vunpack.c.0.s8 %v2546
        %v2548 = vperm.slane %v2544, %v2547
        %v2549 = vsel %vm378, %v1588, %v1577
        %v2551 = vunpack.c.l.s4 1983009808
        %v2552 = vunpack.c.0.s8 %v2551
        %v2553 = vperm.slane %v2549, %v2552
        %v2554 = vrot.slane %v1589, 4
        %v2555 = vsel %vm378, %v2554, %v1587
        %v2557 = vunpack.c.l.s4 1983009808
        %v2558 = vunpack.c.0.s8 %v2557
        %v2559 = vperm.slane %v2555, %v2558
        %v2560 = vrot.slane %v2548, 4
        %v2561 = vsel %vm378, %v2560, %v2542
        %v2563 = vunpack.c.l.s4 1934713408
        %v2564 = vunpack.c.0.s8 %v2563
        %v2565 = vperm.slane %v2561, %v2564
        %v2566 = vrot.slane %v2559, 4
        %v2567 = vsel %vm378, %v2566, %v2553
        %v2569 = vunpack.c.l.s4 1934713408
        %v2570 = vunpack.c.0.s8 %v2569
        %v2571 = vperm.slane %v2567, %v2570
        %v2572 = vrot.slane %v2571, 4
        %v2573 = vsel %vm378, %v2572, %v2565
        %v2574 = vrot.slane %v2565, 4
        %v2575 = vsel %vm378, %v2571, %v2574
        %v2576 = vsel %vm378, %v1636, %v1617
        %v2578 = vunpack.c.l.s4 1983009808
        %v2579 = vunpack.c.0.s8 %v2578
        %v2580 = vperm.slane %v2576, %v2579
        %v2581 = vrot.slane %v1637, 4
        %v2582 = vsel %vm378, %v2581, %v1635
        %v2584 = vunpack.c.l.s4 1983009808
        %v2585 = vunpack.c.0.s8 %v2584
        %v2586 = vperm.slane %v2582, %v2585
        %v2587 = vsel %vm378, %v1640, %v1629
        %v2589 = vunpack.c.l.s4 1983009808
        %v2590 = vunpack.c.0.s8 %v2589
        %v2591 = vperm.slane %v2587, %v2590
        %v2592 = vrot.slane %v1641, 4
        %v2593 = vsel %vm378, %v2592, %v1639
        %v2595 = vunpack.c.l.s4 1983009808
        %v2596 = vunpack.c.0.s8 %v2595
        %v2597 = vperm.slane %v2593, %v2596
        %v2598 = vrot.slane %v2586, 4
        %v2599 = vsel %vm378, %v2598, %v2580
        %v2601 = vunpack.c.l.s4 1934713408
        %v2602 = vunpack.c.0.s8 %v2601
        %v2603 = vperm.slane %v2599, %v2602
        %v2604 = vrot.slane %v2597, 4
        %v2605 = vsel %vm378, %v2604, %v2591
        %v2607 = vunpack.c.l.s4 1934713408
        %v2608 = vunpack.c.0.s8 %v2607
        %v2609 = vperm.slane %v2605, %v2608
        %v2610 = vrot.slane %v2609, 4
        %v2611 = vsel %vm378, %v2610, %v2603
        %v2612 = vrot.slane %v2603, 4
        %v2613 = vsel %vm378, %v2609, %v2612
        %v2614 = vsel %vm378, %v1688, %v1669
        %v2616 = vunpack.c.l.s4 1983009808
        %v2617 = vunpack.c.0.s8 %v2616
        %v2618 = vperm.slane %v2614, %v2617
        %v2619 = vrot.slane %v1689, 4
        %v2620 = vsel %vm378, %v2619, %v1687
        %v2622 = vunpack.c.l.s4 1983009808
        %v2623 = vunpack.c.0.s8 %v2622
        %v2624 = vperm.slane %v2620, %v2623
        %v2625 = vsel %vm378, %v1692, %v1681
        %v2627 = vunpack.c.l.s4 1983009808
        %v2628 = vunpack.c.0.s8 %v2627
        %v2629 = vperm.slane %v2625, %v2628
        %v2630 = vrot.slane %v1693, 4
        %v2631 = vsel %vm378, %v2630, %v1691
        %v2633 = vunpack.c.l.s4 1983009808
        %v2634 = vunpack.c.0.s8 %v2633
        %v2635 = vperm.slane %v2631, %v2634
        %v2636 = vrot.slane %v2624, 4
        %v2637 = vsel %vm378, %v2636, %v2618
        %v2639 = vunpack.c.l.s4 1934713408
        %v2640 = vunpack.c.0.s8 %v2639
        %v2641 = vperm.slane %v2637, %v2640
        %v2642 = vrot.slane %v2635, 4
        %v2643 = vsel %vm378, %v2642, %v2629
        %v2645 = vunpack.c.l.s4 1934713408
        %v2646 = vunpack.c.0.s8 %v2645
        %v2647 = vperm.slane %v2643, %v2646
        %v2648 = vrot.slane %v2647, 4
        %v2649 = vsel %vm378, %v2648, %v2641
        %v2650 = vrot.slane %v2641, 4
        %v2651 = vsel %vm378, %v2647, %v2650
        %v2652 = vsel %vm378, %v1740, %v1721
        %v2654 = vunpack.c.l.s4 1983009808
        %v2655 = vunpack.c.0.s8 %v2654
        %v2656 = vperm.slane %v2652, %v2655
        %v2657 = vrot.slane %v1741, 4
        %v2658 = vsel %vm378, %v2657, %v1739
        %v2660 = vunpack.c.l.s4 1983009808
        %v2661 = vunpack.c.0.s8 %v2660
        %v2662 = vperm.slane %v2658, %v2661
        %v2663 = vsel %vm378, %v1744, %v1733
        %v2665 = vunpack.c.l.s4 1983009808
        %v2666 = vunpack.c.0.s8 %v2665
        %v2667 = vperm.slane %v2663, %v2666
        %v2668 = vrot.slane %v1745, 4
        %v2669 = vsel %vm378, %v2668, %v1743
        %v2671 = vunpack.c.l.s4 1983009808
        %v2672 = vunpack.c.0.s8 %v2671
        %v2673 = vperm.slane %v2669, %v2672
        %v2674 = vrot.slane %v2662, 4
        %v2675 = vsel %vm378, %v2674, %v2656
        %v2677 = vunpack.c.l.s4 1934713408
        %v2678 = vunpack.c.0.s8 %v2677
        %v2679 = vperm.slane %v2675, %v2678
        %v2680 = vrot.slane %v2673, 4
        %v2681 = vsel %vm378, %v2680, %v2667
        %v2683 = vunpack.c.l.s4 1934713408
        %v2684 = vunpack.c.0.s8 %v2683
        %v2685 = vperm.slane %v2681, %v2684
        %v2686 = vrot.slane %v2685, 4
        %v2687 = vsel %vm378, %v2686, %v2679
        %v2688 = vrot.slane %v2679, 4
        %v2689 = vsel %vm378, %v2685, %v2688
        %v2690 = vpack.c.bf16 %v2421, %v2421
        %v2691 = vpack.c.bf16 %v2459, %v2459
        %v2692 = vpack.c.bf16 %v2497, %v2497
        %v2693 = vpack.c.bf16 %v2535, %v2535
        %v2694 = vpack.c.bf16 %v2573, %v2573
        %v2695 = vpack.c.bf16 %v2611, %v2611
        %v2696 = vpack.c.bf16 %v2649, %v2649
        %v2697 = vpack.c.bf16 %v2687, %v2687
        %v2698 = vpack.c.bf16 %v2423, %v2423
        %v2699 = vpack.c.bf16 %v2461, %v2461
        %v2700 = vpack.c.bf16 %v2499, %v2499
        %v2701 = vpack.c.bf16 %v2537, %v2537
        %v2702 = vpack.c.bf16 %v2575, %v2575
        %v2703 = vpack.c.bf16 %v2613, %v2613
        %v2704 = vpack.c.bf16 %v2651, %v2651
        %v2705 = vpack.c.bf16 %v2689, %v2689
        %v2714 = vunpack.c.l.b16 %v2050
        %v2715 = vunpack.c.l.b16 %v2051
        %v2716 = vunpack.c.l.b16 %v2052
        %v2717 = vunpack.c.l.b16 %v2053
        %v2718 = vunpack.c.l.b16 %v2054
        %v2719 = vunpack.c.l.b16 %v2055
        %v2720 = vunpack.c.l.b16 %v2056
        %v2721 = vunpack.c.l.b16 %v2057
        %v2722 = vpack.c.b16 %v2715, %v2714
        %v2723 = vpack.c.b16 %v2717, %v2716
        %v2724 = vpack.c.b16 %v2719, %v2718
        %v2725 = vpack.c.b16 %v2721, %v2720
        %v2734 = vunpack.c.l.b16 %v2370
        %v2735 = vunpack.c.l.b16 %v2371
        %v2736 = vunpack.c.l.b16 %v2372
        %v2737 = vunpack.c.l.b16 %v2373
        %v2738 = vunpack.c.l.b16 %v2374
        %v2739 = vunpack.c.l.b16 %v2375
        %v2740 = vunpack.c.l.b16 %v2376
        %v2741 = vunpack.c.l.b16 %v2377
        %v2742 = vpack.c.b16 %v2735, %v2734
        %v2743 = vpack.c.b16 %v2737, %v2736
        %v2744 = vpack.c.b16 %v2739, %v2738
        %v2745 = vpack.c.b16 %v2741, %v2740
        %vm2746 = vcmask 64512
        %v2748 = vsel %vm2746, %v2722, 0
        %v2751 = vsel %vm2746, %v2723, 0
        %v2754 = vsel %vm2746, %v2724, 0
        %v2757 = vsel %vm2746, %v2725, 0
        %v2760 = vsel %vm2746, %v2742, 0
        %v2763 = vsel %vm2746, %v2743, 0
        %v2766 = vsel %vm2746, %v2744, 0
        %v2769 = vsel %vm2746, %v2745, 0
        %2771 = vmatpush.bf16.xpose.msra.mxu0 0
        %2772 = vmatpush.bf16.xpose.msra.mxu0 0
        %2773 = vmatpush.bf16.xpose.msra.mxu0 0
        %2774 = vmatpush.bf16.xpose.msra.mxu0 0
        %2775 = vmatpush.bf16.xpose.msra.mxu0 %v2769
        %2776 = vmatpush.bf16.xpose.msra.mxu0 %v2766
        %2777 = vmatpush.bf16.xpose.msra.mxu0 %v2763
        %2778 = vmatpush.bf16.xpose.msra.mxu0 %v2760
        %2779 = vmatmul.bf16.gmra.mxu0 %v2748
        %v2780 = vpop.f32.mrf.mxu0
        %v2781 = vadd.f32 0.0, %v2780
        %v2782 = vpop.f32.mrf.mxu0
        %v2783 = vadd.f32 0.0, %v2782
        %2784 = vmatmul.bf16.gmra.mxu0 %v2751
        %v2785 = vpop.f32.mrf.mxu0
        %v2786 = vadd.f32 0.0, %v2785
        %v2787 = vpop.f32.mrf.mxu0
        %v2788 = vadd.f32 0.0, %v2787
        %2789 = vmatmul.bf16.gmra.mxu0 %v2754
        %v2790 = vpop.f32.mrf.mxu0
        %v2791 = vadd.f32 0.0, %v2790
        %v2792 = vpop.f32.mrf.mxu0
        %v2793 = vadd.f32 0.0, %v2792
        %2794 = vmatmul.bf16.gmra.mxu0 %v2757
        %v2795 = vpop.f32.mrf.mxu0
        %v2796 = vadd.f32 0.0, %v2795
        %v2797 = vpop.f32.mrf.mxu0
        %v2798 = vadd.f32 0.0, %v2797
        %2799 = vdwg.mxu0
        %v2808 = vunpack.c.l.b16 %v2058
        %v2809 = vunpack.c.l.b16 %v2059
        %v2810 = vunpack.c.l.b16 %v2060
        %v2811 = vunpack.c.l.b16 %v2061
        %v2812 = vunpack.c.l.b16 %v2062
        %v2813 = vunpack.c.l.b16 %v2063
        %v2814 = vunpack.c.l.b16 %v2064
        %v2815 = vunpack.c.l.b16 %v2065
        %v2816 = vpack.c.b16 %v2809, %v2808
        %v2817 = vpack.c.b16 %v2811, %v2810
        %v2818 = vpack.c.b16 %v2813, %v2812
        %v2819 = vpack.c.b16 %v2815, %v2814
        %v2828 = vunpack.c.l.b16 %v2378
        %v2829 = vunpack.c.l.b16 %v2379
        %v2830 = vunpack.c.l.b16 %v2380
        %v2831 = vunpack.c.l.b16 %v2381
        %v2832 = vunpack.c.l.b16 %v2382
        %v2833 = vunpack.c.l.b16 %v2383
        %v2834 = vunpack.c.l.b16 %v2384
        %v2835 = vunpack.c.l.b16 %v2385
        %v2836 = vpack.c.b16 %v2829, %v2828
        %v2837 = vpack.c.b16 %v2831, %v2830
        %v2838 = vpack.c.b16 %v2833, %v2832
        %v2839 = vpack.c.b16 %v2835, %v2834
        %v2841 = vsel %vm2746, %v2816, 0
        %v2844 = vsel %vm2746, %v2817, 0
        %v2847 = vsel %vm2746, %v2818, 0
        %v2850 = vsel %vm2746, %v2819, 0
        %v2853 = vsel %vm2746, %v2836, 0
        %v2856 = vsel %vm2746, %v2837, 0
        %v2859 = vsel %vm2746, %v2838, 0
        %v2862 = vsel %vm2746, %v2839, 0
        %2864 = vmatpush.bf16.xpose.msra.mxu0 0
        %2865 = vmatpush.bf16.xpose.msra.mxu0 0
        %2866 = vmatpush.bf16.xpose.msra.mxu0 0
        %2867 = vmatpush.bf16.xpose.msra.mxu0 0
        %2868 = vmatpush.bf16.xpose.msra.mxu0 %v2862
        %2869 = vmatpush.bf16.xpose.msra.mxu0 %v2859
        %2870 = vmatpush.bf16.xpose.msra.mxu0 %v2856
        %2871 = vmatpush.bf16.xpose.msra.mxu0 %v2853
        %2872 = vmatmul.bf16.gmra.mxu0 %v2841
        %v2873 = vpop.f32.mrf.mxu0
        %v2874 = vadd.f32 0.0, %v2873
        %v2875 = vpop.f32.mrf.mxu0
        %v2876 = vadd.f32 0.0, %v2875
        %2877 = vmatmul.bf16.gmra.mxu0 %v2844
        %v2878 = vpop.f32.mrf.mxu0
        %v2879 = vadd.f32 0.0, %v2878
        %v2880 = vpop.f32.mrf.mxu0
        %v2881 = vadd.f32 0.0, %v2880
        %2882 = vmatmul.bf16.gmra.mxu0 %v2847
        %v2883 = vpop.f32.mrf.mxu0
        %v2884 = vadd.f32 0.0, %v2883
        %v2885 = vpop.f32.mrf.mxu0
        %v2886 = vadd.f32 0.0, %v2885
        %2887 = vmatmul.bf16.gmra.mxu0 %v2850
        %v2888 = vpop.f32.mrf.mxu0
        %v2889 = vadd.f32 0.0, %v2888
        %v2890 = vpop.f32.mrf.mxu0
        %v2891 = vadd.f32 0.0, %v2890
        %2892 = vdwg.mxu0
        %vm2893 = vcmask 523264
        %v2894 = vsel %vm2893, %v2781, -inf
        %2895 = vmax.xlane.f32.xlu0 %v2894
        %v2896 = vpop.xlane.xlu0 %2895
        %v2897 = vsel %vm2893, %v2783, -inf
        %2898 = vmax.xlane.f32.xlu0 %v2897
        %v2899 = vpop.xlane.xlu0 %2898
        %v2900 = vsel %vm2893, %v2786, -inf
        %2901 = vmax.xlane.f32.xlu0 %v2900
        %v2902 = vpop.xlane.xlu0 %2901
        %v2903 = vsel %vm2893, %v2788, -inf
        %2904 = vmax.xlane.f32.xlu0 %v2903
        %v2905 = vpop.xlane.xlu0 %2904
        %v2906 = vsel %vm2893, %v2791, -inf
        %2907 = vmax.xlane.f32.xlu0 %v2906
        %v2908 = vpop.xlane.xlu0 %2907
        %v2909 = vsel %vm2893, %v2793, -inf
        %2910 = vmax.xlane.f32.xlu0 %v2909
        %v2911 = vpop.xlane.xlu0 %2910
        %v2912 = vsel %vm2893, %v2796, -inf
        %2913 = vmax.xlane.f32.xlu0 %v2912
        %v2914 = vpop.xlane.xlu0 %2913
        %v2915 = vsel %vm2893, %v2798, -inf
        %2916 = vmax.xlane.f32.xlu0 %v2915
        %v2917 = vpop.xlane.xlu0 %2916
        %v2918 = vsel %vm2893, %v2874, -inf
        %2919 = vmax.xlane.f32.xlu0 %v2918
        %v2920 = vpop.xlane.xlu0 %2919
        %v2921 = vsel %vm2893, %v2876, -inf
        %2922 = vmax.xlane.f32.xlu0 %v2921
        %v2923 = vpop.xlane.xlu0 %2922
        %v2924 = vsel %vm2893, %v2879, -inf
        %2925 = vmax.xlane.f32.xlu0 %v2924
        %v2926 = vpop.xlane.xlu0 %2925
        %v2927 = vsel %vm2893, %v2881, -inf
        %2928 = vmax.xlane.f32.xlu0 %v2927
        %v2929 = vpop.xlane.xlu0 %2928
        %v2930 = vsel %vm2893, %v2884, -inf
        %2931 = vmax.xlane.f32.xlu0 %v2930
        %v2932 = vpop.xlane.xlu0 %2931
        %v2933 = vsel %vm2893, %v2886, -inf
        %2934 = vmax.xlane.f32.xlu0 %v2933
        %v2935 = vpop.xlane.xlu0 %2934
        %v2936 = vsel %vm2893, %v2889, -inf
        %2937 = vmax.xlane.f32.xlu0 %v2936
        %v2938 = vpop.xlane.xlu0 %2937
        %v2939 = vsel %vm2893, %v2891, -inf
        %2940 = vmax.xlane.f32.xlu0 %v2939
        %v2941 = vpop.xlane.xlu0 %2940
        %v2942 = vsub.f32 %v2781, %v2896
        %v2943 = vsub.f32 %v2783, %v2899
        %v2944 = vsub.f32 %v2786, %v2902
        %v2945 = vsub.f32 %v2788, %v2905
        %v2946 = vsub.f32 %v2791, %v2908
        %v2947 = vsub.f32 %v2793, %v2911
        %v2948 = vsub.f32 %v2796, %v2914
        %v2949 = vsub.f32 %v2798, %v2917
        %v2950 = vsub.f32 %v2874, %v2920
        %v2951 = vsub.f32 %v2876, %v2923
        %v2952 = vsub.f32 %v2879, %v2926
        %v2953 = vsub.f32 %v2881, %v2929
        %v2954 = vsub.f32 %v2884, %v2932
        %v2955 = vsub.f32 %v2886, %v2935
        %v2956 = vsub.f32 %v2889, %v2938
        %v2957 = vsub.f32 %v2891, %v2941
        %v2958 = vmul.f32 %v2942, 1.442695
        %v2959 = vpow.pop %v2958
        %v2960 = vmul.f32 %v2943, 1.442695
        %v2961 = vpow.pop %v2960
        %v2962 = vmul.f32 %v2944, 1.442695
        %v2963 = vpow.pop %v2962
        %v2964 = vmul.f32 %v2945, 1.442695
        %v2965 = vpow.pop %v2964
        %v2966 = vmul.f32 %v2946, 1.442695
        %v2967 = vpow.pop %v2966
        %v2968 = vmul.f32 %v2947, 1.442695
        %v2969 = vpow.pop %v2968
        %v2970 = vmul.f32 %v2948, 1.442695
        %v2971 = vpow.pop %v2970
        %v2972 = vmul.f32 %v2949, 1.442695
        %v2973 = vpow.pop %v2972
        %v2974 = vmul.f32 %v2950, 1.442695
        %v2975 = vpow.pop %v2974
        %v2976 = vmul.f32 %v2951, 1.442695
        %v2977 = vpow.pop %v2976
        %v2978 = vmul.f32 %v2952, 1.442695
        %v2979 = vpow.pop %v2978
        %v2980 = vmul.f32 %v2953, 1.442695
        %v2981 = vpow.pop %v2980
        %v2982 = vmul.f32 %v2954, 1.442695
        %v2983 = vpow.pop %v2982
        %v2984 = vmul.f32 %v2955, 1.442695
        %v2985 = vpow.pop %v2984
        %v2986 = vmul.f32 %v2956, 1.442695
        %v2987 = vpow.pop %v2986
        %v2988 = vmul.f32 %v2957, 1.442695
        %v2989 = vpow.pop %v2988
        %v2990 = vsel %vm2893, %v2959, 0.0
        %2991 = vadd.xlane.f32.xlu0 %v2990
        %v2992 = vpop.xlane.xlu0 %2991
        %v2993 = vsel %vm2893, %v2961, 0.0
        %2994 = vadd.xlane.f32.xlu0 %v2993
        %v2995 = vpop.xlane.xlu0 %2994
        %v2996 = vsel %vm2893, %v2963, 0.0
        %2997 = vadd.xlane.f32.xlu0 %v2996
        %v2998 = vpop.xlane.xlu0 %2997
        %v2999 = vsel %vm2893, %v2965, 0.0
        %3000 = vadd.xlane.f32.xlu0 %v2999
        %v3001 = vpop.xlane.xlu0 %3000
        %v3002 = vsel %vm2893, %v2967, 0.0
        %3003 = vadd.xlane.f32.xlu0 %v3002
        %v3004 = vpop.xlane.xlu0 %3003
        %v3005 = vsel %vm2893, %v2969, 0.0
        %3006 = vadd.xlane.f32.xlu0 %v3005
        %v3007 = vpop.xlane.xlu0 %3006
        %v3008 = vsel %vm2893, %v2971, 0.0
        %3009 = vadd.xlane.f32.xlu0 %v3008
        %v3010 = vpop.xlane.xlu0 %3009
        %v3011 = vsel %vm2893, %v2973, 0.0
        %3012 = vadd.xlane.f32.xlu0 %v3011
        %v3013 = vpop.xlane.xlu0 %3012
        %v3014 = vsel %vm2893, %v2975, 0.0
        %3015 = vadd.xlane.f32.xlu0 %v3014
        %v3016 = vpop.xlane.xlu0 %3015
        %v3017 = vsel %vm2893, %v2977, 0.0
        %3018 = vadd.xlane.f32.xlu0 %v3017
        %v3019 = vpop.xlane.xlu0 %3018
        %v3020 = vsel %vm2893, %v2979, 0.0
        %3021 = vadd.xlane.f32.xlu0 %v3020
        %v3022 = vpop.xlane.xlu0 %3021
        %v3023 = vsel %vm2893, %v2981, 0.0
        %3024 = vadd.xlane.f32.xlu0 %v3023
        %v3025 = vpop.xlane.xlu0 %3024
        %v3026 = vsel %vm2893, %v2983, 0.0
        %3027 = vadd.xlane.f32.xlu0 %v3026
        %v3028 = vpop.xlane.xlu0 %3027
        %v3029 = vsel %vm2893, %v2985, 0.0
        %3030 = vadd.xlane.f32.xlu0 %v3029
        %v3031 = vpop.xlane.xlu0 %3030
        %v3032 = vsel %vm2893, %v2987, 0.0
        %3033 = vadd.xlane.f32.xlu0 %v3032
        %v3034 = vpop.xlane.xlu0 %3033
        %v3035 = vsel %vm2893, %v2989, 0.0
        %3036 = vadd.xlane.f32.xlu0 %v3035
        %v3037 = vpop.xlane.xlu0 %3036
        %v3038 = vpack.c.bf16 %v2959, %v2959
        %v3039 = vpack.c.bf16 %v2961, %v2961
        %v3040 = vpack.c.bf16 %v2963, %v2963
        %v3041 = vpack.c.bf16 %v2965, %v2965
        %v3042 = vpack.c.bf16 %v2967, %v2967
        %v3043 = vpack.c.bf16 %v2969, %v2969
        %v3044 = vpack.c.bf16 %v2971, %v2971
        %v3045 = vpack.c.bf16 %v2973, %v2973
        %v3046 = vpack.c.bf16 %v2975, %v2975
        %v3047 = vpack.c.bf16 %v2977, %v2977
        %v3048 = vpack.c.bf16 %v2979, %v2979
        %v3049 = vpack.c.bf16 %v2981, %v2981
        %v3050 = vpack.c.bf16 %v2983, %v2983
        %v3051 = vpack.c.bf16 %v2985, %v2985
        %v3052 = vpack.c.bf16 %v2987, %v2987
        %v3053 = vpack.c.bf16 %v2989, %v2989
        %v3062 = vunpack.c.l.b16 %v3038
        %v3063 = vunpack.c.l.b16 %v3039
        %v3064 = vunpack.c.l.b16 %v3040
        %v3065 = vunpack.c.l.b16 %v3041
        %v3066 = vunpack.c.l.b16 %v3042
        %v3067 = vunpack.c.l.b16 %v3043
        %v3068 = vunpack.c.l.b16 %v3044
        %v3069 = vunpack.c.l.b16 %v3045
        %v3070 = vpack.c.b16 %v3063, %v3062
        %v3071 = vpack.c.b16 %v3065, %v3064
        %v3072 = vpack.c.b16 %v3067, %v3066
        %v3073 = vpack.c.b16 %v3069, %v3068
        %v3082 = vunpack.c.l.b16 %v2690
        %v3083 = vunpack.c.l.b16 %v2691
        %v3084 = vunpack.c.l.b16 %v2692
        %v3085 = vunpack.c.l.b16 %v2693
        %v3086 = vunpack.c.l.b16 %v2694
        %v3087 = vunpack.c.l.b16 %v2695
        %v3088 = vunpack.c.l.b16 %v2696
        %v3089 = vunpack.c.l.b16 %v2697
        %v3090 = vpack.c.b16 %v3083, %v3082
        %v3091 = vpack.c.b16 %v3085, %v3084
        %v3092 = vpack.c.b16 %v3087, %v3086
        %v3093 = vpack.c.b16 %v3089, %v3088
        %v3099 = vsel %vm2893, %v3070, 0
        %v3102 = vsel %vm2893, %v3071, 0
        %v3105 = vsel %vm2893, %v3072, 0
        %v3108 = vsel %vm2893, %v3073, 0
        %3110 = vmatpush.bf16.msra.mxu0 0
        %3111 = vmatpush.bf16.msra.mxu0 0
        %3112 = vmatpush.bf16.msra.mxu0 0
        %3113 = vmatpush.bf16.msra.mxu0 0
        %3114 = vmatpush.bf16.msra.mxu0 %v3093
        %3115 = vmatpush.bf16.msra.mxu0 %v3092
        %3116 = vmatpush.bf16.msra.mxu0 %v3091
        %3117 = vmatpush.bf16.msra.mxu0 %v3090
        %3118 = vmatmul.bf16.gmra.mxu0 %v3099
        %v3119 = vpop.f32.mrf.mxu0
        %v3120 = vadd.f32 0.0, %v3119
        %v3121 = vpop.f32.mrf.mxu0
        %v3122 = vadd.f32 0.0, %v3121
        %3123 = vmatmul.bf16.gmra.mxu0 %v3102
        %v3124 = vpop.f32.mrf.mxu0
        %v3125 = vadd.f32 0.0, %v3124
        %v3126 = vpop.f32.mrf.mxu0
        %v3127 = vadd.f32 0.0, %v3126
        %3128 = vmatmul.bf16.gmra.mxu0 %v3105
        %v3129 = vpop.f32.mrf.mxu0
        %v3130 = vadd.f32 0.0, %v3129
        %v3131 = vpop.f32.mrf.mxu0
        %v3132 = vadd.f32 0.0, %v3131
        %3133 = vmatmul.bf16.gmra.mxu0 %v3108
        %v3134 = vpop.f32.mrf.mxu0
        %v3135 = vadd.f32 0.0, %v3134
        %v3136 = vpop.f32.mrf.mxu0
        %v3137 = vadd.f32 0.0, %v3136
        %3138 = vdwg.mxu0
        %v3147 = vunpack.c.l.b16 %v3046
        %v3148 = vunpack.c.l.b16 %v3047
        %v3149 = vunpack.c.l.b16 %v3048
        %v3150 = vunpack.c.l.b16 %v3049
        %v3151 = vunpack.c.l.b16 %v3050
        %v3152 = vunpack.c.l.b16 %v3051
        %v3153 = vunpack.c.l.b16 %v3052
        %v3154 = vunpack.c.l.b16 %v3053
        %v3155 = vpack.c.b16 %v3148, %v3147
        %v3156 = vpack.c.b16 %v3150, %v3149
        %v3157 = vpack.c.b16 %v3152, %v3151
        %v3158 = vpack.c.b16 %v3154, %v3153
        %v3167 = vunpack.c.l.b16 %v2698
        %v3168 = vunpack.c.l.b16 %v2699
        %v3169 = vunpack.c.l.b16 %v2700
        %v3170 = vunpack.c.l.b16 %v2701
        %v3171 = vunpack.c.l.b16 %v2702
        %v3172 = vunpack.c.l.b16 %v2703
        %v3173 = vunpack.c.l.b16 %v2704
        %v3174 = vunpack.c.l.b16 %v2705
        %v3175 = vpack.c.b16 %v3168, %v3167
        %v3176 = vpack.c.b16 %v3170, %v3169
        %v3177 = vpack.c.b16 %v3172, %v3171
        %v3178 = vpack.c.b16 %v3174, %v3173
        %v3184 = vsel %vm2893, %v3155, 0
        %v3187 = vsel %vm2893, %v3156, 0
        %v3190 = vsel %vm2893, %v3157, 0
        %v3193 = vsel %vm2893, %v3158, 0
        %3195 = vmatpush.bf16.msra.mxu0 0
        %3196 = vmatpush.bf16.msra.mxu0 0
        %3197 = vmatpush.bf16.msra.mxu0 0
        %3198 = vmatpush.bf16.msra.mxu0 0
        %3199 = vmatpush.bf16.msra.mxu0 %v3178
        %3200 = vmatpush.bf16.msra.mxu0 %v3177
        %3201 = vmatpush.bf16.msra.mxu0 %v3176
        %3202 = vmatpush.bf16.msra.mxu0 %v3175
        %3203 = vmatmul.bf16.gmra.mxu0 %v3184
        %v3204 = vpop.f32.mrf.mxu0
        %v3205 = vadd.f32 0.0, %v3204
        %v3206 = vpop.f32.mrf.mxu0
        %v3207 = vadd.f32 0.0, %v3206
        %3208 = vmatmul.bf16.gmra.mxu0 %v3187
        %v3209 = vpop.f32.mrf.mxu0
        %v3210 = vadd.f32 0.0, %v3209
        %v3211 = vpop.f32.mrf.mxu0
        %v3212 = vadd.f32 0.0, %v3211
        %3213 = vmatmul.bf16.gmra.mxu0 %v3190
        %v3214 = vpop.f32.mrf.mxu0
        %v3215 = vadd.f32 0.0, %v3214
        %v3216 = vpop.f32.mrf.mxu0
        %v3217 = vadd.f32 0.0, %v3216
        %3218 = vmatmul.bf16.gmra.mxu0 %v3193
        %v3219 = vpop.f32.mrf.mxu0
        %v3220 = vadd.f32 0.0, %v3219
        %v3221 = vpop.f32.mrf.mxu0
        %v3222 = vadd.f32 0.0, %v3221
        %3223 = vdwg.mxu0
        %v3224 = vrcp.pop %v2992
        %v3225 = vrcp.pop %v2995
        %v3226 = vrcp.pop %v2998
        %v3227 = vrcp.pop %v3001
        %v3228 = vrcp.pop %v3004
        %v3229 = vrcp.pop %v3007
        %v3230 = vrcp.pop %v3010
        %v3231 = vrcp.pop %v3013
        %v3232 = vrcp.pop %v3016
        %v3233 = vrcp.pop %v3019
        %v3234 = vrcp.pop %v3022
        %v3235 = vrcp.pop %v3025
        %v3236 = vrcp.pop %v3028
        %v3237 = vrcp.pop %v3031
        %v3238 = vrcp.pop %v3034
        %v3239 = vrcp.pop %v3037
        %v3240 = vmul.f32 %v3120, %v3224
        %v3241 = vmul.f32 %v3122, %v3225
        %v3242 = vmul.f32 %v3125, %v3226
        %v3243 = vmul.f32 %v3127, %v3227
        %v3244 = vmul.f32 %v3130, %v3228
        %v3245 = vmul.f32 %v3132, %v3229
        %v3246 = vmul.f32 %v3135, %v3230
        %v3247 = vmul.f32 %v3137, %v3231
        %v3248 = vmul.f32 %v3205, %v3232
        %v3249 = vmul.f32 %v3207, %v3233
        %v3250 = vmul.f32 %v3210, %v3234
        %v3251 = vmul.f32 %v3212, %v3235
        %v3252 = vmul.f32 %v3215, %v3236
        %v3253 = vmul.f32 %v3217, %v3237
        %v3254 = vmul.f32 %v3220, %v3238
        %v3255 = vmul.f32 %v3222, %v3239
        %v3256 = vrot.slane %v3240, 4
        %v3257 = vsel %vm378, 0.0, %v3256
        %v3259 = vunpack.c.l.s4 1983009808
        %v3260 = vunpack.c.0.s8 %v3259
        %v3261 = vperm.slane %v3240, %v3260
        %v3263 = vunpack.c.l.s4 1983009808
        %v3264 = vunpack.c.0.s8 %v3263
        %v3265 = vperm.slane %v3257, %v3264
        %v3266 = vrot.slane %v3248, 4
        %v3267 = vsel %vm378, 0.0, %v3266
        %v3269 = vunpack.c.l.s4 1983009808
        %v3270 = vunpack.c.0.s8 %v3269
        %v3271 = vperm.slane %v3248, %v3270
        %v3273 = vunpack.c.l.s4 1983009808
        %v3274 = vunpack.c.0.s8 %v3273
        %v3275 = vperm.slane %v3267, %v3274
        %v3276 = vrot.slane %v3271, 4
        %v3277 = vsel %vm378, %v3276, %v3261
        %v3278 = vrot.slane %v3261, 4
        %v3279 = vsel %vm378, %v3271, %v3278
        %v3281 = vunpack.c.l.s4 1934713408
        %v3282 = vunpack.c.0.s8 %v3281
        %v3283 = vperm.slane %v3277, %v3282
        %v3285 = vunpack.c.l.s4 1934713408
        %v3286 = vunpack.c.0.s8 %v3285
        %v3287 = vperm.slane %v3279, %v3286
        %v3288 = vrot.slane %v3275, 4
        %v3289 = vsel %vm378, %v3288, %v3265
        %v3290 = vrot.slane %v3265, 4
        %v3291 = vsel %vm378, %v3275, %v3290
        %v3293 = vunpack.c.l.s4 1934713408
        %v3294 = vunpack.c.0.s8 %v3293
        %v3295 = vperm.slane %v3289, %v3294
        %v3297 = vunpack.c.l.s4 1934713408
        %v3298 = vunpack.c.0.s8 %v3297
        %v3299 = vperm.slane %v3291, %v3298
        %v3300 = vrot.slane %v3283, 4
        %v3301 = vsel %vm378, 0.0, %v3300
        %v3302 = vrot.slane %v3287, 4
        %v3303 = vsel %vm378, 0.0, %v3302
        %v3304 = vrot.slane %v3295, 4
        %v3305 = vsel %vm378, 0.0, %v3304
        %v3306 = vrot.slane %v3299, 4
        %v3307 = vsel %vm378, 0.0, %v3306
        %v3308 = vrot.slane %v3241, 4
        %v3309 = vsel %vm378, 0.0, %v3308
        %v3311 = vunpack.c.l.s4 1983009808
        %v3312 = vunpack.c.0.s8 %v3311
        %v3313 = vperm.slane %v3241, %v3312
        %v3315 = vunpack.c.l.s4 1983009808
        %v3316 = vunpack.c.0.s8 %v3315
        %v3317 = vperm.slane %v3309, %v3316
        %v3318 = vrot.slane %v3249, 4
        %v3319 = vsel %vm378, 0.0, %v3318
        %v3321 = vunpack.c.l.s4 1983009808
        %v3322 = vunpack.c.0.s8 %v3321
        %v3323 = vperm.slane %v3249, %v3322
        %v3325 = vunpack.c.l.s4 1983009808
        %v3326 = vunpack.c.0.s8 %v3325
        %v3327 = vperm.slane %v3319, %v3326
        %v3328 = vrot.slane %v3323, 4
        %v3329 = vsel %vm378, %v3328, %v3313
        %v3330 = vrot.slane %v3313, 4
        %v3331 = vsel %vm378, %v3323, %v3330
        %v3333 = vunpack.c.l.s4 1934713408
        %v3334 = vunpack.c.0.s8 %v3333
        %v3335 = vperm.slane %v3329, %v3334
        %v3337 = vunpack.c.l.s4 1934713408
        %v3338 = vunpack.c.0.s8 %v3337
        %v3339 = vperm.slane %v3331, %v3338
        %v3340 = vrot.slane %v3327, 4
        %v3341 = vsel %vm378, %v3340, %v3317
        %v3342 = vrot.slane %v3317, 4
        %v3343 = vsel %vm378, %v3327, %v3342
        %v3345 = vunpack.c.l.s4 1934713408
        %v3346 = vunpack.c.0.s8 %v3345
        %v3347 = vperm.slane %v3341, %v3346
        %v3349 = vunpack.c.l.s4 1934713408
        %v3350 = vunpack.c.0.s8 %v3349
        %v3351 = vperm.slane %v3343, %v3350
        %v3352 = vrot.slane %v3335, 4
        %v3353 = vsel %vm378, 0.0, %v3352
        %v3354 = vrot.slane %v3339, 4
        %v3355 = vsel %vm378, 0.0, %v3354
        %v3356 = vrot.slane %v3347, 4
        %v3357 = vsel %vm378, 0.0, %v3356
        %v3358 = vrot.slane %v3351, 4
        %v3359 = vsel %vm378, 0.0, %v3358
        %v3360 = vrot.slane %v3242, 4
        %v3361 = vsel %vm378, 0.0, %v3360
        %v3363 = vunpack.c.l.s4 1983009808
        %v3364 = vunpack.c.0.s8 %v3363
        %v3365 = vperm.slane %v3242, %v3364
        %v3367 = vunpack.c.l.s4 1983009808
        %v3368 = vunpack.c.0.s8 %v3367
        %v3369 = vperm.slane %v3361, %v3368
        %v3370 = vrot.slane %v3250, 4
        %v3371 = vsel %vm378, 0.0, %v3370
        %v3373 = vunpack.c.l.s4 1983009808
        %v3374 = vunpack.c.0.s8 %v3373
        %v3375 = vperm.slane %v3250, %v3374
        %v3377 = vunpack.c.l.s4 1983009808
        %v3378 = vunpack.c.0.s8 %v3377
        %v3379 = vperm.slane %v3371, %v3378
        %v3380 = vrot.slane %v3375, 4
        %v3381 = vsel %vm378, %v3380, %v3365
        %v3382 = vrot.slane %v3365, 4
        %v3383 = vsel %vm378, %v3375, %v3382
        %v3385 = vunpack.c.l.s4 1934713408
        %v3386 = vunpack.c.0.s8 %v3385
        %v3387 = vperm.slane %v3381, %v3386
        %v3389 = vunpack.c.l.s4 1934713408
        %v3390 = vunpack.c.0.s8 %v3389
        %v3391 = vperm.slane %v3383, %v3390
        %v3392 = vrot.slane %v3379, 4
        %v3393 = vsel %vm378, %v3392, %v3369
        %v3394 = vrot.slane %v3369, 4
        %v3395 = vsel %vm378, %v3379, %v3394
        %v3397 = vunpack.c.l.s4 1934713408
        %v3398 = vunpack.c.0.s8 %v3397
        %v3399 = vperm.slane %v3393, %v3398
        %v3401 = vunpack.c.l.s4 1934713408
        %v3402 = vunpack.c.0.s8 %v3401
        %v3403 = vperm.slane %v3395, %v3402
        %v3404 = vrot.slane %v3387, 4
        %v3405 = vsel %vm378, 0.0, %v3404
        %v3406 = vrot.slane %v3391, 4
        %v3407 = vsel %vm378, 0.0, %v3406
        %v3408 = vrot.slane %v3399, 4
        %v3409 = vsel %vm378, 0.0, %v3408
        %v3410 = vrot.slane %v3403, 4
        %v3411 = vsel %vm378, 0.0, %v3410
        %v3412 = vrot.slane %v3243, 4
        %v3413 = vsel %vm378, 0.0, %v3412
        %v3415 = vunpack.c.l.s4 1983009808
        %v3416 = vunpack.c.0.s8 %v3415
        %v3417 = vperm.slane %v3243, %v3416
        %v3419 = vunpack.c.l.s4 1983009808
        %v3420 = vunpack.c.0.s8 %v3419
        %v3421 = vperm.slane %v3413, %v3420
        %v3422 = vrot.slane %v3251, 4
        %v3423 = vsel %vm378, 0.0, %v3422
        %v3425 = vunpack.c.l.s4 1983009808
        %v3426 = vunpack.c.0.s8 %v3425
        %v3427 = vperm.slane %v3251, %v3426
        %v3429 = vunpack.c.l.s4 1983009808
        %v3430 = vunpack.c.0.s8 %v3429
        %v3431 = vperm.slane %v3423, %v3430
        %v3432 = vrot.slane %v3427, 4
        %v3433 = vsel %vm378, %v3432, %v3417
        %v3434 = vrot.slane %v3417, 4
        %v3435 = vsel %vm378, %v3427, %v3434
        %v3437 = vunpack.c.l.s4 1934713408
        %v3438 = vunpack.c.0.s8 %v3437
        %v3439 = vperm.slane %v3433, %v3438
        %v3441 = vunpack.c.l.s4 1934713408
        %v3442 = vunpack.c.0.s8 %v3441
        %v3443 = vperm.slane %v3435, %v3442
        %v3444 = vrot.slane %v3431, 4
        %v3445 = vsel %vm378, %v3444, %v3421
        %v3446 = vrot.slane %v3421, 4
        %v3447 = vsel %vm378, %v3431, %v3446
        %v3449 = vunpack.c.l.s4 1934713408
        %v3450 = vunpack.c.0.s8 %v3449
        %v3451 = vperm.slane %v3445, %v3450
        %v3453 = vunpack.c.l.s4 1934713408
        %v3454 = vunpack.c.0.s8 %v3453
        %v3455 = vperm.slane %v3447, %v3454
        %v3456 = vrot.slane %v3439, 4
        %v3457 = vsel %vm378, 0.0, %v3456
        %v3458 = vrot.slane %v3443, 4
        %v3459 = vsel %vm378, 0.0, %v3458
        %v3460 = vrot.slane %v3451, 4
        %v3461 = vsel %vm378, 0.0, %v3460
        %v3462 = vrot.slane %v3455, 4
        %v3463 = vsel %vm378, 0.0, %v3462
        %v3464 = vrot.slane %v3244, 4
        %v3465 = vsel %vm378, 0.0, %v3464
        %v3467 = vunpack.c.l.s4 1983009808
        %v3468 = vunpack.c.0.s8 %v3467
        %v3469 = vperm.slane %v3244, %v3468
        %v3471 = vunpack.c.l.s4 1983009808
        %v3472 = vunpack.c.0.s8 %v3471
        %v3473 = vperm.slane %v3465, %v3472
        %v3474 = vrot.slane %v3252, 4
        %v3475 = vsel %vm378, 0.0, %v3474
        %v3477 = vunpack.c.l.s4 1983009808
        %v3478 = vunpack.c.0.s8 %v3477
        %v3479 = vperm.slane %v3252, %v3478
        %v3481 = vunpack.c.l.s4 1983009808
        %v3482 = vunpack.c.0.s8 %v3481
        %v3483 = vperm.slane %v3475, %v3482
        %v3484 = vrot.slane %v3479, 4
        %v3485 = vsel %vm378, %v3484, %v3469
        %v3486 = vrot.slane %v3469, 4
        %v3487 = vsel %vm378, %v3479, %v3486
        %v3489 = vunpack.c.l.s4 1934713408
        %v3490 = vunpack.c.0.s8 %v3489
        %v3491 = vperm.slane %v3485, %v3490
        %v3493 = vunpack.c.l.s4 1934713408
        %v3494 = vunpack.c.0.s8 %v3493
        %v3495 = vperm.slane %v3487, %v3494
        %v3496 = vrot.slane %v3483, 4
        %v3497 = vsel %vm378, %v3496, %v3473
        %v3498 = vrot.slane %v3473, 4
        %v3499 = vsel %vm378, %v3483, %v3498
        %v3501 = vunpack.c.l.s4 1934713408
        %v3502 = vunpack.c.0.s8 %v3501
        %v3503 = vperm.slane %v3497, %v3502
        %v3505 = vunpack.c.l.s4 1934713408
        %v3506 = vunpack.c.0.s8 %v3505
        %v3507 = vperm.slane %v3499, %v3506
        %v3508 = vrot.slane %v3491, 4
        %v3509 = vsel %vm378, 0.0, %v3508
        %v3510 = vrot.slane %v3495, 4
        %v3511 = vsel %vm378, 0.0, %v3510
        %v3512 = vrot.slane %v3503, 4
        %v3513 = vsel %vm378, 0.0, %v3512
        %v3514 = vrot.slane %v3507, 4
        %v3515 = vsel %vm378, 0.0, %v3514
        %v3516 = vrot.slane %v3245, 4
        %v3517 = vsel %vm378, 0.0, %v3516
        %v3519 = vunpack.c.l.s4 1983009808
        %v3520 = vunpack.c.0.s8 %v3519
        %v3521 = vperm.slane %v3245, %v3520
        %v3523 = vunpack.c.l.s4 1983009808
        %v3524 = vunpack.c.0.s8 %v3523
        %v3525 = vperm.slane %v3517, %v3524
        %v3526 = vrot.slane %v3253, 4
        %v3527 = vsel %vm378, 0.0, %v3526
        %v3529 = vunpack.c.l.s4 1983009808
        %v3530 = vunpack.c.0.s8 %v3529
        %v3531 = vperm.slane %v3253, %v3530
        %v3533 = vunpack.c.l.s4 1983009808
        %v3534 = vunpack.c.0.s8 %v3533
        %v3535 = vperm.slane %v3527, %v3534
        %v3536 = vrot.slane %v3531, 4
        %v3537 = vsel %vm378, %v3536, %v3521
        %v3538 = vrot.slane %v3521, 4
        %v3539 = vsel %vm378, %v3531, %v3538
        %v3541 = vunpack.c.l.s4 1934713408
        %v3542 = vunpack.c.0.s8 %v3541
        %v3543 = vperm.slane %v3537, %v3542
        %v3545 = vunpack.c.l.s4 1934713408
        %v3546 = vunpack.c.0.s8 %v3545
        %v3547 = vperm.slane %v3539, %v3546
        %v3548 = vrot.slane %v3535, 4
        %v3549 = vsel %vm378, %v3548, %v3525
        %v3550 = vrot.slane %v3525, 4
        %v3551 = vsel %vm378, %v3535, %v3550
        %v3553 = vunpack.c.l.s4 1934713408
        %v3554 = vunpack.c.0.s8 %v3553
        %v3555 = vperm.slane %v3549, %v3554
        %v3557 = vunpack.c.l.s4 1934713408
        %v3558 = vunpack.c.0.s8 %v3557
        %v3559 = vperm.slane %v3551, %v3558
        %v3560 = vrot.slane %v3543, 4
        %v3561 = vsel %vm378, 0.0, %v3560
        %v3562 = vrot.slane %v3547, 4
        %v3563 = vsel %vm378, 0.0, %v3562
        %v3564 = vrot.slane %v3555, 4
        %v3565 = vsel %vm378, 0.0, %v3564
        %v3566 = vrot.slane %v3559, 4
        %v3567 = vsel %vm378, 0.0, %v3566
        %v3568 = vrot.slane %v3246, 4
        %v3569 = vsel %vm378, 0.0, %v3568
        %v3571 = vunpack.c.l.s4 1983009808
        %v3572 = vunpack.c.0.s8 %v3571
        %v3573 = vperm.slane %v3246, %v3572
        %v3575 = vunpack.c.l.s4 1983009808
        %v3576 = vunpack.c.0.s8 %v3575
        %v3577 = vperm.slane %v3569, %v3576
        %v3578 = vrot.slane %v3254, 4
        %v3579 = vsel %vm378, 0.0, %v3578
        %v3581 = vunpack.c.l.s4 1983009808
        %v3582 = vunpack.c.0.s8 %v3581
        %v3583 = vperm.slane %v3254, %v3582
        %v3585 = vunpack.c.l.s4 1983009808
        %v3586 = vunpack.c.0.s8 %v3585
        %v3587 = vperm.slane %v3579, %v3586
        %v3588 = vrot.slane %v3583, 4
        %v3589 = vsel %vm378, %v3588, %v3573
        %v3590 = vrot.slane %v3573, 4
        %v3591 = vsel %vm378, %v3583, %v3590
        %v3593 = vunpack.c.l.s4 1934713408
        %v3594 = vunpack.c.0.s8 %v3593
        %v3595 = vperm.slane %v3589, %v3594
        %v3597 = vunpack.c.l.s4 1934713408
        %v3598 = vunpack.c.0.s8 %v3597
        %v3599 = vperm.slane %v3591, %v3598
        %v3600 = vrot.slane %v3587, 4
        %v3601 = vsel %vm378, %v3600, %v3577
        %v3602 = vrot.slane %v3577, 4
        %v3603 = vsel %vm378, %v3587, %v3602
        %v3605 = vunpack.c.l.s4 1934713408
        %v3606 = vunpack.c.0.s8 %v3605
        %v3607 = vperm.slane %v3601, %v3606
        %v3609 = vunpack.c.l.s4 1934713408
        %v3610 = vunpack.c.0.s8 %v3609
        %v3611 = vperm.slane %v3603, %v3610
        %v3612 = vrot.slane %v3595, 4
        %v3613 = vsel %vm378, 0.0, %v3612
        %v3614 = vrot.slane %v3599, 4
        %v3615 = vsel %vm378, 0.0, %v3614
        %v3616 = vrot.slane %v3607, 4
        %v3617 = vsel %vm378, 0.0, %v3616
        %v3618 = vrot.slane %v3611, 4
        %v3619 = vsel %vm378, 0.0, %v3618
        %v3620 = vrot.slane %v3247, 4
        %v3621 = vsel %vm378, 0.0, %v3620
        %v3623 = vunpack.c.l.s4 1983009808
        %v3624 = vunpack.c.0.s8 %v3623
        %v3625 = vperm.slane %v3247, %v3624
        %v3627 = vunpack.c.l.s4 1983009808
        %v3628 = vunpack.c.0.s8 %v3627
        %v3629 = vperm.slane %v3621, %v3628
        %v3630 = vrot.slane %v3255, 4
        %v3631 = vsel %vm378, 0.0, %v3630
        %v3633 = vunpack.c.l.s4 1983009808
        %v3634 = vunpack.c.0.s8 %v3633
        %v3635 = vperm.slane %v3255, %v3634
        %v3637 = vunpack.c.l.s4 1983009808
        %v3638 = vunpack.c.0.s8 %v3637
        %v3639 = vperm.slane %v3631, %v3638
        %v3640 = vrot.slane %v3635, 4
        %v3641 = vsel %vm378, %v3640, %v3625
        %v3642 = vrot.slane %v3625, 4
        %v3643 = vsel %vm378, %v3635, %v3642
        %v3645 = vunpack.c.l.s4 1934713408
        %v3646 = vunpack.c.0.s8 %v3645
        %v3647 = vperm.slane %v3641, %v3646
        %v3649 = vunpack.c.l.s4 1934713408
        %v3650 = vunpack.c.0.s8 %v3649
        %v3651 = vperm.slane %v3643, %v3650
        %v3652 = vrot.slane %v3639, 4
        %v3653 = vsel %vm378, %v3652, %v3629
        %v3654 = vrot.slane %v3629, 4
        %v3655 = vsel %vm378, %v3639, %v3654
        %v3657 = vunpack.c.l.s4 1934713408
        %v3658 = vunpack.c.0.s8 %v3657
        %v3659 = vperm.slane %v3653, %v3658
        %v3661 = vunpack.c.l.s4 1934713408
        %v3662 = vunpack.c.0.s8 %v3661
        %v3663 = vperm.slane %v3655, %v3662
        %v3664 = vrot.slane %v3647, 4
        %v3665 = vsel %vm378, 0.0, %v3664
        %v3666 = vrot.slane %v3651, 4
        %v3667 = vsel %vm378, 0.0, %v3666
        %v3668 = vrot.slane %v3659, 4
        %v3669 = vsel %vm378, 0.0, %v3668
        %v3670 = vrot.slane %v3663, 4
        %v3671 = vsel %vm378, 0.0, %v3670
        %v3672 = vsel %vm378, %v3302, %v3283
        %v3674 = vunpack.c.l.s4 1983009808
        %v3675 = vunpack.c.0.s8 %v3674
        %v3676 = vperm.slane %v3672, %v3675
        %v3677 = vrot.slane %v3303, 4
        %v3678 = vsel %vm378, %v3677, %v3301
        %v3680 = vunpack.c.l.s4 1983009808
        %v3681 = vunpack.c.0.s8 %v3680
        %v3682 = vperm.slane %v3678, %v3681
        %v3683 = vsel %vm378, %v3306, %v3295
        %v3685 = vunpack.c.l.s4 1983009808
        %v3686 = vunpack.c.0.s8 %v3685
        %v3687 = vperm.slane %v3683, %v3686
        %v3688 = vrot.slane %v3307, 4
        %v3689 = vsel %vm378, %v3688, %v3305
        %v3691 = vunpack.c.l.s4 1983009808
        %v3692 = vunpack.c.0.s8 %v3691
        %v3693 = vperm.slane %v3689, %v3692
        %v3694 = vrot.slane %v3682, 4
        %v3695 = vsel %vm378, %v3694, %v3676
        %v3697 = vunpack.c.l.s4 1934713408
        %v3698 = vunpack.c.0.s8 %v3697
        %v3699 = vperm.slane %v3695, %v3698
        %v3700 = vrot.slane %v3693, 4
        %v3701 = vsel %vm378, %v3700, %v3687
        %v3703 = vunpack.c.l.s4 1934713408
        %v3704 = vunpack.c.0.s8 %v3703
        %v3705 = vperm.slane %v3701, %v3704
        %v3706 = vrot.slane %v3705, 4
        %v3707 = vsel %vm378, %v3706, %v3699
        %v3708 = vrot.slane %v3699, 4
        %v3709 = vsel %vm378, %v3705, %v3708
        %v3710 = vsel %vm378, %v3354, %v3335
        %v3712 = vunpack.c.l.s4 1983009808
        %v3713 = vunpack.c.0.s8 %v3712
        %v3714 = vperm.slane %v3710, %v3713
        %v3715 = vrot.slane %v3355, 4
        %v3716 = vsel %vm378, %v3715, %v3353
        %v3718 = vunpack.c.l.s4 1983009808
        %v3719 = vunpack.c.0.s8 %v3718
        %v3720 = vperm.slane %v3716, %v3719
        %v3721 = vsel %vm378, %v3358, %v3347
        %v3723 = vunpack.c.l.s4 1983009808
        %v3724 = vunpack.c.0.s8 %v3723
        %v3725 = vperm.slane %v3721, %v3724
        %v3726 = vrot.slane %v3359, 4
        %v3727 = vsel %vm378, %v3726, %v3357
        %v3729 = vunpack.c.l.s4 1983009808
        %v3730 = vunpack.c.0.s8 %v3729
        %v3731 = vperm.slane %v3727, %v3730
        %v3732 = vrot.slane %v3720, 4
        %v3733 = vsel %vm378, %v3732, %v3714
        %v3735 = vunpack.c.l.s4 1934713408
        %v3736 = vunpack.c.0.s8 %v3735
        %v3737 = vperm.slane %v3733, %v3736
        %v3738 = vrot.slane %v3731, 4
        %v3739 = vsel %vm378, %v3738, %v3725
        %v3741 = vunpack.c.l.s4 1934713408
        %v3742 = vunpack.c.0.s8 %v3741
        %v3743 = vperm.slane %v3739, %v3742
        %v3744 = vrot.slane %v3743, 4
        %v3745 = vsel %vm378, %v3744, %v3737
        %v3746 = vrot.slane %v3737, 4
        %v3747 = vsel %vm378, %v3743, %v3746
        %v3748 = vsel %vm378, %v3406, %v3387
        %v3750 = vunpack.c.l.s4 1983009808
        %v3751 = vunpack.c.0.s8 %v3750
        %v3752 = vperm.slane %v3748, %v3751
        %v3753 = vrot.slane %v3407, 4
        %v3754 = vsel %vm378, %v3753, %v3405
        %v3756 = vunpack.c.l.s4 1983009808
        %v3757 = vunpack.c.0.s8 %v3756
        %v3758 = vperm.slane %v3754, %v3757
        %v3759 = vsel %vm378, %v3410, %v3399
        %v3761 = vunpack.c.l.s4 1983009808
        %v3762 = vunpack.c.0.s8 %v3761
        %v3763 = vperm.slane %v3759, %v3762
        %v3764 = vrot.slane %v3411, 4
        %v3765 = vsel %vm378, %v3764, %v3409
        %v3767 = vunpack.c.l.s4 1983009808
        %v3768 = vunpack.c.0.s8 %v3767
        %v3769 = vperm.slane %v3765, %v3768
        %v3770 = vrot.slane %v3758, 4
        %v3771 = vsel %vm378, %v3770, %v3752
        %v3773 = vunpack.c.l.s4 1934713408
        %v3774 = vunpack.c.0.s8 %v3773
        %v3775 = vperm.slane %v3771, %v3774
        %v3776 = vrot.slane %v3769, 4
        %v3777 = vsel %vm378, %v3776, %v3763
        %v3779 = vunpack.c.l.s4 1934713408
        %v3780 = vunpack.c.0.s8 %v3779
        %v3781 = vperm.slane %v3777, %v3780
        %v3782 = vrot.slane %v3781, 4
        %v3783 = vsel %vm378, %v3782, %v3775
        %v3784 = vrot.slane %v3775, 4
        %v3785 = vsel %vm378, %v3781, %v3784
        %v3786 = vsel %vm378, %v3458, %v3439
        %v3788 = vunpack.c.l.s4 1983009808
        %v3789 = vunpack.c.0.s8 %v3788
        %v3790 = vperm.slane %v3786, %v3789
        %v3791 = vrot.slane %v3459, 4
        %v3792 = vsel %vm378, %v3791, %v3457
        %v3794 = vunpack.c.l.s4 1983009808
        %v3795 = vunpack.c.0.s8 %v3794
        %v3796 = vperm.slane %v3792, %v3795
        %v3797 = vsel %vm378, %v3462, %v3451
        %v3799 = vunpack.c.l.s4 1983009808
        %v3800 = vunpack.c.0.s8 %v3799
        %v3801 = vperm.slane %v3797, %v3800
        %v3802 = vrot.slane %v3463, 4
        %v3803 = vsel %vm378, %v3802, %v3461
        %v3805 = vunpack.c.l.s4 1983009808
        %v3806 = vunpack.c.0.s8 %v3805
        %v3807 = vperm.slane %v3803, %v3806
        %v3808 = vrot.slane %v3796, 4
        %v3809 = vsel %vm378, %v3808, %v3790
        %v3811 = vunpack.c.l.s4 1934713408
        %v3812 = vunpack.c.0.s8 %v3811
        %v3813 = vperm.slane %v3809, %v3812
        %v3814 = vrot.slane %v3807, 4
        %v3815 = vsel %vm378, %v3814, %v3801
        %v3817 = vunpack.c.l.s4 1934713408
        %v3818 = vunpack.c.0.s8 %v3817
        %v3819 = vperm.slane %v3815, %v3818
        %v3820 = vrot.slane %v3819, 4
        %v3821 = vsel %vm378, %v3820, %v3813
        %v3822 = vrot.slane %v3813, 4
        %v3823 = vsel %vm378, %v3819, %v3822
        %v3824 = vsel %vm378, %v3510, %v3491
        %v3826 = vunpack.c.l.s4 1983009808
        %v3827 = vunpack.c.0.s8 %v3826
        %v3828 = vperm.slane %v3824, %v3827
        %v3829 = vrot.slane %v3511, 4
        %v3830 = vsel %vm378, %v3829, %v3509
        %v3832 = vunpack.c.l.s4 1983009808
        %v3833 = vunpack.c.0.s8 %v3832
        %v3834 = vperm.slane %v3830, %v3833
        %v3835 = vsel %vm378, %v3514, %v3503
        %v3837 = vunpack.c.l.s4 1983009808
        %v3838 = vunpack.c.0.s8 %v3837
        %v3839 = vperm.slane %v3835, %v3838
        %v3840 = vrot.slane %v3515, 4
        %v3841 = vsel %vm378, %v3840, %v3513
        %v3843 = vunpack.c.l.s4 1983009808
        %v3844 = vunpack.c.0.s8 %v3843
        %v3845 = vperm.slane %v3841, %v3844
        %v3846 = vrot.slane %v3834, 4
        %v3847 = vsel %vm378, %v3846, %v3828
        %v3849 = vunpack.c.l.s4 1934713408
        %v3850 = vunpack.c.0.s8 %v3849
        %v3851 = vperm.slane %v3847, %v3850
        %v3852 = vrot.slane %v3845, 4
        %v3853 = vsel %vm378, %v3852, %v3839
        %v3855 = vunpack.c.l.s4 1934713408
        %v3856 = vunpack.c.0.s8 %v3855
        %v3857 = vperm.slane %v3853, %v3856
        %v3858 = vrot.slane %v3857, 4
        %v3859 = vsel %vm378, %v3858, %v3851
        %v3860 = vrot.slane %v3851, 4
        %v3861 = vsel %vm378, %v3857, %v3860
        %v3862 = vsel %vm378, %v3562, %v3543
        %v3864 = vunpack.c.l.s4 1983009808
        %v3865 = vunpack.c.0.s8 %v3864
        %v3866 = vperm.slane %v3862, %v3865
        %v3867 = vrot.slane %v3563, 4
        %v3868 = vsel %vm378, %v3867, %v3561
        %v3870 = vunpack.c.l.s4 1983009808
        %v3871 = vunpack.c.0.s8 %v3870
        %v3872 = vperm.slane %v3868, %v3871
        %v3873 = vsel %vm378, %v3566, %v3555
        %v3875 = vunpack.c.l.s4 1983009808
        %v3876 = vunpack.c.0.s8 %v3875
        %v3877 = vperm.slane %v3873, %v3876
        %v3878 = vrot.slane %v3567, 4
        %v3879 = vsel %vm378, %v3878, %v3565
        %v3881 = vunpack.c.l.s4 1983009808
        %v3882 = vunpack.c.0.s8 %v3881
        %v3883 = vperm.slane %v3879, %v3882
        %v3884 = vrot.slane %v3872, 4
        %v3885 = vsel %vm378, %v3884, %v3866
        %v3887 = vunpack.c.l.s4 1934713408
        %v3888 = vunpack.c.0.s8 %v3887
        %v3889 = vperm.slane %v3885, %v3888
        %v3890 = vrot.slane %v3883, 4
        %v3891 = vsel %vm378, %v3890, %v3877
        %v3893 = vunpack.c.l.s4 1934713408
        %v3894 = vunpack.c.0.s8 %v3893
        %v3895 = vperm.slane %v3891, %v3894
        %v3896 = vrot.slane %v3895, 4
        %v3897 = vsel %vm378, %v3896, %v3889
        %v3898 = vrot.slane %v3889, 4
        %v3899 = vsel %vm378, %v3895, %v3898
        %v3900 = vsel %vm378, %v3614, %v3595
        %v3902 = vunpack.c.l.s4 1983009808
        %v3903 = vunpack.c.0.s8 %v3902
        %v3904 = vperm.slane %v3900, %v3903
        %v3905 = vrot.slane %v3615, 4
        %v3906 = vsel %vm378, %v3905, %v3613
        %v3908 = vunpack.c.l.s4 1983009808
        %v3909 = vunpack.c.0.s8 %v3908
        %v3910 = vperm.slane %v3906, %v3909
        %v3911 = vsel %vm378, %v3618, %v3607
        %v3913 = vunpack.c.l.s4 1983009808
        %v3914 = vunpack.c.0.s8 %v3913
        %v3915 = vperm.slane %v3911, %v3914
        %v3916 = vrot.slane %v3619, 4
        %v3917 = vsel %vm378, %v3916, %v3617
        %v3919 = vunpack.c.l.s4 1983009808
        %v3920 = vunpack.c.0.s8 %v3919
        %v3921 = vperm.slane %v3917, %v3920
        %v3922 = vrot.slane %v3910, 4
        %v3923 = vsel %vm378, %v3922, %v3904
        %v3925 = vunpack.c.l.s4 1934713408
        %v3926 = vunpack.c.0.s8 %v3925
        %v3927 = vperm.slane %v3923, %v3926
        %v3928 = vrot.slane %v3921, 4
        %v3929 = vsel %vm378, %v3928, %v3915
        %v3931 = vunpack.c.l.s4 1934713408
        %v3932 = vunpack.c.0.s8 %v3931
        %v3933 = vperm.slane %v3929, %v3932
        %v3934 = vrot.slane %v3933, 4
        %v3935 = vsel %vm378, %v3934, %v3927
        %v3936 = vrot.slane %v3927, 4
        %v3937 = vsel %vm378, %v3933, %v3936
        %v3938 = vsel %vm378, %v3666, %v3647
        %v3940 = vunpack.c.l.s4 1983009808
        %v3941 = vunpack.c.0.s8 %v3940
        %v3942 = vperm.slane %v3938, %v3941
        %v3943 = vrot.slane %v3667, 4
        %v3944 = vsel %vm378, %v3943, %v3665
        %v3946 = vunpack.c.l.s4 1983009808
        %v3947 = vunpack.c.0.s8 %v3946
        %v3948 = vperm.slane %v3944, %v3947
        %v3949 = vsel %vm378, %v3670, %v3659
        %v3951 = vunpack.c.l.s4 1983009808
        %v3952 = vunpack.c.0.s8 %v3951
        %v3953 = vperm.slane %v3949, %v3952
        %v3954 = vrot.slane %v3671, 4
        %v3955 = vsel %vm378, %v3954, %v3669
        %v3957 = vunpack.c.l.s4 1983009808
        %v3958 = vunpack.c.0.s8 %v3957
        %v3959 = vperm.slane %v3955, %v3958
        %v3960 = vrot.slane %v3948, 4
        %v3961 = vsel %vm378, %v3960, %v3942
        %v3963 = vunpack.c.l.s4 1934713408
        %v3964 = vunpack.c.0.s8 %v3963
        %v3965 = vperm.slane %v3961, %v3964
        %v3966 = vrot.slane %v3959, 4
        %v3967 = vsel %vm378, %v3966, %v3953
        %v3969 = vunpack.c.l.s4 1934713408
        %v3970 = vunpack.c.0.s8 %v3969
        %v3971 = vperm.slane %v3967, %v3970
        %v3972 = vrot.slane %v3971, 4
        %v3973 = vsel %vm378, %v3972, %v3965
        %v3974 = vrot.slane %v3965, 4
        %v3975 = vsel %vm378, %v3971, %v3974
        %3984 = vrot.lane.b32.xlu0 %v3709, 8
        %v3985 = vpop.permute.xlu0 %3984
        %3986 = vrot.lane.b32.xlu0 %v3747, 8
        %v3987 = vpop.permute.xlu0 %3986
        %3988 = vrot.lane.b32.xlu0 %v3785, 8
        %v3989 = vpop.permute.xlu0 %3988
        %3990 = vrot.lane.b32.xlu0 %v3823, 8
        %v3991 = vpop.permute.xlu0 %3990
        %3992 = vrot.lane.b32.xlu0 %v3861, 8
        %v3993 = vpop.permute.xlu0 %3992
        %3994 = vrot.lane.b32.xlu0 %v3899, 8
        %v3995 = vpop.permute.xlu0 %3994
        %3996 = vrot.lane.b32.xlu0 %v3937, 8
        %v3997 = vpop.permute.xlu0 %3996
        %3998 = vrot.lane.b32.xlu0 %v3975, 8
        %v3999 = vpop.permute.xlu0 %3998
        %v4008 = vsel %vm2746, %v3707, %v3985
        %v4009 = vsel %vm2746, %v3745, %v3987
        %v4010 = vsel %vm2746, %v3783, %v3989
        %v4011 = vsel %vm2746, %v3821, %v3991
        %v4012 = vsel %vm2746, %v3859, %v3993
        %v4013 = vsel %vm2746, %v3897, %v3995
        %v4014 = vsel %vm2746, %v3935, %v3997
        %v4015 = vsel %vm2746, %v3973, %v3999
        %vm4016 = vcmask 130048
        %4017 = vst.msk [vmem:[%s259] sm:$0xff] %vm4016, %v4008
        %4018 = vst.msk [vmem:[%s259 + $0x8] sm:$0xff] %vm4016, %v4009
        %4019 = vst.msk [vmem:[%s259 + $0x10] sm:$0xff] %vm4016, %v4010
        %4020 = vst.msk [vmem:[%s259 + $0x18] sm:$0xff] %vm4016, %v4011
        %4021 = vst.msk [vmem:[%s259 + $0x20] sm:$0xff] %vm4016, %v4012
        %4022 = vst.msk [vmem:[%s259 + $0x28] sm:$0xff] %vm4016, %v4013
        %4023 = vst.msk [vmem:[%s259 + $0x30] sm:$0xff] %vm4016, %v4014
        %4024 = vst.msk [vmem:[%s259 + $0x38] sm:$0xff] %vm4016, %v4015
        %s4025 = sand.u32 %s117, 1
        %s4026 = sand.u32 %s117, 1
        %s4027 = smul.addr %s4026, 64
        %s4028 = scalar_lea.vmem [#allocation3], %s4027
        // Predicated region
        $region71: #{transformer_stage.7} parent=65 // pred_check
          %p4029 = pneg %p127
        $region72: #{transformer_stage.7} parent=65 // pred_check_branch
          %4031 = sbr.rel (%p4029) target = $region74
        $region73: #{transformer_stage.7} parent=65 // pred_region
          %s4032 = smul.u32 8, %s20
          %s4033 = smul.addr %s4032, 2
          %s4034 = sadd.s32 %s21, %s4033
          %s4035 = smul.addr %s19, 32
          %s4036 = sadd.s32 %s4034, %s4035
          %s4037 = smul.addr %s4036, 8
          %s4038 = scalar_lea.vmem %s3, %s4037
          // Predicated region
          $region75: #{transformer_stage.7} parent=73 // pred_check
            _
          $region76: #{transformer_stage.7} parent=73 // pred_check_branch
            %4040 = sbr.rel (0) target = $region78
          $region77: #{transformer_stage.7} parent=73 // pred_region
            // Predicated region
            $region79: #{transformer_stage.7} parent=77 // pred_check
              _
            $region80: #{transformer_stage.7} parent=77 // pred_check_branch
              %4042 = sbr.rel (0) target = $region82
            $region81: #{transformer_stage.7} parent=77 // pred_region
              // Predicated region
              $region94: #{transformer_stage.7} parent=81 // pred_check
                _
              $region95: #{transformer_stage.7} parent=81 // pred_check_branch
                %4072 = sbr.rel (0) target = $region97
              $region96: #{transformer_stage.7} parent=81 // pred_region
                loop: start=0, step=1, limit=1
                $region98: #{transformer_stage.7} parent=96 // loop_pre_header
                  _
                $region99: #{transformer_stage.7} parent=96 // loop_header
                  %s4074 = sphi 0, %s4078
                  %p4075 = scmp.ge.s32.totalorder %s4074, 1
                  %s4079 = sphi %s4028, %s4028
                  %s4080 = sphi %s4038, %s4038
                $region100: #{transformer_stage.7} parent=96 // loop_header_branch
                  %4077 = sbr.rel (%p4075) target = $region104
                $region101: #{transformer_stage.7} parent=96 // loop_body
                  %v4081 = vld [vmem:[%s4079] sm:$0xff]
                  %4082 = vst [vmem:[%s4080] sm:$0xff] %v4081
                  %v4083 = vld [vmem:[%s4079 + $0x8] sm:$0xff]
                  %4084 = vst [vmem:[%s4080 + $0x10] sm:$0xff] %v4083
                  %v4085 = vld [vmem:[%s4079 + $0x10] sm:$0xff]
                  %4086 = vst [vmem:[%s4080 + $0x20] sm:$0xff] %v4085
                  %v4087 = vld [vmem:[%s4079 + $0x18] sm:$0xff]
                  %4088 = vst [vmem:[%s4080 + $0x30] sm:$0xff] %v4087
                  %v4089 = vld [vmem:[%s4079 + $0x20] sm:$0xff]
                  %4090 = vst [vmem:[%s4080 + $0x40] sm:$0xff] %v4089
                  %v4091 = vld [vmem:[%s4079 + $0x28] sm:$0xff]
                  %4092 = vst [vmem:[%s4080 + $0x50] sm:$0xff] %v4091
                  %v4093 = vld [vmem:[%s4079 + $0x30] sm:$0xff]
                  %4094 = vst [vmem:[%s4080 + $0x60] sm:$0xff] %v4093
                  %v4095 = vld [vmem:[%s4079 + $0x38] sm:$0xff]
                  %4096 = vst [vmem:[%s4080 + $0x70] sm:$0xff] %v4095
                $region102: #{transformer_stage.7} parent=96 // loop_footer
                  %s4078 = sadd.s32 1, %s4074
                $region103: #{transformer_stage.7} parent=96 // loop_footer_branch
                  %4073 = sbr.rel target = $region99
                $region104: #{transformer_stage.7} parent=96 // loop_exit
                  _
              $region97: #{transformer_stage.7} parent=81 // pred_fallthru
                _
              // Predicated region
              $region105: #{transformer_stage.7} parent=81 // pred_check
                _
              $region106: #{transformer_stage.7} parent=81 // pred_check_branch
                %4098 = sbr.rel target = $region108
              $region107: #{transformer_stage.7} parent=81 // pred_region
                _
              $region108: #{transformer_stage.7} parent=81 // pred_fallthru
                _
            $region82: #{transformer_stage.7} parent=77 // pred_fallthru
              _
            // Predicated region
            $region83: #{transformer_stage.7} parent=77 // pred_check
              _
            $region84: #{transformer_stage.7} parent=77 // pred_check_branch
              %4044 = sbr.rel target = $region86
            $region85: #{transformer_stage.7} parent=77 // pred_region
              %s4046 = ssub.s32 256, 1
              loop: start=0, step=1, limit=1
              $region87: #{transformer_stage.7} parent=85 // loop_pre_header
                _
              $region88: #{transformer_stage.7} parent=85 // loop_header
                %s4048 = sphi 0, %s4052
                %p4049 = scmp.ge.s32.totalorder %s4048, 1
                %s4053 = sphi %s4028, %s4028
                %s4054 = sphi %s4038, %s4038
              $region89: #{transformer_stage.7} parent=85 // loop_header_branch
                %4051 = sbr.rel (%p4049) target = $region93
              $region90: #{transformer_stage.7} parent=85 // loop_body
                %v4055 = vld [vmem:[%s4053] sm:%s4046]
                %4056 = vst [vmem:[%s4054] sm:%s4046] %v4055
                %v4057 = vld [vmem:[%s4053 + $0x8] sm:%s4046]
                %4058 = vst [vmem:[%s4054 + $0x10] sm:%s4046] %v4057
                %v4059 = vld [vmem:[%s4053 + $0x10] sm:%s4046]
                %4060 = vst [vmem:[%s4054 + $0x20] sm:%s4046] %v4059
                %v4061 = vld [vmem:[%s4053 + $0x18] sm:%s4046]
                %4062 = vst [vmem:[%s4054 + $0x30] sm:%s4046] %v4061
                %v4063 = vld [vmem:[%s4053 + $0x20] sm:%s4046]
                %4064 = vst [vmem:[%s4054 + $0x40] sm:%s4046] %v4063
                %v4065 = vld [vmem:[%s4053 + $0x28] sm:%s4046]
                %4066 = vst [vmem:[%s4054 + $0x50] sm:%s4046] %v4065
                %v4067 = vld [vmem:[%s4053 + $0x30] sm:%s4046]
                %4068 = vst [vmem:[%s4054 + $0x60] sm:%s4046] %v4067
                %v4069 = vld [vmem:[%s4053 + $0x38] sm:%s4046]
                %4070 = vst [vmem:[%s4054 + $0x70] sm:%s4046] %v4069
              $region91: #{transformer_stage.7} parent=85 // loop_footer
                %s4052 = sadd.s32 1, %s4048
              $region92: #{transformer_stage.7} parent=85 // loop_footer_branch
                %4047 = sbr.rel target = $region88
              $region93: #{transformer_stage.7} parent=85 // loop_exit
                _
            $region86: #{transformer_stage.7} parent=77 // pred_fallthru
              _
          $region78: #{transformer_stage.7} parent=73 // pred_fallthru
            _
          %4099 = vnop
        $region74: #{transformer_stage.7} parent=65 // pred_fallthru
          _
      $region66: #{transformer_stage.7} parent=5 // pred_fallthru
        _
      %p4100 = scmp.le.s32.totalorder 2, %s9
      // Predicated region
      $region109: #{transformer_stage.7} parent=5 // pred_check
        %p4101 = pneg %p4100
      $region110: #{transformer_stage.7} parent=5 // pred_check_branch
        %4103 = sbr.rel (%p4101) target = $region112
      $region111: #{transformer_stage.7} parent=5 // pred_region
        %s4104 = ssub.s32 %s9, 2
        // Predicated region
        $region113: #{transformer_stage.7} parent=111 // pred_check
          %p4105 = pneg %p133
        $region114: #{transformer_stage.7} parent=111 // pred_check_branch
          %4107 = sbr.rel (%p4105) target = $region116
        $region115: #{transformer_stage.7} parent=111 // pred_region
          %s4108 = sand.u32 %s118, 1
          %s4109 = sand.u32 %s118, 1
          %s4110 = smul.addr %s4109, 64
          %s4111 = scalar_lea.vmem [#allocation3], %s4110
        $region116: #{transformer_stage.7} parent=111 // pred_fallthru
          _
      $region112: #{transformer_stage.7} parent=5 // pred_fallthru
        _
    $region6: #{transformer_stage.7} parent=1 // loop_footer
      %s13 = sadd.s32 1, %s9
    $region7: #{transformer_stage.7} parent=1 // loop_footer_branch
      %8 = sbr.rel target = $region3
    $region8: #{transformer_stage.7} parent=1 // loop_exit
      _

// kernel: transformer_stage.13
$region0: #{transformer_stage.13}
  #allocation0 [shape = 'u32[]', space=smem, size = 0x4, offset = 0x4, fixed_abs, tag = 'smem constant byte address 0x4 - core index']
  #allocation1 [shape = 'u32[72,128]{1,0:T(1,128)}', space=vmem, size = 0x9000, scoped, tag = 'internal scratch']
  %s0 = inlined_call_operand.vmem [shape: bf16[2,18,18,32], index: 0, kind: input, shape index: {}]
  %s1 = inlined_call_operand.vmem [shape: f32[2,256,32], index: 1, kind: input, shape index: {}]
  %s2 = inlined_call_operand.vmem [shape: bf16[288,32], index: 2, kind: input, shape index: {}]
  %s3 = inlined_call_operand.vmem [shape: f32[1,32], index: 3, kind: input, shape index: {}]
  %s4 = inlined_call_operand.vmem [shape: f32[2,256,32], index: 4, kind: output, shape index: {}]
  %s5 = sld [smem:[#allocation0]]
  $region49: #{transformer_stage.13} parent=0
    _
  %s7 = ssub.s32 1, %s5
  %s8 = scalar_select 0, %s7, %s5
  loop: start=0, step=1, limit=4
  $region2: #{transformer_stage.13} parent=0 // loop_pre_header
    _
  $region3: #{transformer_stage.13} parent=0 // loop_header
    %s10 = sphi 0, %s14
    %p11 = scmp.ge.s32.totalorder %s10, 4
    %s20 = sphi 0, %s22
    %s23 = sphi 0, %s20
    %s24 = sphi 0, %s23
    %s40 = sphi 0, %s24
    %s46 = sphi 0, %s48
    %s49 = sphi 0, %s46
    %s50 = sphi 0, %s49
    %s66 = sphi 0, %s50
    %s70 = sphi 0, %s70
    %s72 = sphi 0, %s70
    %s73 = sphi 0, %s72
    %s87 = sphi 0, %s73
    %s91 = sphi 0, %s91
    %s93 = sphi 0, %s91
    %s94 = sphi 0, %s93
    %s108 = sphi 0, %s94
    %s114 = sphi 0, %s116
    %s117 = sphi 0, %s114
    %s118 = sphi 0, %s117
    %s134 = sphi 0, %s118
  $region4: #{transformer_stage.13} parent=0 // loop_header_branch
    %13 = sbr.rel (%p11) target = $region8
  $region5: #{transformer_stage.13} parent=0 // loop_body
    %s15 = ssub.s32 %s10, 1
    %s16 = ssub.s32 %s10, 2
    %s17 = sadd.s32 %s10, 1
    %s18 = ssub.s32 %s10, %s17
    %p19 = scmp.eq.s32.totalorder %s18, 0
    %s21 = sadd.s32 %s20, 1
    %s22 = scalar_select %p19, %s20, %s21
    %p25 = pneg %p19
    %p26 = scmp.eq.s32.totalorder %s10, 1
    %p27 = por %p25, %p26
    %p28 = scmp.ne.s32.totalorder %s20, %s23
    %p29 = scmp.eq.s32.totalorder %s10, 0
    %p30 = por %p28, %p29
    %p31 = scmp.ne.s32.totalorder %s20, %s23
    %p32 = scmp.eq.s32.totalorder %s15, 1
    %p33 = por %p31, %p32
    %p34 = scmp.ne.s32.totalorder %s23, %s24
    %p35 = scmp.eq.s32.totalorder %s15, 0
    %p36 = por %p34, %p35
    %p37 = scmp.ne.s32.totalorder %s23, %s24
    %p38 = scmp.eq.s32.totalorder %s16, 1
    %p39 = por %p37, %p38
    %p41 = scmp.ne.s32.totalorder %s24, %s40
    %p42 = scmp.eq.s32.totalorder %s16, 0
    %p43 = por %p41, %p42
    %s44 = ssub.s32 %s10, %s17
    %p45 = scmp.eq.s32.totalorder %s44, 0
    %s47 = sadd.s32 %s46, 1
    %s48 = scalar_select %p45, %s46, %s47
    %p51 = pneg %p45
    %p52 = scmp.eq.s32.totalorder %s10, 1
    %p53 = por %p51, %p52
    %p54 = scmp.ne.s32.totalorder %s46, %s49
    %p55 = scmp.eq.s32.totalorder %s10, 0
    %p56 = por %p54, %p55
    %p57 = scmp.ne.s32.totalorder %s46, %s49
    %p58 = scmp.eq.s32.totalorder %s15, 1
    %p59 = por %p57, %p58
    %p60 = scmp.ne.s32.totalorder %s49, %s50
    %p61 = scmp.eq.s32.totalorder %s15, 0
    %p62 = por %p60, %p61
    %p63 = scmp.ne.s32.totalorder %s49, %s50
    %p64 = scmp.eq.s32.totalorder %s16, 1
    %p65 = por %p63, %p64
    %p67 = scmp.ne.s32.totalorder %s50, %s66
    %p68 = scmp.eq.s32.totalorder %s16, 0
    %p69 = por %p67, %p68
    %s71 = sadd.s32 %s70, 1
    %p74 = scmp.eq.s32.totalorder %s10, 1
    %p75 = scmp.ne.s32.totalorder %s70, %s72
    %p76 = scmp.eq.s32.totalorder %s10, 0
    %p77 = por %p75, %p76
    %p78 = scmp.ne.s32.totalorder %s70, %s72
    %p79 = scmp.eq.s32.totalorder %s15, 1
    %p80 = por %p78, %p79
    %p81 = scmp.ne.s32.totalorder %s72, %s73
    %p82 = scmp.eq.s32.totalorder %s15, 0
    %p83 = por %p81, %p82
    %p84 = scmp.ne.s32.totalorder %s72, %s73
    %p85 = scmp.eq.s32.totalorder %s16, 1
    %p86 = por %p84, %p85
    %p88 = scmp.ne.s32.totalorder %s73, %s87
    %p89 = scmp.eq.s32.totalorder %s16, 0
    %p90 = por %p88, %p89
    %s92 = sadd.s32 %s91, 1
    %p95 = scmp.eq.s32.totalorder %s10, 1
    %p96 = scmp.ne.s32.totalorder %s91, %s93
    %p97 = scmp.eq.s32.totalorder %s10, 0
    %p98 = por %p96, %p97
    %p99 = scmp.ne.s32.totalorder %s91, %s93
    %p100 = scmp.eq.s32.totalorder %s15, 1
    %p101 = por %p99, %p100
    %p102 = scmp.ne.s32.totalorder %s93, %s94
    %p103 = scmp.eq.s32.totalorder %s15, 0
    %p104 = por %p102, %p103
    %p105 = scmp.ne.s32.totalorder %s93, %s94
    %p106 = scmp.eq.s32.totalorder %s16, 1
    %p107 = por %p105, %p106
    %p109 = scmp.ne.s32.totalorder %s94, %s108
    %p110 = scmp.eq.s32.totalorder %s16, 0
    %p111 = por %p109, %p110
    %s112 = ssub.s32 %s10, %s17
    %p113 = scmp.eq.s32.totalorder %s112, 0
    %s115 = sadd.s32 %s114, 1
    %s116 = scalar_select %p113, %s114, %s115
    %p119 = pneg %p113
    %p120 = scmp.eq.s32.totalorder %s10, 1
    %p121 = por %p119, %p120
    %p122 = scmp.ne.s32.totalorder %s114, %s117
    %p123 = scmp.eq.s32.totalorder %s10, 0
    %p124 = por %p122, %p123
    %p125 = scmp.ne.s32.totalorder %s114, %s117
    %p126 = scmp.eq.s32.totalorder %s15, 1
    %p127 = por %p125, %p126
    %p128 = scmp.ne.s32.totalorder %s117, %s118
    %p129 = scmp.eq.s32.totalorder %s15, 0
    %p130 = por %p128, %p129
    %p131 = scmp.ne.s32.totalorder %s117, %s118
    %p132 = scmp.eq.s32.totalorder %s16, 1
    %p133 = por %p131, %p132
    %p135 = scmp.ne.s32.totalorder %s118, %s134
    %p136 = scmp.eq.s32.totalorder %s16, 0
    %p137 = por %p135, %p136
    %p138 = scmp.le.s32.totalorder 1, %s10
    %p139 = scmp.lt.s32.totalorder %s10, 3
    %p140 = pnand %p138, %p139
    %p141 = pneg %p140
    // Predicated region
    $region9: #{transformer_stage.13} parent=5 // pred_check
      _
    $region10: #{transformer_stage.13} parent=5 // pred_check_branch
      %143 = sbr.rel (%p140) target = $region12
    $region11: #{transformer_stage.13} parent=5 // pred_region
      %s144 = ssub.s32 %s10, 1
      // Predicated region
      $region13: #{transformer_stage.13} parent=11 // pred_check
        %p145 = pneg %p83
      $region14: #{transformer_stage.13} parent=11 // pred_check_branch
        %147 = sbr.rel (%p145) target = $region16
      $region15: #{transformer_stage.13} parent=11 // pred_region
        _
      $region16: #{transformer_stage.13} parent=11 // pred_fallthru
        _
      // Predicated region
      $region17: #{transformer_stage.13} parent=11 // pred_check
        %p148 = pneg %p104
      $region18: #{transformer_stage.13} parent=11 // pred_check_branch
        %150 = sbr.rel (%p148) target = $region20
      $region19: #{transformer_stage.13} parent=11 // pred_region
        _
      $region20: #{transformer_stage.13} parent=11 // pred_fallthru
        _
    $region12: #{transformer_stage.13} parent=5 // pred_fallthru
      _
    %p151 = scmp.lt.s32.totalorder %s10, 2
    // Predicated region
    $region21: #{transformer_stage.13} parent=5 // pred_check
      %p152 = pneg %p151
    $region22: #{transformer_stage.13} parent=5 // pred_check_branch
      %154 = sbr.rel (%p152) target = $region24
    $region23: #{transformer_stage.13} parent=5 // pred_region
      // Predicated region
      $region25: #{transformer_stage.13} parent=23 // pred_check
        %p155 = pneg %p30
      $region26: #{transformer_stage.13} parent=23 // pred_check_branch
        %157 = sbr.rel (%p155) target = $region28
      $region27: #{transformer_stage.13} parent=23 // pred_region
        %p158 = scmp.lt.s32.totalorder %s10, 1
        %s159 = scalar_select %p158, %s10, 1
        %s160 = smul.addr %s159, 54
        %s161 = smul.addr %s160, 4
        %s162 = scalar_lea.vmem %s0, %s161
      $region28: #{transformer_stage.13} parent=23 // pred_fallthru
        _
      // Predicated region
      $region29: #{transformer_stage.13} parent=23 // pred_check
        %p163 = pneg %p56
      $region30: #{transformer_stage.13} parent=23 // pred_check_branch
        %165 = sbr.rel (%p163) target = $region32
      $region31: #{transformer_stage.13} parent=23 // pred_region
        %p166 = scmp.lt.s32.totalorder %s10, 1
        %s167 = scalar_select %p166, %s10, 1
        %s168 = smul.addr %s167, 32
        %s169 = smul.addr %s168, 8
        %s170 = scalar_lea.vmem %s1, %s169
      $region32: #{transformer_stage.13} parent=23 // pred_fallthru
        _
    $region24: #{transformer_stage.13} parent=5 // pred_fallthru
      _
    %p171 = scmp.le.s32.totalorder 1, %s10
    %p172 = scmp.lt.s32.totalorder %s10, 3
    %p173 = pnand %p171, %p172
    %p174 = pneg %p173
    // Predicated region
    $region33: #{transformer_stage.13} parent=5 // pred_check
      _
    $region34: #{transformer_stage.13} parent=5 // pred_check_branch
      %176 = sbr.rel (%p173) target = $region36
    $region35: #{transformer_stage.13} parent=5 // pred_region
      %s177 = ssub.s32 %s10, 1
      %p178 = scmp.lt.s32.totalorder %s15, 1
      %s179 = scalar_select %p178, %s15, 1
      %s180 = smul.addr %s179, 54
      %s181 = smul.addr %s180, 4
      %s182 = scalar_lea.vmem %s0, %s181
      %p183 = pneg %p36
      %p184 = pneg %p33
      %p185 = scmp.lt.s32.totalorder %s15, 1
      %s186 = scalar_select %p185, %s15, 1
      %s187 = smul.addr %s186, 32
      %s188 = smul.addr %s187, 8
      %s189 = scalar_lea.vmem %s1, %s188
      %p190 = pneg %p62
      %p191 = pneg %p59
      %p192 = pneg %p83
      %p193 = pneg %p80
      %p194 = pneg %p104
      %p195 = pneg %p101
      %p196 = pneg %p130
      %p197 = pneg %p127
      %p198 = scmp.lt.s32.totalorder %s15, 1
      %s199 = scalar_select %p198, %s15, 1
      %s200 = smul.addr %s199, 32
      %s201 = smul.addr %s200, 8
      %s202 = scalar_lea.vmem %s4, %s201
      %p203 = scmp.lt.s32.totalorder %s15, 1
      %s204 = scalar_select %p203, %s15, 1
      %s205 = smul.addr %s204, 54
      %s206 = smul.addr %s205, 4
      %s207 = scalar_lea.vmem %s0, %s206
      %p208 = scmp.lt.s32.totalorder %s15, 1
      %s209 = scalar_select %p208, %s15, 1
      %s210 = smul.addr %s209, 32
      %s211 = smul.addr %s210, 8
      %s212 = scalar_lea.vmem %s1, %s211
      %p213 = scmp.lt.s32.totalorder %s15, 1
      %s214 = scalar_select %p213, %s15, 1
      %s215 = smul.addr %s214, 32
      %s216 = smul.addr %s215, 8
      %s217 = scalar_lea.vmem %s4, %s216
      %v219 = vld [vmem:[%s207] sm:$0xf]
      %v220 = vld [vmem:[%s207 + $0x4] sm:$0xf]
      %v221 = vld [vmem:[%s207 + $0x8] sm:$0x1]
      %v222 = vld [vmem:[%s207 + $0xc] sm:$0xf]
      %v223 = vld [vmem:[%s207 + $0x10] sm:$0xf]
      %v224 = vld [vmem:[%s207 + $0x14] sm:$0x1]
      %v225 = vld [vmem:[%s207 + $0x18] sm:$0xf]
      %v226 = vld [vmem:[%s207 + $0x1c] sm:$0xf]
      %v227 = vld [vmem:[%s207 + $0x20] sm:$0x1]
      %v228 = vld [vmem:[%s207 + $0x24] sm:$0xf]
      %v229 = vld [vmem:[%s207 + $0x28] sm:$0xf]
      %v230 = vld [vmem:[%s207 + $0x2c] sm:$0x1]
      %v231 = vld [vmem:[%s207 + $0x30] sm:$0xf]
      %v232 = vld [vmem:[%s207 + $0x34] sm:$0xf]
      %v233 = vld [vmem:[%s207 + $0x38] sm:$0x1]
      %v234 = vld [vmem:[%s207 + $0x3c] sm:$0xf]
      %v235 = vld [vmem:[%s207 + $0x40] sm:$0xf]
      %v236 = vld [vmem:[%s207 + $0x44] sm:$0x1]
      %v237 = vld [vmem:[%s207 + $0x48] sm:$0xf]
      %v238 = vld [vmem:[%s207 + $0x4c] sm:$0xf]
      %v239 = vld [vmem:[%s207 + $0x50] sm:$0x1]
      %v240 = vld [vmem:[%s207 + $0x54] sm:$0xf]
      %v241 = vld [vmem:[%s207 + $0x58] sm:$0xf]
      %v242 = vld [vmem:[%s207 + $0x5c] sm:$0x1]
      %v243 = vld [vmem:[%s207 + $0x60] sm:$0xf]
      %v244 = vld [vmem:[%s207 + $0x64] sm:$0xf]
      %v245 = vld [vmem:[%s207 + $0x68] sm:$0x1]
      %v246 = vld [vmem:[%s207 + $0x6c] sm:$0xf]
      %v247 = vld [vmem:[%s207 + $0x70] sm:$0xf]
      %v248 = vld [vmem:[%s207 + $0x74] sm:$0x1]
      %v249 = vld [vmem:[%s207 + $0x78] sm:$0xf]
      %v250 = vld [vmem:[%s207 + $0x7c] sm:$0xf]
      %v251 = vld [vmem:[%s207 + $0x80] sm:$0x1]
      %v252 = vld [vmem:[%s207 + $0x84] sm:$0xf]
      %v253 = vld [vmem:[%s207 + $0x88] sm:$0xf]
      %v254 = vld [vmem:[%s207 + $0x8c] sm:$0x1]
      %v255 = vld [vmem:[%s207 + $0x90] sm:$0xf]
      %v256 = vld [vmem:[%s207 + $0x94] sm:$0xf]
      %v257 = vld [vmem:[%s207 + $0x98] sm:$0x1]
      %v258 = vld [vmem:[%s207 + $0x9c] sm:$0xf]
      %v259 = vld [vmem:[%s207 + $0xa0] sm:$0xf]
      %v260 = vld [vmem:[%s207 + $0xa4] sm:$0x1]
      %v261 = vld [vmem:[%s207 + $0xa8] sm:$0xf]
      %v262 = vld [vmem:[%s207 + $0xac] sm:$0xf]
      %v263 = vld [vmem:[%s207 + $0xb0] sm:$0x1]
      %v264 = vld [vmem:[%s207 + $0xb4] sm:$0xf]
      %v265 = vld [vmem:[%s207 + $0xb8] sm:$0xf]
      %v266 = vld [vmem:[%s207 + $0xbc] sm:$0x1]
      %v267 = vld [vmem:[%s207 + $0xc0] sm:$0xf]
      %v268 = vld [vmem:[%s207 + $0xc4] sm:$0xf]
      %v269 = vld [vmem:[%s207 + $0xc8] sm:$0x1]
      %v270 = vld [vmem:[%s207 + $0xcc] sm:$0xf]
      %v271 = vld [vmem:[%s207 + $0xd0] sm:$0xf]
      %v272 = vld [vmem:[%s207 + $0xd4] sm:$0x1]
      %v273 = vld [vmem:[%s2] sm:$0xf]
      %v274 = vld [vmem:[%s2 + $0x4] sm:$0xf]
      %v275 = vld [vmem:[%s2 + $0x8] sm:$0xf]
      %v276 = vld [vmem:[%s2 + $0xc] sm:$0xf]
      %vm277 = vsmask.f32 3328
      %vm278 = vsmask.f32 7440
      %vm279 = vmor %vm277, %vm278
      %v281 = vshrl.u32 %v219, 16
      %v283 = vrot.slane %v281, 4
      %v284 = vshll.u32 %v219, 16
      %v286 = vrot.slane %v284, 5
      %v287 = vor.u32 %v283, %v286
      %v288 = vrot.slane %v287, 4
      %v290 = vshll.u32 %v220, 16
      %v292 = vrot.slane %v290, 5
      %v293 = vsel %vm279, %v288, %v292
      %v294 = vshrl.u32 %v220, 16
      %v296 = vrot.slane %v294, 4
      %v297 = vor.u32 %v296, %v292
      %v298 = vrot.slane %v297, 4
      %v300 = vshll.u32 %v221, 16
      %v302 = vrot.slane %v300, 5
      %v303 = vsel %vm279, %v298, %v302
      %v305 = vshrl.u32 %v222, 16
      %v307 = vrot.slane %v305, 4
      %v308 = vshll.u32 %v222, 16
      %v310 = vrot.slane %v308, 5
      %v311 = vor.u32 %v307, %v310
      %v312 = vrot.slane %v311, 4
      %v314 = vshll.u32 %v223, 16
      %v316 = vrot.slane %v314, 5
      %v317 = vsel %vm279, %v312, %v316
      %v318 = vshrl.u32 %v223, 16
      %v320 = vrot.slane %v318, 4
      %v321 = vor.u32 %v320, %v316
      %v322 = vrot.slane %v321, 4
      %v324 = vshll.u32 %v224, 16
      %v326 = vrot.slane %v324, 5
      %v327 = vsel %vm279, %v322, %v326
      %v329 = vshrl.u32 %v225, 16
      %v331 = vrot.slane %v329, 4
      %v332 = vshll.u32 %v225, 16
      %v334 = vrot.slane %v332, 5
      %v335 = vor.u32 %v331, %v334
      %v336 = vrot.slane %v335, 4
      %v338 = vshll.u32 %v226, 16
      %v340 = vrot.slane %v338, 5
      %v341 = vsel %vm279, %v336, %v340
      %v342 = vshrl.u32 %v226, 16
      %v344 = vrot.slane %v342, 4
      %v345 = vor.u32 %v344, %v340
      %v346 = vrot.slane %v345, 4
      %v348 = vshll.u32 %v227, 16
      %v350 = vrot.slane %v348, 5
      %v351 = vsel %vm279, %v346, %v350
      %v353 = vshrl.u32 %v228, 16
      %v355 = vrot.slane %v353, 4
      %v356 = vshll.u32 %v228, 16
      %v358 = vrot.slane %v356, 5
      %v359 = vor.u32 %v355, %v358
      %v360 = vrot.slane %v359, 4
      %v362 = vshll.u32 %v229, 16
      %v364 = vrot.slane %v362, 5
      %v365 = vsel %vm279, %v360, %v364
      %v366 = vshrl.u32 %v229, 16
      %v368 = vrot.slane %v366, 4
      %v369 = vor.u32 %v368, %v364
      %v370 = vrot.slane %v369, 4
      %v372 = vshll.u32 %v230, 16
      %v374 = vrot.slane %v372, 5
      %v375 = vsel %vm279, %v370, %v374
      %v377 = vshrl.u32 %v231, 16
      %v379 = vrot.slane %v377, 4
      %v380 = vshll.u32 %v231, 16
      %v382 = vrot.slane %v380, 5
      %v383 = vor.u32 %v379, %v382
      %v384 = vrot.slane %v383, 4
      %v386 = vshll.u32 %v232, 16
      %v388 = vrot.slane %v386, 5
      %v389 = vsel %vm279, %v384, %v388
      %v390 = vshrl.u32 %v232, 16
      %v392 = vrot.slane %v390, 4
      %v393 = vor.u32 %v392, %v388
      %v394 = vrot.slane %v393, 4
      %v396 = vshll.u32 %v233, 16
      %v398 = vrot.slane %v396, 5
      %v399 = vsel %vm279, %v394, %v398
      %v401 = vshrl.u32 %v234, 16
      %v403 = vrot.slane %v401, 4
      %v404 = vshll.u32 %v234, 16
      %v406 = vrot.slane %v404, 5
      %v407 = vor.u32 %v403, %v406
      %v408 = vrot.slane %v407, 4
      %v410 = vshll.u32 %v235, 16
      %v412 = vrot.slane %v410, 5
      %v413 = vsel %vm279, %v408, %v412
      %v414 = vshrl.u32 %v235, 16
      %v416 = vrot.slane %v414, 4
      %v417 = vor.u32 %v416, %v412
      %v418 = vrot.slane %v417, 4
      %v420 = vshll.u32 %v236, 16
      %v422 = vrot.slane %v420, 5
      %v423 = vsel %vm279, %v418, %v422
      %v425 = vshrl.u32 %v237, 16
      %v427 = vrot.slane %v425, 4
      %v428 = vshll.u32 %v237, 16
      %v430 = vrot.slane %v428, 5
      %v431 = vor.u32 %v427, %v430
      %v432 = vrot.slane %v431, 4
      %v434 = vshll.u32 %v238, 16
      %v436 = vrot.slane %v434, 5
      %v437 = vsel %vm279, %v432, %v436
      %v438 = vshrl.u32 %v238, 16
      %v440 = vrot.slane %v438, 4
      %v441 = vor.u32 %v440, %v436
      %v442 = vrot.slane %v441, 4
      %v444 = vshll.u32 %v239, 16
      %v446 = vrot.slane %v444, 5
      %v447 = vsel %vm279, %v442, %v446
      %v449 = vshrl.u32 %v240, 16
      %v451 = vrot.slane %v449, 4
      %v452 = vshll.u32 %v240, 16
      %v454 = vrot.slane %v452, 5
      %v455 = vor.u32 %v451, %v454
      %v456 = vrot.slane %v455, 4
      %v458 = vshll.u32 %v241, 16
      %v460 = vrot.slane %v458, 5
      %v461 = vsel %vm279, %v456, %v460
      %v462 = vshrl.u32 %v241, 16
      %v464 = vrot.slane %v462, 4
      %v465 = vor.u32 %v464, %v460
      %v466 = vrot.slane %v465, 4
      %v468 = vshll.u32 %v242, 16
      %v470 = vrot.slane %v468, 5
      %v471 = vsel %vm279, %v466, %v470
      %v473 = vshrl.u32 %v243, 16
      %v475 = vrot.slane %v473, 4
      %v476 = vshll.u32 %v243, 16
      %v478 = vrot.slane %v476, 5
      %v479 = vor.u32 %v475, %v478
      %v480 = vrot.slane %v479, 4
      %v482 = vshll.u32 %v244, 16
      %v484 = vrot.slane %v482, 5
      %v485 = vsel %vm279, %v480, %v484
      %v486 = vshrl.u32 %v244, 16
      %v488 = vrot.slane %v486, 4
      %v489 = vor.u32 %v488, %v484
      %v490 = vrot.slane %v489, 4
      %v492 = vshll.u32 %v245, 16
      %v494 = vrot.slane %v492, 5
      %v495 = vsel %vm279, %v490, %v494
      %v497 = vshrl.u32 %v246, 16
      %v499 = vrot.slane %v497, 4
      %v500 = vshll.u32 %v246, 16
      %v502 = vrot.slane %v500, 5
      %v503 = vor.u32 %v499, %v502
      %v504 = vrot.slane %v503, 4
      %v506 = vshll.u32 %v247, 16
      %v508 = vrot.slane %v506, 5
      %v509 = vsel %vm279, %v504, %v508
      %v510 = vshrl.u32 %v247, 16
      %v512 = vrot.slane %v510, 4
      %v513 = vor.u32 %v512, %v508
      %v514 = vrot.slane %v513, 4
      %v516 = vshll.u32 %v248, 16
      %v518 = vrot.slane %v516, 5
      %v519 = vsel %vm279, %v514, %v518
      %v521 = vshrl.u32 %v249, 16
      %v523 = vrot.slane %v521, 4
      %v524 = vshll.u32 %v249, 16
      %v526 = vrot.slane %v524, 5
      %v527 = vor.u32 %v523, %v526
      %v528 = vrot.slane %v527, 4
      %v530 = vshll.u32 %v250, 16
      %v532 = vrot.slane %v530, 5
      %v533 = vsel %vm279, %v528, %v532
      %v534 = vshrl.u32 %v250, 16
      %v536 = vrot.slane %v534, 4
      %v537 = vor.u32 %v536, %v532
      %v538 = vrot.slane %v537, 4
      %v540 = vshll.u32 %v251, 16
      %v542 = vrot.slane %v540, 5
      %v543 = vsel %vm279, %v538, %v542
      %v545 = vshrl.u32 %v252, 16
      %v547 = vrot.slane %v545, 4
      %v548 = vshll.u32 %v252, 16
      %v550 = vrot.slane %v548, 5
      %v551 = vor.u32 %v547, %v550
      %v552 = vrot.slane %v551, 4
      %v554 = vshll.u32 %v253, 16
      %v556 = vrot.slane %v554, 5
      %v557 = vsel %vm279, %v552, %v556
      %v558 = vshrl.u32 %v253, 16
      %v560 = vrot.slane %v558, 4
      %v561 = vor.u32 %v560, %v556
      %v562 = vrot.slane %v561, 4
      %v564 = vshll.u32 %v254, 16
      %v566 = vrot.slane %v564, 5
      %v567 = vsel %vm279, %v562, %v566
      %v569 = vshrl.u32 %v255, 16
      %v571 = vrot.slane %v569, 4
      %v572 = vshll.u32 %v255, 16
      %v574 = vrot.slane %v572, 5
      %v575 = vor.u32 %v571, %v574
      %v576 = vrot.slane %v575, 4
      %v578 = vshll.u32 %v256, 16
      %v580 = vrot.slane %v578, 5
      %v581 = vsel %vm279, %v576, %v580
      %v582 = vshrl.u32 %v256, 16
      %v584 = vrot.slane %v582, 4
      %v585 = vor.u32 %v584, %v580
      %v586 = vrot.slane %v585, 4
      %v588 = vshll.u32 %v257, 16
      %v590 = vrot.slane %v588, 5
      %v591 = vsel %vm279, %v586, %v590
      %v593 = vshrl.u32 %v258, 16
      %v595 = vrot.slane %v593, 4
      %v596 = vshll.u32 %v258, 16
      %v598 = vrot.slane %v596, 5
      %v599 = vor.u32 %v595, %v598
      %v600 = vrot.slane %v599, 4
      %v602 = vshll.u32 %v259, 16
      %v604 = vrot.slane %v602, 5
      %v605 = vsel %vm279, %v600, %v604
      %v606 = vshrl.u32 %v259, 16
      %v608 = vrot.slane %v606, 4
      %v609 = vor.u32 %v608, %v604
      %v610 = vrot.slane %v609, 4
      %v612 = vshll.u32 %v260, 16
      %v614 = vrot.slane %v612, 5
      %v615 = vsel %vm279, %v610, %v614
      %v617 = vshrl.u32 %v261, 16
      %v619 = vrot.slane %v617, 4
      %v620 = vshll.u32 %v261, 16
      %v622 = vrot.slane %v620, 5
      %v623 = vor.u32 %v619, %v622
      %v624 = vrot.slane %v623, 4
      %v626 = vshll.u32 %v262, 16
      %v628 = vrot.slane %v626, 5
      %v629 = vsel %vm279, %v624, %v628
      %v630 = vshrl.u32 %v262, 16
      %v632 = vrot.slane %v630, 4
      %v633 = vor.u32 %v632, %v628
      %v634 = vrot.slane %v633, 4
      %v636 = vshll.u32 %v263, 16
      %v638 = vrot.slane %v636, 5
      %v639 = vsel %vm279, %v634, %v638
      %v641 = vshrl.u32 %v264, 16
      %v643 = vrot.slane %v641, 4
      %v644 = vshll.u32 %v264, 16
      %v646 = vrot.slane %v644, 5
      %v647 = vor.u32 %v643, %v646
      %v648 = vrot.slane %v647, 4
      %v650 = vshll.u32 %v265, 16
      %v652 = vrot.slane %v650, 5
      %v653 = vsel %vm279, %v648, %v652
      %v654 = vshrl.u32 %v265, 16
      %v656 = vrot.slane %v654, 4
      %v657 = vor.u32 %v656, %v652
      %v658 = vrot.slane %v657, 4
      %v660 = vshll.u32 %v266, 16
      %v662 = vrot.slane %v660, 5
      %v663 = vsel %vm279, %v658, %v662
      %v664 = vld [vmem:[%s2 + $0x10] sm:$0xf]
      %v665 = vld [vmem:[%s2 + $0x14] sm:$0xf]
      %v666 = vld [vmem:[%s2 + $0x18] sm:$0xf]
      %v667 = vld [vmem:[%s2 + $0x1c] sm:$0xf]
      %v668 = vunpack.c.l.b16 %v293
      %v669 = vunpack.c.l.b16 %v303
      %v670 = vunpack.c.l.b16 %v317
      %v671 = vunpack.c.l.b16 %v327
      %v672 = vunpack.c.l.b16 %v341
      %v673 = vunpack.c.l.b16 %v351
      %v674 = vunpack.c.l.b16 %v365
      %v675 = vunpack.c.l.b16 %v375
      %v676 = vunpack.c.l.b16 %v389
      %v677 = vunpack.c.l.b16 %v399
      %v678 = vunpack.c.l.b16 %v413
      %v679 = vunpack.c.l.b16 %v423
      %v680 = vunpack.c.l.b16 %v437
      %v681 = vunpack.c.l.b16 %v447
      %v682 = vunpack.c.l.b16 %v461
      %v683 = vunpack.c.l.b16 %v471
      %v684 = vunpack.c.l.b16 %v485
      %v685 = vunpack.c.l.b16 %v495
      %v686 = vunpack.c.l.b16 %v509
      %v687 = vunpack.c.l.b16 %v519
      %v688 = vunpack.c.l.b16 %v533
      %v689 = vunpack.c.l.b16 %v543
      %v690 = vunpack.c.l.b16 %v557
      %v691 = vunpack.c.l.b16 %v567
      %v692 = vunpack.c.l.b16 %v581
      %v693 = vunpack.c.l.b16 %v591
      %v694 = vunpack.c.l.b16 %v605
      %v695 = vunpack.c.l.b16 %v615
      %v696 = vunpack.c.l.b16 %v629
      %v697 = vunpack.c.l.b16 %v639
      %v698 = vunpack.c.l.b16 %v653
      %v699 = vunpack.c.l.b16 %v663
      %v700 = vpack.c.b16 %v669, %v668
      %v701 = vpack.c.b16 %v671, %v670
      %v702 = vpack.c.b16 %v673, %v672
      %v703 = vpack.c.b16 %v675, %v674
      %v704 = vpack.c.b16 %v677, %v676
      %v705 = vpack.c.b16 %v679, %v678
      %v706 = vpack.c.b16 %v681, %v680
      %v707 = vpack.c.b16 %v683, %v682
      %v708 = vpack.c.b16 %v685, %v684
      %v709 = vpack.c.b16 %v687, %v686
      %v710 = vpack.c.b16 %v689, %v688
      %v711 = vpack.c.b16 %v691, %v690
      %v712 = vpack.c.b16 %v693, %v692
      %v713 = vpack.c.b16 %v695, %v694
      %v714 = vpack.c.b16 %v697, %v696
      %v715 = vpack.c.b16 %v699, %v698
      %v720 = vunpack.c.l.b16 %v664
      %v721 = vunpack.c.l.b16 %v665
      %v722 = vunpack.c.l.b16 %v666
      %v723 = vunpack.c.l.b16 %v667
      %v724 = vpack.c.b16 %v721, %v720
      %v725 = vpack.c.b16 %v723, %v722
      %vm728 = vcmask 261120
      %v730 = vsel %vm728, %v700, 0
      %v733 = vsel %vm728, %v701, 0
      %v736 = vsel %vm728, %v702, 0
      %v739 = vsel %vm728, %v703, 0
      %v742 = vsel %vm728, %v704, 0
      %v745 = vsel %vm728, %v705, 0
      %v748 = vsel %vm728, %v706, 0
      %v751 = vsel %vm728, %v707, 0
      %v754 = vsel %vm728, %v708, 0
      %v757 = vsel %vm728, %v709, 0
      %v760 = vsel %vm728, %v710, 0
      %v763 = vsel %vm728, %v711, 0
      %v766 = vsel %vm728, %v712, 0
      %v769 = vsel %vm728, %v713, 0
      %v772 = vsel %vm728, %v714, 0
      %v775 = vsel %vm728, %v715, 0
      %777 = vmatpush.bf16.msra.mxu0 0
      %778 = vmatpush.bf16.msra.mxu0 0
      %779 = vmatpush.bf16.msra.mxu0 0
      %780 = vmatpush.bf16.msra.mxu0 0
      %781 = vmatpush.bf16.msra.mxu0 0
      %782 = vmatpush.bf16.msra.mxu0 0
      %783 = vmatpush.bf16.msra.mxu0 %v725
      %784 = vmatpush.bf16.msra.mxu0 %v724
      %785 = vmatmul.bf16.gmra.mxu0 %v730
      %v786 = vpop.f32.mrf.mxu0
      %v787 = vadd.f32 0.0, %v786
      %v788 = vpop.f32.mrf.mxu0
      %v789 = vadd.f32 0.0, %v788
      %790 = vmatmul.bf16.gmra.mxu0 %v733
      %v791 = vpop.f32.mrf.mxu0
      %v792 = vadd.f32 0.0, %v791
      %v793 = vpop.f32.mrf.mxu0
      %v794 = vadd.f32 0.0, %v793
      %795 = vmatmul.bf16.gmra.mxu0 %v736
      %v796 = vpop.f32.mrf.mxu0
      %v797 = vadd.f32 0.0, %v796
      %v798 = vpop.f32.mrf.mxu0
      %v799 = vadd.f32 0.0, %v798
      %800 = vmatmul.bf16.gmra.mxu0 %v739
      %v801 = vpop.f32.mrf.mxu0
      %v802 = vadd.f32 0.0, %v801
      %v803 = vpop.f32.mrf.mxu0
      %v804 = vadd.f32 0.0, %v803
      %805 = vmatmul.bf16.gmra.mxu0 %v742
      %v806 = vpop.f32.mrf.mxu0
      %v807 = vadd.f32 0.0, %v806
      %v808 = vpop.f32.mrf.mxu0
      %v809 = vadd.f32 0.0, %v808
      %810 = vmatmul.bf16.gmra.mxu0 %v745
      %v811 = vpop.f32.mrf.mxu0
      %v812 = vadd.f32 0.0, %v811
      %v813 = vpop.f32.mrf.mxu0
      %v814 = vadd.f32 0.0, %v813
      %815 = vmatmul.bf16.gmra.mxu0 %v748
      %v816 = vpop.f32.mrf.mxu0
      %v817 = vadd.f32 0.0, %v816
      %v818 = vpop.f32.mrf.mxu0
      %v819 = vadd.f32 0.0, %v818
      %820 = vmatmul.bf16.gmra.mxu0 %v751
      %v821 = vpop.f32.mrf.mxu0
      %v822 = vadd.f32 0.0, %v821
      %v823 = vpop.f32.mrf.mxu0
      %v824 = vadd.f32 0.0, %v823
      %825 = vmatmul.bf16.gmra.mxu0 %v754
      %v826 = vpop.f32.mrf.mxu0
      %v827 = vadd.f32 0.0, %v826
      %v828 = vpop.f32.mrf.mxu0
      %v829 = vadd.f32 0.0, %v828
      %830 = vmatmul.bf16.gmra.mxu0 %v757
      %v831 = vpop.f32.mrf.mxu0
      %v832 = vadd.f32 0.0, %v831
      %v833 = vpop.f32.mrf.mxu0
      %v834 = vadd.f32 0.0, %v833
      %835 = vmatmul.bf16.gmra.mxu0 %v760
      %v836 = vpop.f32.mrf.mxu0
      %v837 = vadd.f32 0.0, %v836
      %v838 = vpop.f32.mrf.mxu0
      %v839 = vadd.f32 0.0, %v838
      %840 = vmatmul.bf16.gmra.mxu0 %v763
      %v841 = vpop.f32.mrf.mxu0
      %v842 = vadd.f32 0.0, %v841
      %v843 = vpop.f32.mrf.mxu0
      %v844 = vadd.f32 0.0, %v843
      %845 = vmatmul.bf16.gmra.mxu0 %v766
      %v846 = vpop.f32.mrf.mxu0
      %v847 = vadd.f32 0.0, %v846
      %v848 = vpop.f32.mrf.mxu0
      %v849 = vadd.f32 0.0, %v848
      %850 = vmatmul.bf16.gmra.mxu0 %v769
      %v851 = vpop.f32.mrf.mxu0
      %v852 = vadd.f32 0.0, %v851
      %v853 = vpop.f32.mrf.mxu0
      %v854 = vadd.f32 0.0, %v853
      %855 = vmatmul.bf16.gmra.mxu0 %v772
      %v856 = vpop.f32.mrf.mxu0
      %v857 = vadd.f32 0.0, %v856
      %v858 = vpop.f32.mrf.mxu0
      %v859 = vadd.f32 0.0, %v858
      %860 = vmatmul.bf16.gmra.mxu0 %v775
      %v861 = vpop.f32.mrf.mxu0
      %v862 = vadd.f32 0.0, %v861
      %v863 = vpop.f32.mrf.mxu0
      %v864 = vadd.f32 0.0, %v863
      %865 = vdwg.mxu0
      %v898 = vunpack.c.l.b16 %v219
      %v899 = vunpack.c.l.b16 %v220
      %v900 = vunpack.c.l.b16 %v222
      %v901 = vunpack.c.l.b16 %v223
      %v902 = vunpack.c.l.b16 %v225
      %v903 = vunpack.c.l.b16 %v226
      %v904 = vunpack.c.l.b16 %v228
      %v905 = vunpack.c.l.b16 %v229
      %v906 = vunpack.c.l.b16 %v231
      %v907 = vunpack.c.l.b16 %v232
      %v908 = vunpack.c.l.b16 %v234
      %v909 = vunpack.c.l.b16 %v235
      %v910 = vunpack.c.l.b16 %v237
      %v911 = vunpack.c.l.b16 %v238
      %v912 = vunpack.c.l.b16 %v240
      %v913 = vunpack.c.l.b16 %v241
      %v914 = vunpack.c.l.b16 %v243
      %v915 = vunpack.c.l.b16 %v244
      %v916 = vunpack.c.l.b16 %v246
      %v917 = vunpack.c.l.b16 %v247
      %v918 = vunpack.c.l.b16 %v249
      %v919 = vunpack.c.l.b16 %v250
      %v920 = vunpack.c.l.b16 %v252
      %v921 = vunpack.c.l.b16 %v253
      %v922 = vunpack.c.l.b16 %v255
      %v923 = vunpack.c.l.b16 %v256
      %v924 = vunpack.c.l.b16 %v258
      %v925 = vunpack.c.l.b16 %v259
      %v926 = vunpack.c.l.b16 %v261
      %v927 = vunpack.c.l.b16 %v262
      %v928 = vunpack.c.l.b16 %v264
      %v929 = vunpack.c.l.b16 %v265
      %v930 = vpack.c.b16 %v899, %v898
      %v931 = vpack.c.b16 %v901, %v900
      %v932 = vpack.c.b16 %v903, %v902
      %v933 = vpack.c.b16 %v905, %v904
      %v934 = vpack.c.b16 %v907, %v906
      %v935 = vpack.c.b16 %v909, %v908
      %v936 = vpack.c.b16 %v911, %v910
      %v937 = vpack.c.b16 %v913, %v912
      %v938 = vpack.c.b16 %v915, %v914
      %v939 = vpack.c.b16 %v917, %v916
      %v940 = vpack.c.b16 %v919, %v918
      %v941 = vpack.c.b16 %v921, %v920
      %v942 = vpack.c.b16 %v923, %v922
      %v943 = vpack.c.b16 %v925, %v924
      %v944 = vpack.c.b16 %v927, %v926
      %v945 = vpack.c.b16 %v929, %v928
      %v950 = vunpack.c.l.b16 %v273
      %v951 = vunpack.c.l.b16 %v274
      %v952 = vunpack.c.l.b16 %v275
      %v953 = vunpack.c.l.b16 %v276
      %v954 = vpack.c.b16 %v951, %v950
      %v955 = vpack.c.b16 %v953, %v952
      %v959 = vsel %vm728, %v930, 0
      %v962 = vsel %vm728, %v931, 0
      %v965 = vsel %vm728, %v932, 0
      %v968 = vsel %vm728, %v933, 0
      %v971 = vsel %vm728, %v934, 0
      %v974 = vsel %vm728, %v935, 0
      %v977 = vsel %vm728, %v936, 0
      %v980 = vsel %vm728, %v937, 0
      %v983 = vsel %vm728, %v938, 0
      %v986 = vsel %vm728, %v939, 0
      %v989 = vsel %vm728, %v940, 0
      %v992 = vsel %vm728, %v941, 0
      %v995 = vsel %vm728, %v942, 0
      %v998 = vsel %vm728, %v943, 0
      %v1001 = vsel %vm728, %v944, 0
      %v1004 = vsel %vm728, %v945, 0
      %1006 = vmatpush.bf16.msra.mxu0 0
      %1007 = vmatpush.bf16.msra.mxu0 0
      %1008 = vmatpush.bf16.msra.mxu0 0
      %1009 = vmatpush.bf16.msra.mxu0 0
      %1010 = vmatpush.bf16.msra.mxu0 0
      %1011 = vmatpush.bf16.msra.mxu0 0
      %1012 = vmatpush.bf16.msra.mxu0 %v955
      %1013 = vmatpush.bf16.msra.mxu0 %v954
      %1014 = vmatmul.bf16.gmra.mxu0 %v959
      %v1015 = vpop.f32.mrf.mxu0
      %v1016 = vadd.f32 %v787, %v1015
      %v1017 = vpop.f32.mrf.mxu0
      %v1018 = vadd.f32 %v789, %v1017
      %1019 = vmatmul.bf16.gmra.mxu0 %v962
      %v1020 = vpop.f32.mrf.mxu0
      %v1021 = vadd.f32 %v792, %v1020
      %v1022 = vpop.f32.mrf.mxu0
      %v1023 = vadd.f32 %v794, %v1022
      %1024 = vmatmul.bf16.gmra.mxu0 %v965
      %v1025 = vpop.f32.mrf.mxu0
      %v1026 = vadd.f32 %v797, %v1025
      %v1027 = vpop.f32.mrf.mxu0
      %v1028 = vadd.f32 %v799, %v1027
      %1029 = vmatmul.bf16.gmra.mxu0 %v968
      %v1030 = vpop.f32.mrf.mxu0
      %v1031 = vadd.f32 %v802, %v1030
      %v1032 = vpop.f32.mrf.mxu0
      %v1033 = vadd.f32 %v804, %v1032
      %1034 = vmatmul.bf16.gmra.mxu0 %v971
      %v1035 = vpop.f32.mrf.mxu0
      %v1036 = vadd.f32 %v807, %v1035
      %v1037 = vpop.f32.mrf.mxu0
      %v1038 = vadd.f32 %v809, %v1037
      %1039 = vmatmul.bf16.gmra.mxu0 %v974
      %v1040 = vpop.f32.mrf.mxu0
      %v1041 = vadd.f32 %v812, %v1040
      %v1042 = vpop.f32.mrf.mxu0
      %v1043 = vadd.f32 %v814, %v1042
      %1044 = vmatmul.bf16.gmra.mxu0 %v977
      %v1045 = vpop.f32.mrf.mxu0
      %v1046 = vadd.f32 %v817, %v1045
      %v1047 = vpop.f32.mrf.mxu0
      %v1048 = vadd.f32 %v819, %v1047
      %1049 = vmatmul.bf16.gmra.mxu0 %v980
      %v1050 = vpop.f32.mrf.mxu0
      %v1051 = vadd.f32 %v822, %v1050
      %v1052 = vpop.f32.mrf.mxu0
      %v1053 = vadd.f32 %v824, %v1052
      %1054 = vmatmul.bf16.gmra.mxu0 %v983
      %v1055 = vpop.f32.mrf.mxu0
      %v1056 = vadd.f32 %v827, %v1055
      %v1057 = vpop.f32.mrf.mxu0
      %v1058 = vadd.f32 %v829, %v1057
      %1059 = vmatmul.bf16.gmra.mxu0 %v986
      %v1060 = vpop.f32.mrf.mxu0
      %v1061 = vadd.f32 %v832, %v1060
      %v1062 = vpop.f32.mrf.mxu0
      %v1063 = vadd.f32 %v834, %v1062
      %1064 = vmatmul.bf16.gmra.mxu0 %v989
      %v1065 = vpop.f32.mrf.mxu0
      %v1066 = vadd.f32 %v837, %v1065
      %v1067 = vpop.f32.mrf.mxu0
      %v1068 = vadd.f32 %v839, %v1067
      %1069 = vmatmul.bf16.gmra.mxu0 %v992
      %v1070 = vpop.f32.mrf.mxu0
      %v1071 = vadd.f32 %v842, %v1070
      %v1072 = vpop.f32.mrf.mxu0
      %v1073 = vadd.f32 %v844, %v1072
      %1074 = vmatmul.bf16.gmra.mxu0 %v995
      %v1075 = vpop.f32.mrf.mxu0
      %v1076 = vadd.f32 %v847, %v1075
      %v1077 = vpop.f32.mrf.mxu0
      %v1078 = vadd.f32 %v849, %v1077
      %1079 = vmatmul.bf16.gmra.mxu0 %v998
      %v1080 = vpop.f32.mrf.mxu0
      %v1081 = vadd.f32 %v852, %v1080
      %v1082 = vpop.f32.mrf.mxu0
      %v1083 = vadd.f32 %v854, %v1082
      %1084 = vmatmul.bf16.gmra.mxu0 %v1001
      %v1085 = vpop.f32.mrf.mxu0
      %v1086 = vadd.f32 %v857, %v1085
      %v1087 = vpop.f32.mrf.mxu0
      %v1088 = vadd.f32 %v859, %v1087
      %1089 = vmatmul.bf16.gmra.mxu0 %v1004
      %v1090 = vpop.f32.mrf.mxu0
      %v1091 = vadd.f32 %v862, %v1090
      %v1092 = vpop.f32.mrf.mxu0
      %v1093 = vadd.f32 %v864, %v1092
      %1094 = vdwg.mxu0
      %vm1111 = vcmask 1042432
      %vm1112 = vcmask 1046532
      %vm1113 = vmor %vm1111, %vm1112
      %v1114 = vrot.slane %v219, 5
      %v1115 = vrot.slane %v1114, 4
      %v1116 = vrot.slane %v220, 5
      %v1117 = vsel %vm1113, %v1115, %v1116
      %v1118 = vrot.slane %v1116, 4
      %v1119 = vrot.slane %v221, 5
      %v1120 = vsel %vm1113, %v1118, %v1119
      %v1121 = vrot.slane %v222, 5
      %v1122 = vrot.slane %v1121, 4
      %v1123 = vrot.slane %v223, 5
      %v1124 = vsel %vm1113, %v1122, %v1123
      %v1125 = vrot.slane %v1123, 4
      %v1126 = vrot.slane %v224, 5
      %v1127 = vsel %vm1113, %v1125, %v1126
      %v1128 = vrot.slane %v225, 5
      %v1129 = vrot.slane %v1128, 4
      %v1130 = vrot.slane %v226, 5
      %v1131 = vsel %vm1113, %v1129, %v1130
      %v1132 = vrot.slane %v1130, 4
      %v1133 = vrot.slane %v227, 5
      %v1134 = vsel %vm1113, %v1132, %v1133
      %v1135 = vrot.slane %v228, 5
      %v1136 = vrot.slane %v1135, 4
      %v1137 = vrot.slane %v229, 5
      %v1138 = vsel %vm1113, %v1136, %v1137
      %v1139 = vrot.slane %v1137, 4
      %v1140 = vrot.slane %v230, 5
      %v1141 = vsel %vm1113, %v1139, %v1140
      %v1142 = vrot.slane %v231, 5
      %v1143 = vrot.slane %v1142, 4
      %v1144 = vrot.slane %v232, 5
      %v1145 = vsel %vm1113, %v1143, %v1144
      %v1146 = vrot.slane %v1144, 4
      %v1147 = vrot.slane %v233, 5
      %v1148 = vsel %vm1113, %v1146, %v1147
      %v1149 = vrot.slane %v234, 5
      %v1150 = vrot.slane %v1149, 4
      %v1151 = vrot.slane %v235, 5
      %v1152 = vsel %vm1113, %v1150, %v1151
      %v1153 = vrot.slane %v1151, 4
      %v1154 = vrot.slane %v236, 5
      %v1155 = vsel %vm1113, %v1153, %v1154
      %v1156 = vrot.slane %v237, 5
      %v1157 = vrot.slane %v1156, 4
      %v1158 = vrot.slane %v238, 5
      %v1159 = vsel %vm1113, %v1157, %v1158
      %v1160 = vrot.slane %v1158, 4
      %v1161 = vrot.slane %v239, 5
      %v1162 = vsel %vm1113, %v1160, %v1161
      %v1163 = vrot.slane %v240, 5
      %v1164 = vrot.slane %v1163, 4
      %v1165 = vrot.slane %v241, 5
      %v1166 = vsel %vm1113, %v1164, %v1165
      %v1167 = vrot.slane %v1165, 4
      %v1168 = vrot.slane %v242, 5
      %v1169 = vsel %vm1113, %v1167, %v1168
      %v1170 = vrot.slane %v243, 5
      %v1171 = vrot.slane %v1170, 4
      %v1172 = vrot.slane %v244, 5
      %v1173 = vsel %vm1113, %v1171, %v1172
      %v1174 = vrot.slane %v1172, 4
      %v1175 = vrot.slane %v245, 5
      %v1176 = vsel %vm1113, %v1174, %v1175
      %v1177 = vrot.slane %v246, 5
      %v1178 = vrot.slane %v1177, 4
      %v1179 = vrot.slane %v247, 5
      %v1180 = vsel %vm1113, %v1178, %v1179
      %v1181 = vrot.slane %v1179, 4
      %v1182 = vrot.slane %v248, 5
      %v1183 = vsel %vm1113, %v1181, %v1182
      %v1184 = vrot.slane %v249, 5
      %v1185 = vrot.slane %v1184, 4
      %v1186 = vrot.slane %v250, 5
      %v1187 = vsel %vm1113, %v1185, %v1186
      %v1188 = vrot.slane %v1186, 4
      %v1189 = vrot.slane %v251, 5
      %v1190 = vsel %vm1113, %v1188, %v1189
      %v1191 = vrot.slane %v252, 5
      %v1192 = vrot.slane %v1191, 4
      %v1193 = vrot.slane %v253, 5
      %v1194 = vsel %vm1113, %v1192, %v1193
      %v1195 = vrot.slane %v1193, 4
      %v1196 = vrot.slane %v254, 5
      %v1197 = vsel %vm1113, %v1195, %v1196
      %v1198 = vrot.slane %v255, 5
      %v1199 = vrot.slane %v1198, 4
      %v1200 = vrot.slane %v256, 5
      %v1201 = vsel %vm1113, %v1199, %v1200
      %v1202 = vrot.slane %v1200, 4
      %v1203 = vrot.slane %v257, 5
      %v1204 = vsel %vm1113, %v1202, %v1203
      %v1205 = vrot.slane %v258, 5
      %v1206 = vrot.slane %v1205, 4
      %v1207 = vrot.slane %v259, 5
      %v1208 = vsel %vm1113, %v1206, %v1207
      %v1209 = vrot.slane %v1207, 4
      %v1210 = vrot.slane %v260, 5
      %v1211 = vsel %vm1113, %v1209, %v1210
      %v1212 = vrot.slane %v261, 5
      %v1213 = vrot.slane %v1212, 4
      %v1214 = vrot.slane %v262, 5
      %v1215 = vsel %vm1113, %v1213, %v1214
      %v1216 = vrot.slane %v1214, 4
      %v1217 = vrot.slane %v263, 5
      %v1218 = vsel %vm1113, %v1216, %v1217
      %v1219 = vrot.slane %v264, 5
      %v1220 = vrot.slane %v1219, 4
      %v1221 = vrot.slane %v265, 5
      %v1222 = vsel %vm1113, %v1220, %v1221
      %v1223 = vrot.slane %v1221, 4
      %v1224 = vrot.slane %v266, 5
      %v1225 = vsel %vm1113, %v1223, %v1224
      %v1226 = vld [vmem:[%s2 + $0x20] sm:$0xf]
      %v1227 = vld [vmem:[%s2 + $0x24] sm:$0xf]
      %v1228 = vld [vmem:[%s2 + $0x28] sm:$0xf]
      %v1229 = vld [vmem:[%s2 + $0x2c] sm:$0xf]
      %v1230 = vunpack.c.l.b16 %v1117
      %v1231 = vunpack.c.l.b16 %v1120
      %v1232 = vunpack.c.l.b16 %v1124
      %v1233 = vunpack.c.l.b16 %v1127
      %v1234 = vunpack.c.l.b16 %v1131
      %v1235 = vunpack.c.l.b16 %v1134
      %v1236 = vunpack.c.l.b16 %v1138
      %v1237 = vunpack.c.l.b16 %v1141
      %v1238 = vunpack.c.l.b16 %v1145
      %v1239 = vunpack.c.l.b16 %v1148
      %v1240 = vunpack.c.l.b16 %v1152
      %v1241 = vunpack.c.l.b16 %v1155
      %v1242 = vunpack.c.l.b16 %v1159
      %v1243 = vunpack.c.l.b16 %v1162
      %v1244 = vunpack.c.l.b16 %v1166
      %v1245 = vunpack.c.l.b16 %v1169
      %v1246 = vunpack.c.l.b16 %v1173
      %v1247 = vunpack.c.l.b16 %v1176
      %v1248 = vunpack.c.l.b16 %v1180
      %v1249 = vunpack.c.l.b16 %v1183
      %v1250 = vunpack.c.l.b16 %v1187
      %v1251 = vunpack.c.l.b16 %v1190
      %v1252 = vunpack.c.l.b16 %v1194
      %v1253 = vunpack.c.l.b16 %v1197
      %v1254 = vunpack.c.l.b16 %v1201
      %v1255 = vunpack.c.l.b16 %v1204
      %v1256 = vunpack.c.l.b16 %v1208
      %v1257 = vunpack.c.l.b16 %v1211
      %v1258 = vunpack.c.l.b16 %v1215
      %v1259 = vunpack.c.l.b16 %v1218
      %v1260 = vunpack.c.l.b16 %v1222
      %v1261 = vunpack.c.l.b16 %v1225
      %v1262 = vpack.c.b16 %v1231, %v1230
      %v1263 = vpack.c.b16 %v1233, %v1232
      %v1264 = vpack.c.b16 %v1235, %v1234
      %v1265 = vpack.c.b16 %v1237, %v1236
      %v1266 = vpack.c.b16 %v1239, %v1238
      %v1267 = vpack.c.b16 %v1241, %v1240
      %v1268 = vpack.c.b16 %v1243, %v1242
      %v1269 = vpack.c.b16 %v1245, %v1244
      %v1270 = vpack.c.b16 %v1247, %v1246
      %v1271 = vpack.c.b16 %v1249, %v1248
      %v1272 = vpack.c.b16 %v1251, %v1250
      %v1273 = vpack.c.b16 %v1253, %v1252
      %v1274 = vpack.c.b16 %v1255, %v1254
      %v1275 = vpack.c.b16 %v1257, %v1256
      %v1276 = vpack.c.b16 %v1259, %v1258
      %v1277 = vpack.c.b16 %v1261, %v1260
      %v1282 = vunpack.c.l.b16 %v1226
      %v1283 = vunpack.c.l.b16 %v1227
      %v1284 = vunpack.c.l.b16 %v1228
      %v1285 = vunpack.c.l.b16 %v1229
      %v1286 = vpack.c.b16 %v1283, %v1282
      %v1287 = vpack.c.b16 %v1285, %v1284
      %v1291 = vsel %vm728, %v1262, 0
      %v1294 = vsel %vm728, %v1263, 0
      %v1297 = vsel %vm728, %v1264, 0
      %v1300 = vsel %vm728, %v1265, 0
      %v1303 = vsel %vm728, %v1266, 0
      %v1306 = vsel %vm728, %v1267, 0
      %v1309 = vsel %vm728, %v1268, 0
      %v1312 = vsel %vm728, %v1269, 0
      %v1315 = vsel %vm728, %v1270, 0
      %v1318 = vsel %vm728, %v1271, 0
      %v1321 = vsel %vm728, %v1272, 0
      %v1324 = vsel %vm728, %v1273, 0
      %v1327 = vsel %vm728, %v1274, 0
      %v1330 = vsel %vm728, %v1275, 0
      %v1333 = vsel %vm728, %v1276, 0
      %v1336 = vsel %vm728, %v1277, 0
      %1338 = vmatpush.bf16.msra.mxu0 0
      %1339 = vmatpush.bf16.msra.mxu0 0
      %1340 = vmatpush.bf16.msra.mxu0 0
      %1341 = vmatpush.bf16.msra.mxu0 0
      %1342 = vmatpush.bf16.msra.mxu0 0
      %1343 = vmatpush.bf16.msra.mxu0 0
      %1344 = vmatpush.bf16.msra.mxu0 %v1287
      %1345 = vmatpush.bf16.msra.mxu0 %v1286
      %1346 = vmatmul.bf16.gmra.mxu0 %v1291
      %v1347 = vpop.f32.mrf.mxu0
      %v1348 = vadd.f32 0.0, %v1347
      %v1349 = vpop.f32.mrf.mxu0
      %v1350 = vadd.f32 0.0, %v1349
      %1351 = vmatmul.bf16.gmra.mxu0 %v1294
      %v1352 = vpop.f32.mrf.mxu0
      %v1353 = vadd.f32 0.0, %v1352
      %v1354 = vpop.f32.mrf.mxu0
      %v1355 = vadd.f32 0.0, %v1354
      %1356 = vmatmul.bf16.gmra.mxu0 %v1297
      %v1357 = vpop.f32.mrf.mxu0
      %v1358 = vadd.f32 0.0, %v1357
      %v1359 = vpop.f32.mrf.mxu0
      %v1360 = vadd.f32 0.0, %v1359
      %1361 = vmatmul.bf16.gmra.mxu0 %v1300
      %v1362 = vpop.f32.mrf.mxu0
      %v1363 = vadd.f32 0.0, %v1362
      %v1364 = vpop.f32.mrf.mxu0
      %v1365 = vadd.f32 0.0, %v1364
      %1366 = vmatmul.bf16.gmra.mxu0 %v1303
      %v1367 = vpop.f32.mrf.mxu0
      %v1368 = vadd.f32 0.0, %v1367
      %v1369 = vpop.f32.mrf.mxu0
      %v1370 = vadd.f32 0.0, %v1369
      %1371 = vmatmul.bf16.gmra.mxu0 %v1306
      %v1372 = vpop.f32.mrf.mxu0
      %v1373 = vadd.f32 0.0, %v1372
      %v1374 = vpop.f32.mrf.mxu0
      %v1375 = vadd.f32 0.0, %v1374
      %1376 = vmatmul.bf16.gmra.mxu0 %v1309
      %v1377 = vpop.f32.mrf.mxu0
      %v1378 = vadd.f32 0.0, %v1377
      %v1379 = vpop.f32.mrf.mxu0
      %v1380 = vadd.f32 0.0, %v1379
      %1381 = vmatmul.bf16.gmra.mxu0 %v1312
      %v1382 = vpop.f32.mrf.mxu0
      %v1383 = vadd.f32 0.0, %v1382
      %v1384 = vpop.f32.mrf.mxu0
      %v1385 = vadd.f32 0.0, %v1384
      %1386 = vmatmul.bf16.gmra.mxu0 %v1315
      %v1387 = vpop.f32.mrf.mxu0
      %v1388 = vadd.f32 0.0, %v1387
      %v1389 = vpop.f32.mrf.mxu0
      %v1390 = vadd.f32 0.0, %v1389
      %1391 = vmatmul.bf16.gmra.mxu0 %v1318
      %v1392 = vpop.f32.mrf.mxu0
      %v1393 = vadd.f32 0.0, %v1392
      %v1394 = vpop.f32.mrf.mxu0
      %v1395 = vadd.f32 0.0, %v1394
      %1396 = vmatmul.bf16.gmra.mxu0 %v1321
      %v1397 = vpop.f32.mrf.mxu0
      %v1398 = vadd.f32 0.0, %v1397
      %v1399 = vpop.f32.mrf.mxu0
      %v1400 = vadd.f32 0.0, %v1399
      %1401 = vmatmul.bf16.gmra.mxu0 %v1324
      %v1402 = vpop.f32.mrf.mxu0
      %v1403 = vadd.f32 0.0, %v1402
      %v1404 = vpop.f32.mrf.mxu0
      %v1405 = vadd.f32 0.0, %v1404
      %1406 = vmatmul.bf16.gmra.mxu0 %v1327
      %v1407 = vpop.f32.mrf.mxu0
      %v1408 = vadd.f32 0.0, %v1407
      %v1409 = vpop.f32.mrf.mxu0
      %v1410 = vadd.f32 0.0, %v1409
      %1411 = vmatmul.bf16.gmra.mxu0 %v1330
      %v1412 = vpop.f32.mrf.mxu0
      %v1413 = vadd.f32 0.0, %v1412
      %v1414 = vpop.f32.mrf.mxu0
      %v1415 = vadd.f32 0.0, %v1414
      %1416 = vmatmul.bf16.gmra.mxu0 %v1333
      %v1417 = vpop.f32.mrf.mxu0
      %v1418 = vadd.f32 0.0, %v1417
      %v1419 = vpop.f32.mrf.mxu0
      %v1420 = vadd.f32 0.0, %v1419
      %1421 = vmatmul.bf16.gmra.mxu0 %v1336
      %v1422 = vpop.f32.mrf.mxu0
      %v1423 = vadd.f32 0.0, %v1422
      %v1424 = vpop.f32.mrf.mxu0
      %v1425 = vadd.f32 0.0, %v1424
      %1426 = vdwg.mxu0
      %v1427 = vadd.f32 %v1016, %v1348
      %v1428 = vadd.f32 %v1018, %v1350
      %v1429 = vadd.f32 %v1021, %v1353
      %v1430 = vadd.f32 %v1023, %v1355
      %v1431 = vadd.f32 %v1026, %v1358
      %v1432 = vadd.f32 %v1028, %v1360
      %v1433 = vadd.f32 %v1031, %v1363
      %v1434 = vadd.f32 %v1033, %v1365
      %v1435 = vadd.f32 %v1036, %v1368
      %v1436 = vadd.f32 %v1038, %v1370
      %v1437 = vadd.f32 %v1041, %v1373
      %v1438 = vadd.f32 %v1043, %v1375
      %v1439 = vadd.f32 %v1046, %v1378
      %v1440 = vadd.f32 %v1048, %v1380
      %v1441 = vadd.f32 %v1051, %v1383
      %v1442 = vadd.f32 %v1053, %v1385
      %v1443 = vadd.f32 %v1056, %v1388
      %v1444 = vadd.f32 %v1058, %v1390
      %v1445 = vadd.f32 %v1061, %v1393
      %v1446 = vadd.f32 %v1063, %v1395
      %v1447 = vadd.f32 %v1066, %v1398
      %v1448 = vadd.f32 %v1068, %v1400
      %v1449 = vadd.f32 %v1071, %v1403
      %v1450 = vadd.f32 %v1073, %v1405
      %v1451 = vadd.f32 %v1076, %v1408
      %v1452 = vadd.f32 %v1078, %v1410
      %v1453 = vadd.f32 %v1081, %v1413
      %v1454 = vadd.f32 %v1083, %v1415
      %v1455 = vadd.f32 %v1086, %v1418
      %v1456 = vadd.f32 %v1088, %v1420
      %v1457 = vadd.f32 %v1091, %v1423
      %v1458 = vadd.f32 %v1093, %v1425
      %v1459 = vld [vmem:[%s2 + $0x30] sm:$0xf]
      %v1460 = vld [vmem:[%s2 + $0x34] sm:$0xf]
      %v1461 = vld [vmem:[%s2 + $0x38] sm:$0xf]
      %v1462 = vld [vmem:[%s2 + $0x3c] sm:$0xf]
      %v1465 = vunpack.c.l.b16 %v267
      %v1466 = vunpack.c.l.b16 %v268
      %v1467 = vpack.c.b16 %v1466, %v1465
      %v1472 = vunpack.c.l.b16 %v1459
      %v1473 = vunpack.c.l.b16 %v1460
      %v1474 = vunpack.c.l.b16 %v1461
      %v1475 = vunpack.c.l.b16 %v1462
      %v1476 = vpack.c.b16 %v1473, %v1472
      %v1477 = vpack.c.b16 %v1475, %v1474
      %v1481 = vsel %vm728, %v1467, 0
      %1483 = vmatpush.bf16.msra.mxu0 0
      %1484 = vmatpush.bf16.msra.mxu0 0
      %1485 = vmatpush.bf16.msra.mxu0 0
      %1486 = vmatpush.bf16.msra.mxu0 0
      %1487 = vmatpush.bf16.msra.mxu0 0
      %1488 = vmatpush.bf16.msra.mxu0 0
      %1489 = vmatpush.bf16.msra.mxu0 %v1477
      %1490 = vmatpush.bf16.msra.mxu0 %v1476
      %1491 = vmatmul.bf16.gmra.mxu0 %v962
      %v1492 = vpop.f32.mrf.mxu0
      %v1493 = vadd.f32 0.0, %v1492
      %v1494 = vpop.f32.mrf.mxu0
      %v1495 = vadd.f32 0.0, %v1494
      %1496 = vmatmul.bf16.gmra.mxu0 %v965
      %v1497 = vpop.f32.mrf.mxu0
      %v1498 = vadd.f32 0.0, %v1497
      %v1499 = vpop.f32.mrf.mxu0
      %v1500 = vadd.f32 0.0, %v1499
      %1501 = vmatmul.bf16.gmra.mxu0 %v968
      %v1502 = vpop.f32.mrf.mxu0
      %v1503 = vadd.f32 0.0, %v1502
      %v1504 = vpop.f32.mrf.mxu0
      %v1505 = vadd.f32 0.0, %v1504
      %1506 = vmatmul.bf16.gmra.mxu0 %v971
      %v1507 = vpop.f32.mrf.mxu0
      %v1508 = vadd.f32 0.0, %v1507
      %v1509 = vpop.f32.mrf.mxu0
      %v1510 = vadd.f32 0.0, %v1509
      %1511 = vmatmul.bf16.gmra.mxu0 %v974
      %v1512 = vpop.f32.mrf.mxu0
      %v1513 = vadd.f32 0.0, %v1512
      %v1514 = vpop.f32.mrf.mxu0
      %v1515 = vadd.f32 0.0, %v1514
      %1516 = vmatmul.bf16.gmra.mxu0 %v977
      %v1517 = vpop.f32.mrf.mxu0
      %v1518 = vadd.f32 0.0, %v1517
      %v1519 = vpop.f32.mrf.mxu0
      %v1520 = vadd.f32 0.0, %v1519
      %1521 = vmatmul.bf16.gmra.mxu0 %v980
      %v1522 = vpop.f32.mrf.mxu0
      %v1523 = vadd.f32 0.0, %v1522
      %v1524 = vpop.f32.mrf.mxu0
      %v1525 = vadd.f32 0.0, %v1524
      %1526 = vmatmul.bf16.gmra.mxu0 %v983
      %v1527 = vpop.f32.mrf.mxu0
      %v1528 = vadd.f32 0.0, %v1527
      %v1529 = vpop.f32.mrf.mxu0
      %v1530 = vadd.f32 0.0, %v1529
      %1531 = vmatmul.bf16.gmra.mxu0 %v986
      %v1532 = vpop.f32.mrf.mxu0
      %v1533 = vadd.f32 0.0, %v1532
      %v1534 = vpop.f32.mrf.mxu0
      %v1535 = vadd.f32 0.0, %v1534
      %1536 = vmatmul.bf16.gmra.mxu0 %v989
      %v1537 = vpop.f32.mrf.mxu0
      %v1538 = vadd.f32 0.0, %v1537
      %v1539 = vpop.f32.mrf.mxu0
      %v1540 = vadd.f32 0.0, %v1539
      %1541 = vmatmul.bf16.gmra.mxu0 %v992
      %v1542 = vpop.f32.mrf.mxu0
      %v1543 = vadd.f32 0.0, %v1542
      %v1544 = vpop.f32.mrf.mxu0
      %v1545 = vadd.f32 0.0, %v1544
      %1546 = vmatmul.bf16.gmra.mxu0 %v995
      %v1547 = vpop.f32.mrf.mxu0
      %v1548 = vadd.f32 0.0, %v1547
      %v1549 = vpop.f32.mrf.mxu0
      %v1550 = vadd.f32 0.0, %v1549
      %1551 = vmatmul.bf16.gmra.mxu0 %v998
      %v1552 = vpop.f32.mrf.mxu0
      %v1553 = vadd.f32 0.0, %v1552
      %v1554 = vpop.f32.mrf.mxu0
      %v1555 = vadd.f32 0.0, %v1554
      %1556 = vmatmul.bf16.gmra.mxu0 %v1001
      %v1557 = vpop.f32.mrf.mxu0
      %v1558 = vadd.f32 0.0, %v1557
      %v1559 = vpop.f32.mrf.mxu0
      %v1560 = vadd.f32 0.0, %v1559
      %1561 = vmatmul.bf16.gmra.mxu0 %v1004
      %v1562 = vpop.f32.mrf.mxu0
      %v1563 = vadd.f32 0.0, %v1562
      %v1564 = vpop.f32.mrf.mxu0
      %v1565 = vadd.f32 0.0, %v1564
      %1566 = vmatmul.bf16.gmra.mxu0 %v1481
      %v1567 = vpop.f32.mrf.mxu0
      %v1568 = vadd.f32 0.0, %v1567
      %v1569 = vpop.f32.mrf.mxu0
      %v1570 = vadd.f32 0.0, %v1569
      %1571 = vdwg.mxu0
      %v1572 = vadd.f32 %v1427, %v1493
      %v1573 = vadd.f32 %v1428, %v1495
      %v1574 = vadd.f32 %v1429, %v1498
      %v1575 = vadd.f32 %v1430, %v1500
      %v1576 = vadd.f32 %v1431, %v1503
      %v1577 = vadd.f32 %v1432, %v1505
      %v1578 = vadd.f32 %v1433, %v1508
      %v1579 = vadd.f32 %v1434, %v1510
      %v1580 = vadd.f32 %v1435, %v1513
      %v1581 = vadd.f32 %v1436, %v1515
      %v1582 = vadd.f32 %v1437, %v1518
      %v1583 = vadd.f32 %v1438, %v1520
      %v1584 = vadd.f32 %v1439, %v1523
      %v1585 = vadd.f32 %v1440, %v1525
      %v1586 = vadd.f32 %v1441, %v1528
      %v1587 = vadd.f32 %v1442, %v1530
      %v1588 = vadd.f32 %v1443, %v1533
      %v1589 = vadd.f32 %v1444, %v1535
      %v1590 = vadd.f32 %v1445, %v1538
      %v1591 = vadd.f32 %v1446, %v1540
      %v1592 = vadd.f32 %v1447, %v1543
      %v1593 = vadd.f32 %v1448, %v1545
      %v1594 = vadd.f32 %v1449, %v1548
      %v1595 = vadd.f32 %v1450, %v1550
      %v1596 = vadd.f32 %v1451, %v1553
      %v1597 = vadd.f32 %v1452, %v1555
      %v1598 = vadd.f32 %v1453, %v1558
      %v1599 = vadd.f32 %v1454, %v1560
      %v1600 = vadd.f32 %v1455, %v1563
      %v1601 = vadd.f32 %v1456, %v1565
      %v1602 = vadd.f32 %v1457, %v1568
      %v1603 = vadd.f32 %v1458, %v1570
      %v1605 = vshrl.u32 %v267, 16
      %v1607 = vrot.slane %v1605, 4
      %v1608 = vshll.u32 %v267, 16
      %v1610 = vrot.slane %v1608, 5
      %v1611 = vor.u32 %v1607, %v1610
      %v1612 = vrot.slane %v1611, 4
      %v1614 = vshll.u32 %v268, 16
      %v1616 = vrot.slane %v1614, 5
      %v1617 = vsel %vm279, %v1612, %v1616
      %v1618 = vshrl.u32 %v268, 16
      %v1620 = vrot.slane %v1618, 4
      %v1621 = vor.u32 %v1620, %v1616
      %v1622 = vrot.slane %v1621, 4
      %v1624 = vshll.u32 %v269, 16
      %v1626 = vrot.slane %v1624, 5
      %v1627 = vsel %vm279, %v1622, %v1626
      %v1628 = vld [vmem:[%s2 + $0x40] sm:$0xf]
      %v1629 = vld [vmem:[%s2 + $0x44] sm:$0xf]
      %v1630 = vld [vmem:[%s2 + $0x48] sm:$0xf]
      %v1631 = vld [vmem:[%s2 + $0x4c] sm:$0xf]
      %v1632 = vunpack.c.l.b16 %v1617
      %v1633 = vunpack.c.l.b16 %v1627
      %v1634 = vpack.c.b16 %v1633, %v1632
      %v1639 = vunpack.c.l.b16 %v1628
      %v1640 = vunpack.c.l.b16 %v1629
      %v1641 = vunpack.c.l.b16 %v1630
      %v1642 = vunpack.c.l.b16 %v1631
      %v1643 = vpack.c.b16 %v1640, %v1639
      %v1644 = vpack.c.b16 %v1642, %v1641
      %v1648 = vsel %vm728, %v1634, 0
      %1650 = vmatpush.bf16.msra.mxu0 0
      %1651 = vmatpush.bf16.msra.mxu0 0
      %1652 = vmatpush.bf16.msra.mxu0 0
      %1653 = vmatpush.bf16.msra.mxu0 0
      %1654 = vmatpush.bf16.msra.mxu0 0
      %1655 = vmatpush.bf16.msra.mxu0 0
      %1656 = vmatpush.bf16.msra.mxu0 %v1644
      %1657 = vmatpush.bf16.msra.mxu0 %v1643
      %1658 = vmatmul.bf16.gmra.mxu0 %v733
      %v1659 = vpop.f32.mrf.mxu0
      %v1660 = vadd.f32 0.0, %v1659
      %v1661 = vpop.f32.mrf.mxu0
      %v1662 = vadd.f32 0.0, %v1661
      %1663 = vmatmul.bf16.gmra.mxu0 %v736
      %v1664 = vpop.f32.mrf.mxu0
      %v1665 = vadd.f32 0.0, %v1664
      %v1666 = vpop.f32.mrf.mxu0
      %v1667 = vadd.f32 0.0, %v1666
      %1668 = vmatmul.bf16.gmra.mxu0 %v739
      %v1669 = vpop.f32.mrf.mxu0
      %v1670 = vadd.f32 0.0, %v1669
      %v1671 = vpop.f32.mrf.mxu0
      %v1672 = vadd.f32 0.0, %v1671
      %1673 = vmatmul.bf16.gmra.mxu0 %v742
      %v1674 = vpop.f32.mrf.mxu0
      %v1675 = vadd.f32 0.0, %v1674
      %v1676 = vpop.f32.mrf.mxu0
      %v1677 = vadd.f32 0.0, %v1676
      %1678 = vmatmul.bf16.gmra.mxu0 %v745
      %v1679 = vpop.f32.mrf.mxu0
      %v1680 = vadd.f32 0.0, %v1679
      %v1681 = vpop.f32.mrf.mxu0
      %v1682 = vadd.f32 0.0, %v1681
      %1683 = vmatmul.bf16.gmra.mxu0 %v748
      %v1684 = vpop.f32.mrf.mxu0
      %v1685 = vadd.f32 0.0, %v1684
      %v1686 = vpop.f32.mrf.mxu0
      %v1687 = vadd.f32 0.0, %v1686
      %1688 = vmatmul.bf16.gmra.mxu0 %v751
      %v1689 = vpop.f32.mrf.mxu0
      %v1690 = vadd.f32 0.0, %v1689
      %v1691 = vpop.f32.mrf.mxu0
      %v1692 = vadd.f32 0.0, %v1691
      %1693 = vmatmul.bf16.gmra.mxu0 %v754
      %v1694 = vpop.f32.mrf.mxu0
      %v1695 = vadd.f32 0.0, %v1694
      %v1696 = vpop.f32.mrf.mxu0
      %v1697 = vadd.f32 0.0, %v1696
      %1698 = vmatmul.bf16.gmra.mxu0 %v757
      %v1699 = vpop.f32.mrf.mxu0
      %v1700 = vadd.f32 0.0, %v1699
      %v1701 = vpop.f32.mrf.mxu0
      %v1702 = vadd.f32 0.0, %v1701
      %1703 = vmatmul.bf16.gmra.mxu0 %v760
      %v1704 = vpop.f32.mrf.mxu0
      %v1705 = vadd.f32 0.0, %v1704
      %v1706 = vpop.f32.mrf.mxu0
      %v1707 = vadd.f32 0.0, %v1706
      %1708 = vmatmul.bf16.gmra.mxu0 %v763
      %v1709 = vpop.f32.mrf.mxu0
      %v1710 = vadd.f32 0.0, %v1709
      %v1711 = vpop.f32.mrf.mxu0
      %v1712 = vadd.f32 0.0, %v1711
      %1713 = vmatmul.bf16.gmra.mxu0 %v766
      %v1714 = vpop.f32.mrf.mxu0
      %v1715 = vadd.f32 0.0, %v1714
      %v1716 = vpop.f32.mrf.mxu0
      %v1717 = vadd.f32 0.0, %v1716
      %1718 = vmatmul.bf16.gmra.mxu0 %v769
      %v1719 = vpop.f32.mrf.mxu0
      %v1720 = vadd.f32 0.0, %v1719
      %v1721 = vpop.f32.mrf.mxu0
      %v1722 = vadd.f32 0.0, %v1721
      %1723 = vmatmul.bf16.gmra.mxu0 %v772
      %v1724 = vpop.f32.mrf.mxu0
      %v1725 = vadd.f32 0.0, %v1724
      %v1726 = vpop.f32.mrf.mxu0
      %v1727 = vadd.f32 0.0, %v1726
      %1728 = vmatmul.bf16.gmra.mxu0 %v775
      %v1729 = vpop.f32.mrf.mxu0
      %v1730 = vadd.f32 0.0, %v1729
      %v1731 = vpop.f32.mrf.mxu0
      %v1732 = vadd.f32 0.0, %v1731
      %1733 = vmatmul.bf16.gmra.mxu0 %v1648
      %v1734 = vpop.f32.mrf.mxu0
      %v1735 = vadd.f32 0.0, %v1734
      %v1736 = vpop.f32.mrf.mxu0
      %v1737 = vadd.f32 0.0, %v1736
      %1738 = vdwg.mxu0
      %v1739 = vadd.f32 %v1572, %v1660
      %v1740 = vadd.f32 %v1573, %v1662
      %v1741 = vadd.f32 %v1574, %v1665
      %v1742 = vadd.f32 %v1575, %v1667
      %v1743 = vadd.f32 %v1576, %v1670
      %v1744 = vadd.f32 %v1577, %v1672
      %v1745 = vadd.f32 %v1578, %v1675
      %v1746 = vadd.f32 %v1579, %v1677
      %v1747 = vadd.f32 %v1580, %v1680
      %v1748 = vadd.f32 %v1581, %v1682
      %v1749 = vadd.f32 %v1582, %v1685
      %v1750 = vadd.f32 %v1583, %v1687
      %v1751 = vadd.f32 %v1584, %v1690
      %v1752 = vadd.f32 %v1585, %v1692
      %v1753 = vadd.f32 %v1586, %v1695
      %v1754 = vadd.f32 %v1587, %v1697
      %v1755 = vadd.f32 %v1588, %v1700
      %v1756 = vadd.f32 %v1589, %v1702
      %v1757 = vadd.f32 %v1590, %v1705
      %v1758 = vadd.f32 %v1591, %v1707
      %v1759 = vadd.f32 %v1592, %v1710
      %v1760 = vadd.f32 %v1593, %v1712
      %v1761 = vadd.f32 %v1594, %v1715
      %v1762 = vadd.f32 %v1595, %v1717
      %v1763 = vadd.f32 %v1596, %v1720
      %v1764 = vadd.f32 %v1597, %v1722
      %v1765 = vadd.f32 %v1598, %v1725
      %v1766 = vadd.f32 %v1599, %v1727
      %v1767 = vadd.f32 %v1600, %v1730
      %v1768 = vadd.f32 %v1601, %v1732
      %v1769 = vadd.f32 %v1602, %v1735
      %v1770 = vadd.f32 %v1603, %v1737
      %v1772 = vrot.slane %v267, 5
      %v1773 = vrot.slane %v1772, 4
      %v1774 = vrot.slane %v268, 5
      %v1775 = vsel %vm1113, %v1773, %v1774
      %v1776 = vrot.slane %v1774, 4
      %v1777 = vrot.slane %v269, 5
      %v1778 = vsel %vm1113, %v1776, %v1777
      %v1779 = vld [vmem:[%s2 + $0x50] sm:$0xf]
      %v1780 = vld [vmem:[%s2 + $0x54] sm:$0xf]
      %v1781 = vld [vmem:[%s2 + $0x58] sm:$0xf]
      %v1782 = vld [vmem:[%s2 + $0x5c] sm:$0xf]
      %v1783 = vunpack.c.l.b16 %v1775
      %v1784 = vunpack.c.l.b16 %v1778
      %v1785 = vpack.c.b16 %v1784, %v1783
      %v1790 = vunpack.c.l.b16 %v1779
      %v1791 = vunpack.c.l.b16 %v1780
      %v1792 = vunpack.c.l.b16 %v1781
      %v1793 = vunpack.c.l.b16 %v1782
      %v1794 = vpack.c.b16 %v1791, %v1790
      %v1795 = vpack.c.b16 %v1793, %v1792
      %v1799 = vsel %vm728, %v1785, 0
      %1801 = vmatpush.bf16.msra.mxu0 0
      %1802 = vmatpush.bf16.msra.mxu0 0
      %1803 = vmatpush.bf16.msra.mxu0 0
      %1804 = vmatpush.bf16.msra.mxu0 0
      %1805 = vmatpush.bf16.msra.mxu0 0
      %1806 = vmatpush.bf16.msra.mxu0 0
      %1807 = vmatpush.bf16.msra.mxu0 %v1795
      %1808 = vmatpush.bf16.msra.mxu0 %v1794
      %1809 = vmatmul.bf16.gmra.mxu0 %v1294
      %v1810 = vpop.f32.mrf.mxu0
      %v1811 = vadd.f32 0.0, %v1810
      %v1812 = vpop.f32.mrf.mxu0
      %v1813 = vadd.f32 0.0, %v1812
      %1814 = vmatmul.bf16.gmra.mxu0 %v1297
      %v1815 = vpop.f32.mrf.mxu0
      %v1816 = vadd.f32 0.0, %v1815
      %v1817 = vpop.f32.mrf.mxu0
      %v1818 = vadd.f32 0.0, %v1817
      %1819 = vmatmul.bf16.gmra.mxu0 %v1300
      %v1820 = vpop.f32.mrf.mxu0
      %v1821 = vadd.f32 0.0, %v1820
      %v1822 = vpop.f32.mrf.mxu0
      %v1823 = vadd.f32 0.0, %v1822
      %1824 = vmatmul.bf16.gmra.mxu0 %v1303
      %v1825 = vpop.f32.mrf.mxu0
      %v1826 = vadd.f32 0.0, %v1825
      %v1827 = vpop.f32.mrf.mxu0
      %v1828 = vadd.f32 0.0, %v1827
      %1829 = vmatmul.bf16.gmra.mxu0 %v1306
      %v1830 = vpop.f32.mrf.mxu0
      %v1831 = vadd.f32 0.0, %v1830
      %v1832 = vpop.f32.mrf.mxu0
      %v1833 = vadd.f32 0.0, %v1832
      %1834 = vmatmul.bf16.gmra.mxu0 %v1309
      %v1835 = vpop.f32.mrf.mxu0
      %v1836 = vadd.f32 0.0, %v1835
      %v1837 = vpop.f32.mrf.mxu0
      %v1838 = vadd.f32 0.0, %v1837
      %1839 = vmatmul.bf16.gmra.mxu0 %v1312
      %v1840 = vpop.f32.mrf.mxu0
      %v1841 = vadd.f32 0.0, %v1840
      %v1842 = vpop.f32.mrf.mxu0
      %v1843 = vadd.f32 0.0, %v1842
      %1844 = vmatmul.bf16.gmra.mxu0 %v1315
      %v1845 = vpop.f32.mrf.mxu0
      %v1846 = vadd.f32 0.0, %v1845
      %v1847 = vpop.f32.mrf.mxu0
      %v1848 = vadd.f32 0.0, %v1847
      %1849 = vmatmul.bf16.gmra.mxu0 %v1318
      %v1850 = vpop.f32.mrf.mxu0
      %v1851 = vadd.f32 0.0, %v1850
      %v1852 = vpop.f32.mrf.mxu0
      %v1853 = vadd.f32 0.0, %v1852
      %1854 = vmatmul.bf16.gmra.mxu0 %v1321
      %v1855 = vpop.f32.mrf.mxu0
      %v1856 = vadd.f32 0.0, %v1855
      %v1857 = vpop.f32.mrf.mxu0
      %v1858 = vadd.f32 0.0, %v1857
      %1859 = vmatmul.bf16.gmra.mxu0 %v1324
      %v1860 = vpop.f32.mrf.mxu0
      %v1861 = vadd.f32 0.0, %v1860
      %v1862 = vpop.f32.mrf.mxu0
      %v1863 = vadd.f32 0.0, %v1862
      %1864 = vmatmul.bf16.gmra.mxu0 %v1327
      %v1865 = vpop.f32.mrf.mxu0
      %v1866 = vadd.f32 0.0, %v1865
      %v1867 = vpop.f32.mrf.mxu0
      %v1868 = vadd.f32 0.0, %v1867
      %1869 = vmatmul.bf16.gmra.mxu0 %v1330
      %v1870 = vpop.f32.mrf.mxu0
      %v1871 = vadd.f32 0.0, %v1870
      %v1872 = vpop.f32.mrf.mxu0
      %v1873 = vadd.f32 0.0, %v1872
      %1874 = vmatmul.bf16.gmra.mxu0 %v1333
      %v1875 = vpop.f32.mrf.mxu0
      %v1876 = vadd.f32 0.0, %v1875
      %v1877 = vpop.f32.mrf.mxu0
      %v1878 = vadd.f32 0.0, %v1877
      %1879 = vmatmul.bf16.gmra.mxu0 %v1336
      %v1880 = vpop.f32.mrf.mxu0
      %v1881 = vadd.f32 0.0, %v1880
      %v1882 = vpop.f32.mrf.mxu0
      %v1883 = vadd.f32 0.0, %v1882
      %1884 = vmatmul.bf16.gmra.mxu0 %v1799
      %v1885 = vpop.f32.mrf.mxu0
      %v1886 = vadd.f32 0.0, %v1885
      %v1887 = vpop.f32.mrf.mxu0
      %v1888 = vadd.f32 0.0, %v1887
      %1889 = vdwg.mxu0
      %v1890 = vadd.f32 %v1739, %v1811
      %v1891 = vadd.f32 %v1740, %v1813
      %v1892 = vadd.f32 %v1741, %v1816
      %v1893 = vadd.f32 %v1742, %v1818
      %v1894 = vadd.f32 %v1743, %v1821
      %v1895 = vadd.f32 %v1744, %v1823
      %v1896 = vadd.f32 %v1745, %v1826
      %v1897 = vadd.f32 %v1746, %v1828
      %v1898 = vadd.f32 %v1747, %v1831
      %v1899 = vadd.f32 %v1748, %v1833
      %v1900 = vadd.f32 %v1749, %v1836
      %v1901 = vadd.f32 %v1750, %v1838
      %v1902 = vadd.f32 %v1751, %v1841
      %v1903 = vadd.f32 %v1752, %v1843
      %v1904 = vadd.f32 %v1753, %v1846
      %v1905 = vadd.f32 %v1754, %v1848
      %v1906 = vadd.f32 %v1755, %v1851
      %v1907 = vadd.f32 %v1756, %v1853
      %v1908 = vadd.f32 %v1757, %v1856
      %v1909 = vadd.f32 %v1758, %v1858
      %v1910 = vadd.f32 %v1759, %v1861
      %v1911 = vadd.f32 %v1760, %v1863
      %v1912 = vadd.f32 %v1761, %v1866
      %v1913 = vadd.f32 %v1762, %v1868
      %v1914 = vadd.f32 %v1763, %v1871
      %v1915 = vadd.f32 %v1764, %v1873
      %v1916 = vadd.f32 %v1765, %v1876
      %v1917 = vadd.f32 %v1766, %v1878
      %v1918 = vadd.f32 %v1767, %v1881
      %v1919 = vadd.f32 %v1768, %v1883
      %v1920 = vadd.f32 %v1769, %v1886
      %v1921 = vadd.f32 %v1770, %v1888
      %v1922 = vld [vmem:[%s2 + $0x60] sm:$0xf]
      %v1923 = vld [vmem:[%s2 + $0x64] sm:$0xf]
      %v1924 = vld [vmem:[%s2 + $0x68] sm:$0xf]
      %v1925 = vld [vmem:[%s2 + $0x6c] sm:$0xf]
      %v1928 = vunpack.c.l.b16 %v270
      %v1929 = vunpack.c.l.b16 %v271
      %v1930 = vpack.c.b16 %v1929, %v1928
      %v1935 = vunpack.c.l.b16 %v1922
      %v1936 = vunpack.c.l.b16 %v1923
      %v1937 = vunpack.c.l.b16 %v1924
      %v1938 = vunpack.c.l.b16 %v1925
      %v1939 = vpack.c.b16 %v1936, %v1935
      %v1940 = vpack.c.b16 %v1938, %v1937
      %v1944 = vsel %vm728, %v1930, 0
      %1946 = vmatpush.bf16.msra.mxu0 0
      %1947 = vmatpush.bf16.msra.mxu0 0
      %1948 = vmatpush.bf16.msra.mxu0 0
      %1949 = vmatpush.bf16.msra.mxu0 0
      %1950 = vmatpush.bf16.msra.mxu0 0
      %1951 = vmatpush.bf16.msra.mxu0 0
      %1952 = vmatpush.bf16.msra.mxu0 %v1940
      %1953 = vmatpush.bf16.msra.mxu0 %v1939
      %1954 = vmatmul.bf16.gmra.mxu0 %v965
      %v1955 = vpop.f32.mrf.mxu0
      %v1956 = vadd.f32 0.0, %v1955
      %v1957 = vpop.f32.mrf.mxu0
      %v1958 = vadd.f32 0.0, %v1957
      %1959 = vmatmul.bf16.gmra.mxu0 %v968
      %v1960 = vpop.f32.mrf.mxu0
      %v1961 = vadd.f32 0.0, %v1960
      %v1962 = vpop.f32.mrf.mxu0
      %v1963 = vadd.f32 0.0, %v1962
      %1964 = vmatmul.bf16.gmra.mxu0 %v971
      %v1965 = vpop.f32.mrf.mxu0
      %v1966 = vadd.f32 0.0, %v1965
      %v1967 = vpop.f32.mrf.mxu0
      %v1968 = vadd.f32 0.0, %v1967
      %1969 = vmatmul.bf16.gmra.mxu0 %v974
      %v1970 = vpop.f32.mrf.mxu0
      %v1971 = vadd.f32 0.0, %v1970
      %v1972 = vpop.f32.mrf.mxu0
      %v1973 = vadd.f32 0.0, %v1972
      %1974 = vmatmul.bf16.gmra.mxu0 %v977
      %v1975 = vpop.f32.mrf.mxu0
      %v1976 = vadd.f32 0.0, %v1975
      %v1977 = vpop.f32.mrf.mxu0
      %v1978 = vadd.f32 0.0, %v1977
      %1979 = vmatmul.bf16.gmra.mxu0 %v980
      %v1980 = vpop.f32.mrf.mxu0
      %v1981 = vadd.f32 0.0, %v1980
      %v1982 = vpop.f32.mrf.mxu0
      %v1983 = vadd.f32 0.0, %v1982
      %1984 = vmatmul.bf16.gmra.mxu0 %v983
      %v1985 = vpop.f32.mrf.mxu0
      %v1986 = vadd.f32 0.0, %v1985
      %v1987 = vpop.f32.mrf.mxu0
      %v1988 = vadd.f32 0.0, %v1987
      %1989 = vmatmul.bf16.gmra.mxu0 %v986
      %v1990 = vpop.f32.mrf.mxu0
      %v1991 = vadd.f32 0.0, %v1990
      %v1992 = vpop.f32.mrf.mxu0
      %v1993 = vadd.f32 0.0, %v1992
      %1994 = vmatmul.bf16.gmra.mxu0 %v989
      %v1995 = vpop.f32.mrf.mxu0
      %v1996 = vadd.f32 0.0, %v1995
      %v1997 = vpop.f32.mrf.mxu0
      %v1998 = vadd.f32 0.0, %v1997
      %1999 = vmatmul.bf16.gmra.mxu0 %v992
      %v2000 = vpop.f32.mrf.mxu0
      %v2001 = vadd.f32 0.0, %v2000
      %v2002 = vpop.f32.mrf.mxu0
      %v2003 = vadd.f32 0.0, %v2002
      %2004 = vmatmul.bf16.gmra.mxu0 %v995
      %v2005 = vpop.f32.mrf.mxu0
      %v2006 = vadd.f32 0.0, %v2005
      %v2007 = vpop.f32.mrf.mxu0
      %v2008 = vadd.f32 0.0, %v2007
      %2009 = vmatmul.bf16.gmra.mxu0 %v998
      %v2010 = vpop.f32.mrf.mxu0
      %v2011 = vadd.f32 0.0, %v2010
      %v2012 = vpop.f32.mrf.mxu0
      %v2013 = vadd.f32 0.0, %v2012
      %2014 = vmatmul.bf16.gmra.mxu0 %v1001
      %v2015 = vpop.f32.mrf.mxu0
      %v2016 = vadd.f32 0.0, %v2015
      %v2017 = vpop.f32.mrf.mxu0
      %v2018 = vadd.f32 0.0, %v2017
      %2019 = vmatmul.bf16.gmra.mxu0 %v1004
      %v2020 = vpop.f32.mrf.mxu0
      %v2021 = vadd.f32 0.0, %v2020
      %v2022 = vpop.f32.mrf.mxu0
      %v2023 = vadd.f32 0.0, %v2022
      %2024 = vmatmul.bf16.gmra.mxu0 %v1481
      %v2025 = vpop.f32.mrf.mxu0
      %v2026 = vadd.f32 0.0, %v2025
      %v2027 = vpop.f32.mrf.mxu0
      %v2028 = vadd.f32 0.0, %v2027
      %2029 = vmatmul.bf16.gmra.mxu0 %v1944
      %v2030 = vpop.f32.mrf.mxu0
      %v2031 = vadd.f32 0.0, %v2030
      %v2032 = vpop.f32.mrf.mxu0
      %v2033 = vadd.f32 0.0, %v2032
      %2034 = vdwg.mxu0
      %v2035 = vadd.f32 %v1890, %v1956
      %v2036 = vadd.f32 %v1891, %v1958
      %v2037 = vadd.f32 %v1892, %v1961
      %v2038 = vadd.f32 %v1893, %v1963
      %v2039 = vadd.f32 %v1894, %v1966
      %v2040 = vadd.f32 %v1895, %v1968
      %v2041 = vadd.f32 %v1896, %v1971
      %v2042 = vadd.f32 %v1897, %v1973
      %v2043 = vadd.f32 %v1898, %v1976
      %v2044 = vadd.f32 %v1899, %v1978
      %v2045 = vadd.f32 %v1900, %v1981
      %v2046 = vadd.f32 %v1901, %v1983
      %v2047 = vadd.f32 %v1902, %v1986
      %v2048 = vadd.f32 %v1903, %v1988
      %v2049 = vadd.f32 %v1904, %v1991
      %v2050 = vadd.f32 %v1905, %v1993
      %v2051 = vadd.f32 %v1906, %v1996
      %v2052 = vadd.f32 %v1907, %v1998
      %v2053 = vadd.f32 %v1908, %v2001
      %v2054 = vadd.f32 %v1909, %v2003
      %v2055 = vadd.f32 %v1910, %v2006
      %v2056 = vadd.f32 %v1911, %v2008
      %v2057 = vadd.f32 %v1912, %v2011
      %v2058 = vadd.f32 %v1913, %v2013
      %v2059 = vadd.f32 %v1914, %v2016
      %v2060 = vadd.f32 %v1915, %v2018
      %v2061 = vadd.f32 %v1916, %v2021
      %v2062 = vadd.f32 %v1917, %v2023
      %v2063 = vadd.f32 %v1918, %v2026
      %v2064 = vadd.f32 %v1919, %v2028
      %v2065 = vadd.f32 %v1920, %v2031
      %v2066 = vadd.f32 %v1921, %v2033
      %v2068 = vshrl.u32 %v270, 16
      %v2070 = vrot.slane %v2068, 4
      %v2071 = vshll.u32 %v270, 16
      %v2073 = vrot.slane %v2071, 5
      %v2074 = vor.u32 %v2070, %v2073
      %v2075 = vrot.slane %v2074, 4
      %v2077 = vshll.u32 %v271, 16
      %v2079 = vrot.slane %v2077, 5
      %v2080 = vsel %vm279, %v2075, %v2079
      %v2081 = vshrl.u32 %v271, 16
      %v2083 = vrot.slane %v2081, 4
      %v2084 = vor.u32 %v2083, %v2079
      %v2085 = vrot.slane %v2084, 4
      %v2087 = vshll.u32 %v272, 16
      %v2089 = vrot.slane %v2087, 5
      %v2090 = vsel %vm279, %v2085, %v2089
      %v2091 = vld [vmem:[%s2 + $0x70] sm:$0xf]
      %v2092 = vld [vmem:[%s2 + $0x74] sm:$0xf]
      %v2093 = vld [vmem:[%s2 + $0x78] sm:$0xf]
      %v2094 = vld [vmem:[%s2 + $0x7c] sm:$0xf]
      %v2095 = vunpack.c.l.b16 %v2080
      %v2096 = vunpack.c.l.b16 %v2090
      %v2097 = vpack.c.b16 %v2096, %v2095
      %v2102 = vunpack.c.l.b16 %v2091
      %v2103 = vunpack.c.l.b16 %v2092
      %v2104 = vunpack.c.l.b16 %v2093
      %v2105 = vunpack.c.l.b16 %v2094
      %v2106 = vpack.c.b16 %v2103, %v2102
      %v2107 = vpack.c.b16 %v2105, %v2104
      %v2111 = vsel %vm728, %v2097, 0
      %2113 = vmatpush.bf16.msra.mxu0 0
      %2114 = vmatpush.bf16.msra.mxu0 0
      %2115 = vmatpush.bf16.msra.mxu0 0
      %2116 = vmatpush.bf16.msra.mxu0 0
      %2117 = vmatpush.bf16.msra.mxu0 0
      %2118 = vmatpush.bf16.msra.mxu0 0
      %2119 = vmatpush.bf16.msra.mxu0 %v2107
      %2120 = vmatpush.bf16.msra.mxu0 %v2106
      %2121 = vmatmul.bf16.gmra.mxu0 %v736
      %v2122 = vpop.f32.mrf.mxu0
      %v2123 = vadd.f32 0.0, %v2122
      %v2124 = vpop.f32.mrf.mxu0
      %v2125 = vadd.f32 0.0, %v2124
      %2126 = vmatmul.bf16.gmra.mxu0 %v739
      %v2127 = vpop.f32.mrf.mxu0
      %v2128 = vadd.f32 0.0, %v2127
      %v2129 = vpop.f32.mrf.mxu0
      %v2130 = vadd.f32 0.0, %v2129
      %2131 = vmatmul.bf16.gmra.mxu0 %v742
      %v2132 = vpop.f32.mrf.mxu0
      %v2133 = vadd.f32 0.0, %v2132
      %v2134 = vpop.f32.mrf.mxu0
      %v2135 = vadd.f32 0.0, %v2134
      %2136 = vmatmul.bf16.gmra.mxu0 %v745
      %v2137 = vpop.f32.mrf.mxu0
      %v2138 = vadd.f32 0.0, %v2137
      %v2139 = vpop.f32.mrf.mxu0
      %v2140 = vadd.f32 0.0, %v2139
      %2141 = vmatmul.bf16.gmra.mxu0 %v748
      %v2142 = vpop.f32.mrf.mxu0
      %v2143 = vadd.f32 0.0, %v2142
      %v2144 = vpop.f32.mrf.mxu0
      %v2145 = vadd.f32 0.0, %v2144
      %2146 = vmatmul.bf16.gmra.mxu0 %v751
      %v2147 = vpop.f32.mrf.mxu0
      %v2148 = vadd.f32 0.0, %v2147
      %v2149 = vpop.f32.mrf.mxu0
      %v2150 = vadd.f32 0.0, %v2149
      %2151 = vmatmul.bf16.gmra.mxu0 %v754
      %v2152 = vpop.f32.mrf.mxu0
      %v2153 = vadd.f32 0.0, %v2152
      %v2154 = vpop.f32.mrf.mxu0
      %v2155 = vadd.f32 0.0, %v2154
      %2156 = vmatmul.bf16.gmra.mxu0 %v757
      %v2157 = vpop.f32.mrf.mxu0
      %v2158 = vadd.f32 0.0, %v2157
      %v2159 = vpop.f32.mrf.mxu0
      %v2160 = vadd.f32 0.0, %v2159
      %2161 = vmatmul.bf16.gmra.mxu0 %v760
      %v2162 = vpop.f32.mrf.mxu0
      %v2163 = vadd.f32 0.0, %v2162
      %v2164 = vpop.f32.mrf.mxu0
      %v2165 = vadd.f32 0.0, %v2164
      %2166 = vmatmul.bf16.gmra.mxu0 %v763
      %v2167 = vpop.f32.mrf.mxu0
      %v2168 = vadd.f32 0.0, %v2167
      %v2169 = vpop.f32.mrf.mxu0
      %v2170 = vadd.f32 0.0, %v2169
      %2171 = vmatmul.bf16.gmra.mxu0 %v766
      %v2172 = vpop.f32.mrf.mxu0
      %v2173 = vadd.f32 0.0, %v2172
      %v2174 = vpop.f32.mrf.mxu0
      %v2175 = vadd.f32 0.0, %v2174
      %2176 = vmatmul.bf16.gmra.mxu0 %v769
      %v2177 = vpop.f32.mrf.mxu0
      %v2178 = vadd.f32 0.0, %v2177
      %v2179 = vpop.f32.mrf.mxu0
      %v2180 = vadd.f32 0.0, %v2179
      %2181 = vmatmul.bf16.gmra.mxu0 %v772
      %v2182 = vpop.f32.mrf.mxu0
      %v2183 = vadd.f32 0.0, %v2182
      %v2184 = vpop.f32.mrf.mxu0
      %v2185 = vadd.f32 0.0, %v2184
      %2186 = vmatmul.bf16.gmra.mxu0 %v775
      %v2187 = vpop.f32.mrf.mxu0
      %v2188 = vadd.f32 0.0, %v2187
      %v2189 = vpop.f32.mrf.mxu0
      %v2190 = vadd.f32 0.0, %v2189
      %2191 = vmatmul.bf16.gmra.mxu0 %v1648
      %v2192 = vpop.f32.mrf.mxu0
      %v2193 = vadd.f32 0.0, %v2192
      %v2194 = vpop.f32.mrf.mxu0
      %v2195 = vadd.f32 0.0, %v2194
      %2196 = vmatmul.bf16.gmra.mxu0 %v2111
      %v2197 = vpop.f32.mrf.mxu0
      %v2198 = vadd.f32 0.0, %v2197
      %v2199 = vpop.f32.mrf.mxu0
      %v2200 = vadd.f32 0.0, %v2199
      %2201 = vdwg.mxu0
      %v2202 = vadd.f32 %v2035, %v2123
      %v2203 = vadd.f32 %v2036, %v2125
      %v2204 = vadd.f32 %v2037, %v2128
      %v2205 = vadd.f32 %v2038, %v2130
      %v2206 = vadd.f32 %v2039, %v2133
      %v2207 = vadd.f32 %v2040, %v2135
      %v2208 = vadd.f32 %v2041, %v2138
      %v2209 = vadd.f32 %v2042, %v2140
      %v2210 = vadd.f32 %v2043, %v2143
      %v2211 = vadd.f32 %v2044, %v2145
      %v2212 = vadd.f32 %v2045, %v2148
      %v2213 = vadd.f32 %v2046, %v2150
      %v2214 = vadd.f32 %v2047, %v2153
      %v2215 = vadd.f32 %v2048, %v2155
      %v2216 = vadd.f32 %v2049, %v2158
      %v2217 = vadd.f32 %v2050, %v2160
      %v2218 = vadd.f32 %v2051, %v2163
      %v2219 = vadd.f32 %v2052, %v2165
      %v2220 = vadd.f32 %v2053, %v2168
      %v2221 = vadd.f32 %v2054, %v2170
      %v2222 = vadd.f32 %v2055, %v2173
      %v2223 = vadd.f32 %v2056, %v2175
      %v2224 = vadd.f32 %v2057, %v2178
      %v2225 = vadd.f32 %v2058, %v2180
      %v2226 = vadd.f32 %v2059, %v2183
      %v2227 = vadd.f32 %v2060, %v2185
      %v2228 = vadd.f32 %v2061, %v2188
      %v2229 = vadd.f32 %v2062, %v2190
      %v2230 = vadd.f32 %v2063, %v2193
      %v2231 = vadd.f32 %v2064, %v2195
      %v2232 = vadd.f32 %v2065, %v2198
      %v2233 = vadd.f32 %v2066, %v2200
      %v2235 = vrot.slane %v270, 5
      %v2236 = vrot.slane %v2235, 4
      %v2237 = vrot.slane %v271, 5
      %v2238 = vsel %vm1113, %v2236, %v2237
      %v2239 = vrot.slane %v2237, 4
      %v2240 = vrot.slane %v272, 5
      %v2241 = vsel %vm1113, %v2239, %v2240
      %v2242 = vld [vmem:[%s2 + $0x80] sm:$0xf]
      %v2243 = vld [vmem:[%s2 + $0x84] sm:$0xf]
      %v2244 = vld [vmem:[%s2 + $0x88] sm:$0xf]
      %v2245 = vld [vmem:[%s2 + $0x8c] sm:$0xf]
      %v2246 = vunpack.c.l.b16 %v2238
      %v2247 = vunpack.c.l.b16 %v2241
      %v2248 = vpack.c.b16 %v2247, %v2246
      %v2253 = vunpack.c.l.b16 %v2242
      %v2254 = vunpack.c.l.b16 %v2243
      %v2255 = vunpack.c.l.b16 %v2244
      %v2256 = vunpack.c.l.b16 %v2245
      %v2257 = vpack.c.b16 %v2254, %v2253
      %v2258 = vpack.c.b16 %v2256, %v2255
      %v2262 = vsel %vm728, %v2248, 0
      %2264 = vmatpush.bf16.msra.mxu0 0
      %2265 = vmatpush.bf16.msra.mxu0 0
      %2266 = vmatpush.bf16.msra.mxu0 0
      %2267 = vmatpush.bf16.msra.mxu0 0
      %2268 = vmatpush.bf16.msra.mxu0 0
      %2269 = vmatpush.bf16.msra.mxu0 0
      %2270 = vmatpush.bf16.msra.mxu0 %v2258
      %2271 = vmatpush.bf16.msra.mxu0 %v2257
      %2272 = vmatmul.bf16.gmra.mxu0 %v1297
      %v2273 = vpop.f32.mrf.mxu0
      %v2274 = vadd.f32 0.0, %v2273
      %v2275 = vpop.f32.mrf.mxu0
      %v2276 = vadd.f32 0.0, %v2275
      %2277 = vmatmul.bf16.gmra.mxu0 %v1300
      %v2278 = vpop.f32.mrf.mxu0
      %v2279 = vadd.f32 0.0, %v2278
      %v2280 = vpop.f32.mrf.mxu0
      %v2281 = vadd.f32 0.0, %v2280
      %2282 = vmatmul.bf16.gmra.mxu0 %v1303
      %v2283 = vpop.f32.mrf.mxu0
      %v2284 = vadd.f32 0.0, %v2283
      %v2285 = vpop.f32.mrf.mxu0
      %v2286 = vadd.f32 0.0, %v2285
      %2287 = vmatmul.bf16.gmra.mxu0 %v1306
      %v2288 = vpop.f32.mrf.mxu0
      %v2289 = vadd.f32 0.0, %v2288
      %v2290 = vpop.f32.mrf.mxu0
      %v2291 = vadd.f32 0.0, %v2290
      %2292 = vmatmul.bf16.gmra.mxu0 %v1309
      %v2293 = vpop.f32.mrf.mxu0
      %v2294 = vadd.f32 0.0, %v2293
      %v2295 = vpop.f32.mrf.mxu0
      %v2296 = vadd.f32 0.0, %v2295
      %2297 = vmatmul.bf16.gmra.mxu0 %v1312
      %v2298 = vpop.f32.mrf.mxu0
      %v2299 = vadd.f32 0.0, %v2298
      %v2300 = vpop.f32.mrf.mxu0
      %v2301 = vadd.f32 0.0, %v2300
      %2302 = vmatmul.bf16.gmra.mxu0 %v1315
      %v2303 = vpop.f32.mrf.mxu0
      %v2304 = vadd.f32 0.0, %v2303
      %v2305 = vpop.f32.mrf.mxu0
      %v2306 = vadd.f32 0.0, %v2305
      %2307 = vmatmul.bf16.gmra.mxu0 %v1318
      %v2308 = vpop.f32.mrf.mxu0
      %v2309 = vadd.f32 0.0, %v2308
      %v2310 = vpop.f32.mrf.mxu0
      %v2311 = vadd.f32 0.0, %v2310
      %2312 = vmatmul.bf16.gmra.mxu0 %v1321
      %v2313 = vpop.f32.mrf.mxu0
      %v2314 = vadd.f32 0.0, %v2313
      %v2315 = vpop.f32.mrf.mxu0
      %v2316 = vadd.f32 0.0, %v2315
      %2317 = vmatmul.bf16.gmra.mxu0 %v1324
      %v2318 = vpop.f32.mrf.mxu0
      %v2319 = vadd.f32 0.0, %v2318
      %v2320 = vpop.f32.mrf.mxu0
      %v2321 = vadd.f32 0.0, %v2320
      %2322 = vmatmul.bf16.gmra.mxu0 %v1327
      %v2323 = vpop.f32.mrf.mxu0
      %v2324 = vadd.f32 0.0, %v2323
      %v2325 = vpop.f32.mrf.mxu0
      %v2326 = vadd.f32 0.0, %v2325
      %2327 = vmatmul.bf16.gmra.mxu0 %v1330
      %v2328 = vpop.f32.mrf.mxu0
      %v2329 = vadd.f32 0.0, %v2328
      %v2330 = vpop.f32.mrf.mxu0
      %v2331 = vadd.f32 0.0, %v2330
      %2332 = vmatmul.bf16.gmra.mxu0 %v1333
      %v2333 = vpop.f32.mrf.mxu0
      %v2334 = vadd.f32 0.0, %v2333
      %v2335 = vpop.f32.mrf.mxu0
      %v2336 = vadd.f32 0.0, %v2335
      %2337 = vmatmul.bf16.gmra.mxu0 %v1336
      %v2338 = vpop.f32.mrf.mxu0
      %v2339 = vadd.f32 0.0, %v2338
      %v2340 = vpop.f32.mrf.mxu0
      %v2341 = vadd.f32 0.0, %v2340
      %2342 = vmatmul.bf16.gmra.mxu0 %v1799
      %v2343 = vpop.f32.mrf.mxu0
      %v2344 = vadd.f32 0.0, %v2343
      %v2345 = vpop.f32.mrf.mxu0
      %v2346 = vadd.f32 0.0, %v2345
      %2347 = vmatmul.bf16.gmra.mxu0 %v2262
      %v2348 = vpop.f32.mrf.mxu0
      %v2349 = vadd.f32 0.0, %v2348
      %v2350 = vpop.f32.mrf.mxu0
      %v2351 = vadd.f32 0.0, %v2350
      %2352 = vdwg.mxu0
      %v2353 = vadd.f32 %v2202, %v2274
      %v2354 = vadd.f32 %v2203, %v2276
      %v2355 = vadd.f32 %v2204, %v2279
      %v2356 = vadd.f32 %v2205, %v2281
      %v2357 = vadd.f32 %v2206, %v2284
      %v2358 = vadd.f32 %v2207, %v2286
      %v2359 = vadd.f32 %v2208, %v2289
      %v2360 = vadd.f32 %v2209, %v2291
      %v2361 = vadd.f32 %v2210, %v2294
      %v2362 = vadd.f32 %v2211, %v2296
      %v2363 = vadd.f32 %v2212, %v2299
      %v2364 = vadd.f32 %v2213, %v2301
      %v2365 = vadd.f32 %v2214, %v2304
      %v2366 = vadd.f32 %v2215, %v2306
      %v2367 = vadd.f32 %v2216, %v2309
      %v2368 = vadd.f32 %v2217, %v2311
      %v2369 = vadd.f32 %v2218, %v2314
      %v2370 = vadd.f32 %v2219, %v2316
      %v2371 = vadd.f32 %v2220, %v2319
      %v2372 = vadd.f32 %v2221, %v2321
      %v2373 = vadd.f32 %v2222, %v2324
      %v2374 = vadd.f32 %v2223, %v2326
      %v2375 = vadd.f32 %v2224, %v2329
      %v2376 = vadd.f32 %v2225, %v2331
      %v2377 = vadd.f32 %v2226, %v2334
      %v2378 = vadd.f32 %v2227, %v2336
      %v2379 = vadd.f32 %v2228, %v2339
      %v2380 = vadd.f32 %v2229, %v2341
      %v2381 = vadd.f32 %v2230, %v2344
      %v2382 = vadd.f32 %v2231, %v2346
      %v2383 = vadd.f32 %v2232, %v2349
      %v2384 = vadd.f32 %v2233, %v2351
      %v2385 = vld [vmem:[%s3] sm:$0x1]
      %v2387 = vperm.slane %v2385, 0
      %v2389 = vadd.f32 %v2353, %v2387
      %v2390 = vadd.f32 %v2354, %v2387
      %v2391 = vadd.f32 %v2355, %v2387
      %v2392 = vadd.f32 %v2356, %v2387
      %v2393 = vadd.f32 %v2357, %v2387
      %v2394 = vadd.f32 %v2358, %v2387
      %v2395 = vadd.f32 %v2359, %v2387
      %v2396 = vadd.f32 %v2360, %v2387
      %v2397 = vadd.f32 %v2361, %v2387
      %v2398 = vadd.f32 %v2362, %v2387
      %v2399 = vadd.f32 %v2363, %v2387
      %v2400 = vadd.f32 %v2364, %v2387
      %v2401 = vadd.f32 %v2365, %v2387
      %v2402 = vadd.f32 %v2366, %v2387
      %v2403 = vadd.f32 %v2367, %v2387
      %v2404 = vadd.f32 %v2368, %v2387
      %v2405 = vadd.f32 %v2369, %v2387
      %v2406 = vadd.f32 %v2370, %v2387
      %v2407 = vadd.f32 %v2371, %v2387
      %v2408 = vadd.f32 %v2372, %v2387
      %v2409 = vadd.f32 %v2373, %v2387
      %v2410 = vadd.f32 %v2374, %v2387
      %v2411 = vadd.f32 %v2375, %v2387
      %v2412 = vadd.f32 %v2376, %v2387
      %v2413 = vadd.f32 %v2377, %v2387
      %v2414 = vadd.f32 %v2378, %v2387
      %v2415 = vadd.f32 %v2379, %v2387
      %v2416 = vadd.f32 %v2380, %v2387
      %v2417 = vadd.f32 %v2381, %v2387
      %v2418 = vadd.f32 %v2382, %v2387
      %v2419 = vadd.f32 %v2383, %v2387
      %v2420 = vadd.f32 %v2384, %v2387
      %v2421 = vld [vmem:[%s212] sm:$0xff]
      %v2422 = vld [vmem:[%s212 + $0x8] sm:$0xff]
      %v2423 = vld [vmem:[%s212 + $0x10] sm:$0xff]
      %v2424 = vld [vmem:[%s212 + $0x18] sm:$0xff]
      %v2425 = vld [vmem:[%s212 + $0x20] sm:$0xff]
      %v2426 = vld [vmem:[%s212 + $0x28] sm:$0xff]
      %v2427 = vld [vmem:[%s212 + $0x30] sm:$0xff]
      %v2428 = vld [vmem:[%s212 + $0x38] sm:$0xff]
      %v2429 = vld [vmem:[%s212 + $0x40] sm:$0xff]
      %v2430 = vld [vmem:[%s212 + $0x48] sm:$0xff]
      %v2431 = vld [vmem:[%s212 + $0x50] sm:$0xff]
      %v2432 = vld [vmem:[%s212 + $0x58] sm:$0xff]
      %v2433 = vld [vmem:[%s212 + $0x60] sm:$0xff]
      %v2434 = vld [vmem:[%s212 + $0x68] sm:$0xff]
      %v2435 = vld [vmem:[%s212 + $0x70] sm:$0xff]
      %v2436 = vld [vmem:[%s212 + $0x78] sm:$0xff]
      %v2437 = vld [vmem:[%s212 + $0x80] sm:$0xff]
      %v2438 = vld [vmem:[%s212 + $0x88] sm:$0xff]
      %v2439 = vld [vmem:[%s212 + $0x90] sm:$0xff]
      %v2440 = vld [vmem:[%s212 + $0x98] sm:$0xff]
      %v2441 = vld [vmem:[%s212 + $0xa0] sm:$0xff]
      %v2442 = vld [vmem:[%s212 + $0xa8] sm:$0xff]
      %v2443 = vld [vmem:[%s212 + $0xb0] sm:$0xff]
      %v2444 = vld [vmem:[%s212 + $0xb8] sm:$0xff]
      %v2445 = vld [vmem:[%s212 + $0xc0] sm:$0xff]
      %v2446 = vld [vmem:[%s212 + $0xc8] sm:$0xff]
      %v2447 = vld [vmem:[%s212 + $0xd0] sm:$0xff]
      %v2448 = vld [vmem:[%s212 + $0xd8] sm:$0xff]
      %v2449 = vld [vmem:[%s212 + $0xe0] sm:$0xff]
      %v2450 = vld [vmem:[%s212 + $0xe8] sm:$0xff]
      %v2451 = vld [vmem:[%s212 + $0xf0] sm:$0xff]
      %v2452 = vld [vmem:[%s212 + $0xf8] sm:$0xff]
      %v2453 = vadd.f32 %v2421, %v2389
      %v2454 = vadd.f32 %v2422, %v2390
      %v2455 = vadd.f32 %v2423, %v2391
      %v2456 = vadd.f32 %v2424, %v2392
      %v2457 = vadd.f32 %v2425, %v2393
      %v2458 = vadd.f32 %v2426, %v2394
      %v2459 = vadd.f32 %v2427, %v2395
      %v2460 = vadd.f32 %v2428, %v2396
      %v2461 = vadd.f32 %v2429, %v2397
      %v2462 = vadd.f32 %v2430, %v2398
      %v2463 = vadd.f32 %v2431, %v2399
      %v2464 = vadd.f32 %v2432, %v2400
      %v2465 = vadd.f32 %v2433, %v2401
      %v2466 = vadd.f32 %v2434, %v2402
      %v2467 = vadd.f32 %v2435, %v2403
      %v2468 = vadd.f32 %v2436, %v2404
      %v2469 = vadd.f32 %v2437, %v2405
      %v2470 = vadd.f32 %v2438, %v2406
      %v2471 = vadd.f32 %v2439, %v2407
      %v2472 = vadd.f32 %v2440, %v2408
      %v2473 = vadd.f32 %v2441, %v2409
      %v2474 = vadd.f32 %v2442, %v2410
      %v2475 = vadd.f32 %v2443, %v2411
      %v2476 = vadd.f32 %v2444, %v2412
      %v2477 = vadd.f32 %v2445, %v2413
      %v2478 = vadd.f32 %v2446, %v2414
      %v2479 = vadd.f32 %v2447, %v2415
      %v2480 = vadd.f32 %v2448, %v2416
      %v2481 = vadd.f32 %v2449, %v2417
      %v2482 = vadd.f32 %v2450, %v2418
      %v2483 = vadd.f32 %v2451, %v2419
      %v2484 = vadd.f32 %v2452, %v2420
      %2485 = vst.msk [vmem:[%s217] sm:$0xff] %vm728, %v2453
      %2486 = vst.msk [vmem:[%s217 + $0x8] sm:$0xff] %vm728, %v2454
      %2487 = vst.msk [vmem:[%s217 + $0x10] sm:$0xff] %vm728, %v2455
      %2488 = vst.msk [vmem:[%s217 + $0x18] sm:$0xff] %vm728, %v2456
      %2489 = vst.msk [vmem:[%s217 + $0x20] sm:$0xff] %vm728, %v2457
      %2490 = vst.msk [vmem:[%s217 + $0x28] sm:$0xff] %vm728, %v2458
      %2491 = vst.msk [vmem:[%s217 + $0x30] sm:$0xff] %vm728, %v2459
      %2492 = vst.msk [vmem:[%s217 + $0x38] sm:$0xff] %vm728, %v2460
      %2493 = vst.msk [vmem:[%s217 + $0x40] sm:$0xff] %vm728, %v2461
      %2494 = vst.msk [vmem:[%s217 + $0x48] sm:$0xff] %vm728, %v2462
      %2495 = vst.msk [vmem:[%s217 + $0x50] sm:$0xff] %vm728, %v2463
      %2496 = vst.msk [vmem:[%s217 + $0x58] sm:$0xff] %vm728, %v2464
      %2497 = vst.msk [vmem:[%s217 + $0x60] sm:$0xff] %vm728, %v2465
      %2498 = vst.msk [vmem:[%s217 + $0x68] sm:$0xff] %vm728, %v2466
      %2499 = vst.msk [vmem:[%s217 + $0x70] sm:$0xff] %vm728, %v2467
      %2500 = vst.msk [vmem:[%s217 + $0x78] sm:$0xff] %vm728, %v2468
      %2501 = vst.msk [vmem:[%s217 + $0x80] sm:$0xff] %vm728, %v2469
      %2502 = vst.msk [vmem:[%s217 + $0x88] sm:$0xff] %vm728, %v2470
      %2503 = vst.msk [vmem:[%s217 + $0x90] sm:$0xff] %vm728, %v2471
      %2504 = vst.msk [vmem:[%s217 + $0x98] sm:$0xff] %vm728, %v2472
      %2505 = vst.msk [vmem:[%s217 + $0xa0] sm:$0xff] %vm728, %v2473
      %2506 = vst.msk [vmem:[%s217 + $0xa8] sm:$0xff] %vm728, %v2474
      %2507 = vst.msk [vmem:[%s217 + $0xb0] sm:$0xff] %vm728, %v2475
      %2508 = vst.msk [vmem:[%s217 + $0xb8] sm:$0xff] %vm728, %v2476
      %2509 = vst.msk [vmem:[%s217 + $0xc0] sm:$0xff] %vm728, %v2477
      %2510 = vst.msk [vmem:[%s217 + $0xc8] sm:$0xff] %vm728, %v2478
      %2511 = vst.msk [vmem:[%s217 + $0xd0] sm:$0xff] %vm728, %v2479
      %2512 = vst.msk [vmem:[%s217 + $0xd8] sm:$0xff] %vm728, %v2480
      %2513 = vst.msk [vmem:[%s217 + $0xe0] sm:$0xff] %vm728, %v2481
      %2514 = vst.msk [vmem:[%s217 + $0xe8] sm:$0xff] %vm728, %v2482
      %2515 = vst.msk [vmem:[%s217 + $0xf0] sm:$0xff] %vm728, %v2483
      %2516 = vst.msk [vmem:[%s217 + $0xf8] sm:$0xff] %vm728, %v2484
      %p2517 = scmp.lt.s32.totalorder %s15, 1
      %s2518 = scalar_select %p2517, %s15, 1
      %s2519 = smul.addr %s2518, 32
      %s2520 = smul.addr %s2519, 8
      %s2521 = scalar_lea.vmem %s4, %s2520
      // Predicated region
      $region37: #{transformer_stage.13} parent=35 // pred_check
        %p2522 = pneg %p127
      $region38: #{transformer_stage.13} parent=35 // pred_check_branch
        %2524 = sbr.rel (%p2522) target = $region40
      $region39: #{transformer_stage.13} parent=35 // pred_region
        _
      $region40: #{transformer_stage.13} parent=35 // pred_fallthru
        _
    $region36: #{transformer_stage.13} parent=5 // pred_fallthru
      _
    %p2525 = scmp.le.s32.totalorder 2, %s10
    // Predicated region
    $region41: #{transformer_stage.13} parent=5 // pred_check
      %p2526 = pneg %p2525
    $region42: #{transformer_stage.13} parent=5 // pred_check_branch
      %2528 = sbr.rel (%p2526) target = $region44
    $region43: #{transformer_stage.13} parent=5 // pred_region
      %s2529 = ssub.s32 %s10, 2
      // Predicated region
      $region45: #{transformer_stage.13} parent=43 // pred_check
        %p2530 = pneg %p133
      $region46: #{transformer_stage.13} parent=43 // pred_check_branch
        %2532 = sbr.rel (%p2530) target = $region48
      $region47: #{transformer_stage.13} parent=43 // pred_region
        %p2533 = scmp.lt.s32.totalorder %s16, 1
        %s2534 = scalar_select %p2533, %s16, 1
        %s2535 = smul.addr %s2534, 32
        %s2536 = smul.addr %s2535, 8
        %s2537 = scalar_lea.vmem %s4, %s2536
      $region48: #{transformer_stage.13} parent=43 // pred_fallthru
        _
    $region44: #{transformer_stage.13} parent=5 // pred_fallthru
      _
  $region6: #{transformer_stage.13} parent=0 // loop_footer
    %s14 = sadd.s32 1, %s10
  $region7: #{transformer_stage.13} parent=0 // loop_footer_branch
    %9 = sbr.rel target = $region3
  $region8: #{transformer_stage.13} parent=0 // loop_exit
    _

</llo_original>
